<compile_context>
chip_gen: v6e
topology: v6e:2x2x1
jax: 0.10.0
libtpu: 0.0.40
codegen_flags: <defaults>
</compile_context>

<pallas_src>
import functools
import numpy as np
import jax
import jax.numpy as jnp
from jax.experimental import pallas as pl
from jax.experimental.pallas import tpu as pltpu

LANE = 128
TAIL = 8   # extra zero rows appended so every flat tap window stays in bounds


def basic_block_kernel(xp_ref, mask_ref, w1_ref, s1_ref, b1_ref,
                       w2_ref, s2_ref, b2_ref, out_ref,
                       acc1_ref, y_ref, *, wrow, m1, m2, cdt):
    # xp_ref  : ((H+4)*(W+4)+TAIL, Cp) f32  flattened input, zero-padded by 2
    # mask_ref: (m1, 1) f32                 1.0 on conv2's interior, 0.0 on the
    #                                       zero ring / junk columns
    # w*_ref  : (9, Cp, Cp) cdt             conv taps, flattened (kh*3+kw)
    # s*/b*   : (1, Cp) f32                 folded BatchNorm scale / bias
    # out_ref : (m2, Cp) f32                flattened H x (W+4) output block
    # acc1_ref: (m1, Cp) f32                conv1 accumulator
    # y_ref   : (m1+TAIL, Cp) cdt           relu(bn1(conv1)) with zero ring
    cp = acc1_ref.shape[-1]

    # ---- conv1: 9 flat-window MXU matmuls over the (H+2) x (W+4) grid.
    # The 3 kw taps of each kh row are summed in registers; the accumulator is
    # touched only 3 times (store) + 2 times (load).
    for kh in range(3):
        base = kh * wrow
        row = None
        for kw in range(3):
            patch = xp_ref[base + kw:base + kw + m1, :].astype(cdt)
            tap = jnp.dot(patch, w1_ref[kh * 3 + kw],
                          preferred_element_type=jnp.float32)
            row = tap if row is None else row + tap
        if kh == 0:
            acc1_ref[...] = row
        else:
            acc1_ref[...] += row

    # ---- bn1 (folded affine) + relu; zero the 1-pixel ring / junk columns
    # (lane-broadcast mask multiply) so conv2 sees exactly the reference's
    # zero padding.  Single aligned store of the intermediate.
    y_ref[0:m1, :] = (jnp.maximum(acc1_ref[...] * s1_ref[...] + b1_ref[...],
                                  0.0) * mask_ref[...]).astype(cdt)
    y_ref[m1:m1 + TAIL, :] = jnp.zeros((TAIL, cp), cdt)

    # ---- conv2: same flat-window pattern, accumulated straight into the f32
    # output block (no second accumulator scratch).
    for kh in range(3):
        base = kh * wrow
        row = None
        for kw in range(3):
            patch = y_ref[base + kw:base + kw + m2, :]
            tap = jnp.dot(patch, w2_ref[kh * 3 + kw],
                          preferred_element_type=jnp.float32)
            row = tap if row is None else row + tap
        if kh == 0:
            out_ref[...] = row
        else:
            out_ref[...] += row

    # ---- bn2 + residual add (full-precision f32 identity) + relu.
    # dropout(p=0.25) is identity in eval mode.
    identity = xp_ref[2 * wrow + 2:2 * wrow + 2 + m2, :]
    out_ref[...] = jnp.maximum(out_ref[...] * s2_ref[...] + b2_ref[...]
                               + identity, 0.0)


def basic_block_forward(x_nchw, params, *, compute_dtype=jnp.bfloat16):
    """Fused BasicBlock forward (eval mode). x_nchw: (N, C, H, W) float32."""
    w1, g1, be1, rm1, rv1, w2, g2, be2, rm2, rv2 = params
    eps = 1e-5

    # Fold BN (eval mode) into per-channel scale / bias (f32).
    s1 = g1 / jnp.sqrt(rv1 + eps)
    b1 = be1 - rm1 * s1
    s2 = g2 / jnp.sqrt(rv2 + eps)
    b2 = be2 - rm2 * s2

    N, C, H, W = x_nchw.shape
    assert C == w1.shape[-1], "no downsample: in_planes must equal planes"
    Cp = ((C + LANE - 1) // LANE) * LANE   # lane-dense channel count
    wrow = W + 4                           # padded image width (2 each side)
    M0 = (H + 4) * wrow                    # flattened padded-input rows
    M1 = (H + 2) * wrow                    # conv1 / intermediate rows
    M2 = H * wrow                          # conv2 / output rows

    # NCHW -> NHWC (channels on lanes), zero-pad spatial by 2 and channels to
    # Cp, flatten (row, col) -> rows, append TAIL zero rows.  Input stays f32
    # so the residual uses the full-precision identity; matmul patches are
    # cast to compute_dtype inside the kernel.
    x = jnp.transpose(x_nchw, (0, 2, 3, 1)).astype(jnp.float32)
    xp = jnp.pad(x, ((0, 0), (2, 2), (2, 2), (0, Cp - C))).reshape(N, M0, Cp)
    xp = jnp.pad(xp, ((0, 0), (0, TAIL), (0, 0)))

    def pack_w(w):   # (3,3,Cin,Cout) -> (9, Cp, Cp); padded channels are zero
        wp = jnp.pad(w, ((0, 0), (0, 0), (0, Cp - C), (0, Cp - C)))
        return wp.reshape(9, Cp, Cp).astype(compute_dtype)

    def pack_v(v):   # (C,) -> (1, Cp) f32; padded channels stay exactly zero
        return jnp.pad(v, ((0, Cp - C),)).reshape(1, Cp).astype(jnp.float32)

    w1p, w2p = pack_w(w1), pack_w(w2)
    s1p, b1p, s2p, b2p = pack_v(s1), pack_v(b1), pack_v(s2), pack_v(b2)

    # Interior mask over the (H+2) x (W+4) full-width conv1 grid.
    rr = np.arange(H + 2)[:, None]
    cc = np.arange(wrow)[None, :]
    mask_np = ((rr >= 1) & (rr <= H) & (cc >= 1) & (cc <= W)).astype(np.float32)
    mask = jnp.asarray(mask_np.reshape(M1, 1))

    # Generation-aware VMEM budget: per-step working set (double-buffered
    # blocks, including both conv-weight blocks) with 2x headroom, capped by
    # the chip's physical VMEM (64 MiB on v7x, 128 MiB on v5e/v6e).
    itm = np.dtype(compute_dtype).itemsize
    ws = (2 * (M0 + TAIL) * Cp * 4        # input block (f32), double-buffered
          + 2 * M2 * Cp * 4               # output block, double-buffered
          + 2 * 2 * 9 * Cp * Cp * itm     # both conv weights, double-buffered
          + 2 * M1 * LANE * 4             # mask (lane-padded), double-buffered
          + 2 * 4 * 8 * Cp * 4            # scales / biases (sublane-padded)
          + M1 * Cp * 4                   # conv1 accumulator scratch
          + (M1 + TAIL) * Cp * itm)       # intermediate y scratch
    try:
        cap = int(getattr(pltpu.get_tpu_info(), "vmem_capacity_bytes",
                          64 * 2 ** 20))
    except Exception:
        cap = 64 * 2 ** 20
    vmem_limit = int(min(max(2 * ws, 16 * 2 ** 20), int(0.8 * cap)))

    kernel = functools.partial(basic_block_kernel, wrow=wrow, m1=M1, m2=M2,
                               cdt=compute_dtype)

    out = pl.pallas_call(
        kernel,
        out_shape=jax.ShapeDtypeStruct((N, M2, Cp), jnp.float32),
        grid_spec=pltpu.PrefetchScalarGridSpec(
            num_scalar_prefetch=0,
            grid=(N,),
            in_specs=[
                pl.BlockSpec((None, M0 + TAIL, Cp), lambda n: (n, 0, 0)),
                pl.BlockSpec((M1, 1), lambda n: (0, 0)),
                pl.BlockSpec((9, Cp, Cp), lambda n: (0, 0, 0)),
                pl.BlockSpec((1, Cp), lambda n: (0, 0)),
                pl.BlockSpec((1, Cp), lambda n: (0, 0)),
                pl.BlockSpec((9, Cp, Cp), lambda n: (0, 0, 0)),
                pl.BlockSpec((1, Cp), lambda n: (0, 0)),
                pl.BlockSpec((1, Cp), lambda n: (0, 0)),
            ],
            out_specs=pl.BlockSpec((None, M2, Cp), lambda n: (n, 0, 0)),
            scratch_shapes=[
                pltpu.VMEM((M1, Cp), jnp.float32),           # conv1 accumulator
                pltpu.VMEM((M1 + TAIL, Cp), compute_dtype),  # intermediate y
            ]),
        compiler_params=pltpu.CompilerParams(
            dimension_semantics=("parallel",),
            vmem_limit_bytes=vmem_limit),
    )(xp, mask, w1p, s1p, b1p, w2p, s2p, b2p)

    # Drop junk columns / channel padding, back to NCHW.
    out = out.reshape(N, H, wrow, Cp)[:, :, :W, :C]
    return jnp.transpose(out, (0, 3, 1, 2))


def ref_forward(x_nchw, params):
    """Pure-JAX (XLA) reference for correctness checking."""
    w1, g1, be1, rm1, rv1, w2, g2, be2, rm2, rv2 = params
    eps = 1e-5
    x = jnp.transpose(x_nchw, (0, 2, 3, 1))

    def conv3x3(x, w):
        return jax.lax.conv_general_dilated(
            x, w, window_strides=(1, 1), padding=((1, 1), (1, 1)),
            dimension_numbers=('NHWC', 'HWIO', 'NHWC'),
            precision=jax.lax.Precision.HIGHEST)

    def bn(x, g, b, rm, rv):
        return (x - rm) / jnp.sqrt(rv + eps) * g + b

    out = jax.nn.relu(bn(conv3x3(x, w1), g1, be1, rm1, rv1))
    out = bn(conv3x3(out, w2), g2, be2, rm2, rv2)
    out = jax.nn.relu(out + x)
    return jnp.transpose(out, (0, 3, 1, 2))


def init_params(key, in_planes, planes):
    ks = jax.random.split(key, 8)
    w1 = 0.1 * jax.random.normal(ks[0], (3, 3, in_planes, planes), jnp.float32)
    w2 = 0.1 * jax.random.normal(ks[1], (3, 3, planes, planes), jnp.float32)
    g1 = 1.0 + 0.1 * jax.random.normal(ks[2], (planes,), jnp.float32)
    be1 = 0.1 * jax.random.normal(ks[3], (planes,), jnp.float32)
    rm1 = 0.05 * jax.random.normal(ks[4], (planes,), jnp.float32)
    rv1 = 1.0 + 0.1 * jnp.abs(jax.random.normal(ks[5], (planes,), jnp.float32))
    g2 = 1.0 + 0.1 * jax.random.normal(ks[6], (planes,), jnp.float32)
    be2 = 0.1 * jax.random.normal(ks[7], (planes,), jnp.float32)
    rm2 = jnp.zeros((planes,), jnp.float32)
    rv2 = jnp.ones((planes,), jnp.float32)
    return (w1, g1, be1, rm1, rv1, w2, g2, be2, rm2, rv2)


if __name__ == "__main__":
    key = jax.random.PRNGKey(0)
    k_x, k_p = jax.random.split(key)

    N, C, H, W = 2, 4, 16, 16          # in_planes = planes = 4, stride=1
    x = jax.random.normal(k_x, (N, C, H, W), jnp.float32)
    params = init_params(k_p, C, C)

    ref = jax.block_until_ready(ref_forward(x, params))

    # f32 compute path vs. the XLA reference.
    out_f32 = jax.block_until_ready(
        basic_block_forward(x, params, compute_dtype=jnp.float32))
    assert out_f32.shape == (N, C, H, W)
    assert jnp.allclose(out_f32, ref, atol=1e-2, rtol=1e-2), "f32 mismatch vs reference"

    # Optimized path: bf16 matmul inputs (MXU-native), f32 accumulate/residual.
    out_bf16 = jax.block_until_ready(
        basic_block_forward(x, params, compute_dtype=jnp.bfloat16))
    assert out_bf16.shape == (N, C, H, W)
    assert jnp.allclose(out_bf16, ref, atol=7e-2, rtol=7e-2), "bf16 mismatch vs reference"

    print("KERNEL_OK")
</pallas_src>

<mosaic_0001>
module attributes {stable_mosaic.version = 11 : i64} {
  func.func @basic_block_kernel(%arg0: i32, %arg1: memref<1x408x128xf32, #tpu.memory_space<vmem>>, %arg2: memref<360x1xf32, #tpu.memory_space<vmem>>, %arg3: memref<9x128x128xf32, #tpu.memory_space<vmem>>, %arg4: memref<1x128xf32, #tpu.memory_space<vmem>>, %arg5: memref<1x128xf32, #tpu.memory_space<vmem>>, %arg6: memref<9x128x128xf32, #tpu.memory_space<vmem>>, %arg7: memref<1x128xf32, #tpu.memory_space<vmem>>, %arg8: memref<1x128xf32, #tpu.memory_space<vmem>>, %arg9: memref<1x320x128xf32, #tpu.memory_space<vmem>>, %arg10: memref<360x128xf32, #tpu.memory_space<vmem>>, %arg11: memref<368x128xf32, #tpu.memory_space<vmem>>) attributes {dimension_semantics = [#tpu.dimension_semantics<parallel>], iteration_bounds = array<i64: 2>, scalar_prefetch = 0 : i64, scratch_operands = 2 : i64, tpu.core_type = #tpu.core_type<tc>, window_params = [{transform_indices = @transform_0, window_bounds = array<i64: 1, 408, 128>}, {pipeline_mode = #tpu.pipeline_mode<synchronous>, transform_indices = @transform_1, window_bounds = array<i64: 360, 1>}, {pipeline_mode = #tpu.pipeline_mode<synchronous>, transform_indices = @transform_2, window_bounds = array<i64: 9, 128, 128>}, {pipeline_mode = #tpu.pipeline_mode<synchronous>, transform_indices = @transform_3, window_bounds = array<i64: 1, 128>}, {pipeline_mode = #tpu.pipeline_mode<synchronous>, transform_indices = @transform_4, window_bounds = array<i64: 1, 128>}, {pipeline_mode = #tpu.pipeline_mode<synchronous>, transform_indices = @transform_5, window_bounds = array<i64: 9, 128, 128>}, {pipeline_mode = #tpu.pipeline_mode<synchronous>, transform_indices = @transform_6, window_bounds = array<i64: 1, 128>}, {pipeline_mode = #tpu.pipeline_mode<synchronous>, transform_indices = @transform_7, window_bounds = array<i64: 1, 128>}, {transform_indices = @transform_8, window_bounds = array<i64: 1, 320, 128>}]} {
    %c0 = arith.constant 0 : index
    %c0_0 = arith.constant 0 : index
    %c0_1 = arith.constant 0 : index
    %0 = vector.load %arg1[%c0, %c0_0, %c0_1] : memref<1x408x128xf32, #tpu.memory_space<vmem>>, vector<1x360x128xf32>
    %1 = vector.shape_cast %0 : vector<1x360x128xf32> to vector<360x128xf32>
    %c0_2 = arith.constant 0 : index
    %c0_3 = arith.constant 0 : index
    %c0_4 = arith.constant 0 : index
    %2 = vector.load %arg3[%c0_2, %c0_3, %c0_4] : memref<9x128x128xf32, #tpu.memory_space<vmem>>, vector<1x128x128xf32>
    %3 = vector.shape_cast %2 : vector<1x128x128xf32> to vector<128x128xf32>
    %cst = arith.constant dense<0.000000e+00> : vector<360x128xf32>
    %4 = tpu.matmul %1, %3, %cst {dimension_numbers = #tpu.dot_dimension_numbers<[1], [0], [0], [1], [0, 0, 1, 1], [], []>} : vector<360x128xf32>, vector<128x128xf32>, vector<360x128xf32> -> vector<360x128xf32>
    %c0_5 = arith.constant 0 : index
    %c1 = arith.constant 1 : index
    %c0_6 = arith.constant 0 : index
    %5 = vector.load %arg1[%c0_5, %c1, %c0_6] : memref<1x408x128xf32, #tpu.memory_space<vmem>>, vector<1x360x128xf32>
    %6 = vector.shape_cast %5 : vector<1x360x128xf32> to vector<360x128xf32>
    %c1_7 = arith.constant 1 : index
    %c0_8 = arith.constant 0 : index
    %c0_9 = arith.constant 0 : index
    %7 = vector.load %arg3[%c1_7, %c0_8, %c0_9] : memref<9x128x128xf32, #tpu.memory_space<vmem>>, vector<1x128x128xf32>
    %8 = vector.shape_cast %7 : vector<1x128x128xf32> to vector<128x128xf32>
    %cst_10 = arith.constant dense<0.000000e+00> : vector<360x128xf32>
    %9 = tpu.matmul %6, %8, %cst_10 {dimension_numbers = #tpu.dot_dimension_numbers<[1], [0], [0], [1], [0, 0, 1, 1], [], []>} : vector<360x128xf32>, vector<128x128xf32>, vector<360x128xf32> -> vector<360x128xf32>
    %10 = arith.addf %4, %9 : vector<360x128xf32>
    %c0_11 = arith.constant 0 : index
    %c2 = arith.constant 2 : index
    %c0_12 = arith.constant 0 : index
    %11 = vector.load %arg1[%c0_11, %c2, %c0_12] : memref<1x408x128xf32, #tpu.memory_space<vmem>>, vector<1x360x128xf32>
    %12 = vector.shape_cast %11 : vector<1x360x128xf32> to vector<360x128xf32>
    %c2_13 = arith.constant 2 : index
    %c0_14 = arith.constant 0 : index
    %c0_15 = arith.constant 0 : index
    %13 = vector.load %arg3[%c2_13, %c0_14, %c0_15] : memref<9x128x128xf32, #tpu.memory_space<vmem>>, vector<1x128x128xf32>
    %14 = vector.shape_cast %13 : vector<1x128x128xf32> to vector<128x128xf32>
    %cst_16 = arith.constant dense<0.000000e+00> : vector<360x128xf32>
    %15 = tpu.matmul %12, %14, %cst_16 {dimension_numbers = #tpu.dot_dimension_numbers<[1], [0], [0], [1], [0, 0, 1, 1], [], []>} : vector<360x128xf32>, vector<128x128xf32>, vector<360x128xf32> -> vector<360x128xf32>
    %16 = arith.addf %10, %15 : vector<360x128xf32>
    %c0_17 = arith.constant 0 : index
    %c0_18 = arith.constant 0 : index
    %17 = vector.load %arg10[%c0_17, %c0_18] : memref<360x128xf32, #tpu.memory_space<vmem>>, vector<360x128xf32>
    tpu.vector_store %arg10[%c0_17, %c0_18], %16 {strides = array<i32>} : memref<360x128xf32, #tpu.memory_space<vmem>>, vector<360x128xf32>,
    %c0_19 = arith.constant 0 : index
    %c20 = arith.constant 20 : index
    %c0_20 = arith.constant 0 : index
    %18 = vector.load %arg1[%c0_19, %c20, %c0_20] : memref<1x408x128xf32, #tpu.memory_space<vmem>>, vector<1x360x128xf32>
    %19 = vector.shape_cast %18 : vector<1x360x128xf32> to vector<360x128xf32>
    %c3 = arith.constant 3 : index
    %c0_21 = arith.constant 0 : index
    %c0_22 = arith.constant 0 : index
    %20 = vector.load %arg3[%c3, %c0_21, %c0_22] : memref<9x128x128xf32, #tpu.memory_space<vmem>>, vector<1x128x128xf32>
    %21 = vector.shape_cast %20 : vector<1x128x128xf32> to vector<128x128xf32>
    %cst_23 = arith.constant dense<0.000000e+00> : vector<360x128xf32>
    %22 = tpu.matmul %19, %21, %cst_23 {dimension_numbers = #tpu.dot_dimension_numbers<[1], [0], [0], [1], [0, 0, 1, 1], [], []>} : vector<360x128xf32>, vector<128x128xf32>, vector<360x128xf32> -> vector<360x128xf32>
    %c0_24 = arith.constant 0 : index
    %c21 = arith.constant 21 : index
    %c0_25 = arith.constant 0 : index
    %23 = vector.load %arg1[%c0_24, %c21, %c0_25] : memref<1x408x128xf32, #tpu.memory_space<vmem>>, vector<1x360x128xf32>
    %24 = vector.shape_cast %23 : vector<1x360x128xf32> to vector<360x128xf32>
    %c4 = arith.constant 4 : index
    %c0_26 = arith.constant 0 : index
    %c0_27 = arith.constant 0 : index
    %25 = vector.load %arg3[%c4, %c0_26, %c0_27] : memref<9x128x128xf32, #tpu.memory_space<vmem>>, vector<1x128x128xf32>
    %26 = vector.shape_cast %25 : vector<1x128x128xf32> to vector<128x128xf32>
    %cst_28 = arith.constant dense<0.000000e+00> : vector<360x128xf32>
    %27 = tpu.matmul %24, %26, %cst_28 {dimension_numbers = #tpu.dot_dimension_numbers<[1], [0], [0], [1], [0, 0, 1, 1], [], []>} : vector<360x128xf32>, vector<128x128xf32>, vector<360x128xf32> -> vector<360x128xf32>
    %28 = arith.addf %22, %27 : vector<360x128xf32>
    %c0_29 = arith.constant 0 : index
    %c22 = arith.constant 22 : index
    %c0_30 = arith.constant 0 : index
    %29 = vector.load %arg1[%c0_29, %c22, %c0_30] : memref<1x408x128xf32, #tpu.memory_space<vmem>>, vector<1x360x128xf32>
    %30 = vector.shape_cast %29 : vector<1x360x128xf32> to vector<360x128xf32>
    %c5 = arith.constant 5 : index
    %c0_31 = arith.constant 0 : index
    %c0_32 = arith.constant 0 : index
    %31 = vector.load %arg3[%c5, %c0_31, %c0_32] : memref<9x128x128xf32, #tpu.memory_space<vmem>>, vector<1x128x128xf32>
    %32 = vector.shape_cast %31 : vector<1x128x128xf32> to vector<128x128xf32>
    %cst_33 = arith.constant dense<0.000000e+00> : vector<360x128xf32>
    %33 = tpu.matmul %30, %32, %cst_33 {dimension_numbers = #tpu.dot_dimension_numbers<[1], [0], [0], [1], [0, 0, 1, 1], [], []>} : vector<360x128xf32>, vector<128x128xf32>, vector<360x128xf32> -> vector<360x128xf32>
    %34 = arith.addf %28, %33 : vector<360x128xf32>
    %c0_34 = arith.constant 0 : index
    %c0_35 = arith.constant 0 : index
    %35 = vector.load %arg10[%c0_34, %c0_35] : memref<360x128xf32, #tpu.memory_space<vmem>>, vector<360x128xf32>
    %36 = arith.addf %35, %34 : vector<360x128xf32>
    %c0_36 = arith.constant 0 : index
    %c0_37 = arith.constant 0 : index
    %37 = vector.load %arg10[%c0_36, %c0_37] : memref<360x128xf32, #tpu.memory_space<vmem>>, vector<360x128xf32>
    tpu.vector_store %arg10[%c0_36, %c0_37], %36 {strides = array<i32>} : memref<360x128xf32, #tpu.memory_space<vmem>>, vector<360x128xf32>,
    %c0_38 = arith.constant 0 : index
    %c40 = arith.constant 40 : index
    %c0_39 = arith.constant 0 : index
    %38 = vector.load %arg1[%c0_38, %c40, %c0_39] : memref<1x408x128xf32, #tpu.memory_space<vmem>>, vector<1x360x128xf32>
    %39 = vector.shape_cast %38 : vector<1x360x128xf32> to vector<360x128xf32>
    %c6 = arith.constant 6 : index
    %c0_40 = arith.constant 0 : index
    %c0_41 = arith.constant 0 : index
    %40 = vector.load %arg3[%c6, %c0_40, %c0_41] : memref<9x128x128xf32, #tpu.memory_space<vmem>>, vector<1x128x128xf32>
    %41 = vector.shape_cast %40 : vector<1x128x128xf32> to vector<128x128xf32>
    %cst_42 = arith.constant dense<0.000000e+00> : vector<360x128xf32>
    %42 = tpu.matmul %39, %41, %cst_42 {dimension_numbers = #tpu.dot_dimension_numbers<[1], [0], [0], [1], [0, 0, 1, 1], [], []>} : vector<360x128xf32>, vector<128x128xf32>, vector<360x128xf32> -> vector<360x128xf32>
    %c0_43 = arith.constant 0 : index
    %c41 = arith.constant 41 : index
    %c0_44 = arith.constant 0 : index
    %43 = vector.load %arg1[%c0_43, %c41, %c0_44] : memref<1x408x128xf32, #tpu.memory_space<vmem>>, vector<1x360x128xf32>
    %44 = vector.shape_cast %43 : vector<1x360x128xf32> to vector<360x128xf32>
    %c7 = arith.constant 7 : index
    %c0_45 = arith.constant 0 : index
    %c0_46 = arith.constant 0 : index
    %45 = vector.load %arg3[%c7, %c0_45, %c0_46] : memref<9x128x128xf32, #tpu.memory_space<vmem>>, vector<1x128x128xf32>
    %46 = vector.shape_cast %45 : vector<1x128x128xf32> to vector<128x128xf32>
    %cst_47 = arith.constant dense<0.000000e+00> : vector<360x128xf32>
    %47 = tpu.matmul %44, %46, %cst_47 {dimension_numbers = #tpu.dot_dimension_numbers<[1], [0], [0], [1], [0, 0, 1, 1], [], []>} : vector<360x128xf32>, vector<128x128xf32>, vector<360x128xf32> -> vector<360x128xf32>
    %48 = arith.addf %42, %47 : vector<360x128xf32>
    %c0_48 = arith.constant 0 : index
    %c42 = arith.constant 42 : index
    %c0_49 = arith.constant 0 : index
    %49 = vector.load %arg1[%c0_48, %c42, %c0_49] : memref<1x408x128xf32, #tpu.memory_space<vmem>>, vector<1x360x128xf32>
    %50 = vector.shape_cast %49 : vector<1x360x128xf32> to vector<360x128xf32>
    %c8 = arith.constant 8 : index
    %c0_50 = arith.constant 0 : index
    %c0_51 = arith.constant 0 : index
    %51 = vector.load %arg3[%c8, %c0_50, %c0_51] : memref<9x128x128xf32, #tpu.memory_space<vmem>>, vector<1x128x128xf32>
    %52 = vector.shape_cast %51 : vector<1x128x128xf32> to vector<128x128xf32>
    %cst_52 = arith.constant dense<0.000000e+00> : vector<360x128xf32>
    %53 = tpu.matmul %50, %52, %cst_52 {dimension_numbers = #tpu.dot_dimension_numbers<[1], [0], [0], [1], [0, 0, 1, 1], [], []>} : vector<360x128xf32>, vector<128x128xf32>, vector<360x128xf32> -> vector<360x128xf32>
    %54 = arith.addf %48, %53 : vector<360x128xf32>
    %c0_53 = arith.constant 0 : index
    %c0_54 = arith.constant 0 : index
    %55 = vector.load %arg10[%c0_53, %c0_54] : memref<360x128xf32, #tpu.memory_space<vmem>>, vector<360x128xf32>
    %56 = arith.addf %55, %54 : vector<360x128xf32>
    %c0_55 = arith.constant 0 : index
    %c0_56 = arith.constant 0 : index
    %57 = vector.load %arg10[%c0_55, %c0_56] : memref<360x128xf32, #tpu.memory_space<vmem>>, vector<360x128xf32>
    tpu.vector_store %arg10[%c0_55, %c0_56], %56 {strides = array<i32>} : memref<360x128xf32, #tpu.memory_space<vmem>>, vector<360x128xf32>,
    %c0_57 = arith.constant 0 : index
    %c0_58 = arith.constant 0 : index
    %58 = vector.load %arg10[%c0_57, %c0_58] : memref<360x128xf32, #tpu.memory_space<vmem>>, vector<360x128xf32>
    %c0_59 = arith.constant 0 : index
    %c0_60 = arith.constant 0 : index
    %59 = vector.load %arg4[%c0_59, %c0_60] : memref<1x128xf32, #tpu.memory_space<vmem>>, vector<1x128xf32>
    %60 = vector.broadcast %59 : vector<1x128xf32> to vector<360x128xf32>
    %61 = arith.mulf %58, %60 : vector<360x128xf32>
    %c0_61 = arith.constant 0 : index
    %c0_62 = arith.constant 0 : index
    %62 = vector.load %arg5[%c0_61, %c0_62] : memref<1x128xf32, #tpu.memory_space<vmem>>, vector<1x128xf32>
    %63 = vector.broadcast %62 : vector<1x128xf32> to vector<360x128xf32>
    %64 = arith.addf %61, %63 : vector<360x128xf32>
    %cst_63 = arith.constant 0.000000e+00 : f32
    %65 = vector.broadcast %cst_63 : f32 to vector<360x128xf32>
    %66 = arith.maximumf %64, %65 : vector<360x128xf32>
    %c0_64 = arith.constant 0 : index
    %c0_65 = arith.constant 0 : index
    %67 = vector.load %arg2[%c0_64, %c0_65] : memref<360x1xf32, #tpu.memory_space<vmem>>, vector<360x1xf32>
    %68 = vector.broadcast %67 : vector<360x1xf32> to vector<360x128xf32>
    %69 = arith.mulf %66, %68 : vector<360x128xf32>
    %c0_66 = arith.constant 0 : index
    %c0_67 = arith.constant 0 : index
    %70 = vector.load %arg11[%c0_66, %c0_67] : memref<368x128xf32, #tpu.memory_space<vmem>>, vector<360x128xf32>
    tpu.vector_store %arg11[%c0_66, %c0_67], %69 {strides = array<i32>} : memref<368x128xf32, #tpu.memory_space<vmem>>, vector<360x128xf32>,
    %cst_68 = arith.constant 0.000000e+00 : f32
    %71 = vector.broadcast %cst_68 : f32 to vector<8x128xf32>
    %c360 = arith.constant 360 : index
    %c0_69 = arith.constant 0 : index
    %72 = vector.load %arg11[%c360, %c0_69] : memref<368x128xf32, #tpu.memory_space<vmem>>, vector<8x128xf32>
    tpu.vector_store %arg11[%c360, %c0_69], %71 {strides = array<i32>} : memref<368x128xf32, #tpu.memory_space<vmem>>, vector<8x128xf32>,
    %c0_70 = arith.constant 0 : index
    %c0_71 = arith.constant 0 : index
    %73 = vector.load %arg11[%c0_70, %c0_71] : memref<368x128xf32, #tpu.memory_space<vmem>>, vector<320x128xf32>
    %c0_72 = arith.constant 0 : index
    %c0_73 = arith.constant 0 : index
    %c0_74 = arith.constant 0 : index
    %74 = vector.load %arg6[%c0_72, %c0_73, %c0_74] : memref<9x128x128xf32, #tpu.memory_space<vmem>>, vector<1x128x128xf32>
    %75 = vector.shape_cast %74 : vector<1x128x128xf32> to vector<128x128xf32>
    %cst_75 = arith.constant dense<0.000000e+00> : vector<320x128xf32>
    %76 = tpu.matmul %73, %75, %cst_75 {dimension_numbers = #tpu.dot_dimension_numbers<[1], [0], [0], [1], [0, 0, 1, 1], [], []>} : vector<320x128xf32>, vector<128x128xf32>, vector<320x128xf32> -> vector<320x128xf32>
    %c1_76 = arith.constant 1 : index
    %c0_77 = arith.constant 0 : index
    %77 = vector.load %arg11[%c1_76, %c0_77] : memref<368x128xf32, #tpu.memory_space<vmem>>, vector<320x128xf32>
    %c1_78 = arith.constant 1 : index
    %c0_79 = arith.constant 0 : index
    %c0_80 = arith.constant 0 : index
    %78 = vector.load %arg6[%c1_78, %c0_79, %c0_80] : memref<9x128x128xf32, #tpu.memory_space<vmem>>, vector<1x128x128xf32>
    %79 = vector.shape_cast %78 : vector<1x128x128xf32> to vector<128x128xf32>
    %cst_81 = arith.constant dense<0.000000e+00> : vector<320x128xf32>
    %80 = tpu.matmul %77, %79, %cst_81 {dimension_numbers = #tpu.dot_dimension_numbers<[1], [0], [0], [1], [0, 0, 1, 1], [], []>} : vector<320x128xf32>, vector<128x128xf32>, vector<320x128xf32> -> vector<320x128xf32>
    %81 = arith.addf %76, %80 : vector<320x128xf32>
    %c2_82 = arith.constant 2 : index
    %c0_83 = arith.constant 0 : index
    %82 = vector.load %arg11[%c2_82, %c0_83] : memref<368x128xf32, #tpu.memory_space<vmem>>, vector<320x128xf32>
    %c2_84 = arith.constant 2 : index
    %c0_85 = arith.constant 0 : index
    %c0_86 = arith.constant 0 : index
    %83 = vector.load %arg6[%c2_84, %c0_85, %c0_86] : memref<9x128x128xf32, #tpu.memory_space<vmem>>, vector<1x128x128xf32>
    %84 = vector.shape_cast %83 : vector<1x128x128xf32> to vector<128x128xf32>
    %cst_87 = arith.constant dense<0.000000e+00> : vector<320x128xf32>
    %85 = tpu.matmul %82, %84, %cst_87 {dimension_numbers = #tpu.dot_dimension_numbers<[1], [0], [0], [1], [0, 0, 1, 1], [], []>} : vector<320x128xf32>, vector<128x128xf32>, vector<320x128xf32> -> vector<320x128xf32>
    %86 = arith.addf %81, %85 : vector<320x128xf32>
    %c0_88 = arith.constant 0 : index
    %c0_89 = arith.constant 0 : index
    %c0_90 = arith.constant 0 : index
    %87 = vector.load %arg9[%c0_88, %c0_89, %c0_90] : memref<1x320x128xf32, #tpu.memory_space<vmem>>, vector<1x320x128xf32>
    %88 = vector.shape_cast %87 : vector<1x320x128xf32> to vector<320x128xf32>
    %89 = vector.shape_cast %86 : vector<320x128xf32> to vector<1x320x128xf32>
    tpu.vector_store %arg9[%c0_88, %c0_89, %c0_90], %89 {strides = array<i32>} : memref<1x320x128xf32, #tpu.memory_space<vmem>>, vector<1x320x128xf32>,
    %c20_91 = arith.constant 20 : index
    %c0_92 = arith.constant 0 : index
    %90 = vector.load %arg11[%c20_91, %c0_92] : memref<368x128xf32, #tpu.memory_space<vmem>>, vector<320x128xf32>
    %c3_93 = arith.constant 3 : index
    %c0_94 = arith.constant 0 : index
    %c0_95 = arith.constant 0 : index
    %91 = vector.load %arg6[%c3_93, %c0_94, %c0_95] : memref<9x128x128xf32, #tpu.memory_space<vmem>>, vector<1x128x128xf32>
    %92 = vector.shape_cast %91 : vector<1x128x128xf32> to vector<128x128xf32>
    %cst_96 = arith.constant dense<0.000000e+00> : vector<320x128xf32>
    %93 = tpu.matmul %90, %92, %cst_96 {dimension_numbers = #tpu.dot_dimension_numbers<[1], [0], [0], [1], [0, 0, 1, 1], [], []>} : vector<320x128xf32>, vector<128x128xf32>, vector<320x128xf32> -> vector<320x128xf32>
    %c21_97 = arith.constant 21 : index
    %c0_98 = arith.constant 0 : index
    %94 = vector.load %arg11[%c21_97, %c0_98] : memref<368x128xf32, #tpu.memory_space<vmem>>, vector<320x128xf32>
    %c4_99 = arith.constant 4 : index
    %c0_100 = arith.constant 0 : index
    %c0_101 = arith.constant 0 : index
    %95 = vector.load %arg6[%c4_99, %c0_100, %c0_101] : memref<9x128x128xf32, #tpu.memory_space<vmem>>, vector<1x128x128xf32>
    %96 = vector.shape_cast %95 : vector<1x128x128xf32> to vector<128x128xf32>
    %cst_102 = arith.constant dense<0.000000e+00> : vector<320x128xf32>
    %97 = tpu.matmul %94, %96, %cst_102 {dimension_numbers = #tpu.dot_dimension_numbers<[1], [0], [0], [1], [0, 0, 1, 1], [], []>} : vector<320x128xf32>, vector<128x128xf32>, vector<320x128xf32> -> vector<320x128xf32>
    %98 = arith.addf %93, %97 : vector<320x128xf32>
    %c22_103 = arith.constant 22 : index
    %c0_104 = arith.constant 0 : index
    %99 = vector.load %arg11[%c22_103, %c0_104] : memref<368x128xf32, #tpu.memory_space<vmem>>, vector<320x128xf32>
    %c5_105 = arith.constant 5 : index
    %c0_106 = arith.constant 0 : index
    %c0_107 = arith.constant 0 : index
    %100 = vector.load %arg6[%c5_105, %c0_106, %c0_107] : memref<9x128x128xf32, #tpu.memory_space<vmem>>, vector<1x128x128xf32>
    %101 = vector.shape_cast %100 : vector<1x128x128xf32> to vector<128x128xf32>
    %cst_108 = arith.constant dense<0.000000e+00> : vector<320x128xf32>
    %102 = tpu.matmul %99, %101, %cst_108 {dimension_numbers = #tpu.dot_dimension_numbers<[1], [0], [0], [1], [0, 0, 1, 1], [], []>} : vector<320x128xf32>, vector<128x128xf32>, vector<320x128xf32> -> vector<320x128xf32>
    %103 = arith.addf %98, %102 : vector<320x128xf32>
    %c0_109 = arith.constant 0 : index
    %c0_110 = arith.constant 0 : index
    %c0_111 = arith.constant 0 : index
    %104 = vector.load %arg9[%c0_109, %c0_110, %c0_111] : memref<1x320x128xf32, #tpu.memory_space<vmem>>, vector<1x320x128xf32>
    %105 = vector.shape_cast %104 : vector<1x320x128xf32> to vector<320x128xf32>
    %106 = arith.addf %105, %103 : vector<320x128xf32>
    %c0_112 = arith.constant 0 : index
    %c0_113 = arith.constant 0 : index
    %c0_114 = arith.constant 0 : index
    %107 = vector.load %arg9[%c0_112, %c0_113, %c0_114] : memref<1x320x128xf32, #tpu.memory_space<vmem>>, vector<1x320x128xf32>
    %108 = vector.shape_cast %107 : vector<1x320x128xf32> to vector<320x128xf32>
    %109 = vector.shape_cast %106 : vector<320x128xf32> to vector<1x320x128xf32>
    tpu.vector_store %arg9[%c0_112, %c0_113, %c0_114], %109 {strides = array<i32>} : memref<1x320x128xf32, #tpu.memory_space<vmem>>, vector<1x320x128xf32>,
    %c40_115 = arith.constant 40 : index
    %c0_116 = arith.constant 0 : index
    %110 = vector.load %arg11[%c40_115, %c0_116] : memref<368x128xf32, #tpu.memory_space<vmem>>, vector<320x128xf32>
    %c6_117 = arith.constant 6 : index
    %c0_118 = arith.constant 0 : index
    %c0_119 = arith.constant 0 : index
    %111 = vector.load %arg6[%c6_117, %c0_118, %c0_119] : memref<9x128x128xf32, #tpu.memory_space<vmem>>, vector<1x128x128xf32>
    %112 = vector.shape_cast %111 : vector<1x128x128xf32> to vector<128x128xf32>
    %cst_120 = arith.constant dense<0.000000e+00> : vector<320x128xf32>
    %113 = tpu.matmul %110, %112, %cst_120 {dimension_numbers = #tpu.dot_dimension_numbers<[1], [0], [0], [1], [0, 0, 1, 1], [], []>} : vector<320x128xf32>, vector<128x128xf32>, vector<320x128xf32> -> vector<320x128xf32>
    %c41_121 = arith.constant 41 : index
    %c0_122 = arith.constant 0 : index
    %114 = vector.load %arg11[%c41_121, %c0_122] : memref<368x128xf32, #tpu.memory_space<vmem>>, vector<320x128xf32>
    %c7_123 = arith.constant 7 : index
    %c0_124 = arith.constant 0 : index
    %c0_125 = arith.constant 0 : index
    %115 = vector.load %arg6[%c7_123, %c0_124, %c0_125] : memref<9x128x128xf32, #tpu.memory_space<vmem>>, vector<1x128x128xf32>
    %116 = vector.shape_cast %115 : vector<1x128x128xf32> to vector<128x128xf32>
    %cst_126 = arith.constant dense<0.000000e+00> : vector<320x128xf32>
    %117 = tpu.matmul %114, %116, %cst_126 {dimension_numbers = #tpu.dot_dimension_numbers<[1], [0], [0], [1], [0, 0, 1, 1], [], []>} : vector<320x128xf32>, vector<128x128xf32>, vector<320x128xf32> -> vector<320x128xf32>
    %118 = arith.addf %113, %117 : vector<320x128xf32>
    %c42_127 = arith.constant 42 : index
    %c0_128 = arith.constant 0 : index
    %119 = vector.load %arg11[%c42_127, %c0_128] : memref<368x128xf32, #tpu.memory_space<vmem>>, vector<320x128xf32>
    %c8_129 = arith.constant 8 : index
    %c0_130 = arith.constant 0 : index
    %c0_131 = arith.constant 0 : index
    %120 = vector.load %arg6[%c8_129, %c0_130, %c0_131] : memref<9x128x128xf32, #tpu.memory_space<vmem>>, vector<1x128x128xf32>
    %121 = vector.shape_cast %120 : vector<1x128x128xf32> to vector<128x128xf32>
    %cst_132 = arith.constant dense<0.000000e+00> : vector<320x128xf32>
    %122 = tpu.matmul %119, %121, %cst_132 {dimension_numbers = #tpu.dot_dimension_numbers<[1], [0], [0], [1], [0, 0, 1, 1], [], []>} : vector<320x128xf32>, vector<128x128xf32>, vector<320x128xf32> -> vector<320x128xf32>
    %123 = arith.addf %118, %122 : vector<320x128xf32>
    %c0_133 = arith.constant 0 : index
    %c0_134 = arith.constant 0 : index
    %c0_135 = arith.constant 0 : index
    %124 = vector.load %arg9[%c0_133, %c0_134, %c0_135] : memref<1x320x128xf32, #tpu.memory_space<vmem>>, vector<1x320x128xf32>
    %125 = vector.shape_cast %124 : vector<1x320x128xf32> to vector<320x128xf32>
    %126 = arith.addf %125, %123 : vector<320x128xf32>
    %c0_136 = arith.constant 0 : index
    %c0_137 = arith.constant 0 : index
    %c0_138 = arith.constant 0 : index
    %127 = vector.load %arg9[%c0_136, %c0_137, %c0_138] : memref<1x320x128xf32, #tpu.memory_space<vmem>>, vector<1x320x128xf32>
    %128 = vector.shape_cast %127 : vector<1x320x128xf32> to vector<320x128xf32>
    %129 = vector.shape_cast %126 : vector<320x128xf32> to vector<1x320x128xf32>
    tpu.vector_store %arg9[%c0_136, %c0_137, %c0_138], %129 {strides = array<i32>} : memref<1x320x128xf32, #tpu.memory_space<vmem>>, vector<1x320x128xf32>,
    %c0_139 = arith.constant 0 : index
    %c42_140 = arith.constant 42 : index
    %c0_141 = arith.constant 0 : index
    %130 = vector.load %arg1[%c0_139, %c42_140, %c0_141] : memref<1x408x128xf32, #tpu.memory_space<vmem>>, vector<1x320x128xf32>
    %131 = vector.shape_cast %130 : vector<1x320x128xf32> to vector<320x128xf32>
    %c0_142 = arith.constant 0 : index
    %c0_143 = arith.constant 0 : index
    %c0_144 = arith.constant 0 : index
    %132 = vector.load %arg9[%c0_142, %c0_143, %c0_144] : memref<1x320x128xf32, #tpu.memory_space<vmem>>, vector<1x320x128xf32>
    %133 = vector.shape_cast %132 : vector<1x320x128xf32> to vector<320x128xf32>
    %c0_145 = arith.constant 0 : index
    %c0_146 = arith.constant 0 : index
    %134 = vector.load %arg7[%c0_145, %c0_146] : memref<1x128xf32, #tpu.memory_space<vmem>>, vector<1x128xf32>
    %135 = vector.broadcast %134 : vector<1x128xf32> to vector<320x128xf32>
    %136 = arith.mulf %133, %135 : vector<320x128xf32>
    %c0_147 = arith.constant 0 : index
    %c0_148 = arith.constant 0 : index
    %137 = vector.load %arg8[%c0_147, %c0_148] : memref<1x128xf32, #tpu.memory_space<vmem>>, vector<1x128xf32>
    %138 = vector.broadcast %137 : vector<1x128xf32> to vector<320x128xf32>
    %139 = arith.addf %136, %138 : vector<320x128xf32>
    %140 = arith.addf %139, %131 : vector<320x128xf32>
    %cst_149 = arith.constant 0.000000e+00 : f32
    %141 = vector.broadcast %cst_149 : f32 to vector<320x128xf32>
    %142 = arith.maximumf %140, %141 : vector<320x128xf32>
    %c0_150 = arith.constant 0 : index
    %c0_151 = arith.constant 0 : index
    %c0_152 = arith.constant 0 : index
    %143 = vector.load %arg9[%c0_150, %c0_151, %c0_152] : memref<1x320x128xf32, #tpu.memory_space<vmem>>, vector<1x320x128xf32>
    %144 = vector.shape_cast %143 : vector<1x320x128xf32> to vector<320x128xf32>
    %145 = vector.shape_cast %142 : vector<320x128xf32> to vector<1x320x128xf32>
    tpu.vector_store %arg9[%c0_150, %c0_151, %c0_152], %145 {strides = array<i32>} : memref<1x320x128xf32, #tpu.memory_space<vmem>>, vector<1x320x128xf32>,
    return
  }
  func.func @transform_0(%arg0: i32) -> (i32, i32, i32) {
    %c0_i32 = arith.constant 0 : i32
    %c0_i32_0 = arith.constant 0 : i32
    %c0_i32_1 = arith.constant 0 : i32
    return %arg0, %c0_i32, %c0_i32_0 : i32, i32, i32
  }
  func.func @transform_1(%arg0: i32) -> (i32, i32) {
    %c0_i32 = arith.constant 0 : i32
    %c0_i32_0 = arith.constant 0 : i32
    %c0_i32_1 = arith.constant 0 : i32
    return %c0_i32, %c0_i32_0 : i32, i32
  }
  func.func @transform_2(%arg0: i32) -> (i32, i32, i32) {
    %c0_i32 = arith.constant 0 : i32
    %c0_i32_0 = arith.constant 0 : i32
    %c0_i32_1 = arith.constant 0 : i32
    %c0_i32_2 = arith.constant 0 : i32
    return %c0_i32, %c0_i32_0, %c0_i32_1 : i32, i32, i32
  }
  func.func @transform_3(%arg0: i32) -> (i32, i32) {
    %c0_i32 = arith.constant 0 : i32
    %c0_i32_0 = arith.constant 0 : i32
    %c0_i32_1 = arith.constant 0 : i32
    return %c0_i32, %c0_i32_0 : i32, i32
  }
  func.func @transform_4(%arg0: i32) -> (i32, i32) {
    %c0_i32 = arith.constant 0 : i32
    %c0_i32_0 = arith.constant 0 : i32
    %c0_i32_1 = arith.constant 0 : i32
    return %c0_i32, %c0_i32_0 : i32, i32
  }
  func.func @transform_5(%arg0: i32) -> (i32, i32, i32) {
    %c0_i32 = arith.constant 0 : i32
    %c0_i32_0 = arith.constant 0 : i32
    %c0_i32_1 = arith.constant 0 : i32
    %c0_i32_2 = arith.constant 0 : i32
    return %c0_i32, %c0_i32_0, %c0_i32_1 : i32, i32, i32
  }
  func.func @transform_6(%arg0: i32) -> (i32, i32) {
    %c0_i32 = arith.constant 0 : i32
    %c0_i32_0 = arith.constant 0 : i32
    %c0_i32_1 = arith.constant 0 : i32
    return %c0_i32, %c0_i32_0 : i32, i32
  }
  func.func @transform_7(%arg0: i32) -> (i32, i32) {
    %c0_i32 = arith.constant 0 : i32
    %c0_i32_0 = arith.constant 0 : i32
    %c0_i32_1 = arith.constant 0 : i32
    return %c0_i32, %c0_i32_0 : i32, i32
  }
  func.func @transform_8(%arg0: i32) -> (i32, i32, i32) {
    %c0_i32 = arith.constant 0 : i32
    %c0_i32_0 = arith.constant 0 : i32
    %c0_i32_1 = arith.constant 0 : i32
    return %arg0, %c0_i32, %c0_i32_0 : i32, i32, i32
  }
}

</mosaic_0001>

<llo_original>
// kernel: tpu_custom_call.1
$region0: #{tpu_custom_call.1}
  #allocation0 [shape = 'u32[]', space=smem, size = 0x4, offset = 0x4, fixed_abs, tag = 'smem constant byte address 0x4 - core index']
  #allocation1 [shape = 'u32[144,128]{1,0:T(1,128)}', space=vmem, size = 0x12000, scoped, tag = 'internal scratch']
  #allocation2 [shape = 'f32[360,128]{1,0:T(8,128)}', space=vmem, size = 0x2d000, scoped, tag = 'scratch operand']
  #allocation3 [shape = 'f32[368,128]{1,0:T(8,128)}', space=vmem, size = 0x2e000, scoped, tag = 'scratch operand']
  %s0 = inlined_call_operand.hbm [shape: f32[2,408,128], index: 0, kind: input, shape index: {}]
  %s1 = inlined_call_operand.vmem [shape: f32[360,1], index: 1, kind: input, shape index: {}]
  %s2 = inlined_call_operand.hbm [shape: f32[9,128,128], index: 2, kind: input, shape index: {}]
  %s3 = inlined_call_operand.vmem [shape: f32[1,128], index: 3, kind: input, shape index: {}]
  %s4 = inlined_call_operand.vmem [shape: f32[1,128], index: 4, kind: input, shape index: {}]
  %s5 = inlined_call_operand.hbm [shape: f32[9,128,128], index: 5, kind: input, shape index: {}]
  %s6 = inlined_call_operand.vmem [shape: f32[1,128], index: 6, kind: input, shape index: {}]
  %s7 = inlined_call_operand.vmem [shape: f32[1,128], index: 7, kind: input, shape index: {}]
  %s8 = inlined_call_operand.hbm [shape: f32[2,320,128], index: 8, kind: output, shape index: {}]
  %s9 = sld [smem:[#allocation0]]
  $region77: #{tpu_custom_call.1} parent=0
    _
  %s11 = ssub.s32 1, %s9
  %s12 = scalar_select 0, %s11, %s9
  $region1: #{tpu_custom_call.1} parent=0
    #allocation4 [shape = 'u8[417792]{0}', space=vmem, size = 0x66000, scoped, tag = 'input window, operand 0']
    #allocation5 [shape = 's32[2]{0}', space=sflag, size = 0x8, scoped, tag = 'scoped memory for tpu_custom_call.1']
    #allocation6 [shape = 's32[2]{0}', space=sflag, size = 0x8, scoped, tag = 'scoped memory for tpu_custom_call.1']
    #allocation7 [shape = 'u8[589824]{0}', space=vmem, size = 0x90000, scoped, tag = 'input window, operand 2, single buffered']
    #allocation8 [shape = 's32[1]{0}', space=sflag, size = 0x4, scoped, tag = 'scoped memory for tpu_custom_call.1']
    #allocation9 [shape = 'u8[589824]{0}', space=vmem, size = 0x90000, scoped, tag = 'input window, operand 5, single buffered']
    #allocation10 [shape = 'u8[327680]{0}', space=vmem, size = 0x50000, scoped, tag = 'output window, operand 0']
    %13 = vsyncpa [#allocation5], 0
    %s14 = scalar_lea.sflag [#allocation5], 1
    %15 = vsyncpa %s14, 0
    %16 = vsyncpa [#allocation8], 0
    %17 = vsyncpa [#allocation6], 0
    %s18 = scalar_lea.sflag [#allocation6], 1
    %19 = vsyncpa %s18, 0
    loop: start=0, step=1, limit=4
    $region2: #{tpu_custom_call.1} parent=1 // loop_pre_header
      _
    $region3: #{tpu_custom_call.1} parent=1 // loop_header
      %s21 = sphi 0, %s25
      %p22 = scmp.ge.s32.totalorder %s21, 4
      %s31 = sphi 0, %s33
      %s34 = sphi 0, %s31
      %s35 = sphi 0, %s34
      %s51 = sphi 0, %s35
      %s55 = sphi 0, %s55
      %s57 = sphi 0, %s55
      %s58 = sphi 0, %s57
      %s72 = sphi 0, %s58
      %s76 = sphi 0, %s76
      %s78 = sphi 0, %s76
      %s79 = sphi 0, %s78
      %s93 = sphi 0, %s79
      %s97 = sphi 0, %s97
      %s99 = sphi 0, %s97
      %s100 = sphi 0, %s99
      %s114 = sphi 0, %s100
      %s118 = sphi 0, %s118
      %s120 = sphi 0, %s118
      %s121 = sphi 0, %s120
      %s135 = sphi 0, %s121
      %s139 = sphi 0, %s139
      %s141 = sphi 0, %s139
      %s142 = sphi 0, %s141
      %s156 = sphi 0, %s142
      %s160 = sphi 0, %s160
      %s162 = sphi 0, %s160
      %s163 = sphi 0, %s162
      %s177 = sphi 0, %s163
      %s181 = sphi 0, %s181
      %s183 = sphi 0, %s181
      %s184 = sphi 0, %s183
      %s198 = sphi 0, %s184
      %s204 = sphi 0, %s206
      %s207 = sphi 0, %s204
      %s208 = sphi 0, %s207
      %s224 = sphi 0, %s208
    $region4: #{tpu_custom_call.1} parent=1 // loop_header_branch
      %24 = sbr.rel (%p22) target = $region8
    $region5: #{tpu_custom_call.1} parent=1 // loop_body
      %s26 = ssub.s32 %s21, 1
      %s27 = ssub.s32 %s21, 2
      %s28 = sadd.s32 %s21, 1
      %s29 = ssub.s32 %s21, %s28
      %p30 = scmp.eq.s32.totalorder %s29, 0
      %s32 = sadd.s32 %s31, 1
      %s33 = scalar_select %p30, %s31, %s32
      %p36 = pneg %p30
      %p37 = scmp.eq.s32.totalorder %s21, 1
      %p38 = por %p36, %p37
      %p39 = scmp.ne.s32.totalorder %s31, %s34
      %p40 = scmp.eq.s32.totalorder %s21, 0
      %p41 = por %p39, %p40
      %p42 = scmp.ne.s32.totalorder %s31, %s34
      %p43 = scmp.eq.s32.totalorder %s26, 1
      %p44 = por %p42, %p43
      %p45 = scmp.ne.s32.totalorder %s34, %s35
      %p46 = scmp.eq.s32.totalorder %s26, 0
      %p47 = por %p45, %p46
      %p48 = scmp.ne.s32.totalorder %s34, %s35
      %p49 = scmp.eq.s32.totalorder %s27, 1
      %p50 = por %p48, %p49
      %p52 = scmp.ne.s32.totalorder %s35, %s51
      %p53 = scmp.eq.s32.totalorder %s27, 0
      %p54 = por %p52, %p53
      %s56 = sadd.s32 %s55, 1
      %p59 = scmp.eq.s32.totalorder %s21, 1
      %p60 = scmp.ne.s32.totalorder %s55, %s57
      %p61 = scmp.eq.s32.totalorder %s21, 0
      %p62 = por %p60, %p61
      %p63 = scmp.ne.s32.totalorder %s55, %s57
      %p64 = scmp.eq.s32.totalorder %s26, 1
      %p65 = por %p63, %p64
      %p66 = scmp.ne.s32.totalorder %s57, %s58
      %p67 = scmp.eq.s32.totalorder %s26, 0
      %p68 = por %p66, %p67
      %p69 = scmp.ne.s32.totalorder %s57, %s58
      %p70 = scmp.eq.s32.totalorder %s27, 1
      %p71 = por %p69, %p70
      %p73 = scmp.ne.s32.totalorder %s58, %s72
      %p74 = scmp.eq.s32.totalorder %s27, 0
      %p75 = por %p73, %p74
      %s77 = sadd.s32 %s76, 1
      %p80 = scmp.eq.s32.totalorder %s21, 1
      %p81 = scmp.ne.s32.totalorder %s76, %s78
      %p82 = scmp.eq.s32.totalorder %s21, 0
      %p83 = por %p81, %p82
      %p84 = scmp.ne.s32.totalorder %s76, %s78
      %p85 = scmp.eq.s32.totalorder %s26, 1
      %p86 = por %p84, %p85
      %p87 = scmp.ne.s32.totalorder %s78, %s79
      %p88 = scmp.eq.s32.totalorder %s26, 0
      %p89 = por %p87, %p88
      %p90 = scmp.ne.s32.totalorder %s78, %s79
      %p91 = scmp.eq.s32.totalorder %s27, 1
      %p92 = por %p90, %p91
      %p94 = scmp.ne.s32.totalorder %s79, %s93
      %p95 = scmp.eq.s32.totalorder %s27, 0
      %p96 = por %p94, %p95
      %s98 = sadd.s32 %s97, 1
      %p101 = scmp.eq.s32.totalorder %s21, 1
      %p102 = scmp.ne.s32.totalorder %s97, %s99
      %p103 = scmp.eq.s32.totalorder %s21, 0
      %p104 = por %p102, %p103
      %p105 = scmp.ne.s32.totalorder %s97, %s99
      %p106 = scmp.eq.s32.totalorder %s26, 1
      %p107 = por %p105, %p106
      %p108 = scmp.ne.s32.totalorder %s99, %s100
      %p109 = scmp.eq.s32.totalorder %s26, 0
      %p110 = por %p108, %p109
      %p111 = scmp.ne.s32.totalorder %s99, %s100
      %p112 = scmp.eq.s32.totalorder %s27, 1
      %p113 = por %p111, %p112
      %p115 = scmp.ne.s32.totalorder %s100, %s114
      %p116 = scmp.eq.s32.totalorder %s27, 0
      %p117 = por %p115, %p116
      %s119 = sadd.s32 %s118, 1
      %p122 = scmp.eq.s32.totalorder %s21, 1
      %p123 = scmp.ne.s32.totalorder %s118, %s120
      %p124 = scmp.eq.s32.totalorder %s21, 0
      %p125 = por %p123, %p124
      %p126 = scmp.ne.s32.totalorder %s118, %s120
      %p127 = scmp.eq.s32.totalorder %s26, 1
      %p128 = por %p126, %p127
      %p129 = scmp.ne.s32.totalorder %s120, %s121
      %p130 = scmp.eq.s32.totalorder %s26, 0
      %p131 = por %p129, %p130
      %p132 = scmp.ne.s32.totalorder %s120, %s121
      %p133 = scmp.eq.s32.totalorder %s27, 1
      %p134 = por %p132, %p133
      %p136 = scmp.ne.s32.totalorder %s121, %s135
      %p137 = scmp.eq.s32.totalorder %s27, 0
      %p138 = por %p136, %p137
      %s140 = sadd.s32 %s139, 1
      %p143 = scmp.eq.s32.totalorder %s21, 1
      %p144 = scmp.ne.s32.totalorder %s139, %s141
      %p145 = scmp.eq.s32.totalorder %s21, 0
      %p146 = por %p144, %p145
      %p147 = scmp.ne.s32.totalorder %s139, %s141
      %p148 = scmp.eq.s32.totalorder %s26, 1
      %p149 = por %p147, %p148
      %p150 = scmp.ne.s32.totalorder %s141, %s142
      %p151 = scmp.eq.s32.totalorder %s26, 0
      %p152 = por %p150, %p151
      %p153 = scmp.ne.s32.totalorder %s141, %s142
      %p154 = scmp.eq.s32.totalorder %s27, 1
      %p155 = por %p153, %p154
      %p157 = scmp.ne.s32.totalorder %s142, %s156
      %p158 = scmp.eq.s32.totalorder %s27, 0
      %p159 = por %p157, %p158
      %s161 = sadd.s32 %s160, 1
      %p164 = scmp.eq.s32.totalorder %s21, 1
      %p165 = scmp.ne.s32.totalorder %s160, %s162
      %p166 = scmp.eq.s32.totalorder %s21, 0
      %p167 = por %p165, %p166
      %p168 = scmp.ne.s32.totalorder %s160, %s162
      %p169 = scmp.eq.s32.totalorder %s26, 1
      %p170 = por %p168, %p169
      %p171 = scmp.ne.s32.totalorder %s162, %s163
      %p172 = scmp.eq.s32.totalorder %s26, 0
      %p173 = por %p171, %p172
      %p174 = scmp.ne.s32.totalorder %s162, %s163
      %p175 = scmp.eq.s32.totalorder %s27, 1
      %p176 = por %p174, %p175
      %p178 = scmp.ne.s32.totalorder %s163, %s177
      %p179 = scmp.eq.s32.totalorder %s27, 0
      %p180 = por %p178, %p179
      %s182 = sadd.s32 %s181, 1
      %p185 = scmp.eq.s32.totalorder %s21, 1
      %p186 = scmp.ne.s32.totalorder %s181, %s183
      %p187 = scmp.eq.s32.totalorder %s21, 0
      %p188 = por %p186, %p187
      %p189 = scmp.ne.s32.totalorder %s181, %s183
      %p190 = scmp.eq.s32.totalorder %s26, 1
      %p191 = por %p189, %p190
      %p192 = scmp.ne.s32.totalorder %s183, %s184
      %p193 = scmp.eq.s32.totalorder %s26, 0
      %p194 = por %p192, %p193
      %p195 = scmp.ne.s32.totalorder %s183, %s184
      %p196 = scmp.eq.s32.totalorder %s27, 1
      %p197 = por %p195, %p196
      %p199 = scmp.ne.s32.totalorder %s184, %s198
      %p200 = scmp.eq.s32.totalorder %s27, 0
      %p201 = por %p199, %p200
      %s202 = ssub.s32 %s21, %s28
      %p203 = scmp.eq.s32.totalorder %s202, 0
      %s205 = sadd.s32 %s204, 1
      %s206 = scalar_select %p203, %s204, %s205
      %p209 = pneg %p203
      %p210 = scmp.eq.s32.totalorder %s21, 1
      %p211 = por %p209, %p210
      %p212 = scmp.ne.s32.totalorder %s204, %s207
      %p213 = scmp.eq.s32.totalorder %s21, 0
      %p214 = por %p212, %p213
      %p215 = scmp.ne.s32.totalorder %s204, %s207
      %p216 = scmp.eq.s32.totalorder %s26, 1
      %p217 = por %p215, %p216
      %p218 = scmp.ne.s32.totalorder %s207, %s208
      %p219 = scmp.eq.s32.totalorder %s26, 0
      %p220 = por %p218, %p219
      %p221 = scmp.ne.s32.totalorder %s207, %s208
      %p222 = scmp.eq.s32.totalorder %s27, 1
      %p223 = por %p221, %p222
      %p225 = scmp.ne.s32.totalorder %s208, %s224
      %p226 = scmp.eq.s32.totalorder %s27, 0
      %p227 = por %p225, %p226
      %p228 = scmp.le.s32.totalorder 1, %s21
      %p229 = scmp.lt.s32.totalorder %s21, 3
      %p230 = pnand %p228, %p229
      %p231 = pneg %p230
      // Predicated region
      $region9: #{tpu_custom_call.1} parent=5 // pred_check
        _
      $region10: #{tpu_custom_call.1} parent=5 // pred_check_branch
        %233 = sbr.rel (%p230) target = $region12
      $region11: #{tpu_custom_call.1} parent=5 // pred_region
        %s234 = ssub.s32 %s21, 1
        // Predicated region
        $region13: #{tpu_custom_call.1} parent=11 // pred_check
          %p235 = pneg %p68
        $region14: #{tpu_custom_call.1} parent=11 // pred_check_branch
          %237 = sbr.rel (%p235) target = $region16
        $region15: #{tpu_custom_call.1} parent=11 // pred_region
          _
        $region16: #{tpu_custom_call.1} parent=11 // pred_fallthru
          _
        // Predicated region
        $region17: #{tpu_custom_call.1} parent=11 // pred_check
          %p238 = pneg %p89
        $region18: #{tpu_custom_call.1} parent=11 // pred_check_branch
          %240 = sbr.rel (%p238) target = $region20
        $region19: #{tpu_custom_call.1} parent=11 // pred_region
          %s242 = ssub.s32 18432, 18432
          %243 = vsyncadd [#allocation8], %s242
          %s244 = sshll.u32 [#allocation7], 4
          %s245 = int_to_ptr.vmem [resolvable:$true] %s244
          %250 = dma.hbm_to_vmem [thread:$0]  %s2, 18432, %s245, [#allocation8], 128, 128, 8
        $region20: #{tpu_custom_call.1} parent=11 // pred_fallthru
          _
        // Predicated region
        $region21: #{tpu_custom_call.1} parent=11 // pred_check
          %p251 = pneg %p110
        $region22: #{tpu_custom_call.1} parent=11 // pred_check_branch
          %253 = sbr.rel (%p251) target = $region24
        $region23: #{tpu_custom_call.1} parent=11 // pred_region
          _
        $region24: #{tpu_custom_call.1} parent=11 // pred_fallthru
          _
        // Predicated region
        $region25: #{tpu_custom_call.1} parent=11 // pred_check
          %p254 = pneg %p131
        $region26: #{tpu_custom_call.1} parent=11 // pred_check_branch
          %256 = sbr.rel (%p254) target = $region28
        $region27: #{tpu_custom_call.1} parent=11 // pred_region
          _
        $region28: #{tpu_custom_call.1} parent=11 // pred_fallthru
          _
        // Predicated region
        $region29: #{tpu_custom_call.1} parent=11 // pred_check
          %p257 = pneg %p152
        $region30: #{tpu_custom_call.1} parent=11 // pred_check_branch
          %259 = sbr.rel (%p257) target = $region32
        $region31: #{tpu_custom_call.1} parent=11 // pred_region
          %s261 = ssub.s32 18432, 18432
          %262 = vsyncadd [#allocation8], %s261
          %s263 = sshll.u32 [#allocation9], 4
          %s264 = int_to_ptr.vmem [resolvable:$true] %s263
          %269 = dma.hbm_to_vmem [thread:$0]  %s5, 18432, %s264, [#allocation8], 128, 128, 8
        $region32: #{tpu_custom_call.1} parent=11 // pred_fallthru
          _
        // Predicated region
        $region33: #{tpu_custom_call.1} parent=11 // pred_check
          %p270 = pneg %p173
        $region34: #{tpu_custom_call.1} parent=11 // pred_check_branch
          %272 = sbr.rel (%p270) target = $region36
        $region35: #{tpu_custom_call.1} parent=11 // pred_region
          _
        $region36: #{tpu_custom_call.1} parent=11 // pred_fallthru
          _
        // Predicated region
        $region37: #{tpu_custom_call.1} parent=11 // pred_check
          %p273 = pneg %p194
        $region38: #{tpu_custom_call.1} parent=11 // pred_check_branch
          %275 = sbr.rel (%p273) target = $region40
        $region39: #{tpu_custom_call.1} parent=11 // pred_region
          _
        $region40: #{tpu_custom_call.1} parent=11 // pred_fallthru
          _
      $region12: #{tpu_custom_call.1} parent=5 // pred_fallthru
        _
      %p276 = scmp.lt.s32.totalorder %s21, 2
      // Predicated region
      $region41: #{tpu_custom_call.1} parent=5 // pred_check
        %p277 = pneg %p276
      $region42: #{tpu_custom_call.1} parent=5 // pred_check_branch
        %279 = sbr.rel (%p277) target = $region44
      $region43: #{tpu_custom_call.1} parent=5 // pred_region
        // Predicated region
        $region45: #{tpu_custom_call.1} parent=43 // pred_check
          %p280 = pneg %p41
        $region46: #{tpu_custom_call.1} parent=43 // pred_check_branch
          %282 = sbr.rel (%p280) target = $region48
        $region47: #{tpu_custom_call.1} parent=43 // pred_region
          %s283 = sand.u32 %s31, 1
          %s284 = scalar_lea.sflag [#allocation5], %s283
          %s285 = sand.u32 %s31, 1
          %s286 = smul.addr %s285, 408
          %s287 = scalar_lea.vmem [#allocation4], %s286
          %s289 = ssub.s32 6528, 6528
          %290 = vsyncadd %s284, %s289
          %s291 = smul.addr %s21, 51
          %s292 = smul.addr %s291, 128
          %s293 = scalar_lea.hbm %s0, %s292
          %s294 = sshll.u32 %s287, 4
          %s295 = int_to_ptr.vmem [resolvable:$true] %s294
          %300 = dma.hbm_to_vmem [thread:$0]  %s293, 6528, %s295, %s284, 128, 128, 8
        $region48: #{tpu_custom_call.1} parent=43 // pred_fallthru
          _
      $region44: #{tpu_custom_call.1} parent=5 // pred_fallthru
        _
      %p301 = scmp.le.s32.totalorder 1, %s21
      %p302 = scmp.lt.s32.totalorder %s21, 3
      %p303 = pnand %p301, %p302
      %p304 = pneg %p303
      // Predicated region
      $region49: #{tpu_custom_call.1} parent=5 // pred_check
        _
      $region50: #{tpu_custom_call.1} parent=5 // pred_check_branch
        %306 = sbr.rel (%p303) target = $region52
      $region51: #{tpu_custom_call.1} parent=5 // pred_region
        %s307 = ssub.s32 %s21, 1
        %s308 = sand.u32 %s34, 1
        %s309 = scalar_lea.sflag [#allocation5], %s308
        %s310 = sand.u32 %s34, 1
        %s311 = smul.addr %s310, 408
        %s312 = scalar_lea.vmem [#allocation4], %s311
        // Predicated region
        $region53: #{tpu_custom_call.1} parent=51 // pred_check
          %p313 = pneg %p47
        $region54: #{tpu_custom_call.1} parent=51 // pred_check_branch
          %315 = sbr.rel (%p313) target = $region56
        $region55: #{tpu_custom_call.1} parent=51 // pred_region
          %316 = dma.done %s309, 6528
        $region56: #{tpu_custom_call.1} parent=51 // pred_fallthru
          _
        // Predicated region
        $region57: #{tpu_custom_call.1} parent=51 // pred_check
          %p317 = pneg %p89
        $region58: #{tpu_custom_call.1} parent=51 // pred_check_branch
          %319 = sbr.rel (%p317) target = $region60
        $region59: #{tpu_custom_call.1} parent=51 // pred_region
          %320 = dma.done [#allocation8], 18432
        $region60: #{tpu_custom_call.1} parent=51 // pred_fallthru
          _
        // Predicated region
        $region61: #{tpu_custom_call.1} parent=51 // pred_check
          %p321 = pneg %p152
        $region62: #{tpu_custom_call.1} parent=51 // pred_check_branch
          %323 = sbr.rel (%p321) target = $region64
        $region63: #{tpu_custom_call.1} parent=51 // pred_region
          %324 = dma.done [#allocation8], 18432
        $region64: #{tpu_custom_call.1} parent=51 // pred_fallthru
          _
        %s325 = sand.u32 %s34, 1
        %s326 = scalar_lea.sflag [#allocation5], %s325
        %s327 = sand.u32 %s34, 1
        %s328 = smul.addr %s327, 408
        %s329 = scalar_lea.vmem [#allocation4], %s328
        %p330 = pneg %p47
        %p331 = pneg %p44
        %p332 = pneg %p68
        %p333 = pneg %p65
        %p334 = pneg %p89
        %p335 = pneg %p86
        %p336 = pneg %p110
        %p337 = pneg %p107
        %p338 = pneg %p131
        %p339 = pneg %p128
        %p340 = pneg %p152
        %p341 = pneg %p149
        %p342 = pneg %p173
        %p343 = pneg %p170
        %p344 = pneg %p194
        %p345 = pneg %p191
        %p346 = pneg %p220
        %p347 = pneg %p217
        %s348 = sand.u32 %s207, 1
        %s349 = scalar_lea.sflag [#allocation6], %s348
        %s350 = sand.u32 %s207, 1
        %s351 = smul.addr %s350, 320
        %s352 = scalar_lea.vmem [#allocation10], %s351
        %v353 = vld [vmem:[%s312] sm:$0xff]
        %v354 = vld [vmem:[%s312 + $0x8] sm:$0xff]
        %v355 = vld [vmem:[%s312 + $0x10] sm:$0xff]
        %v356 = vld [vmem:[%s312 + $0x18] sm:$0xff]
        %v357 = vld [vmem:[%s312 + $0x20] sm:$0xff]
        %v358 = vld [vmem:[%s312 + $0x28] sm:$0xff]
        %v359 = vld [vmem:[%s312 + $0x30] sm:$0xff]
        %v360 = vld [vmem:[%s312 + $0x38] sm:$0xff]
        %v361 = vld [vmem:[%s312 + $0x40] sm:$0xff]
        %v362 = vld [vmem:[%s312 + $0x48] sm:$0xff]
        %v363 = vld [vmem:[%s312 + $0x50] sm:$0xff]
        %v364 = vld [vmem:[%s312 + $0x58] sm:$0xff]
        %v365 = vld [vmem:[%s312 + $0x60] sm:$0xff]
        %v366 = vld [vmem:[%s312 + $0x68] sm:$0xff]
        %v367 = vld [vmem:[%s312 + $0x70] sm:$0xff]
        %v368 = vld [vmem:[%s312 + $0x78] sm:$0xff]
        %v369 = vld [vmem:[%s312 + $0x80] sm:$0xff]
        %v370 = vld [vmem:[%s312 + $0x88] sm:$0xff]
        %v371 = vld [vmem:[%s312 + $0x90] sm:$0xff]
        %v372 = vld [vmem:[%s312 + $0x98] sm:$0xff]
        %v373 = vld [vmem:[%s312 + $0xa0] sm:$0xff]
        %v374 = vld [vmem:[%s312 + $0xa8] sm:$0xff]
        %v375 = vld [vmem:[%s312 + $0xb0] sm:$0xff]
        %v376 = vld [vmem:[%s312 + $0xb8] sm:$0xff]
        %v377 = vld [vmem:[%s312 + $0xc0] sm:$0xff]
        %v378 = vld [vmem:[%s312 + $0xc8] sm:$0xff]
        %v379 = vld [vmem:[%s312 + $0xd0] sm:$0xff]
        %v380 = vld [vmem:[%s312 + $0xd8] sm:$0xff]
        %v381 = vld [vmem:[%s312 + $0xe0] sm:$0xff]
        %v382 = vld [vmem:[%s312 + $0xe8] sm:$0xff]
        %v383 = vld [vmem:[%s312 + $0xf0] sm:$0xff]
        %v384 = vld [vmem:[%s312 + $0xf8] sm:$0xff]
        %v385 = vld [vmem:[%s312 + $0x100] sm:$0xff]
        %v386 = vld [vmem:[%s312 + $0x108] sm:$0xff]
        %v387 = vld [vmem:[%s312 + $0x110] sm:$0xff]
        %v388 = vld [vmem:[%s312 + $0x118] sm:$0xff]
        %v389 = vld [vmem:[%s312 + $0x120] sm:$0xff]
        %v390 = vld [vmem:[%s312 + $0x128] sm:$0xff]
        %v391 = vld [vmem:[%s312 + $0x130] sm:$0xff]
        %v392 = vld [vmem:[%s312 + $0x138] sm:$0xff]
        %v393 = vld [vmem:[%s312 + $0x140] sm:$0xff]
        %v394 = vld [vmem:[%s312 + $0x148] sm:$0xff]
        %v395 = vld [vmem:[%s312 + $0x150] sm:$0xff]
        %v396 = vld [vmem:[%s312 + $0x158] sm:$0xff]
        %v397 = vld [vmem:[%s312 + $0x160] sm:$0xff]
        %v398 = vld [vmem:[#allocation7] sm:$0xff]
        %v399 = vld [vmem:[#allocation7 + $0x8] sm:$0xff]
        %v400 = vld [vmem:[#allocation7 + $0x10] sm:$0xff]
        %v401 = vld [vmem:[#allocation7 + $0x18] sm:$0xff]
        %v402 = vld [vmem:[#allocation7 + $0x20] sm:$0xff]
        %v403 = vld [vmem:[#allocation7 + $0x28] sm:$0xff]
        %v404 = vld [vmem:[#allocation7 + $0x30] sm:$0xff]
        %v405 = vld [vmem:[#allocation7 + $0x38] sm:$0xff]
        %v406 = vld [vmem:[#allocation7 + $0x40] sm:$0xff]
        %v407 = vld [vmem:[#allocation7 + $0x48] sm:$0xff]
        %v408 = vld [vmem:[#allocation7 + $0x50] sm:$0xff]
        %v409 = vld [vmem:[#allocation7 + $0x58] sm:$0xff]
        %v410 = vld [vmem:[#allocation7 + $0x60] sm:$0xff]
        %v411 = vld [vmem:[#allocation7 + $0x68] sm:$0xff]
        %v412 = vld [vmem:[#allocation7 + $0x70] sm:$0xff]
        %v413 = vld [vmem:[#allocation7 + $0x78] sm:$0xff]
        %v414 = vld [vmem:[%s312 + $0x1] sm:$0xff]
        %v415 = vld [vmem:[%s312 + $0x9] sm:$0xff]
        %v416 = vld [vmem:[%s312 + $0x11] sm:$0xff]
        %v417 = vld [vmem:[%s312 + $0x19] sm:$0xff]
        %v418 = vld [vmem:[%s312 + $0x21] sm:$0xff]
        %v419 = vld [vmem:[%s312 + $0x29] sm:$0xff]
        %v420 = vld [vmem:[%s312 + $0x31] sm:$0xff]
        %v421 = vld [vmem:[%s312 + $0x39] sm:$0xff]
        %v422 = vld [vmem:[%s312 + $0x41] sm:$0xff]
        %v423 = vld [vmem:[%s312 + $0x49] sm:$0xff]
        %v424 = vld [vmem:[%s312 + $0x51] sm:$0xff]
        %v425 = vld [vmem:[%s312 + $0x59] sm:$0xff]
        %v426 = vld [vmem:[%s312 + $0x61] sm:$0xff]
        %v427 = vld [vmem:[%s312 + $0x69] sm:$0xff]
        %v428 = vld [vmem:[%s312 + $0x71] sm:$0xff]
        %v429 = vld [vmem:[%s312 + $0x79] sm:$0xff]
        %v430 = vld [vmem:[%s312 + $0x81] sm:$0xff]
        %v431 = vld [vmem:[%s312 + $0x89] sm:$0xff]
        %v432 = vld [vmem:[%s312 + $0x91] sm:$0xff]
        %v433 = vld [vmem:[%s312 + $0x99] sm:$0xff]
        %v434 = vld [vmem:[%s312 + $0xa1] sm:$0xff]
        %v435 = vld [vmem:[%s312 + $0xa9] sm:$0xff]
        %v436 = vld [vmem:[%s312 + $0xb1] sm:$0xff]
        %v437 = vld [vmem:[%s312 + $0xb9] sm:$0xff]
        %v438 = vld [vmem:[%s312 + $0xc1] sm:$0xff]
        %v439 = vld [vmem:[%s312 + $0xc9] sm:$0xff]
        %v440 = vld [vmem:[%s312 + $0xd1] sm:$0xff]
        %v441 = vld [vmem:[%s312 + $0xd9] sm:$0xff]
        %v442 = vld [vmem:[%s312 + $0xe1] sm:$0xff]
        %v443 = vld [vmem:[%s312 + $0xe9] sm:$0xff]
        %v444 = vld [vmem:[%s312 + $0xf1] sm:$0xff]
        %v445 = vld [vmem:[%s312 + $0xf9] sm:$0xff]
        %v446 = vld [vmem:[%s312 + $0x101] sm:$0xff]
        %v447 = vld [vmem:[%s312 + $0x109] sm:$0xff]
        %v448 = vld [vmem:[%s312 + $0x111] sm:$0xff]
        %v449 = vld [vmem:[%s312 + $0x119] sm:$0xff]
        %v450 = vld [vmem:[%s312 + $0x121] sm:$0xff]
        %v451 = vld [vmem:[%s312 + $0x129] sm:$0xff]
        %v452 = vld [vmem:[%s312 + $0x131] sm:$0xff]
        %v453 = vld [vmem:[%s312 + $0x139] sm:$0xff]
        %v454 = vld [vmem:[%s312 + $0x141] sm:$0xff]
        %v455 = vld [vmem:[%s312 + $0x149] sm:$0xff]
        %v456 = vld [vmem:[%s312 + $0x151] sm:$0xff]
        %v457 = vld [vmem:[%s312 + $0x159] sm:$0xff]
        %v458 = vld [vmem:[%s312 + $0x161] sm:$0xff]
        %s459 = scalar_lea.vmem [#allocation7], 128
        %v460 = vld [vmem:[%s459] sm:$0xff]
        %v461 = vld [vmem:[%s459 + $0x8] sm:$0xff]
        %v462 = vld [vmem:[%s459 + $0x10] sm:$0xff]
        %v463 = vld [vmem:[%s459 + $0x18] sm:$0xff]
        %v464 = vld [vmem:[%s459 + $0x20] sm:$0xff]
        %v465 = vld [vmem:[%s459 + $0x28] sm:$0xff]
        %v466 = vld [vmem:[%s459 + $0x30] sm:$0xff]
        %v467 = vld [vmem:[%s459 + $0x38] sm:$0xff]
        %v468 = vld [vmem:[%s459 + $0x40] sm:$0xff]
        %v469 = vld [vmem:[%s459 + $0x48] sm:$0xff]
        %v470 = vld [vmem:[%s459 + $0x50] sm:$0xff]
        %v471 = vld [vmem:[%s459 + $0x58] sm:$0xff]
        %v472 = vld [vmem:[%s459 + $0x60] sm:$0xff]
        %v473 = vld [vmem:[%s459 + $0x68] sm:$0xff]
        %v474 = vld [vmem:[%s459 + $0x70] sm:$0xff]
        %v475 = vld [vmem:[%s459 + $0x78] sm:$0xff]
        %476 = vmatprep.subr.mxu0 0.0
        %477 = vmatpush1.msra.mxu0 %v475
        %478 = vmatprep.subr.mxu0 0.0
        %479 = vmatpush1.msra.mxu0 %v474
        %480 = vmatprep.subr.mxu0 0.0
        %481 = vmatpush1.msra.mxu0 %v473
        %482 = vmatprep.subr.mxu0 0.0
        %483 = vmatpush1.msra.mxu0 %v472
        %484 = vmatprep.subr.mxu0 0.0
        %485 = vmatpush1.msra.mxu0 %v471
        %486 = vmatprep.subr.mxu0 0.0
        %487 = vmatpush1.msra.mxu0 %v470
        %488 = vmatprep.subr.mxu0 0.0
        %489 = vmatpush1.msra.mxu0 %v469
        %490 = vmatprep.subr.mxu0 0.0
        %491 = vmatpush1.msra.mxu0 %v468
        %492 = vmatprep.subr.mxu0 0.0
        %493 = vmatpush1.msra.mxu0 %v467
        %494 = vmatprep.subr.mxu0 0.0
        %495 = vmatpush1.msra.mxu0 %v466
        %496 = vmatprep.subr.mxu0 0.0
        %497 = vmatpush1.msra.mxu0 %v465
        %498 = vmatprep.subr.mxu0 0.0
        %499 = vmatpush1.msra.mxu0 %v464
        %500 = vmatprep.subr.mxu0 0.0
        %501 = vmatpush1.msra.mxu0 %v463
        %502 = vmatprep.subr.mxu0 0.0
        %503 = vmatpush1.msra.mxu0 %v462
        %504 = vmatprep.subr.mxu0 0.0
        %505 = vmatpush1.msra.mxu0 %v461
        %506 = vmatprep.subr.mxu0 0.0
        %507 = vmatpush1.msra.mxu0 %v460
        %508 = vmatprep.subr.mxu0 0.0
        %509 = vmatpush2.msra.mxu0 0.0
        %510 = vmatprep.subr.mxu0 0.0
        %511 = vmatpush2.msra.mxu0 0.0
        %512 = vmatprep.subr.mxu0 0.0
        %513 = vmatpush2.msra.mxu0 0.0
        %514 = vmatprep.subr.mxu0 0.0
        %515 = vmatpush2.msra.mxu0 0.0
        %516 = vmatprep.subr.mxu0 0.0
        %517 = vmatpush2.msra.mxu0 0.0
        %518 = vmatprep.subr.mxu0 0.0
        %519 = vmatpush2.msra.mxu0 0.0
        %520 = vmatprep.subr.mxu0 0.0
        %521 = vmatpush2.msra.mxu0 0.0
        %522 = vmatprep.subr.mxu0 0.0
        %523 = vmatpush2.msra.mxu0 0.0
        %524 = vmatprep.subr.mxu0 0.0
        %525 = vmatpush2.msra.mxu0 0.0
        %526 = vmatprep.subr.mxu0 0.0
        %527 = vmatpush2.msra.mxu0 0.0
        %528 = vmatprep.subr.mxu0 0.0
        %529 = vmatpush2.msra.mxu0 0.0
        %530 = vmatprep.subr.mxu0 0.0
        %531 = vmatpush2.msra.mxu0 0.0
        %532 = vmatprep.subr.mxu0 0.0
        %533 = vmatpush2.msra.mxu0 0.0
        %534 = vmatprep.subr.mxu0 0.0
        %535 = vmatpush2.msra.mxu0 0.0
        %536 = vmatprep.subr.mxu0 0.0
        %537 = vmatpush2.msra.mxu0 0.0
        %538 = vmatprep.subr.mxu0 0.0
        %539 = vmatpush2.msra.mxu0 0.0
        %540 = vmatprep.mubr.f32.mxu0 0.0
        %541 = vmatmul.mubr.f32.gmra.mxu0 %v414
        %v542 = vpop.f32.mrf.mxu0
        %v543 = vadd.f32 0.0, %v542
        %v544 = vpop.f32.mrf.mxu0
        %545 = vmatprep.mubr.f32.mxu0 0.0
        %546 = vmatmul.mubr.f32.gmra.mxu0 %v415
        %v547 = vpop.f32.mrf.mxu0
        %v548 = vadd.f32 0.0, %v547
        %v549 = vpop.f32.mrf.mxu0
        %550 = vmatprep.mubr.f32.mxu0 0.0
        %551 = vmatmul.mubr.f32.gmra.mxu0 %v416
        %v552 = vpop.f32.mrf.mxu0
        %v553 = vadd.f32 0.0, %v552
        %v554 = vpop.f32.mrf.mxu0
        %555 = vmatprep.mubr.f32.mxu0 0.0
        %556 = vmatmul.mubr.f32.gmra.mxu0 %v417
        %v557 = vpop.f32.mrf.mxu0
        %v558 = vadd.f32 0.0, %v557
        %v559 = vpop.f32.mrf.mxu0
        %560 = vmatprep.mubr.f32.mxu0 0.0
        %561 = vmatmul.mubr.f32.gmra.mxu0 %v418
        %v562 = vpop.f32.mrf.mxu0
        %v563 = vadd.f32 0.0, %v562
        %v564 = vpop.f32.mrf.mxu0
        %565 = vmatprep.mubr.f32.mxu0 0.0
        %566 = vmatmul.mubr.f32.gmra.mxu0 %v419
        %v567 = vpop.f32.mrf.mxu0
        %v568 = vadd.f32 0.0, %v567
        %v569 = vpop.f32.mrf.mxu0
        %570 = vmatprep.mubr.f32.mxu0 0.0
        %571 = vmatmul.mubr.f32.gmra.mxu0 %v420
        %v572 = vpop.f32.mrf.mxu0
        %v573 = vadd.f32 0.0, %v572
        %v574 = vpop.f32.mrf.mxu0
        %575 = vmatprep.mubr.f32.mxu0 0.0
        %576 = vmatmul.mubr.f32.gmra.mxu0 %v421
        %v577 = vpop.f32.mrf.mxu0
        %v578 = vadd.f32 0.0, %v577
        %v579 = vpop.f32.mrf.mxu0
        %580 = vmatprep.mubr.f32.mxu0 0.0
        %581 = vmatmul.mubr.f32.gmra.mxu0 %v422
        %v582 = vpop.f32.mrf.mxu0
        %v583 = vadd.f32 0.0, %v582
        %v584 = vpop.f32.mrf.mxu0
        %585 = vmatprep.mubr.f32.mxu0 0.0
        %586 = vmatmul.mubr.f32.gmra.mxu0 %v423
        %v587 = vpop.f32.mrf.mxu0
        %v588 = vadd.f32 0.0, %v587
        %v589 = vpop.f32.mrf.mxu0
        %590 = vmatprep.mubr.f32.mxu0 0.0
        %591 = vmatmul.mubr.f32.gmra.mxu0 %v424
        %v592 = vpop.f32.mrf.mxu0
        %v593 = vadd.f32 0.0, %v592
        %v594 = vpop.f32.mrf.mxu0
        %595 = vmatprep.mubr.f32.mxu0 0.0
        %596 = vmatmul.mubr.f32.gmra.mxu0 %v425
        %v597 = vpop.f32.mrf.mxu0
        %v598 = vadd.f32 0.0, %v597
        %v599 = vpop.f32.mrf.mxu0
        %600 = vmatprep.mubr.f32.mxu0 0.0
        %601 = vmatmul.mubr.f32.gmra.mxu0 %v426
        %v602 = vpop.f32.mrf.mxu0
        %v603 = vadd.f32 0.0, %v602
        %v604 = vpop.f32.mrf.mxu0
        %605 = vmatprep.mubr.f32.mxu0 0.0
        %606 = vmatmul.mubr.f32.gmra.mxu0 %v427
        %v607 = vpop.f32.mrf.mxu0
        %v608 = vadd.f32 0.0, %v607
        %v609 = vpop.f32.mrf.mxu0
        %610 = vmatprep.mubr.f32.mxu0 0.0
        %611 = vmatmul.mubr.f32.gmra.mxu0 %v428
        %v612 = vpop.f32.mrf.mxu0
        %v613 = vadd.f32 0.0, %v612
        %v614 = vpop.f32.mrf.mxu0
        %615 = vmatprep.mubr.f32.mxu0 0.0
        %616 = vmatmul.mubr.f32.gmra.mxu0 %v429
        %v617 = vpop.f32.mrf.mxu0
        %v618 = vadd.f32 0.0, %v617
        %v619 = vpop.f32.mrf.mxu0
        %620 = vmatprep.mubr.f32.mxu0 0.0
        %621 = vmatmul.mubr.f32.gmra.mxu0 %v430
        %v622 = vpop.f32.mrf.mxu0
        %v623 = vadd.f32 0.0, %v622
        %v624 = vpop.f32.mrf.mxu0
        %625 = vmatprep.mubr.f32.mxu0 0.0
        %626 = vmatmul.mubr.f32.gmra.mxu0 %v431
        %v627 = vpop.f32.mrf.mxu0
        %v628 = vadd.f32 0.0, %v627
        %v629 = vpop.f32.mrf.mxu0
        %630 = vmatprep.mubr.f32.mxu0 0.0
        %631 = vmatmul.mubr.f32.gmra.mxu0 %v432
        %v632 = vpop.f32.mrf.mxu0
        %v633 = vadd.f32 0.0, %v632
        %v634 = vpop.f32.mrf.mxu0
        %635 = vmatprep.mubr.f32.mxu0 0.0
        %636 = vmatmul.mubr.f32.gmra.mxu0 %v433
        %v637 = vpop.f32.mrf.mxu0
        %v638 = vadd.f32 0.0, %v637
        %v639 = vpop.f32.mrf.mxu0
        %640 = vmatprep.mubr.f32.mxu0 0.0
        %641 = vmatmul.mubr.f32.gmra.mxu0 %v434
        %v642 = vpop.f32.mrf.mxu0
        %v643 = vadd.f32 0.0, %v642
        %v644 = vpop.f32.mrf.mxu0
        %645 = vmatprep.mubr.f32.mxu0 0.0
        %646 = vmatmul.mubr.f32.gmra.mxu0 %v435
        %v647 = vpop.f32.mrf.mxu0
        %v648 = vadd.f32 0.0, %v647
        %v649 = vpop.f32.mrf.mxu0
        %650 = vmatprep.mubr.f32.mxu0 0.0
        %651 = vmatmul.mubr.f32.gmra.mxu0 %v436
        %v652 = vpop.f32.mrf.mxu0
        %v653 = vadd.f32 0.0, %v652
        %v654 = vpop.f32.mrf.mxu0
        %655 = vmatprep.mubr.f32.mxu0 0.0
        %656 = vmatmul.mubr.f32.gmra.mxu0 %v437
        %v657 = vpop.f32.mrf.mxu0
        %v658 = vadd.f32 0.0, %v657
        %v659 = vpop.f32.mrf.mxu0
        %660 = vmatprep.mubr.f32.mxu0 0.0
        %661 = vmatmul.mubr.f32.gmra.mxu0 %v438
        %v662 = vpop.f32.mrf.mxu0
        %v663 = vadd.f32 0.0, %v662
        %v664 = vpop.f32.mrf.mxu0
        %665 = vmatprep.mubr.f32.mxu0 0.0
        %666 = vmatmul.mubr.f32.gmra.mxu0 %v439
        %v667 = vpop.f32.mrf.mxu0
        %v668 = vadd.f32 0.0, %v667
        %v669 = vpop.f32.mrf.mxu0
        %670 = vmatprep.mubr.f32.mxu0 0.0
        %671 = vmatmul.mubr.f32.gmra.mxu0 %v440
        %v672 = vpop.f32.mrf.mxu0
        %v673 = vadd.f32 0.0, %v672
        %v674 = vpop.f32.mrf.mxu0
        %675 = vmatprep.mubr.f32.mxu0 0.0
        %676 = vmatmul.mubr.f32.gmra.mxu0 %v441
        %v677 = vpop.f32.mrf.mxu0
        %v678 = vadd.f32 0.0, %v677
        %v679 = vpop.f32.mrf.mxu0
        %680 = vmatprep.mubr.f32.mxu0 0.0
        %681 = vmatmul.mubr.f32.gmra.mxu0 %v442
        %v682 = vpop.f32.mrf.mxu0
        %v683 = vadd.f32 0.0, %v682
        %v684 = vpop.f32.mrf.mxu0
        %685 = vmatprep.mubr.f32.mxu0 0.0
        %686 = vmatmul.mubr.f32.gmra.mxu0 %v443
        %v687 = vpop.f32.mrf.mxu0
        %v688 = vadd.f32 0.0, %v687
        %v689 = vpop.f32.mrf.mxu0
        %690 = vmatprep.mubr.f32.mxu0 0.0
        %691 = vmatmul.mubr.f32.gmra.mxu0 %v444
        %v692 = vpop.f32.mrf.mxu0
        %v693 = vadd.f32 0.0, %v692
        %v694 = vpop.f32.mrf.mxu0
        %695 = vmatprep.mubr.f32.mxu0 0.0
        %696 = vmatmul.mubr.f32.gmra.mxu0 %v445
        %v697 = vpop.f32.mrf.mxu0
        %v698 = vadd.f32 0.0, %v697
        %v699 = vpop.f32.mrf.mxu0
        %700 = vmatprep.mubr.f32.mxu0 0.0
        %701 = vmatmul.mubr.f32.gmra.mxu0 %v446
        %v702 = vpop.f32.mrf.mxu0
        %v703 = vadd.f32 0.0, %v702
        %v704 = vpop.f32.mrf.mxu0
        %705 = vmatprep.mubr.f32.mxu0 0.0
        %706 = vmatmul.mubr.f32.gmra.mxu0 %v447
        %v707 = vpop.f32.mrf.mxu0
        %v708 = vadd.f32 0.0, %v707
        %v709 = vpop.f32.mrf.mxu0
        %710 = vmatprep.mubr.f32.mxu0 0.0
        %711 = vmatmul.mubr.f32.gmra.mxu0 %v448
        %v712 = vpop.f32.mrf.mxu0
        %v713 = vadd.f32 0.0, %v712
        %v714 = vpop.f32.mrf.mxu0
        %715 = vmatprep.mubr.f32.mxu0 0.0
        %716 = vmatmul.mubr.f32.gmra.mxu0 %v449
        %v717 = vpop.f32.mrf.mxu0
        %v718 = vadd.f32 0.0, %v717
        %v719 = vpop.f32.mrf.mxu0
        %720 = vmatprep.mubr.f32.mxu0 0.0
        %721 = vmatmul.mubr.f32.gmra.mxu0 %v450
        %v722 = vpop.f32.mrf.mxu0
        %v723 = vadd.f32 0.0, %v722
        %v724 = vpop.f32.mrf.mxu0
        %725 = vmatprep.mubr.f32.mxu0 0.0
        %726 = vmatmul.mubr.f32.gmra.mxu0 %v451
        %v727 = vpop.f32.mrf.mxu0
        %v728 = vadd.f32 0.0, %v727
        %v729 = vpop.f32.mrf.mxu0
        %730 = vmatprep.mubr.f32.mxu0 0.0
        %731 = vmatmul.mubr.f32.gmra.mxu0 %v452
        %v732 = vpop.f32.mrf.mxu0
        %v733 = vadd.f32 0.0, %v732
        %v734 = vpop.f32.mrf.mxu0
        %735 = vmatprep.mubr.f32.mxu0 0.0
        %736 = vmatmul.mubr.f32.gmra.mxu0 %v453
        %v737 = vpop.f32.mrf.mxu0
        %v738 = vadd.f32 0.0, %v737
        %v739 = vpop.f32.mrf.mxu0
        %740 = vmatprep.mubr.f32.mxu0 0.0
        %741 = vmatmul.mubr.f32.gmra.mxu0 %v454
        %v742 = vpop.f32.mrf.mxu0
        %v743 = vadd.f32 0.0, %v742
        %v744 = vpop.f32.mrf.mxu0
        %745 = vmatprep.mubr.f32.mxu0 0.0
        %746 = vmatmul.mubr.f32.gmra.mxu0 %v455
        %v747 = vpop.f32.mrf.mxu0
        %v748 = vadd.f32 0.0, %v747
        %v749 = vpop.f32.mrf.mxu0
        %750 = vmatprep.mubr.f32.mxu0 0.0
        %751 = vmatmul.mubr.f32.gmra.mxu0 %v456
        %v752 = vpop.f32.mrf.mxu0
        %v753 = vadd.f32 0.0, %v752
        %v754 = vpop.f32.mrf.mxu0
        %755 = vmatprep.mubr.f32.mxu0 0.0
        %756 = vmatmul.mubr.f32.gmra.mxu0 %v457
        %v757 = vpop.f32.mrf.mxu0
        %v758 = vadd.f32 0.0, %v757
        %v759 = vpop.f32.mrf.mxu0
        %760 = vmatprep.mubr.f32.mxu0 0.0
        %761 = vmatmul.mubr.f32.gmra.mxu0 %v458
        %v762 = vpop.f32.mrf.mxu0
        %v763 = vadd.f32 0.0, %v762
        %v764 = vpop.f32.mrf.mxu0
        %765 = vdwg.mxu0
        %766 = vmatprep.subr.mxu0 0.0
        %767 = vmatpush1.msra.mxu0 %v413
        %768 = vmatprep.subr.mxu0 0.0
        %769 = vmatpush1.msra.mxu0 %v412
        %770 = vmatprep.subr.mxu0 0.0
        %771 = vmatpush1.msra.mxu0 %v411
        %772 = vmatprep.subr.mxu0 0.0
        %773 = vmatpush1.msra.mxu0 %v410
        %774 = vmatprep.subr.mxu0 0.0
        %775 = vmatpush1.msra.mxu0 %v409
        %776 = vmatprep.subr.mxu0 0.0
        %777 = vmatpush1.msra.mxu0 %v408
        %778 = vmatprep.subr.mxu0 0.0
        %779 = vmatpush1.msra.mxu0 %v407
        %780 = vmatprep.subr.mxu0 0.0
        %781 = vmatpush1.msra.mxu0 %v406
        %782 = vmatprep.subr.mxu0 0.0
        %783 = vmatpush1.msra.mxu0 %v405
        %784 = vmatprep.subr.mxu0 0.0
        %785 = vmatpush1.msra.mxu0 %v404
        %786 = vmatprep.subr.mxu0 0.0
        %787 = vmatpush1.msra.mxu0 %v403
        %788 = vmatprep.subr.mxu0 0.0
        %789 = vmatpush1.msra.mxu0 %v402
        %790 = vmatprep.subr.mxu0 0.0
        %791 = vmatpush1.msra.mxu0 %v401
        %792 = vmatprep.subr.mxu0 0.0
        %793 = vmatpush1.msra.mxu0 %v400
        %794 = vmatprep.subr.mxu0 0.0
        %795 = vmatpush1.msra.mxu0 %v399
        %796 = vmatprep.subr.mxu0 0.0
        %797 = vmatpush1.msra.mxu0 %v398
        %798 = vmatprep.subr.mxu0 0.0
        %799 = vmatpush2.msra.mxu0 0.0
        %800 = vmatprep.subr.mxu0 0.0
        %801 = vmatpush2.msra.mxu0 0.0
        %802 = vmatprep.subr.mxu0 0.0
        %803 = vmatpush2.msra.mxu0 0.0
        %804 = vmatprep.subr.mxu0 0.0
        %805 = vmatpush2.msra.mxu0 0.0
        %806 = vmatprep.subr.mxu0 0.0
        %807 = vmatpush2.msra.mxu0 0.0
        %808 = vmatprep.subr.mxu0 0.0
        %809 = vmatpush2.msra.mxu0 0.0
        %810 = vmatprep.subr.mxu0 0.0
        %811 = vmatpush2.msra.mxu0 0.0
        %812 = vmatprep.subr.mxu0 0.0
        %813 = vmatpush2.msra.mxu0 0.0
        %814 = vmatprep.subr.mxu0 0.0
        %815 = vmatpush2.msra.mxu0 0.0
        %816 = vmatprep.subr.mxu0 0.0
        %817 = vmatpush2.msra.mxu0 0.0
        %818 = vmatprep.subr.mxu0 0.0
        %819 = vmatpush2.msra.mxu0 0.0
        %820 = vmatprep.subr.mxu0 0.0
        %821 = vmatpush2.msra.mxu0 0.0
        %822 = vmatprep.subr.mxu0 0.0
        %823 = vmatpush2.msra.mxu0 0.0
        %824 = vmatprep.subr.mxu0 0.0
        %825 = vmatpush2.msra.mxu0 0.0
        %826 = vmatprep.subr.mxu0 0.0
        %827 = vmatpush2.msra.mxu0 0.0
        %828 = vmatprep.subr.mxu0 0.0
        %829 = vmatpush2.msra.mxu0 0.0
        %830 = vmatprep.mubr.f32.mxu0 0.0
        %831 = vmatmul.mubr.f32.gmra.mxu0 %v353
        %v832 = vpop.f32.mrf.mxu0
        %v833 = vadd.f32 %v543, %v832
        %v834 = vpop.f32.mrf.mxu0
        %835 = vmatprep.mubr.f32.mxu0 0.0
        %836 = vmatmul.mubr.f32.gmra.mxu0 %v354
        %v837 = vpop.f32.mrf.mxu0
        %v838 = vadd.f32 %v548, %v837
        %v839 = vpop.f32.mrf.mxu0
        %840 = vmatprep.mubr.f32.mxu0 0.0
        %841 = vmatmul.mubr.f32.gmra.mxu0 %v355
        %v842 = vpop.f32.mrf.mxu0
        %v843 = vadd.f32 %v553, %v842
        %v844 = vpop.f32.mrf.mxu0
        %845 = vmatprep.mubr.f32.mxu0 0.0
        %846 = vmatmul.mubr.f32.gmra.mxu0 %v356
        %v847 = vpop.f32.mrf.mxu0
        %v848 = vadd.f32 %v558, %v847
        %v849 = vpop.f32.mrf.mxu0
        %850 = vmatprep.mubr.f32.mxu0 0.0
        %851 = vmatmul.mubr.f32.gmra.mxu0 %v357
        %v852 = vpop.f32.mrf.mxu0
        %v853 = vadd.f32 %v563, %v852
        %v854 = vpop.f32.mrf.mxu0
        %855 = vmatprep.mubr.f32.mxu0 0.0
        %856 = vmatmul.mubr.f32.gmra.mxu0 %v358
        %v857 = vpop.f32.mrf.mxu0
        %v858 = vadd.f32 %v568, %v857
        %v859 = vpop.f32.mrf.mxu0
        %860 = vmatprep.mubr.f32.mxu0 0.0
        %861 = vmatmul.mubr.f32.gmra.mxu0 %v359
        %v862 = vpop.f32.mrf.mxu0
        %v863 = vadd.f32 %v573, %v862
        %v864 = vpop.f32.mrf.mxu0
        %865 = vmatprep.mubr.f32.mxu0 0.0
        %866 = vmatmul.mubr.f32.gmra.mxu0 %v360
        %v867 = vpop.f32.mrf.mxu0
        %v868 = vadd.f32 %v578, %v867
        %v869 = vpop.f32.mrf.mxu0
        %870 = vmatprep.mubr.f32.mxu0 0.0
        %871 = vmatmul.mubr.f32.gmra.mxu0 %v361
        %v872 = vpop.f32.mrf.mxu0
        %v873 = vadd.f32 %v583, %v872
        %v874 = vpop.f32.mrf.mxu0
        %875 = vmatprep.mubr.f32.mxu0 0.0
        %876 = vmatmul.mubr.f32.gmra.mxu0 %v362
        %v877 = vpop.f32.mrf.mxu0
        %v878 = vadd.f32 %v588, %v877
        %v879 = vpop.f32.mrf.mxu0
        %880 = vmatprep.mubr.f32.mxu0 0.0
        %881 = vmatmul.mubr.f32.gmra.mxu0 %v363
        %v882 = vpop.f32.mrf.mxu0
        %v883 = vadd.f32 %v593, %v882
        %v884 = vpop.f32.mrf.mxu0
        %885 = vmatprep.mubr.f32.mxu0 0.0
        %886 = vmatmul.mubr.f32.gmra.mxu0 %v364
        %v887 = vpop.f32.mrf.mxu0
        %v888 = vadd.f32 %v598, %v887
        %v889 = vpop.f32.mrf.mxu0
        %890 = vmatprep.mubr.f32.mxu0 0.0
        %891 = vmatmul.mubr.f32.gmra.mxu0 %v365
        %v892 = vpop.f32.mrf.mxu0
        %v893 = vadd.f32 %v603, %v892
        %v894 = vpop.f32.mrf.mxu0
        %895 = vmatprep.mubr.f32.mxu0 0.0
        %896 = vmatmul.mubr.f32.gmra.mxu0 %v366
        %v897 = vpop.f32.mrf.mxu0
        %v898 = vadd.f32 %v608, %v897
        %v899 = vpop.f32.mrf.mxu0
        %900 = vmatprep.mubr.f32.mxu0 0.0
        %901 = vmatmul.mubr.f32.gmra.mxu0 %v367
        %v902 = vpop.f32.mrf.mxu0
        %v903 = vadd.f32 %v613, %v902
        %v904 = vpop.f32.mrf.mxu0
        %905 = vmatprep.mubr.f32.mxu0 0.0
        %906 = vmatmul.mubr.f32.gmra.mxu0 %v368
        %v907 = vpop.f32.mrf.mxu0
        %v908 = vadd.f32 %v618, %v907
        %v909 = vpop.f32.mrf.mxu0
        %910 = vmatprep.mubr.f32.mxu0 0.0
        %911 = vmatmul.mubr.f32.gmra.mxu0 %v369
        %v912 = vpop.f32.mrf.mxu0
        %v913 = vadd.f32 %v623, %v912
        %v914 = vpop.f32.mrf.mxu0
        %915 = vmatprep.mubr.f32.mxu0 0.0
        %916 = vmatmul.mubr.f32.gmra.mxu0 %v370
        %v917 = vpop.f32.mrf.mxu0
        %v918 = vadd.f32 %v628, %v917
        %v919 = vpop.f32.mrf.mxu0
        %920 = vmatprep.mubr.f32.mxu0 0.0
        %921 = vmatmul.mubr.f32.gmra.mxu0 %v371
        %v922 = vpop.f32.mrf.mxu0
        %v923 = vadd.f32 %v633, %v922
        %v924 = vpop.f32.mrf.mxu0
        %925 = vmatprep.mubr.f32.mxu0 0.0
        %926 = vmatmul.mubr.f32.gmra.mxu0 %v372
        %v927 = vpop.f32.mrf.mxu0
        %v928 = vadd.f32 %v638, %v927
        %v929 = vpop.f32.mrf.mxu0
        %930 = vmatprep.mubr.f32.mxu0 0.0
        %931 = vmatmul.mubr.f32.gmra.mxu0 %v373
        %v932 = vpop.f32.mrf.mxu0
        %v933 = vadd.f32 %v643, %v932
        %v934 = vpop.f32.mrf.mxu0
        %935 = vmatprep.mubr.f32.mxu0 0.0
        %936 = vmatmul.mubr.f32.gmra.mxu0 %v374
        %v937 = vpop.f32.mrf.mxu0
        %v938 = vadd.f32 %v648, %v937
        %v939 = vpop.f32.mrf.mxu0
        %940 = vmatprep.mubr.f32.mxu0 0.0
        %941 = vmatmul.mubr.f32.gmra.mxu0 %v375
        %v942 = vpop.f32.mrf.mxu0
        %v943 = vadd.f32 %v653, %v942
        %v944 = vpop.f32.mrf.mxu0
        %945 = vmatprep.mubr.f32.mxu0 0.0
        %946 = vmatmul.mubr.f32.gmra.mxu0 %v376
        %v947 = vpop.f32.mrf.mxu0
        %v948 = vadd.f32 %v658, %v947
        %v949 = vpop.f32.mrf.mxu0
        %950 = vmatprep.mubr.f32.mxu0 0.0
        %951 = vmatmul.mubr.f32.gmra.mxu0 %v377
        %v952 = vpop.f32.mrf.mxu0
        %v953 = vadd.f32 %v663, %v952
        %v954 = vpop.f32.mrf.mxu0
        %955 = vmatprep.mubr.f32.mxu0 0.0
        %956 = vmatmul.mubr.f32.gmra.mxu0 %v378
        %v957 = vpop.f32.mrf.mxu0
        %v958 = vadd.f32 %v668, %v957
        %v959 = vpop.f32.mrf.mxu0
        %960 = vmatprep.mubr.f32.mxu0 0.0
        %961 = vmatmul.mubr.f32.gmra.mxu0 %v379
        %v962 = vpop.f32.mrf.mxu0
        %v963 = vadd.f32 %v673, %v962
        %v964 = vpop.f32.mrf.mxu0
        %965 = vmatprep.mubr.f32.mxu0 0.0
        %966 = vmatmul.mubr.f32.gmra.mxu0 %v380
        %v967 = vpop.f32.mrf.mxu0
        %v968 = vadd.f32 %v678, %v967
        %v969 = vpop.f32.mrf.mxu0
        %970 = vmatprep.mubr.f32.mxu0 0.0
        %971 = vmatmul.mubr.f32.gmra.mxu0 %v381
        %v972 = vpop.f32.mrf.mxu0
        %v973 = vadd.f32 %v683, %v972
        %v974 = vpop.f32.mrf.mxu0
        %975 = vmatprep.mubr.f32.mxu0 0.0
        %976 = vmatmul.mubr.f32.gmra.mxu0 %v382
        %v977 = vpop.f32.mrf.mxu0
        %v978 = vadd.f32 %v688, %v977
        %v979 = vpop.f32.mrf.mxu0
        %980 = vmatprep.mubr.f32.mxu0 0.0
        %981 = vmatmul.mubr.f32.gmra.mxu0 %v383
        %v982 = vpop.f32.mrf.mxu0
        %v983 = vadd.f32 %v693, %v982
        %v984 = vpop.f32.mrf.mxu0
        %985 = vmatprep.mubr.f32.mxu0 0.0
        %986 = vmatmul.mubr.f32.gmra.mxu0 %v384
        %v987 = vpop.f32.mrf.mxu0
        %v988 = vadd.f32 %v698, %v987
        %v989 = vpop.f32.mrf.mxu0
        %990 = vmatprep.mubr.f32.mxu0 0.0
        %991 = vmatmul.mubr.f32.gmra.mxu0 %v385
        %v992 = vpop.f32.mrf.mxu0
        %v993 = vadd.f32 %v703, %v992
        %v994 = vpop.f32.mrf.mxu0
        %995 = vmatprep.mubr.f32.mxu0 0.0
        %996 = vmatmul.mubr.f32.gmra.mxu0 %v386
        %v997 = vpop.f32.mrf.mxu0
        %v998 = vadd.f32 %v708, %v997
        %v999 = vpop.f32.mrf.mxu0
        %1000 = vmatprep.mubr.f32.mxu0 0.0
        %1001 = vmatmul.mubr.f32.gmra.mxu0 %v387
        %v1002 = vpop.f32.mrf.mxu0
        %v1003 = vadd.f32 %v713, %v1002
        %v1004 = vpop.f32.mrf.mxu0
        %1005 = vmatprep.mubr.f32.mxu0 0.0
        %1006 = vmatmul.mubr.f32.gmra.mxu0 %v388
        %v1007 = vpop.f32.mrf.mxu0
        %v1008 = vadd.f32 %v718, %v1007
        %v1009 = vpop.f32.mrf.mxu0
        %1010 = vmatprep.mubr.f32.mxu0 0.0
        %1011 = vmatmul.mubr.f32.gmra.mxu0 %v389
        %v1012 = vpop.f32.mrf.mxu0
        %v1013 = vadd.f32 %v723, %v1012
        %v1014 = vpop.f32.mrf.mxu0
        %1015 = vmatprep.mubr.f32.mxu0 0.0
        %1016 = vmatmul.mubr.f32.gmra.mxu0 %v390
        %v1017 = vpop.f32.mrf.mxu0
        %v1018 = vadd.f32 %v728, %v1017
        %v1019 = vpop.f32.mrf.mxu0
        %1020 = vmatprep.mubr.f32.mxu0 0.0
        %1021 = vmatmul.mubr.f32.gmra.mxu0 %v391
        %v1022 = vpop.f32.mrf.mxu0
        %v1023 = vadd.f32 %v733, %v1022
        %v1024 = vpop.f32.mrf.mxu0
        %1025 = vmatprep.mubr.f32.mxu0 0.0
        %1026 = vmatmul.mubr.f32.gmra.mxu0 %v392
        %v1027 = vpop.f32.mrf.mxu0
        %v1028 = vadd.f32 %v738, %v1027
        %v1029 = vpop.f32.mrf.mxu0
        %1030 = vmatprep.mubr.f32.mxu0 0.0
        %1031 = vmatmul.mubr.f32.gmra.mxu0 %v393
        %v1032 = vpop.f32.mrf.mxu0
        %v1033 = vadd.f32 %v743, %v1032
        %v1034 = vpop.f32.mrf.mxu0
        %1035 = vmatprep.mubr.f32.mxu0 0.0
        %1036 = vmatmul.mubr.f32.gmra.mxu0 %v394
        %v1037 = vpop.f32.mrf.mxu0
        %v1038 = vadd.f32 %v748, %v1037
        %v1039 = vpop.f32.mrf.mxu0
        %1040 = vmatprep.mubr.f32.mxu0 0.0
        %1041 = vmatmul.mubr.f32.gmra.mxu0 %v395
        %v1042 = vpop.f32.mrf.mxu0
        %v1043 = vadd.f32 %v753, %v1042
        %v1044 = vpop.f32.mrf.mxu0
        %1045 = vmatprep.mubr.f32.mxu0 0.0
        %1046 = vmatmul.mubr.f32.gmra.mxu0 %v396
        %v1047 = vpop.f32.mrf.mxu0
        %v1048 = vadd.f32 %v758, %v1047
        %v1049 = vpop.f32.mrf.mxu0
        %1050 = vmatprep.mubr.f32.mxu0 0.0
        %1051 = vmatmul.mubr.f32.gmra.mxu0 %v397
        %v1052 = vpop.f32.mrf.mxu0
        %v1053 = vadd.f32 %v763, %v1052
        %v1054 = vpop.f32.mrf.mxu0
        %1055 = vdwg.mxu0
        %v1056 = vld [vmem:[%s312 + $0x2] sm:$0xff]
        %v1057 = vld [vmem:[%s312 + $0xa] sm:$0xff]
        %v1058 = vld [vmem:[%s312 + $0x12] sm:$0xff]
        %v1059 = vld [vmem:[%s312 + $0x1a] sm:$0xff]
        %v1060 = vld [vmem:[%s312 + $0x22] sm:$0xff]
        %v1061 = vld [vmem:[%s312 + $0x2a] sm:$0xff]
        %v1062 = vld [vmem:[%s312 + $0x32] sm:$0xff]
        %v1063 = vld [vmem:[%s312 + $0x3a] sm:$0xff]
        %v1064 = vld [vmem:[%s312 + $0x42] sm:$0xff]
        %v1065 = vld [vmem:[%s312 + $0x4a] sm:$0xff]
        %v1066 = vld [vmem:[%s312 + $0x52] sm:$0xff]
        %v1067 = vld [vmem:[%s312 + $0x5a] sm:$0xff]
        %v1068 = vld [vmem:[%s312 + $0x62] sm:$0xff]
        %v1069 = vld [vmem:[%s312 + $0x6a] sm:$0xff]
        %v1070 = vld [vmem:[%s312 + $0x72] sm:$0xff]
        %v1071 = vld [vmem:[%s312 + $0x7a] sm:$0xff]
        %v1072 = vld [vmem:[%s312 + $0x82] sm:$0xff]
        %v1073 = vld [vmem:[%s312 + $0x8a] sm:$0xff]
        %v1074 = vld [vmem:[%s312 + $0x92] sm:$0xff]
        %v1075 = vld [vmem:[%s312 + $0x9a] sm:$0xff]
        %v1076 = vld [vmem:[%s312 + $0xa2] sm:$0xff]
        %v1077 = vld [vmem:[%s312 + $0xaa] sm:$0xff]
        %v1078 = vld [vmem:[%s312 + $0xb2] sm:$0xff]
        %v1079 = vld [vmem:[%s312 + $0xba] sm:$0xff]
        %v1080 = vld [vmem:[%s312 + $0xc2] sm:$0xff]
        %v1081 = vld [vmem:[%s312 + $0xca] sm:$0xff]
        %v1082 = vld [vmem:[%s312 + $0xd2] sm:$0xff]
        %v1083 = vld [vmem:[%s312 + $0xda] sm:$0xff]
        %v1084 = vld [vmem:[%s312 + $0xe2] sm:$0xff]
        %v1085 = vld [vmem:[%s312 + $0xea] sm:$0xff]
        %v1086 = vld [vmem:[%s312 + $0xf2] sm:$0xff]
        %v1087 = vld [vmem:[%s312 + $0xfa] sm:$0xff]
        %v1088 = vld [vmem:[%s312 + $0x102] sm:$0xff]
        %v1089 = vld [vmem:[%s312 + $0x10a] sm:$0xff]
        %v1090 = vld [vmem:[%s312 + $0x112] sm:$0xff]
        %v1091 = vld [vmem:[%s312 + $0x11a] sm:$0xff]
        %v1092 = vld [vmem:[%s312 + $0x122] sm:$0xff]
        %v1093 = vld [vmem:[%s312 + $0x12a] sm:$0xff]
        %v1094 = vld [vmem:[%s312 + $0x132] sm:$0xff]
        %v1095 = vld [vmem:[%s312 + $0x13a] sm:$0xff]
        %v1096 = vld [vmem:[%s312 + $0x142] sm:$0xff]
        %v1097 = vld [vmem:[%s312 + $0x14a] sm:$0xff]
        %v1098 = vld [vmem:[%s312 + $0x152] sm:$0xff]
        %v1099 = vld [vmem:[%s312 + $0x15a] sm:$0xff]
        %v1100 = vld [vmem:[%s312 + $0x162] sm:$0xff]
        %s1101 = scalar_lea.vmem [#allocation7], 256
        %v1102 = vld [vmem:[%s1101] sm:$0xff]
        %v1103 = vld [vmem:[%s1101 + $0x8] sm:$0xff]
        %v1104 = vld [vmem:[%s1101 + $0x10] sm:$0xff]
        %v1105 = vld [vmem:[%s1101 + $0x18] sm:$0xff]
        %v1106 = vld [vmem:[%s1101 + $0x20] sm:$0xff]
        %v1107 = vld [vmem:[%s1101 + $0x28] sm:$0xff]
        %v1108 = vld [vmem:[%s1101 + $0x30] sm:$0xff]
        %v1109 = vld [vmem:[%s1101 + $0x38] sm:$0xff]
        %v1110 = vld [vmem:[%s1101 + $0x40] sm:$0xff]
        %v1111 = vld [vmem:[%s1101 + $0x48] sm:$0xff]
        %v1112 = vld [vmem:[%s1101 + $0x50] sm:$0xff]
        %v1113 = vld [vmem:[%s1101 + $0x58] sm:$0xff]
        %v1114 = vld [vmem:[%s1101 + $0x60] sm:$0xff]
        %v1115 = vld [vmem:[%s1101 + $0x68] sm:$0xff]
        %v1116 = vld [vmem:[%s1101 + $0x70] sm:$0xff]
        %v1117 = vld [vmem:[%s1101 + $0x78] sm:$0xff]
        %1118 = vmatprep.subr.mxu0 0.0
        %1119 = vmatpush1.msra.mxu0 %v1117
        %1120 = vmatprep.subr.mxu0 0.0
        %1121 = vmatpush1.msra.mxu0 %v1116
        %1122 = vmatprep.subr.mxu0 0.0
        %1123 = vmatpush1.msra.mxu0 %v1115
        %1124 = vmatprep.subr.mxu0 0.0
        %1125 = vmatpush1.msra.mxu0 %v1114
        %1126 = vmatprep.subr.mxu0 0.0
        %1127 = vmatpush1.msra.mxu0 %v1113
        %1128 = vmatprep.subr.mxu0 0.0
        %1129 = vmatpush1.msra.mxu0 %v1112
        %1130 = vmatprep.subr.mxu0 0.0
        %1131 = vmatpush1.msra.mxu0 %v1111
        %1132 = vmatprep.subr.mxu0 0.0
        %1133 = vmatpush1.msra.mxu0 %v1110
        %1134 = vmatprep.subr.mxu0 0.0
        %1135 = vmatpush1.msra.mxu0 %v1109
        %1136 = vmatprep.subr.mxu0 0.0
        %1137 = vmatpush1.msra.mxu0 %v1108
        %1138 = vmatprep.subr.mxu0 0.0
        %1139 = vmatpush1.msra.mxu0 %v1107
        %1140 = vmatprep.subr.mxu0 0.0
        %1141 = vmatpush1.msra.mxu0 %v1106
        %1142 = vmatprep.subr.mxu0 0.0
        %1143 = vmatpush1.msra.mxu0 %v1105
        %1144 = vmatprep.subr.mxu0 0.0
        %1145 = vmatpush1.msra.mxu0 %v1104
        %1146 = vmatprep.subr.mxu0 0.0
        %1147 = vmatpush1.msra.mxu0 %v1103
        %1148 = vmatprep.subr.mxu0 0.0
        %1149 = vmatpush1.msra.mxu0 %v1102
        %1150 = vmatprep.subr.mxu0 0.0
        %1151 = vmatpush2.msra.mxu0 0.0
        %1152 = vmatprep.subr.mxu0 0.0
        %1153 = vmatpush2.msra.mxu0 0.0
        %1154 = vmatprep.subr.mxu0 0.0
        %1155 = vmatpush2.msra.mxu0 0.0
        %1156 = vmatprep.subr.mxu0 0.0
        %1157 = vmatpush2.msra.mxu0 0.0
        %1158 = vmatprep.subr.mxu0 0.0
        %1159 = vmatpush2.msra.mxu0 0.0
        %1160 = vmatprep.subr.mxu0 0.0
        %1161 = vmatpush2.msra.mxu0 0.0
        %1162 = vmatprep.subr.mxu0 0.0
        %1163 = vmatpush2.msra.mxu0 0.0
        %1164 = vmatprep.subr.mxu0 0.0
        %1165 = vmatpush2.msra.mxu0 0.0
        %1166 = vmatprep.subr.mxu0 0.0
        %1167 = vmatpush2.msra.mxu0 0.0
        %1168 = vmatprep.subr.mxu0 0.0
        %1169 = vmatpush2.msra.mxu0 0.0
        %1170 = vmatprep.subr.mxu0 0.0
        %1171 = vmatpush2.msra.mxu0 0.0
        %1172 = vmatprep.subr.mxu0 0.0
        %1173 = vmatpush2.msra.mxu0 0.0
        %1174 = vmatprep.subr.mxu0 0.0
        %1175 = vmatpush2.msra.mxu0 0.0
        %1176 = vmatprep.subr.mxu0 0.0
        %1177 = vmatpush2.msra.mxu0 0.0
        %1178 = vmatprep.subr.mxu0 0.0
        %1179 = vmatpush2.msra.mxu0 0.0
        %1180 = vmatprep.subr.mxu0 0.0
        %1181 = vmatpush2.msra.mxu0 0.0
        %1182 = vmatprep.mubr.f32.mxu0 0.0
        %1183 = vmatmul.mubr.f32.gmra.mxu0 %v1056
        %v1184 = vpop.f32.mrf.mxu0
        %v1185 = vadd.f32 0.0, %v1184
        %v1186 = vpop.f32.mrf.mxu0
        %1187 = vmatprep.mubr.f32.mxu0 0.0
        %1188 = vmatmul.mubr.f32.gmra.mxu0 %v1057
        %v1189 = vpop.f32.mrf.mxu0
        %v1190 = vadd.f32 0.0, %v1189
        %v1191 = vpop.f32.mrf.mxu0
        %1192 = vmatprep.mubr.f32.mxu0 0.0
        %1193 = vmatmul.mubr.f32.gmra.mxu0 %v1058
        %v1194 = vpop.f32.mrf.mxu0
        %v1195 = vadd.f32 0.0, %v1194
        %v1196 = vpop.f32.mrf.mxu0
        %1197 = vmatprep.mubr.f32.mxu0 0.0
        %1198 = vmatmul.mubr.f32.gmra.mxu0 %v1059
        %v1199 = vpop.f32.mrf.mxu0
        %v1200 = vadd.f32 0.0, %v1199
        %v1201 = vpop.f32.mrf.mxu0
        %1202 = vmatprep.mubr.f32.mxu0 0.0
        %1203 = vmatmul.mubr.f32.gmra.mxu0 %v1060
        %v1204 = vpop.f32.mrf.mxu0
        %v1205 = vadd.f32 0.0, %v1204
        %v1206 = vpop.f32.mrf.mxu0
        %1207 = vmatprep.mubr.f32.mxu0 0.0
        %1208 = vmatmul.mubr.f32.gmra.mxu0 %v1061
        %v1209 = vpop.f32.mrf.mxu0
        %v1210 = vadd.f32 0.0, %v1209
        %v1211 = vpop.f32.mrf.mxu0
        %1212 = vmatprep.mubr.f32.mxu0 0.0
        %1213 = vmatmul.mubr.f32.gmra.mxu0 %v1062
        %v1214 = vpop.f32.mrf.mxu0
        %v1215 = vadd.f32 0.0, %v1214
        %v1216 = vpop.f32.mrf.mxu0
        %1217 = vmatprep.mubr.f32.mxu0 0.0
        %1218 = vmatmul.mubr.f32.gmra.mxu0 %v1063
        %v1219 = vpop.f32.mrf.mxu0
        %v1220 = vadd.f32 0.0, %v1219
        %v1221 = vpop.f32.mrf.mxu0
        %1222 = vmatprep.mubr.f32.mxu0 0.0
        %1223 = vmatmul.mubr.f32.gmra.mxu0 %v1064
        %v1224 = vpop.f32.mrf.mxu0
        %v1225 = vadd.f32 0.0, %v1224
        %v1226 = vpop.f32.mrf.mxu0
        %1227 = vmatprep.mubr.f32.mxu0 0.0
        %1228 = vmatmul.mubr.f32.gmra.mxu0 %v1065
        %v1229 = vpop.f32.mrf.mxu0
        %v1230 = vadd.f32 0.0, %v1229
        %v1231 = vpop.f32.mrf.mxu0
        %1232 = vmatprep.mubr.f32.mxu0 0.0
        %1233 = vmatmul.mubr.f32.gmra.mxu0 %v1066
        %v1234 = vpop.f32.mrf.mxu0
        %v1235 = vadd.f32 0.0, %v1234
        %v1236 = vpop.f32.mrf.mxu0
        %1237 = vmatprep.mubr.f32.mxu0 0.0
        %1238 = vmatmul.mubr.f32.gmra.mxu0 %v1067
        %v1239 = vpop.f32.mrf.mxu0
        %v1240 = vadd.f32 0.0, %v1239
        %v1241 = vpop.f32.mrf.mxu0
        %1242 = vmatprep.mubr.f32.mxu0 0.0
        %1243 = vmatmul.mubr.f32.gmra.mxu0 %v1068
        %v1244 = vpop.f32.mrf.mxu0
        %v1245 = vadd.f32 0.0, %v1244
        %v1246 = vpop.f32.mrf.mxu0
        %1247 = vmatprep.mubr.f32.mxu0 0.0
        %1248 = vmatmul.mubr.f32.gmra.mxu0 %v1069
        %v1249 = vpop.f32.mrf.mxu0
        %v1250 = vadd.f32 0.0, %v1249
        %v1251 = vpop.f32.mrf.mxu0
        %1252 = vmatprep.mubr.f32.mxu0 0.0
        %1253 = vmatmul.mubr.f32.gmra.mxu0 %v1070
        %v1254 = vpop.f32.mrf.mxu0
        %v1255 = vadd.f32 0.0, %v1254
        %v1256 = vpop.f32.mrf.mxu0
        %1257 = vmatprep.mubr.f32.mxu0 0.0
        %1258 = vmatmul.mubr.f32.gmra.mxu0 %v1071
        %v1259 = vpop.f32.mrf.mxu0
        %v1260 = vadd.f32 0.0, %v1259
        %v1261 = vpop.f32.mrf.mxu0
        %1262 = vmatprep.mubr.f32.mxu0 0.0
        %1263 = vmatmul.mubr.f32.gmra.mxu0 %v1072
        %v1264 = vpop.f32.mrf.mxu0
        %v1265 = vadd.f32 0.0, %v1264
        %v1266 = vpop.f32.mrf.mxu0
        %1267 = vmatprep.mubr.f32.mxu0 0.0
        %1268 = vmatmul.mubr.f32.gmra.mxu0 %v1073
        %v1269 = vpop.f32.mrf.mxu0
        %v1270 = vadd.f32 0.0, %v1269
        %v1271 = vpop.f32.mrf.mxu0
        %1272 = vmatprep.mubr.f32.mxu0 0.0
        %1273 = vmatmul.mubr.f32.gmra.mxu0 %v1074
        %v1274 = vpop.f32.mrf.mxu0
        %v1275 = vadd.f32 0.0, %v1274
        %v1276 = vpop.f32.mrf.mxu0
        %1277 = vmatprep.mubr.f32.mxu0 0.0
        %1278 = vmatmul.mubr.f32.gmra.mxu0 %v1075
        %v1279 = vpop.f32.mrf.mxu0
        %v1280 = vadd.f32 0.0, %v1279
        %v1281 = vpop.f32.mrf.mxu0
        %1282 = vmatprep.mubr.f32.mxu0 0.0
        %1283 = vmatmul.mubr.f32.gmra.mxu0 %v1076
        %v1284 = vpop.f32.mrf.mxu0
        %v1285 = vadd.f32 0.0, %v1284
        %v1286 = vpop.f32.mrf.mxu0
        %1287 = vmatprep.mubr.f32.mxu0 0.0
        %1288 = vmatmul.mubr.f32.gmra.mxu0 %v1077
        %v1289 = vpop.f32.mrf.mxu0
        %v1290 = vadd.f32 0.0, %v1289
        %v1291 = vpop.f32.mrf.mxu0
        %1292 = vmatprep.mubr.f32.mxu0 0.0
        %1293 = vmatmul.mubr.f32.gmra.mxu0 %v1078
        %v1294 = vpop.f32.mrf.mxu0
        %v1295 = vadd.f32 0.0, %v1294
        %v1296 = vpop.f32.mrf.mxu0
        %1297 = vmatprep.mubr.f32.mxu0 0.0
        %1298 = vmatmul.mubr.f32.gmra.mxu0 %v1079
        %v1299 = vpop.f32.mrf.mxu0
        %v1300 = vadd.f32 0.0, %v1299
        %v1301 = vpop.f32.mrf.mxu0
        %1302 = vmatprep.mubr.f32.mxu0 0.0
        %1303 = vmatmul.mubr.f32.gmra.mxu0 %v1080
        %v1304 = vpop.f32.mrf.mxu0
        %v1305 = vadd.f32 0.0, %v1304
        %v1306 = vpop.f32.mrf.mxu0
        %1307 = vmatprep.mubr.f32.mxu0 0.0
        %1308 = vmatmul.mubr.f32.gmra.mxu0 %v1081
        %v1309 = vpop.f32.mrf.mxu0
        %v1310 = vadd.f32 0.0, %v1309
        %v1311 = vpop.f32.mrf.mxu0
        %1312 = vmatprep.mubr.f32.mxu0 0.0
        %1313 = vmatmul.mubr.f32.gmra.mxu0 %v1082
        %v1314 = vpop.f32.mrf.mxu0
        %v1315 = vadd.f32 0.0, %v1314
        %v1316 = vpop.f32.mrf.mxu0
        %1317 = vmatprep.mubr.f32.mxu0 0.0
        %1318 = vmatmul.mubr.f32.gmra.mxu0 %v1083
        %v1319 = vpop.f32.mrf.mxu0
        %v1320 = vadd.f32 0.0, %v1319
        %v1321 = vpop.f32.mrf.mxu0
        %1322 = vmatprep.mubr.f32.mxu0 0.0
        %1323 = vmatmul.mubr.f32.gmra.mxu0 %v1084
        %v1324 = vpop.f32.mrf.mxu0
        %v1325 = vadd.f32 0.0, %v1324
        %v1326 = vpop.f32.mrf.mxu0
        %1327 = vmatprep.mubr.f32.mxu0 0.0
        %1328 = vmatmul.mubr.f32.gmra.mxu0 %v1085
        %v1329 = vpop.f32.mrf.mxu0
        %v1330 = vadd.f32 0.0, %v1329
        %v1331 = vpop.f32.mrf.mxu0
        %1332 = vmatprep.mubr.f32.mxu0 0.0
        %1333 = vmatmul.mubr.f32.gmra.mxu0 %v1086
        %v1334 = vpop.f32.mrf.mxu0
        %v1335 = vadd.f32 0.0, %v1334
        %v1336 = vpop.f32.mrf.mxu0
        %1337 = vmatprep.mubr.f32.mxu0 0.0
        %1338 = vmatmul.mubr.f32.gmra.mxu0 %v1087
        %v1339 = vpop.f32.mrf.mxu0
        %v1340 = vadd.f32 0.0, %v1339
        %v1341 = vpop.f32.mrf.mxu0
        %1342 = vmatprep.mubr.f32.mxu0 0.0
        %1343 = vmatmul.mubr.f32.gmra.mxu0 %v1088
        %v1344 = vpop.f32.mrf.mxu0
        %v1345 = vadd.f32 0.0, %v1344
        %v1346 = vpop.f32.mrf.mxu0
        %1347 = vmatprep.mubr.f32.mxu0 0.0
        %1348 = vmatmul.mubr.f32.gmra.mxu0 %v1089
        %v1349 = vpop.f32.mrf.mxu0
        %v1350 = vadd.f32 0.0, %v1349
        %v1351 = vpop.f32.mrf.mxu0
        %1352 = vmatprep.mubr.f32.mxu0 0.0
        %1353 = vmatmul.mubr.f32.gmra.mxu0 %v1090
        %v1354 = vpop.f32.mrf.mxu0
        %v1355 = vadd.f32 0.0, %v1354
        %v1356 = vpop.f32.mrf.mxu0
        %1357 = vmatprep.mubr.f32.mxu0 0.0
        %1358 = vmatmul.mubr.f32.gmra.mxu0 %v1091
        %v1359 = vpop.f32.mrf.mxu0
        %v1360 = vadd.f32 0.0, %v1359
        %v1361 = vpop.f32.mrf.mxu0
        %1362 = vmatprep.mubr.f32.mxu0 0.0
        %1363 = vmatmul.mubr.f32.gmra.mxu0 %v1092
        %v1364 = vpop.f32.mrf.mxu0
        %v1365 = vadd.f32 0.0, %v1364
        %v1366 = vpop.f32.mrf.mxu0
        %1367 = vmatprep.mubr.f32.mxu0 0.0
        %1368 = vmatmul.mubr.f32.gmra.mxu0 %v1093
        %v1369 = vpop.f32.mrf.mxu0
        %v1370 = vadd.f32 0.0, %v1369
        %v1371 = vpop.f32.mrf.mxu0
        %1372 = vmatprep.mubr.f32.mxu0 0.0
        %1373 = vmatmul.mubr.f32.gmra.mxu0 %v1094
        %v1374 = vpop.f32.mrf.mxu0
        %v1375 = vadd.f32 0.0, %v1374
        %v1376 = vpop.f32.mrf.mxu0
        %1377 = vmatprep.mubr.f32.mxu0 0.0
        %1378 = vmatmul.mubr.f32.gmra.mxu0 %v1095
        %v1379 = vpop.f32.mrf.mxu0
        %v1380 = vadd.f32 0.0, %v1379
        %v1381 = vpop.f32.mrf.mxu0
        %1382 = vmatprep.mubr.f32.mxu0 0.0
        %1383 = vmatmul.mubr.f32.gmra.mxu0 %v1096
        %v1384 = vpop.f32.mrf.mxu0
        %v1385 = vadd.f32 0.0, %v1384
        %v1386 = vpop.f32.mrf.mxu0
        %1387 = vmatprep.mubr.f32.mxu0 0.0
        %1388 = vmatmul.mubr.f32.gmra.mxu0 %v1097
        %v1389 = vpop.f32.mrf.mxu0
        %v1390 = vadd.f32 0.0, %v1389
        %v1391 = vpop.f32.mrf.mxu0
        %1392 = vmatprep.mubr.f32.mxu0 0.0
        %1393 = vmatmul.mubr.f32.gmra.mxu0 %v1098
        %v1394 = vpop.f32.mrf.mxu0
        %v1395 = vadd.f32 0.0, %v1394
        %v1396 = vpop.f32.mrf.mxu0
        %1397 = vmatprep.mubr.f32.mxu0 0.0
        %1398 = vmatmul.mubr.f32.gmra.mxu0 %v1099
        %v1399 = vpop.f32.mrf.mxu0
        %v1400 = vadd.f32 0.0, %v1399
        %v1401 = vpop.f32.mrf.mxu0
        %1402 = vmatprep.mubr.f32.mxu0 0.0
        %1403 = vmatmul.mubr.f32.gmra.mxu0 %v1100
        %v1404 = vpop.f32.mrf.mxu0
        %v1405 = vadd.f32 0.0, %v1404
        %v1406 = vpop.f32.mrf.mxu0
        %1407 = vdwg.mxu0
        %v1408 = vadd.f32 %v833, %v1185
        %v1409 = vadd.f32 %v838, %v1190
        %v1410 = vadd.f32 %v843, %v1195
        %v1411 = vadd.f32 %v848, %v1200
        %v1412 = vadd.f32 %v853, %v1205
        %v1413 = vadd.f32 %v858, %v1210
        %v1414 = vadd.f32 %v863, %v1215
        %v1415 = vadd.f32 %v868, %v1220
        %v1416 = vadd.f32 %v873, %v1225
        %v1417 = vadd.f32 %v878, %v1230
        %v1418 = vadd.f32 %v883, %v1235
        %v1419 = vadd.f32 %v888, %v1240
        %v1420 = vadd.f32 %v893, %v1245
        %v1421 = vadd.f32 %v898, %v1250
        %v1422 = vadd.f32 %v903, %v1255
        %v1423 = vadd.f32 %v908, %v1260
        %v1424 = vadd.f32 %v913, %v1265
        %v1425 = vadd.f32 %v918, %v1270
        %v1426 = vadd.f32 %v923, %v1275
        %v1427 = vadd.f32 %v928, %v1280
        %v1428 = vadd.f32 %v933, %v1285
        %v1429 = vadd.f32 %v938, %v1290
        %v1430 = vadd.f32 %v943, %v1295
        %v1431 = vadd.f32 %v948, %v1300
        %v1432 = vadd.f32 %v953, %v1305
        %v1433 = vadd.f32 %v958, %v1310
        %v1434 = vadd.f32 %v963, %v1315
        %v1435 = vadd.f32 %v968, %v1320
        %v1436 = vadd.f32 %v973, %v1325
        %v1437 = vadd.f32 %v978, %v1330
        %v1438 = vadd.f32 %v983, %v1335
        %v1439 = vadd.f32 %v988, %v1340
        %v1440 = vadd.f32 %v993, %v1345
        %v1441 = vadd.f32 %v998, %v1350
        %v1442 = vadd.f32 %v1003, %v1355
        %v1443 = vadd.f32 %v1008, %v1360
        %v1444 = vadd.f32 %v1013, %v1365
        %v1445 = vadd.f32 %v1018, %v1370
        %v1446 = vadd.f32 %v1023, %v1375
        %v1447 = vadd.f32 %v1028, %v1380
        %v1448 = vadd.f32 %v1033, %v1385
        %v1449 = vadd.f32 %v1038, %v1390
        %v1450 = vadd.f32 %v1043, %v1395
        %v1451 = vadd.f32 %v1048, %v1400
        %v1452 = vadd.f32 %v1053, %v1405
        %1453 = vst [vmem:[#allocation2] sm:$0xff] %v1408
        %1454 = vst [vmem:[#allocation2 + $0x8] sm:$0xff] %v1409
        %1455 = vst [vmem:[#allocation2 + $0x10] sm:$0xff] %v1410
        %1456 = vst [vmem:[#allocation2 + $0x18] sm:$0xff] %v1411
        %1457 = vst [vmem:[#allocation2 + $0x20] sm:$0xff] %v1412
        %1458 = vst [vmem:[#allocation2 + $0x28] sm:$0xff] %v1413
        %1459 = vst [vmem:[#allocation2 + $0x30] sm:$0xff] %v1414
        %1460 = vst [vmem:[#allocation2 + $0x38] sm:$0xff] %v1415
        %1461 = vst [vmem:[#allocation2 + $0x40] sm:$0xff] %v1416
        %1462 = vst [vmem:[#allocation2 + $0x48] sm:$0xff] %v1417
        %1463 = vst [vmem:[#allocation2 + $0x50] sm:$0xff] %v1418
        %1464 = vst [vmem:[#allocation2 + $0x58] sm:$0xff] %v1419
        %1465 = vst [vmem:[#allocation2 + $0x60] sm:$0xff] %v1420
        %1466 = vst [vmem:[#allocation2 + $0x68] sm:$0xff] %v1421
        %1467 = vst [vmem:[#allocation2 + $0x70] sm:$0xff] %v1422
        %1468 = vst [vmem:[#allocation2 + $0x78] sm:$0xff] %v1423
        %1469 = vst [vmem:[#allocation2 + $0x80] sm:$0xff] %v1424
        %1470 = vst [vmem:[#allocation2 + $0x88] sm:$0xff] %v1425
        %1471 = vst [vmem:[#allocation2 + $0x90] sm:$0xff] %v1426
        %1472 = vst [vmem:[#allocation2 + $0x98] sm:$0xff] %v1427
        %1473 = vst [vmem:[#allocation2 + $0xa0] sm:$0xff] %v1428
        %1474 = vst [vmem:[#allocation2 + $0xa8] sm:$0xff] %v1429
        %1475 = vst [vmem:[#allocation2 + $0xb0] sm:$0xff] %v1430
        %1476 = vst [vmem:[#allocation2 + $0xb8] sm:$0xff] %v1431
        %1477 = vst [vmem:[#allocation2 + $0xc0] sm:$0xff] %v1432
        %1478 = vst [vmem:[#allocation2 + $0xc8] sm:$0xff] %v1433
        %1479 = vst [vmem:[#allocation2 + $0xd0] sm:$0xff] %v1434
        %1480 = vst [vmem:[#allocation2 + $0xd8] sm:$0xff] %v1435
        %1481 = vst [vmem:[#allocation2 + $0xe0] sm:$0xff] %v1436
        %1482 = vst [vmem:[#allocation2 + $0xe8] sm:$0xff] %v1437
        %1483 = vst [vmem:[#allocation2 + $0xf0] sm:$0xff] %v1438
        %1484 = vst [vmem:[#allocation2 + $0xf8] sm:$0xff] %v1439
        %1485 = vst [vmem:[#allocation2 + $0x100] sm:$0xff] %v1440
        %1486 = vst [vmem:[#allocation2 + $0x108] sm:$0xff] %v1441
        %1487 = vst [vmem:[#allocation2 + $0x110] sm:$0xff] %v1442
        %1488 = vst [vmem:[#allocation2 + $0x118] sm:$0xff] %v1443
        %1489 = vst [vmem:[#allocation2 + $0x120] sm:$0xff] %v1444
        %1490 = vst [vmem:[#allocation2 + $0x128] sm:$0xff] %v1445
        %1491 = vst [vmem:[#allocation2 + $0x130] sm:$0xff] %v1446
        %1492 = vst [vmem:[#allocation2 + $0x138] sm:$0xff] %v1447
        %1493 = vst [vmem:[#allocation2 + $0x140] sm:$0xff] %v1448
        %1494 = vst [vmem:[#allocation2 + $0x148] sm:$0xff] %v1449
        %1495 = vst [vmem:[#allocation2 + $0x150] sm:$0xff] %v1450
        %1496 = vst [vmem:[#allocation2 + $0x158] sm:$0xff] %v1451
        %1497 = vst [vmem:[#allocation2 + $0x160] sm:$0xff] %v1452
        %v1498 = vld [vmem:[%s312 + $0x14] sm:$0xff]
        %v1499 = vld [vmem:[%s312 + $0x1c] sm:$0xff]
        %v1500 = vld [vmem:[%s312 + $0x24] sm:$0xff]
        %v1501 = vld [vmem:[%s312 + $0x2c] sm:$0xff]
        %v1502 = vld [vmem:[%s312 + $0x34] sm:$0xff]
        %v1503 = vld [vmem:[%s312 + $0x3c] sm:$0xff]
        %v1504 = vld [vmem:[%s312 + $0x44] sm:$0xff]
        %v1505 = vld [vmem:[%s312 + $0x4c] sm:$0xff]
        %v1506 = vld [vmem:[%s312 + $0x54] sm:$0xff]
        %v1507 = vld [vmem:[%s312 + $0x5c] sm:$0xff]
        %v1508 = vld [vmem:[%s312 + $0x64] sm:$0xff]
        %v1509 = vld [vmem:[%s312 + $0x6c] sm:$0xff]
        %v1510 = vld [vmem:[%s312 + $0x74] sm:$0xff]
        %v1511 = vld [vmem:[%s312 + $0x7c] sm:$0xff]
        %v1512 = vld [vmem:[%s312 + $0x84] sm:$0xff]
        %v1513 = vld [vmem:[%s312 + $0x8c] sm:$0xff]
        %v1514 = vld [vmem:[%s312 + $0x94] sm:$0xff]
        %v1515 = vld [vmem:[%s312 + $0x9c] sm:$0xff]
        %v1516 = vld [vmem:[%s312 + $0xa4] sm:$0xff]
        %v1517 = vld [vmem:[%s312 + $0xac] sm:$0xff]
        %v1518 = vld [vmem:[%s312 + $0xb4] sm:$0xff]
        %v1519 = vld [vmem:[%s312 + $0xbc] sm:$0xff]
        %v1520 = vld [vmem:[%s312 + $0xc4] sm:$0xff]
        %v1521 = vld [vmem:[%s312 + $0xcc] sm:$0xff]
        %v1522 = vld [vmem:[%s312 + $0xd4] sm:$0xff]
        %v1523 = vld [vmem:[%s312 + $0xdc] sm:$0xff]
        %v1524 = vld [vmem:[%s312 + $0xe4] sm:$0xff]
        %v1525 = vld [vmem:[%s312 + $0xec] sm:$0xff]
        %v1526 = vld [vmem:[%s312 + $0xf4] sm:$0xff]
        %v1527 = vld [vmem:[%s312 + $0xfc] sm:$0xff]
        %v1528 = vld [vmem:[%s312 + $0x104] sm:$0xff]
        %v1529 = vld [vmem:[%s312 + $0x10c] sm:$0xff]
        %v1530 = vld [vmem:[%s312 + $0x114] sm:$0xff]
        %v1531 = vld [vmem:[%s312 + $0x11c] sm:$0xff]
        %v1532 = vld [vmem:[%s312 + $0x124] sm:$0xff]
        %v1533 = vld [vmem:[%s312 + $0x12c] sm:$0xff]
        %v1534 = vld [vmem:[%s312 + $0x134] sm:$0xff]
        %v1535 = vld [vmem:[%s312 + $0x13c] sm:$0xff]
        %v1536 = vld [vmem:[%s312 + $0x144] sm:$0xff]
        %v1537 = vld [vmem:[%s312 + $0x14c] sm:$0xff]
        %v1538 = vld [vmem:[%s312 + $0x154] sm:$0xff]
        %v1539 = vld [vmem:[%s312 + $0x15c] sm:$0xff]
        %v1540 = vld [vmem:[%s312 + $0x164] sm:$0xff]
        %v1541 = vld [vmem:[%s312 + $0x16c] sm:$0xff]
        %v1542 = vld [vmem:[%s312 + $0x174] sm:$0xff]
        %s1543 = scalar_lea.vmem [#allocation7], 384
        %v1544 = vld [vmem:[%s1543] sm:$0xff]
        %v1545 = vld [vmem:[%s1543 + $0x8] sm:$0xff]
        %v1546 = vld [vmem:[%s1543 + $0x10] sm:$0xff]
        %v1547 = vld [vmem:[%s1543 + $0x18] sm:$0xff]
        %v1548 = vld [vmem:[%s1543 + $0x20] sm:$0xff]
        %v1549 = vld [vmem:[%s1543 + $0x28] sm:$0xff]
        %v1550 = vld [vmem:[%s1543 + $0x30] sm:$0xff]
        %v1551 = vld [vmem:[%s1543 + $0x38] sm:$0xff]
        %v1552 = vld [vmem:[%s1543 + $0x40] sm:$0xff]
        %v1553 = vld [vmem:[%s1543 + $0x48] sm:$0xff]
        %v1554 = vld [vmem:[%s1543 + $0x50] sm:$0xff]
        %v1555 = vld [vmem:[%s1543 + $0x58] sm:$0xff]
        %v1556 = vld [vmem:[%s1543 + $0x60] sm:$0xff]
        %v1557 = vld [vmem:[%s1543 + $0x68] sm:$0xff]
        %v1558 = vld [vmem:[%s1543 + $0x70] sm:$0xff]
        %v1559 = vld [vmem:[%s1543 + $0x78] sm:$0xff]
        %v1560 = vld [vmem:[%s312 + $0x15] sm:$0xff]
        %v1561 = vld [vmem:[%s312 + $0x1d] sm:$0xff]
        %v1562 = vld [vmem:[%s312 + $0x25] sm:$0xff]
        %v1563 = vld [vmem:[%s312 + $0x2d] sm:$0xff]
        %v1564 = vld [vmem:[%s312 + $0x35] sm:$0xff]
        %v1565 = vld [vmem:[%s312 + $0x3d] sm:$0xff]
        %v1566 = vld [vmem:[%s312 + $0x45] sm:$0xff]
        %v1567 = vld [vmem:[%s312 + $0x4d] sm:$0xff]
        %v1568 = vld [vmem:[%s312 + $0x55] sm:$0xff]
        %v1569 = vld [vmem:[%s312 + $0x5d] sm:$0xff]
        %v1570 = vld [vmem:[%s312 + $0x65] sm:$0xff]
        %v1571 = vld [vmem:[%s312 + $0x6d] sm:$0xff]
        %v1572 = vld [vmem:[%s312 + $0x75] sm:$0xff]
        %v1573 = vld [vmem:[%s312 + $0x7d] sm:$0xff]
        %v1574 = vld [vmem:[%s312 + $0x85] sm:$0xff]
        %v1575 = vld [vmem:[%s312 + $0x8d] sm:$0xff]
        %v1576 = vld [vmem:[%s312 + $0x95] sm:$0xff]
        %v1577 = vld [vmem:[%s312 + $0x9d] sm:$0xff]
        %v1578 = vld [vmem:[%s312 + $0xa5] sm:$0xff]
        %v1579 = vld [vmem:[%s312 + $0xad] sm:$0xff]
        %v1580 = vld [vmem:[%s312 + $0xb5] sm:$0xff]
        %v1581 = vld [vmem:[%s312 + $0xbd] sm:$0xff]
        %v1582 = vld [vmem:[%s312 + $0xc5] sm:$0xff]
        %v1583 = vld [vmem:[%s312 + $0xcd] sm:$0xff]
        %v1584 = vld [vmem:[%s312 + $0xd5] sm:$0xff]
        %v1585 = vld [vmem:[%s312 + $0xdd] sm:$0xff]
        %v1586 = vld [vmem:[%s312 + $0xe5] sm:$0xff]
        %v1587 = vld [vmem:[%s312 + $0xed] sm:$0xff]
        %v1588 = vld [vmem:[%s312 + $0xf5] sm:$0xff]
        %v1589 = vld [vmem:[%s312 + $0xfd] sm:$0xff]
        %v1590 = vld [vmem:[%s312 + $0x105] sm:$0xff]
        %v1591 = vld [vmem:[%s312 + $0x10d] sm:$0xff]
        %v1592 = vld [vmem:[%s312 + $0x115] sm:$0xff]
        %v1593 = vld [vmem:[%s312 + $0x11d] sm:$0xff]
        %v1594 = vld [vmem:[%s312 + $0x125] sm:$0xff]
        %v1595 = vld [vmem:[%s312 + $0x12d] sm:$0xff]
        %v1596 = vld [vmem:[%s312 + $0x135] sm:$0xff]
        %v1597 = vld [vmem:[%s312 + $0x13d] sm:$0xff]
        %v1598 = vld [vmem:[%s312 + $0x145] sm:$0xff]
        %v1599 = vld [vmem:[%s312 + $0x14d] sm:$0xff]
        %v1600 = vld [vmem:[%s312 + $0x155] sm:$0xff]
        %v1601 = vld [vmem:[%s312 + $0x15d] sm:$0xff]
        %v1602 = vld [vmem:[%s312 + $0x165] sm:$0xff]
        %v1603 = vld [vmem:[%s312 + $0x16d] sm:$0xff]
        %v1604 = vld [vmem:[%s312 + $0x175] sm:$0xff]
        %s1605 = scalar_lea.vmem [#allocation7], 512
        %v1606 = vld [vmem:[%s1605] sm:$0xff]
        %v1607 = vld [vmem:[%s1605 + $0x8] sm:$0xff]
        %v1608 = vld [vmem:[%s1605 + $0x10] sm:$0xff]
        %v1609 = vld [vmem:[%s1605 + $0x18] sm:$0xff]
        %v1610 = vld [vmem:[%s1605 + $0x20] sm:$0xff]
        %v1611 = vld [vmem:[%s1605 + $0x28] sm:$0xff]
        %v1612 = vld [vmem:[%s1605 + $0x30] sm:$0xff]
        %v1613 = vld [vmem:[%s1605 + $0x38] sm:$0xff]
        %v1614 = vld [vmem:[%s1605 + $0x40] sm:$0xff]
        %v1615 = vld [vmem:[%s1605 + $0x48] sm:$0xff]
        %v1616 = vld [vmem:[%s1605 + $0x50] sm:$0xff]
        %v1617 = vld [vmem:[%s1605 + $0x58] sm:$0xff]
        %v1618 = vld [vmem:[%s1605 + $0x60] sm:$0xff]
        %v1619 = vld [vmem:[%s1605 + $0x68] sm:$0xff]
        %v1620 = vld [vmem:[%s1605 + $0x70] sm:$0xff]
        %v1621 = vld [vmem:[%s1605 + $0x78] sm:$0xff]
        %1622 = vmatprep.subr.mxu0 0.0
        %1623 = vmatpush1.msra.mxu0 %v1621
        %1624 = vmatprep.subr.mxu0 0.0
        %1625 = vmatpush1.msra.mxu0 %v1620
        %1626 = vmatprep.subr.mxu0 0.0
        %1627 = vmatpush1.msra.mxu0 %v1619
        %1628 = vmatprep.subr.mxu0 0.0
        %1629 = vmatpush1.msra.mxu0 %v1618
        %1630 = vmatprep.subr.mxu0 0.0
        %1631 = vmatpush1.msra.mxu0 %v1617
        %1632 = vmatprep.subr.mxu0 0.0
        %1633 = vmatpush1.msra.mxu0 %v1616
        %1634 = vmatprep.subr.mxu0 0.0
        %1635 = vmatpush1.msra.mxu0 %v1615
        %1636 = vmatprep.subr.mxu0 0.0
        %1637 = vmatpush1.msra.mxu0 %v1614
        %1638 = vmatprep.subr.mxu0 0.0
        %1639 = vmatpush1.msra.mxu0 %v1613
        %1640 = vmatprep.subr.mxu0 0.0
        %1641 = vmatpush1.msra.mxu0 %v1612
        %1642 = vmatprep.subr.mxu0 0.0
        %1643 = vmatpush1.msra.mxu0 %v1611
        %1644 = vmatprep.subr.mxu0 0.0
        %1645 = vmatpush1.msra.mxu0 %v1610
        %1646 = vmatprep.subr.mxu0 0.0
        %1647 = vmatpush1.msra.mxu0 %v1609
        %1648 = vmatprep.subr.mxu0 0.0
        %1649 = vmatpush1.msra.mxu0 %v1608
        %1650 = vmatprep.subr.mxu0 0.0
        %1651 = vmatpush1.msra.mxu0 %v1607
        %1652 = vmatprep.subr.mxu0 0.0
        %1653 = vmatpush1.msra.mxu0 %v1606
        %1654 = vmatprep.subr.mxu0 0.0
        %1655 = vmatpush2.msra.mxu0 0.0
        %1656 = vmatprep.subr.mxu0 0.0
        %1657 = vmatpush2.msra.mxu0 0.0
        %1658 = vmatprep.subr.mxu0 0.0
        %1659 = vmatpush2.msra.mxu0 0.0
        %1660 = vmatprep.subr.mxu0 0.0
        %1661 = vmatpush2.msra.mxu0 0.0
        %1662 = vmatprep.subr.mxu0 0.0
        %1663 = vmatpush2.msra.mxu0 0.0
        %1664 = vmatprep.subr.mxu0 0.0
        %1665 = vmatpush2.msra.mxu0 0.0
        %1666 = vmatprep.subr.mxu0 0.0
        %1667 = vmatpush2.msra.mxu0 0.0
        %1668 = vmatprep.subr.mxu0 0.0
        %1669 = vmatpush2.msra.mxu0 0.0
        %1670 = vmatprep.subr.mxu0 0.0
        %1671 = vmatpush2.msra.mxu0 0.0
        %1672 = vmatprep.subr.mxu0 0.0
        %1673 = vmatpush2.msra.mxu0 0.0
        %1674 = vmatprep.subr.mxu0 0.0
        %1675 = vmatpush2.msra.mxu0 0.0
        %1676 = vmatprep.subr.mxu0 0.0
        %1677 = vmatpush2.msra.mxu0 0.0
        %1678 = vmatprep.subr.mxu0 0.0
        %1679 = vmatpush2.msra.mxu0 0.0
        %1680 = vmatprep.subr.mxu0 0.0
        %1681 = vmatpush2.msra.mxu0 0.0
        %1682 = vmatprep.subr.mxu0 0.0
        %1683 = vmatpush2.msra.mxu0 0.0
        %1684 = vmatprep.subr.mxu0 0.0
        %1685 = vmatpush2.msra.mxu0 0.0
        %1686 = vmatprep.mubr.f32.mxu0 0.0
        %1687 = vmatmul.mubr.f32.gmra.mxu0 %v1560
        %v1688 = vpop.f32.mrf.mxu0
        %v1689 = vadd.f32 0.0, %v1688
        %v1690 = vpop.f32.mrf.mxu0
        %1691 = vmatprep.mubr.f32.mxu0 0.0
        %1692 = vmatmul.mubr.f32.gmra.mxu0 %v1561
        %v1693 = vpop.f32.mrf.mxu0
        %v1694 = vadd.f32 0.0, %v1693
        %v1695 = vpop.f32.mrf.mxu0
        %1696 = vmatprep.mubr.f32.mxu0 0.0
        %1697 = vmatmul.mubr.f32.gmra.mxu0 %v1562
        %v1698 = vpop.f32.mrf.mxu0
        %v1699 = vadd.f32 0.0, %v1698
        %v1700 = vpop.f32.mrf.mxu0
        %1701 = vmatprep.mubr.f32.mxu0 0.0
        %1702 = vmatmul.mubr.f32.gmra.mxu0 %v1563
        %v1703 = vpop.f32.mrf.mxu0
        %v1704 = vadd.f32 0.0, %v1703
        %v1705 = vpop.f32.mrf.mxu0
        %1706 = vmatprep.mubr.f32.mxu0 0.0
        %1707 = vmatmul.mubr.f32.gmra.mxu0 %v1564
        %v1708 = vpop.f32.mrf.mxu0
        %v1709 = vadd.f32 0.0, %v1708
        %v1710 = vpop.f32.mrf.mxu0
        %1711 = vmatprep.mubr.f32.mxu0 0.0
        %1712 = vmatmul.mubr.f32.gmra.mxu0 %v1565
        %v1713 = vpop.f32.mrf.mxu0
        %v1714 = vadd.f32 0.0, %v1713
        %v1715 = vpop.f32.mrf.mxu0
        %1716 = vmatprep.mubr.f32.mxu0 0.0
        %1717 = vmatmul.mubr.f32.gmra.mxu0 %v1566
        %v1718 = vpop.f32.mrf.mxu0
        %v1719 = vadd.f32 0.0, %v1718
        %v1720 = vpop.f32.mrf.mxu0
        %1721 = vmatprep.mubr.f32.mxu0 0.0
        %1722 = vmatmul.mubr.f32.gmra.mxu0 %v1567
        %v1723 = vpop.f32.mrf.mxu0
        %v1724 = vadd.f32 0.0, %v1723
        %v1725 = vpop.f32.mrf.mxu0
        %1726 = vmatprep.mubr.f32.mxu0 0.0
        %1727 = vmatmul.mubr.f32.gmra.mxu0 %v1568
        %v1728 = vpop.f32.mrf.mxu0
        %v1729 = vadd.f32 0.0, %v1728
        %v1730 = vpop.f32.mrf.mxu0
        %1731 = vmatprep.mubr.f32.mxu0 0.0
        %1732 = vmatmul.mubr.f32.gmra.mxu0 %v1569
        %v1733 = vpop.f32.mrf.mxu0
        %v1734 = vadd.f32 0.0, %v1733
        %v1735 = vpop.f32.mrf.mxu0
        %1736 = vmatprep.mubr.f32.mxu0 0.0
        %1737 = vmatmul.mubr.f32.gmra.mxu0 %v1570
        %v1738 = vpop.f32.mrf.mxu0
        %v1739 = vadd.f32 0.0, %v1738
        %v1740 = vpop.f32.mrf.mxu0
        %1741 = vmatprep.mubr.f32.mxu0 0.0
        %1742 = vmatmul.mubr.f32.gmra.mxu0 %v1571
        %v1743 = vpop.f32.mrf.mxu0
        %v1744 = vadd.f32 0.0, %v1743
        %v1745 = vpop.f32.mrf.mxu0
        %1746 = vmatprep.mubr.f32.mxu0 0.0
        %1747 = vmatmul.mubr.f32.gmra.mxu0 %v1572
        %v1748 = vpop.f32.mrf.mxu0
        %v1749 = vadd.f32 0.0, %v1748
        %v1750 = vpop.f32.mrf.mxu0
        %1751 = vmatprep.mubr.f32.mxu0 0.0
        %1752 = vmatmul.mubr.f32.gmra.mxu0 %v1573
        %v1753 = vpop.f32.mrf.mxu0
        %v1754 = vadd.f32 0.0, %v1753
        %v1755 = vpop.f32.mrf.mxu0
        %1756 = vmatprep.mubr.f32.mxu0 0.0
        %1757 = vmatmul.mubr.f32.gmra.mxu0 %v1574
        %v1758 = vpop.f32.mrf.mxu0
        %v1759 = vadd.f32 0.0, %v1758
        %v1760 = vpop.f32.mrf.mxu0
        %1761 = vmatprep.mubr.f32.mxu0 0.0
        %1762 = vmatmul.mubr.f32.gmra.mxu0 %v1575
        %v1763 = vpop.f32.mrf.mxu0
        %v1764 = vadd.f32 0.0, %v1763
        %v1765 = vpop.f32.mrf.mxu0
        %1766 = vmatprep.mubr.f32.mxu0 0.0
        %1767 = vmatmul.mubr.f32.gmra.mxu0 %v1576
        %v1768 = vpop.f32.mrf.mxu0
        %v1769 = vadd.f32 0.0, %v1768
        %v1770 = vpop.f32.mrf.mxu0
        %1771 = vmatprep.mubr.f32.mxu0 0.0
        %1772 = vmatmul.mubr.f32.gmra.mxu0 %v1577
        %v1773 = vpop.f32.mrf.mxu0
        %v1774 = vadd.f32 0.0, %v1773
        %v1775 = vpop.f32.mrf.mxu0
        %1776 = vmatprep.mubr.f32.mxu0 0.0
        %1777 = vmatmul.mubr.f32.gmra.mxu0 %v1578
        %v1778 = vpop.f32.mrf.mxu0
        %v1779 = vadd.f32 0.0, %v1778
        %v1780 = vpop.f32.mrf.mxu0
        %1781 = vmatprep.mubr.f32.mxu0 0.0
        %1782 = vmatmul.mubr.f32.gmra.mxu0 %v1579
        %v1783 = vpop.f32.mrf.mxu0
        %v1784 = vadd.f32 0.0, %v1783
        %v1785 = vpop.f32.mrf.mxu0
        %1786 = vmatprep.mubr.f32.mxu0 0.0
        %1787 = vmatmul.mubr.f32.gmra.mxu0 %v1580
        %v1788 = vpop.f32.mrf.mxu0
        %v1789 = vadd.f32 0.0, %v1788
        %v1790 = vpop.f32.mrf.mxu0
        %1791 = vmatprep.mubr.f32.mxu0 0.0
        %1792 = vmatmul.mubr.f32.gmra.mxu0 %v1581
        %v1793 = vpop.f32.mrf.mxu0
        %v1794 = vadd.f32 0.0, %v1793
        %v1795 = vpop.f32.mrf.mxu0
        %1796 = vmatprep.mubr.f32.mxu0 0.0
        %1797 = vmatmul.mubr.f32.gmra.mxu0 %v1582
        %v1798 = vpop.f32.mrf.mxu0
        %v1799 = vadd.f32 0.0, %v1798
        %v1800 = vpop.f32.mrf.mxu0
        %1801 = vmatprep.mubr.f32.mxu0 0.0
        %1802 = vmatmul.mubr.f32.gmra.mxu0 %v1583
        %v1803 = vpop.f32.mrf.mxu0
        %v1804 = vadd.f32 0.0, %v1803
        %v1805 = vpop.f32.mrf.mxu0
        %1806 = vmatprep.mubr.f32.mxu0 0.0
        %1807 = vmatmul.mubr.f32.gmra.mxu0 %v1584
        %v1808 = vpop.f32.mrf.mxu0
        %v1809 = vadd.f32 0.0, %v1808
        %v1810 = vpop.f32.mrf.mxu0
        %1811 = vmatprep.mubr.f32.mxu0 0.0
        %1812 = vmatmul.mubr.f32.gmra.mxu0 %v1585
        %v1813 = vpop.f32.mrf.mxu0
        %v1814 = vadd.f32 0.0, %v1813
        %v1815 = vpop.f32.mrf.mxu0
        %1816 = vmatprep.mubr.f32.mxu0 0.0
        %1817 = vmatmul.mubr.f32.gmra.mxu0 %v1586
        %v1818 = vpop.f32.mrf.mxu0
        %v1819 = vadd.f32 0.0, %v1818
        %v1820 = vpop.f32.mrf.mxu0
        %1821 = vmatprep.mubr.f32.mxu0 0.0
        %1822 = vmatmul.mubr.f32.gmra.mxu0 %v1587
        %v1823 = vpop.f32.mrf.mxu0
        %v1824 = vadd.f32 0.0, %v1823
        %v1825 = vpop.f32.mrf.mxu0
        %1826 = vmatprep.mubr.f32.mxu0 0.0
        %1827 = vmatmul.mubr.f32.gmra.mxu0 %v1588
        %v1828 = vpop.f32.mrf.mxu0
        %v1829 = vadd.f32 0.0, %v1828
        %v1830 = vpop.f32.mrf.mxu0
        %1831 = vmatprep.mubr.f32.mxu0 0.0
        %1832 = vmatmul.mubr.f32.gmra.mxu0 %v1589
        %v1833 = vpop.f32.mrf.mxu0
        %v1834 = vadd.f32 0.0, %v1833
        %v1835 = vpop.f32.mrf.mxu0
        %1836 = vmatprep.mubr.f32.mxu0 0.0
        %1837 = vmatmul.mubr.f32.gmra.mxu0 %v1590
        %v1838 = vpop.f32.mrf.mxu0
        %v1839 = vadd.f32 0.0, %v1838
        %v1840 = vpop.f32.mrf.mxu0
        %1841 = vmatprep.mubr.f32.mxu0 0.0
        %1842 = vmatmul.mubr.f32.gmra.mxu0 %v1591
        %v1843 = vpop.f32.mrf.mxu0
        %v1844 = vadd.f32 0.0, %v1843
        %v1845 = vpop.f32.mrf.mxu0
        %1846 = vmatprep.mubr.f32.mxu0 0.0
        %1847 = vmatmul.mubr.f32.gmra.mxu0 %v1592
        %v1848 = vpop.f32.mrf.mxu0
        %v1849 = vadd.f32 0.0, %v1848
        %v1850 = vpop.f32.mrf.mxu0
        %1851 = vmatprep.mubr.f32.mxu0 0.0
        %1852 = vmatmul.mubr.f32.gmra.mxu0 %v1593
        %v1853 = vpop.f32.mrf.mxu0
        %v1854 = vadd.f32 0.0, %v1853
        %v1855 = vpop.f32.mrf.mxu0
        %1856 = vmatprep.mubr.f32.mxu0 0.0
        %1857 = vmatmul.mubr.f32.gmra.mxu0 %v1594
        %v1858 = vpop.f32.mrf.mxu0
        %v1859 = vadd.f32 0.0, %v1858
        %v1860 = vpop.f32.mrf.mxu0
        %1861 = vmatprep.mubr.f32.mxu0 0.0
        %1862 = vmatmul.mubr.f32.gmra.mxu0 %v1595
        %v1863 = vpop.f32.mrf.mxu0
        %v1864 = vadd.f32 0.0, %v1863
        %v1865 = vpop.f32.mrf.mxu0
        %1866 = vmatprep.mubr.f32.mxu0 0.0
        %1867 = vmatmul.mubr.f32.gmra.mxu0 %v1596
        %v1868 = vpop.f32.mrf.mxu0
        %v1869 = vadd.f32 0.0, %v1868
        %v1870 = vpop.f32.mrf.mxu0
        %1871 = vmatprep.mubr.f32.mxu0 0.0
        %1872 = vmatmul.mubr.f32.gmra.mxu0 %v1597
        %v1873 = vpop.f32.mrf.mxu0
        %v1874 = vadd.f32 0.0, %v1873
        %v1875 = vpop.f32.mrf.mxu0
        %1876 = vmatprep.mubr.f32.mxu0 0.0
        %1877 = vmatmul.mubr.f32.gmra.mxu0 %v1598
        %v1878 = vpop.f32.mrf.mxu0
        %v1879 = vadd.f32 0.0, %v1878
        %v1880 = vpop.f32.mrf.mxu0
        %1881 = vmatprep.mubr.f32.mxu0 0.0
        %1882 = vmatmul.mubr.f32.gmra.mxu0 %v1599
        %v1883 = vpop.f32.mrf.mxu0
        %v1884 = vadd.f32 0.0, %v1883
        %v1885 = vpop.f32.mrf.mxu0
        %1886 = vmatprep.mubr.f32.mxu0 0.0
        %1887 = vmatmul.mubr.f32.gmra.mxu0 %v1600
        %v1888 = vpop.f32.mrf.mxu0
        %v1889 = vadd.f32 0.0, %v1888
        %v1890 = vpop.f32.mrf.mxu0
        %1891 = vmatprep.mubr.f32.mxu0 0.0
        %1892 = vmatmul.mubr.f32.gmra.mxu0 %v1601
        %v1893 = vpop.f32.mrf.mxu0
        %v1894 = vadd.f32 0.0, %v1893
        %v1895 = vpop.f32.mrf.mxu0
        %1896 = vmatprep.mubr.f32.mxu0 0.0
        %1897 = vmatmul.mubr.f32.gmra.mxu0 %v1602
        %v1898 = vpop.f32.mrf.mxu0
        %v1899 = vadd.f32 0.0, %v1898
        %v1900 = vpop.f32.mrf.mxu0
        %1901 = vmatprep.mubr.f32.mxu0 0.0
        %1902 = vmatmul.mubr.f32.gmra.mxu0 %v1603
        %v1903 = vpop.f32.mrf.mxu0
        %v1904 = vadd.f32 0.0, %v1903
        %v1905 = vpop.f32.mrf.mxu0
        %1906 = vmatprep.mubr.f32.mxu0 0.0
        %1907 = vmatmul.mubr.f32.gmra.mxu0 %v1604
        %v1908 = vpop.f32.mrf.mxu0
        %v1909 = vadd.f32 0.0, %v1908
        %v1910 = vpop.f32.mrf.mxu0
        %1911 = vdwg.mxu0
        %1912 = vmatprep.subr.mxu0 0.0
        %1913 = vmatpush1.msra.mxu0 %v1559
        %1914 = vmatprep.subr.mxu0 0.0
        %1915 = vmatpush1.msra.mxu0 %v1558
        %1916 = vmatprep.subr.mxu0 0.0
        %1917 = vmatpush1.msra.mxu0 %v1557
        %1918 = vmatprep.subr.mxu0 0.0
        %1919 = vmatpush1.msra.mxu0 %v1556
        %1920 = vmatprep.subr.mxu0 0.0
        %1921 = vmatpush1.msra.mxu0 %v1555
        %1922 = vmatprep.subr.mxu0 0.0
        %1923 = vmatpush1.msra.mxu0 %v1554
        %1924 = vmatprep.subr.mxu0 0.0
        %1925 = vmatpush1.msra.mxu0 %v1553
        %1926 = vmatprep.subr.mxu0 0.0
        %1927 = vmatpush1.msra.mxu0 %v1552
        %1928 = vmatprep.subr.mxu0 0.0
        %1929 = vmatpush1.msra.mxu0 %v1551
        %1930 = vmatprep.subr.mxu0 0.0
        %1931 = vmatpush1.msra.mxu0 %v1550
        %1932 = vmatprep.subr.mxu0 0.0
        %1933 = vmatpush1.msra.mxu0 %v1549
        %1934 = vmatprep.subr.mxu0 0.0
        %1935 = vmatpush1.msra.mxu0 %v1548
        %1936 = vmatprep.subr.mxu0 0.0
        %1937 = vmatpush1.msra.mxu0 %v1547
        %1938 = vmatprep.subr.mxu0 0.0
        %1939 = vmatpush1.msra.mxu0 %v1546
        %1940 = vmatprep.subr.mxu0 0.0
        %1941 = vmatpush1.msra.mxu0 %v1545
        %1942 = vmatprep.subr.mxu0 0.0
        %1943 = vmatpush1.msra.mxu0 %v1544
        %1944 = vmatprep.subr.mxu0 0.0
        %1945 = vmatpush2.msra.mxu0 0.0
        %1946 = vmatprep.subr.mxu0 0.0
        %1947 = vmatpush2.msra.mxu0 0.0
        %1948 = vmatprep.subr.mxu0 0.0
        %1949 = vmatpush2.msra.mxu0 0.0
        %1950 = vmatprep.subr.mxu0 0.0
        %1951 = vmatpush2.msra.mxu0 0.0
        %1952 = vmatprep.subr.mxu0 0.0
        %1953 = vmatpush2.msra.mxu0 0.0
        %1954 = vmatprep.subr.mxu0 0.0
        %1955 = vmatpush2.msra.mxu0 0.0
        %1956 = vmatprep.subr.mxu0 0.0
        %1957 = vmatpush2.msra.mxu0 0.0
        %1958 = vmatprep.subr.mxu0 0.0
        %1959 = vmatpush2.msra.mxu0 0.0
        %1960 = vmatprep.subr.mxu0 0.0
        %1961 = vmatpush2.msra.mxu0 0.0
        %1962 = vmatprep.subr.mxu0 0.0
        %1963 = vmatpush2.msra.mxu0 0.0
        %1964 = vmatprep.subr.mxu0 0.0
        %1965 = vmatpush2.msra.mxu0 0.0
        %1966 = vmatprep.subr.mxu0 0.0
        %1967 = vmatpush2.msra.mxu0 0.0
        %1968 = vmatprep.subr.mxu0 0.0
        %1969 = vmatpush2.msra.mxu0 0.0
        %1970 = vmatprep.subr.mxu0 0.0
        %1971 = vmatpush2.msra.mxu0 0.0
        %1972 = vmatprep.subr.mxu0 0.0
        %1973 = vmatpush2.msra.mxu0 0.0
        %1974 = vmatprep.subr.mxu0 0.0
        %1975 = vmatpush2.msra.mxu0 0.0
        %1976 = vmatprep.mubr.f32.mxu0 0.0
        %1977 = vmatmul.mubr.f32.gmra.mxu0 %v1498
        %v1978 = vpop.f32.mrf.mxu0
        %v1979 = vadd.f32 %v1689, %v1978
        %v1980 = vpop.f32.mrf.mxu0
        %1981 = vmatprep.mubr.f32.mxu0 0.0
        %1982 = vmatmul.mubr.f32.gmra.mxu0 %v1499
        %v1983 = vpop.f32.mrf.mxu0
        %v1984 = vadd.f32 %v1694, %v1983
        %v1985 = vpop.f32.mrf.mxu0
        %1986 = vmatprep.mubr.f32.mxu0 0.0
        %1987 = vmatmul.mubr.f32.gmra.mxu0 %v1500
        %v1988 = vpop.f32.mrf.mxu0
        %v1989 = vadd.f32 %v1699, %v1988
        %v1990 = vpop.f32.mrf.mxu0
        %1991 = vmatprep.mubr.f32.mxu0 0.0
        %1992 = vmatmul.mubr.f32.gmra.mxu0 %v1501
        %v1993 = vpop.f32.mrf.mxu0
        %v1994 = vadd.f32 %v1704, %v1993
        %v1995 = vpop.f32.mrf.mxu0
        %1996 = vmatprep.mubr.f32.mxu0 0.0
        %1997 = vmatmul.mubr.f32.gmra.mxu0 %v1502
        %v1998 = vpop.f32.mrf.mxu0
        %v1999 = vadd.f32 %v1709, %v1998
        %v2000 = vpop.f32.mrf.mxu0
        %2001 = vmatprep.mubr.f32.mxu0 0.0
        %2002 = vmatmul.mubr.f32.gmra.mxu0 %v1503
        %v2003 = vpop.f32.mrf.mxu0
        %v2004 = vadd.f32 %v1714, %v2003
        %v2005 = vpop.f32.mrf.mxu0
        %2006 = vmatprep.mubr.f32.mxu0 0.0
        %2007 = vmatmul.mubr.f32.gmra.mxu0 %v1504
        %v2008 = vpop.f32.mrf.mxu0
        %v2009 = vadd.f32 %v1719, %v2008
        %v2010 = vpop.f32.mrf.mxu0
        %2011 = vmatprep.mubr.f32.mxu0 0.0
        %2012 = vmatmul.mubr.f32.gmra.mxu0 %v1505
        %v2013 = vpop.f32.mrf.mxu0
        %v2014 = vadd.f32 %v1724, %v2013
        %v2015 = vpop.f32.mrf.mxu0
        %2016 = vmatprep.mubr.f32.mxu0 0.0
        %2017 = vmatmul.mubr.f32.gmra.mxu0 %v1506
        %v2018 = vpop.f32.mrf.mxu0
        %v2019 = vadd.f32 %v1729, %v2018
        %v2020 = vpop.f32.mrf.mxu0
        %2021 = vmatprep.mubr.f32.mxu0 0.0
        %2022 = vmatmul.mubr.f32.gmra.mxu0 %v1507
        %v2023 = vpop.f32.mrf.mxu0
        %v2024 = vadd.f32 %v1734, %v2023
        %v2025 = vpop.f32.mrf.mxu0
        %2026 = vmatprep.mubr.f32.mxu0 0.0
        %2027 = vmatmul.mubr.f32.gmra.mxu0 %v1508
        %v2028 = vpop.f32.mrf.mxu0
        %v2029 = vadd.f32 %v1739, %v2028
        %v2030 = vpop.f32.mrf.mxu0
        %2031 = vmatprep.mubr.f32.mxu0 0.0
        %2032 = vmatmul.mubr.f32.gmra.mxu0 %v1509
        %v2033 = vpop.f32.mrf.mxu0
        %v2034 = vadd.f32 %v1744, %v2033
        %v2035 = vpop.f32.mrf.mxu0
        %2036 = vmatprep.mubr.f32.mxu0 0.0
        %2037 = vmatmul.mubr.f32.gmra.mxu0 %v1510
        %v2038 = vpop.f32.mrf.mxu0
        %v2039 = vadd.f32 %v1749, %v2038
        %v2040 = vpop.f32.mrf.mxu0
        %2041 = vmatprep.mubr.f32.mxu0 0.0
        %2042 = vmatmul.mubr.f32.gmra.mxu0 %v1511
        %v2043 = vpop.f32.mrf.mxu0
        %v2044 = vadd.f32 %v1754, %v2043
        %v2045 = vpop.f32.mrf.mxu0
        %2046 = vmatprep.mubr.f32.mxu0 0.0
        %2047 = vmatmul.mubr.f32.gmra.mxu0 %v1512
        %v2048 = vpop.f32.mrf.mxu0
        %v2049 = vadd.f32 %v1759, %v2048
        %v2050 = vpop.f32.mrf.mxu0
        %2051 = vmatprep.mubr.f32.mxu0 0.0
        %2052 = vmatmul.mubr.f32.gmra.mxu0 %v1513
        %v2053 = vpop.f32.mrf.mxu0
        %v2054 = vadd.f32 %v1764, %v2053
        %v2055 = vpop.f32.mrf.mxu0
        %2056 = vmatprep.mubr.f32.mxu0 0.0
        %2057 = vmatmul.mubr.f32.gmra.mxu0 %v1514
        %v2058 = vpop.f32.mrf.mxu0
        %v2059 = vadd.f32 %v1769, %v2058
        %v2060 = vpop.f32.mrf.mxu0
        %2061 = vmatprep.mubr.f32.mxu0 0.0
        %2062 = vmatmul.mubr.f32.gmra.mxu0 %v1515
        %v2063 = vpop.f32.mrf.mxu0
        %v2064 = vadd.f32 %v1774, %v2063
        %v2065 = vpop.f32.mrf.mxu0
        %2066 = vmatprep.mubr.f32.mxu0 0.0
        %2067 = vmatmul.mubr.f32.gmra.mxu0 %v1516
        %v2068 = vpop.f32.mrf.mxu0
        %v2069 = vadd.f32 %v1779, %v2068
        %v2070 = vpop.f32.mrf.mxu0
        %2071 = vmatprep.mubr.f32.mxu0 0.0
        %2072 = vmatmul.mubr.f32.gmra.mxu0 %v1517
        %v2073 = vpop.f32.mrf.mxu0
        %v2074 = vadd.f32 %v1784, %v2073
        %v2075 = vpop.f32.mrf.mxu0
        %2076 = vmatprep.mubr.f32.mxu0 0.0
        %2077 = vmatmul.mubr.f32.gmra.mxu0 %v1518
        %v2078 = vpop.f32.mrf.mxu0
        %v2079 = vadd.f32 %v1789, %v2078
        %v2080 = vpop.f32.mrf.mxu0
        %2081 = vmatprep.mubr.f32.mxu0 0.0
        %2082 = vmatmul.mubr.f32.gmra.mxu0 %v1519
        %v2083 = vpop.f32.mrf.mxu0
        %v2084 = vadd.f32 %v1794, %v2083
        %v2085 = vpop.f32.mrf.mxu0
        %2086 = vmatprep.mubr.f32.mxu0 0.0
        %2087 = vmatmul.mubr.f32.gmra.mxu0 %v1520
        %v2088 = vpop.f32.mrf.mxu0
        %v2089 = vadd.f32 %v1799, %v2088
        %v2090 = vpop.f32.mrf.mxu0
        %2091 = vmatprep.mubr.f32.mxu0 0.0
        %2092 = vmatmul.mubr.f32.gmra.mxu0 %v1521
        %v2093 = vpop.f32.mrf.mxu0
        %v2094 = vadd.f32 %v1804, %v2093
        %v2095 = vpop.f32.mrf.mxu0
        %2096 = vmatprep.mubr.f32.mxu0 0.0
        %2097 = vmatmul.mubr.f32.gmra.mxu0 %v1522
        %v2098 = vpop.f32.mrf.mxu0
        %v2099 = vadd.f32 %v1809, %v2098
        %v2100 = vpop.f32.mrf.mxu0
        %2101 = vmatprep.mubr.f32.mxu0 0.0
        %2102 = vmatmul.mubr.f32.gmra.mxu0 %v1523
        %v2103 = vpop.f32.mrf.mxu0
        %v2104 = vadd.f32 %v1814, %v2103
        %v2105 = vpop.f32.mrf.mxu0
        %2106 = vmatprep.mubr.f32.mxu0 0.0
        %2107 = vmatmul.mubr.f32.gmra.mxu0 %v1524
        %v2108 = vpop.f32.mrf.mxu0
        %v2109 = vadd.f32 %v1819, %v2108
        %v2110 = vpop.f32.mrf.mxu0
        %2111 = vmatprep.mubr.f32.mxu0 0.0
        %2112 = vmatmul.mubr.f32.gmra.mxu0 %v1525
        %v2113 = vpop.f32.mrf.mxu0
        %v2114 = vadd.f32 %v1824, %v2113
        %v2115 = vpop.f32.mrf.mxu0
        %2116 = vmatprep.mubr.f32.mxu0 0.0
        %2117 = vmatmul.mubr.f32.gmra.mxu0 %v1526
        %v2118 = vpop.f32.mrf.mxu0
        %v2119 = vadd.f32 %v1829, %v2118
        %v2120 = vpop.f32.mrf.mxu0
        %2121 = vmatprep.mubr.f32.mxu0 0.0
        %2122 = vmatmul.mubr.f32.gmra.mxu0 %v1527
        %v2123 = vpop.f32.mrf.mxu0
        %v2124 = vadd.f32 %v1834, %v2123
        %v2125 = vpop.f32.mrf.mxu0
        %2126 = vmatprep.mubr.f32.mxu0 0.0
        %2127 = vmatmul.mubr.f32.gmra.mxu0 %v1528
        %v2128 = vpop.f32.mrf.mxu0
        %v2129 = vadd.f32 %v1839, %v2128
        %v2130 = vpop.f32.mrf.mxu0
        %2131 = vmatprep.mubr.f32.mxu0 0.0
        %2132 = vmatmul.mubr.f32.gmra.mxu0 %v1529
        %v2133 = vpop.f32.mrf.mxu0
        %v2134 = vadd.f32 %v1844, %v2133
        %v2135 = vpop.f32.mrf.mxu0
        %2136 = vmatprep.mubr.f32.mxu0 0.0
        %2137 = vmatmul.mubr.f32.gmra.mxu0 %v1530
        %v2138 = vpop.f32.mrf.mxu0
        %v2139 = vadd.f32 %v1849, %v2138
        %v2140 = vpop.f32.mrf.mxu0
        %2141 = vmatprep.mubr.f32.mxu0 0.0
        %2142 = vmatmul.mubr.f32.gmra.mxu0 %v1531
        %v2143 = vpop.f32.mrf.mxu0
        %v2144 = vadd.f32 %v1854, %v2143
        %v2145 = vpop.f32.mrf.mxu0
        %2146 = vmatprep.mubr.f32.mxu0 0.0
        %2147 = vmatmul.mubr.f32.gmra.mxu0 %v1532
        %v2148 = vpop.f32.mrf.mxu0
        %v2149 = vadd.f32 %v1859, %v2148
        %v2150 = vpop.f32.mrf.mxu0
        %2151 = vmatprep.mubr.f32.mxu0 0.0
        %2152 = vmatmul.mubr.f32.gmra.mxu0 %v1533
        %v2153 = vpop.f32.mrf.mxu0
        %v2154 = vadd.f32 %v1864, %v2153
        %v2155 = vpop.f32.mrf.mxu0
        %2156 = vmatprep.mubr.f32.mxu0 0.0
        %2157 = vmatmul.mubr.f32.gmra.mxu0 %v1534
        %v2158 = vpop.f32.mrf.mxu0
        %v2159 = vadd.f32 %v1869, %v2158
        %v2160 = vpop.f32.mrf.mxu0
        %2161 = vmatprep.mubr.f32.mxu0 0.0
        %2162 = vmatmul.mubr.f32.gmra.mxu0 %v1535
        %v2163 = vpop.f32.mrf.mxu0
        %v2164 = vadd.f32 %v1874, %v2163
        %v2165 = vpop.f32.mrf.mxu0
        %2166 = vmatprep.mubr.f32.mxu0 0.0
        %2167 = vmatmul.mubr.f32.gmra.mxu0 %v1536
        %v2168 = vpop.f32.mrf.mxu0
        %v2169 = vadd.f32 %v1879, %v2168
        %v2170 = vpop.f32.mrf.mxu0
        %2171 = vmatprep.mubr.f32.mxu0 0.0
        %2172 = vmatmul.mubr.f32.gmra.mxu0 %v1537
        %v2173 = vpop.f32.mrf.mxu0
        %v2174 = vadd.f32 %v1884, %v2173
        %v2175 = vpop.f32.mrf.mxu0
        %2176 = vmatprep.mubr.f32.mxu0 0.0
        %2177 = vmatmul.mubr.f32.gmra.mxu0 %v1538
        %v2178 = vpop.f32.mrf.mxu0
        %v2179 = vadd.f32 %v1889, %v2178
        %v2180 = vpop.f32.mrf.mxu0
        %2181 = vmatprep.mubr.f32.mxu0 0.0
        %2182 = vmatmul.mubr.f32.gmra.mxu0 %v1539
        %v2183 = vpop.f32.mrf.mxu0
        %v2184 = vadd.f32 %v1894, %v2183
        %v2185 = vpop.f32.mrf.mxu0
        %2186 = vmatprep.mubr.f32.mxu0 0.0
        %2187 = vmatmul.mubr.f32.gmra.mxu0 %v1540
        %v2188 = vpop.f32.mrf.mxu0
        %v2189 = vadd.f32 %v1899, %v2188
        %v2190 = vpop.f32.mrf.mxu0
        %2191 = vmatprep.mubr.f32.mxu0 0.0
        %2192 = vmatmul.mubr.f32.gmra.mxu0 %v1541
        %v2193 = vpop.f32.mrf.mxu0
        %v2194 = vadd.f32 %v1904, %v2193
        %v2195 = vpop.f32.mrf.mxu0
        %2196 = vmatprep.mubr.f32.mxu0 0.0
        %2197 = vmatmul.mubr.f32.gmra.mxu0 %v1542
        %v2198 = vpop.f32.mrf.mxu0
        %v2199 = vadd.f32 %v1909, %v2198
        %v2200 = vpop.f32.mrf.mxu0
        %2201 = vdwg.mxu0
        %v2202 = vld [vmem:[%s312 + $0x16] sm:$0xff]
        %v2203 = vld [vmem:[%s312 + $0x1e] sm:$0xff]
        %v2204 = vld [vmem:[%s312 + $0x26] sm:$0xff]
        %v2205 = vld [vmem:[%s312 + $0x2e] sm:$0xff]
        %v2206 = vld [vmem:[%s312 + $0x36] sm:$0xff]
        %v2207 = vld [vmem:[%s312 + $0x3e] sm:$0xff]
        %v2208 = vld [vmem:[%s312 + $0x46] sm:$0xff]
        %v2209 = vld [vmem:[%s312 + $0x4e] sm:$0xff]
        %v2210 = vld [vmem:[%s312 + $0x56] sm:$0xff]
        %v2211 = vld [vmem:[%s312 + $0x5e] sm:$0xff]
        %v2212 = vld [vmem:[%s312 + $0x66] sm:$0xff]
        %v2213 = vld [vmem:[%s312 + $0x6e] sm:$0xff]
        %v2214 = vld [vmem:[%s312 + $0x76] sm:$0xff]
        %v2215 = vld [vmem:[%s312 + $0x7e] sm:$0xff]
        %v2216 = vld [vmem:[%s312 + $0x86] sm:$0xff]
        %v2217 = vld [vmem:[%s312 + $0x8e] sm:$0xff]
        %v2218 = vld [vmem:[%s312 + $0x96] sm:$0xff]
        %v2219 = vld [vmem:[%s312 + $0x9e] sm:$0xff]
        %v2220 = vld [vmem:[%s312 + $0xa6] sm:$0xff]
        %v2221 = vld [vmem:[%s312 + $0xae] sm:$0xff]
        %v2222 = vld [vmem:[%s312 + $0xb6] sm:$0xff]
        %v2223 = vld [vmem:[%s312 + $0xbe] sm:$0xff]
        %v2224 = vld [vmem:[%s312 + $0xc6] sm:$0xff]
        %v2225 = vld [vmem:[%s312 + $0xce] sm:$0xff]
        %v2226 = vld [vmem:[%s312 + $0xd6] sm:$0xff]
        %v2227 = vld [vmem:[%s312 + $0xde] sm:$0xff]
        %v2228 = vld [vmem:[%s312 + $0xe6] sm:$0xff]
        %v2229 = vld [vmem:[%s312 + $0xee] sm:$0xff]
        %v2230 = vld [vmem:[%s312 + $0xf6] sm:$0xff]
        %v2231 = vld [vmem:[%s312 + $0xfe] sm:$0xff]
        %v2232 = vld [vmem:[%s312 + $0x106] sm:$0xff]
        %v2233 = vld [vmem:[%s312 + $0x10e] sm:$0xff]
        %v2234 = vld [vmem:[%s312 + $0x116] sm:$0xff]
        %v2235 = vld [vmem:[%s312 + $0x11e] sm:$0xff]
        %v2236 = vld [vmem:[%s312 + $0x126] sm:$0xff]
        %v2237 = vld [vmem:[%s312 + $0x12e] sm:$0xff]
        %v2238 = vld [vmem:[%s312 + $0x136] sm:$0xff]
        %v2239 = vld [vmem:[%s312 + $0x13e] sm:$0xff]
        %v2240 = vld [vmem:[%s312 + $0x146] sm:$0xff]
        %v2241 = vld [vmem:[%s312 + $0x14e] sm:$0xff]
        %v2242 = vld [vmem:[%s312 + $0x156] sm:$0xff]
        %v2243 = vld [vmem:[%s312 + $0x15e] sm:$0xff]
        %v2244 = vld [vmem:[%s312 + $0x166] sm:$0xff]
        %v2245 = vld [vmem:[%s312 + $0x16e] sm:$0xff]
        %v2246 = vld [vmem:[%s312 + $0x176] sm:$0xff]
        %s2247 = scalar_lea.vmem [#allocation7], 640
        %v2248 = vld [vmem:[%s2247] sm:$0xff]
        %v2249 = vld [vmem:[%s2247 + $0x8] sm:$0xff]
        %v2250 = vld [vmem:[%s2247 + $0x10] sm:$0xff]
        %v2251 = vld [vmem:[%s2247 + $0x18] sm:$0xff]
        %v2252 = vld [vmem:[%s2247 + $0x20] sm:$0xff]
        %v2253 = vld [vmem:[%s2247 + $0x28] sm:$0xff]
        %v2254 = vld [vmem:[%s2247 + $0x30] sm:$0xff]
        %v2255 = vld [vmem:[%s2247 + $0x38] sm:$0xff]
        %v2256 = vld [vmem:[%s2247 + $0x40] sm:$0xff]
        %v2257 = vld [vmem:[%s2247 + $0x48] sm:$0xff]
        %v2258 = vld [vmem:[%s2247 + $0x50] sm:$0xff]
        %v2259 = vld [vmem:[%s2247 + $0x58] sm:$0xff]
        %v2260 = vld [vmem:[%s2247 + $0x60] sm:$0xff]
        %v2261 = vld [vmem:[%s2247 + $0x68] sm:$0xff]
        %v2262 = vld [vmem:[%s2247 + $0x70] sm:$0xff]
        %v2263 = vld [vmem:[%s2247 + $0x78] sm:$0xff]
        %2264 = vmatprep.subr.mxu0 0.0
        %2265 = vmatpush1.msra.mxu0 %v2263
        %2266 = vmatprep.subr.mxu0 0.0
        %2267 = vmatpush1.msra.mxu0 %v2262
        %2268 = vmatprep.subr.mxu0 0.0
        %2269 = vmatpush1.msra.mxu0 %v2261
        %2270 = vmatprep.subr.mxu0 0.0
        %2271 = vmatpush1.msra.mxu0 %v2260
        %2272 = vmatprep.subr.mxu0 0.0
        %2273 = vmatpush1.msra.mxu0 %v2259
        %2274 = vmatprep.subr.mxu0 0.0
        %2275 = vmatpush1.msra.mxu0 %v2258
        %2276 = vmatprep.subr.mxu0 0.0
        %2277 = vmatpush1.msra.mxu0 %v2257
        %2278 = vmatprep.subr.mxu0 0.0
        %2279 = vmatpush1.msra.mxu0 %v2256
        %2280 = vmatprep.subr.mxu0 0.0
        %2281 = vmatpush1.msra.mxu0 %v2255
        %2282 = vmatprep.subr.mxu0 0.0
        %2283 = vmatpush1.msra.mxu0 %v2254
        %2284 = vmatprep.subr.mxu0 0.0
        %2285 = vmatpush1.msra.mxu0 %v2253
        %2286 = vmatprep.subr.mxu0 0.0
        %2287 = vmatpush1.msra.mxu0 %v2252
        %2288 = vmatprep.subr.mxu0 0.0
        %2289 = vmatpush1.msra.mxu0 %v2251
        %2290 = vmatprep.subr.mxu0 0.0
        %2291 = vmatpush1.msra.mxu0 %v2250
        %2292 = vmatprep.subr.mxu0 0.0
        %2293 = vmatpush1.msra.mxu0 %v2249
        %2294 = vmatprep.subr.mxu0 0.0
        %2295 = vmatpush1.msra.mxu0 %v2248
        %2296 = vmatprep.subr.mxu0 0.0
        %2297 = vmatpush2.msra.mxu0 0.0
        %2298 = vmatprep.subr.mxu0 0.0
        %2299 = vmatpush2.msra.mxu0 0.0
        %2300 = vmatprep.subr.mxu0 0.0
        %2301 = vmatpush2.msra.mxu0 0.0
        %2302 = vmatprep.subr.mxu0 0.0
        %2303 = vmatpush2.msra.mxu0 0.0
        %2304 = vmatprep.subr.mxu0 0.0
        %2305 = vmatpush2.msra.mxu0 0.0
        %2306 = vmatprep.subr.mxu0 0.0
        %2307 = vmatpush2.msra.mxu0 0.0
        %2308 = vmatprep.subr.mxu0 0.0
        %2309 = vmatpush2.msra.mxu0 0.0
        %2310 = vmatprep.subr.mxu0 0.0
        %2311 = vmatpush2.msra.mxu0 0.0
        %2312 = vmatprep.subr.mxu0 0.0
        %2313 = vmatpush2.msra.mxu0 0.0
        %2314 = vmatprep.subr.mxu0 0.0
        %2315 = vmatpush2.msra.mxu0 0.0
        %2316 = vmatprep.subr.mxu0 0.0
        %2317 = vmatpush2.msra.mxu0 0.0
        %2318 = vmatprep.subr.mxu0 0.0
        %2319 = vmatpush2.msra.mxu0 0.0
        %2320 = vmatprep.subr.mxu0 0.0
        %2321 = vmatpush2.msra.mxu0 0.0
        %2322 = vmatprep.subr.mxu0 0.0
        %2323 = vmatpush2.msra.mxu0 0.0
        %2324 = vmatprep.subr.mxu0 0.0
        %2325 = vmatpush2.msra.mxu0 0.0
        %2326 = vmatprep.subr.mxu0 0.0
        %2327 = vmatpush2.msra.mxu0 0.0
        %2328 = vmatprep.mubr.f32.mxu0 0.0
        %2329 = vmatmul.mubr.f32.gmra.mxu0 %v2202
        %v2330 = vpop.f32.mrf.mxu0
        %v2331 = vadd.f32 0.0, %v2330
        %v2332 = vpop.f32.mrf.mxu0
        %2333 = vmatprep.mubr.f32.mxu0 0.0
        %2334 = vmatmul.mubr.f32.gmra.mxu0 %v2203
        %v2335 = vpop.f32.mrf.mxu0
        %v2336 = vadd.f32 0.0, %v2335
        %v2337 = vpop.f32.mrf.mxu0
        %2338 = vmatprep.mubr.f32.mxu0 0.0
        %2339 = vmatmul.mubr.f32.gmra.mxu0 %v2204
        %v2340 = vpop.f32.mrf.mxu0
        %v2341 = vadd.f32 0.0, %v2340
        %v2342 = vpop.f32.mrf.mxu0
        %2343 = vmatprep.mubr.f32.mxu0 0.0
        %2344 = vmatmul.mubr.f32.gmra.mxu0 %v2205
        %v2345 = vpop.f32.mrf.mxu0
        %v2346 = vadd.f32 0.0, %v2345
        %v2347 = vpop.f32.mrf.mxu0
        %2348 = vmatprep.mubr.f32.mxu0 0.0
        %2349 = vmatmul.mubr.f32.gmra.mxu0 %v2206
        %v2350 = vpop.f32.mrf.mxu0
        %v2351 = vadd.f32 0.0, %v2350
        %v2352 = vpop.f32.mrf.mxu0
        %2353 = vmatprep.mubr.f32.mxu0 0.0
        %2354 = vmatmul.mubr.f32.gmra.mxu0 %v2207
        %v2355 = vpop.f32.mrf.mxu0
        %v2356 = vadd.f32 0.0, %v2355
        %v2357 = vpop.f32.mrf.mxu0
        %2358 = vmatprep.mubr.f32.mxu0 0.0
        %2359 = vmatmul.mubr.f32.gmra.mxu0 %v2208
        %v2360 = vpop.f32.mrf.mxu0
        %v2361 = vadd.f32 0.0, %v2360
        %v2362 = vpop.f32.mrf.mxu0
        %2363 = vmatprep.mubr.f32.mxu0 0.0
        %2364 = vmatmul.mubr.f32.gmra.mxu0 %v2209
        %v2365 = vpop.f32.mrf.mxu0
        %v2366 = vadd.f32 0.0, %v2365
        %v2367 = vpop.f32.mrf.mxu0
        %2368 = vmatprep.mubr.f32.mxu0 0.0
        %2369 = vmatmul.mubr.f32.gmra.mxu0 %v2210
        %v2370 = vpop.f32.mrf.mxu0
        %v2371 = vadd.f32 0.0, %v2370
        %v2372 = vpop.f32.mrf.mxu0
        %2373 = vmatprep.mubr.f32.mxu0 0.0
        %2374 = vmatmul.mubr.f32.gmra.mxu0 %v2211
        %v2375 = vpop.f32.mrf.mxu0
        %v2376 = vadd.f32 0.0, %v2375
        %v2377 = vpop.f32.mrf.mxu0
        %2378 = vmatprep.mubr.f32.mxu0 0.0
        %2379 = vmatmul.mubr.f32.gmra.mxu0 %v2212
        %v2380 = vpop.f32.mrf.mxu0
        %v2381 = vadd.f32 0.0, %v2380
        %v2382 = vpop.f32.mrf.mxu0
        %2383 = vmatprep.mubr.f32.mxu0 0.0
        %2384 = vmatmul.mubr.f32.gmra.mxu0 %v2213
        %v2385 = vpop.f32.mrf.mxu0
        %v2386 = vadd.f32 0.0, %v2385
        %v2387 = vpop.f32.mrf.mxu0
        %2388 = vmatprep.mubr.f32.mxu0 0.0
        %2389 = vmatmul.mubr.f32.gmra.mxu0 %v2214
        %v2390 = vpop.f32.mrf.mxu0
        %v2391 = vadd.f32 0.0, %v2390
        %v2392 = vpop.f32.mrf.mxu0
        %2393 = vmatprep.mubr.f32.mxu0 0.0
        %2394 = vmatmul.mubr.f32.gmra.mxu0 %v2215
        %v2395 = vpop.f32.mrf.mxu0
        %v2396 = vadd.f32 0.0, %v2395
        %v2397 = vpop.f32.mrf.mxu0
        %2398 = vmatprep.mubr.f32.mxu0 0.0
        %2399 = vmatmul.mubr.f32.gmra.mxu0 %v2216
        %v2400 = vpop.f32.mrf.mxu0
        %v2401 = vadd.f32 0.0, %v2400
        %v2402 = vpop.f32.mrf.mxu0
        %2403 = vmatprep.mubr.f32.mxu0 0.0
        %2404 = vmatmul.mubr.f32.gmra.mxu0 %v2217
        %v2405 = vpop.f32.mrf.mxu0
        %v2406 = vadd.f32 0.0, %v2405
        %v2407 = vpop.f32.mrf.mxu0
        %2408 = vmatprep.mubr.f32.mxu0 0.0
        %2409 = vmatmul.mubr.f32.gmra.mxu0 %v2218
        %v2410 = vpop.f32.mrf.mxu0
        %v2411 = vadd.f32 0.0, %v2410
        %v2412 = vpop.f32.mrf.mxu0
        %2413 = vmatprep.mubr.f32.mxu0 0.0
        %2414 = vmatmul.mubr.f32.gmra.mxu0 %v2219
        %v2415 = vpop.f32.mrf.mxu0
        %v2416 = vadd.f32 0.0, %v2415
        %v2417 = vpop.f32.mrf.mxu0
        %2418 = vmatprep.mubr.f32.mxu0 0.0
        %2419 = vmatmul.mubr.f32.gmra.mxu0 %v2220
        %v2420 = vpop.f32.mrf.mxu0
        %v2421 = vadd.f32 0.0, %v2420
        %v2422 = vpop.f32.mrf.mxu0
        %2423 = vmatprep.mubr.f32.mxu0 0.0
        %2424 = vmatmul.mubr.f32.gmra.mxu0 %v2221
        %v2425 = vpop.f32.mrf.mxu0
        %v2426 = vadd.f32 0.0, %v2425
        %v2427 = vpop.f32.mrf.mxu0
        %2428 = vmatprep.mubr.f32.mxu0 0.0
        %2429 = vmatmul.mubr.f32.gmra.mxu0 %v2222
        %v2430 = vpop.f32.mrf.mxu0
        %v2431 = vadd.f32 0.0, %v2430
        %v2432 = vpop.f32.mrf.mxu0
        %2433 = vmatprep.mubr.f32.mxu0 0.0
        %2434 = vmatmul.mubr.f32.gmra.mxu0 %v2223
        %v2435 = vpop.f32.mrf.mxu0
        %v2436 = vadd.f32 0.0, %v2435
        %v2437 = vpop.f32.mrf.mxu0
        %2438 = vmatprep.mubr.f32.mxu0 0.0
        %2439 = vmatmul.mubr.f32.gmra.mxu0 %v2224
        %v2440 = vpop.f32.mrf.mxu0
        %v2441 = vadd.f32 0.0, %v2440
        %v2442 = vpop.f32.mrf.mxu0
        %2443 = vmatprep.mubr.f32.mxu0 0.0
        %2444 = vmatmul.mubr.f32.gmra.mxu0 %v2225
        %v2445 = vpop.f32.mrf.mxu0
        %v2446 = vadd.f32 0.0, %v2445
        %v2447 = vpop.f32.mrf.mxu0
        %2448 = vmatprep.mubr.f32.mxu0 0.0
        %2449 = vmatmul.mubr.f32.gmra.mxu0 %v2226
        %v2450 = vpop.f32.mrf.mxu0
        %v2451 = vadd.f32 0.0, %v2450
        %v2452 = vpop.f32.mrf.mxu0
        %2453 = vmatprep.mubr.f32.mxu0 0.0
        %2454 = vmatmul.mubr.f32.gmra.mxu0 %v2227
        %v2455 = vpop.f32.mrf.mxu0
        %v2456 = vadd.f32 0.0, %v2455
        %v2457 = vpop.f32.mrf.mxu0
        %2458 = vmatprep.mubr.f32.mxu0 0.0
        %2459 = vmatmul.mubr.f32.gmra.mxu0 %v2228
        %v2460 = vpop.f32.mrf.mxu0
        %v2461 = vadd.f32 0.0, %v2460
        %v2462 = vpop.f32.mrf.mxu0
        %2463 = vmatprep.mubr.f32.mxu0 0.0
        %2464 = vmatmul.mubr.f32.gmra.mxu0 %v2229
        %v2465 = vpop.f32.mrf.mxu0
        %v2466 = vadd.f32 0.0, %v2465
        %v2467 = vpop.f32.mrf.mxu0
        %2468 = vmatprep.mubr.f32.mxu0 0.0
        %2469 = vmatmul.mubr.f32.gmra.mxu0 %v2230
        %v2470 = vpop.f32.mrf.mxu0
        %v2471 = vadd.f32 0.0, %v2470
        %v2472 = vpop.f32.mrf.mxu0
        %2473 = vmatprep.mubr.f32.mxu0 0.0
        %2474 = vmatmul.mubr.f32.gmra.mxu0 %v2231
        %v2475 = vpop.f32.mrf.mxu0
        %v2476 = vadd.f32 0.0, %v2475
        %v2477 = vpop.f32.mrf.mxu0
        %2478 = vmatprep.mubr.f32.mxu0 0.0
        %2479 = vmatmul.mubr.f32.gmra.mxu0 %v2232
        %v2480 = vpop.f32.mrf.mxu0
        %v2481 = vadd.f32 0.0, %v2480
        %v2482 = vpop.f32.mrf.mxu0
        %2483 = vmatprep.mubr.f32.mxu0 0.0
        %2484 = vmatmul.mubr.f32.gmra.mxu0 %v2233
        %v2485 = vpop.f32.mrf.mxu0
        %v2486 = vadd.f32 0.0, %v2485
        %v2487 = vpop.f32.mrf.mxu0
        %2488 = vmatprep.mubr.f32.mxu0 0.0
        %2489 = vmatmul.mubr.f32.gmra.mxu0 %v2234
        %v2490 = vpop.f32.mrf.mxu0
        %v2491 = vadd.f32 0.0, %v2490
        %v2492 = vpop.f32.mrf.mxu0
        %2493 = vmatprep.mubr.f32.mxu0 0.0
        %2494 = vmatmul.mubr.f32.gmra.mxu0 %v2235
        %v2495 = vpop.f32.mrf.mxu0
        %v2496 = vadd.f32 0.0, %v2495
        %v2497 = vpop.f32.mrf.mxu0
        %2498 = vmatprep.mubr.f32.mxu0 0.0
        %2499 = vmatmul.mubr.f32.gmra.mxu0 %v2236
        %v2500 = vpop.f32.mrf.mxu0
        %v2501 = vadd.f32 0.0, %v2500
        %v2502 = vpop.f32.mrf.mxu0
        %2503 = vmatprep.mubr.f32.mxu0 0.0
        %2504 = vmatmul.mubr.f32.gmra.mxu0 %v2237
        %v2505 = vpop.f32.mrf.mxu0
        %v2506 = vadd.f32 0.0, %v2505
        %v2507 = vpop.f32.mrf.mxu0
        %2508 = vmatprep.mubr.f32.mxu0 0.0
        %2509 = vmatmul.mubr.f32.gmra.mxu0 %v2238
        %v2510 = vpop.f32.mrf.mxu0
        %v2511 = vadd.f32 0.0, %v2510
        %v2512 = vpop.f32.mrf.mxu0
        %2513 = vmatprep.mubr.f32.mxu0 0.0
        %2514 = vmatmul.mubr.f32.gmra.mxu0 %v2239
        %v2515 = vpop.f32.mrf.mxu0
        %v2516 = vadd.f32 0.0, %v2515
        %v2517 = vpop.f32.mrf.mxu0
        %2518 = vmatprep.mubr.f32.mxu0 0.0
        %2519 = vmatmul.mubr.f32.gmra.mxu0 %v2240
        %v2520 = vpop.f32.mrf.mxu0
        %v2521 = vadd.f32 0.0, %v2520
        %v2522 = vpop.f32.mrf.mxu0
        %2523 = vmatprep.mubr.f32.mxu0 0.0
        %2524 = vmatmul.mubr.f32.gmra.mxu0 %v2241
        %v2525 = vpop.f32.mrf.mxu0
        %v2526 = vadd.f32 0.0, %v2525
        %v2527 = vpop.f32.mrf.mxu0
        %2528 = vmatprep.mubr.f32.mxu0 0.0
        %2529 = vmatmul.mubr.f32.gmra.mxu0 %v2242
        %v2530 = vpop.f32.mrf.mxu0
        %v2531 = vadd.f32 0.0, %v2530
        %v2532 = vpop.f32.mrf.mxu0
        %2533 = vmatprep.mubr.f32.mxu0 0.0
        %2534 = vmatmul.mubr.f32.gmra.mxu0 %v2243
        %v2535 = vpop.f32.mrf.mxu0
        %v2536 = vadd.f32 0.0, %v2535
        %v2537 = vpop.f32.mrf.mxu0
        %2538 = vmatprep.mubr.f32.mxu0 0.0
        %2539 = vmatmul.mubr.f32.gmra.mxu0 %v2244
        %v2540 = vpop.f32.mrf.mxu0
        %v2541 = vadd.f32 0.0, %v2540
        %v2542 = vpop.f32.mrf.mxu0
        %2543 = vmatprep.mubr.f32.mxu0 0.0
        %2544 = vmatmul.mubr.f32.gmra.mxu0 %v2245
        %v2545 = vpop.f32.mrf.mxu0
        %v2546 = vadd.f32 0.0, %v2545
        %v2547 = vpop.f32.mrf.mxu0
        %2548 = vmatprep.mubr.f32.mxu0 0.0
        %2549 = vmatmul.mubr.f32.gmra.mxu0 %v2246
        %v2550 = vpop.f32.mrf.mxu0
        %v2551 = vadd.f32 0.0, %v2550
        %v2552 = vpop.f32.mrf.mxu0
        %2553 = vdwg.mxu0
        %v2554 = vadd.f32 %v1979, %v2331
        %v2555 = vadd.f32 %v1984, %v2336
        %v2556 = vadd.f32 %v1989, %v2341
        %v2557 = vadd.f32 %v1994, %v2346
        %v2558 = vadd.f32 %v1999, %v2351
        %v2559 = vadd.f32 %v2004, %v2356
        %v2560 = vadd.f32 %v2009, %v2361
        %v2561 = vadd.f32 %v2014, %v2366
        %v2562 = vadd.f32 %v2019, %v2371
        %v2563 = vadd.f32 %v2024, %v2376
        %v2564 = vadd.f32 %v2029, %v2381
        %v2565 = vadd.f32 %v2034, %v2386
        %v2566 = vadd.f32 %v2039, %v2391
        %v2567 = vadd.f32 %v2044, %v2396
        %v2568 = vadd.f32 %v2049, %v2401
        %v2569 = vadd.f32 %v2054, %v2406
        %v2570 = vadd.f32 %v2059, %v2411
        %v2571 = vadd.f32 %v2064, %v2416
        %v2572 = vadd.f32 %v2069, %v2421
        %v2573 = vadd.f32 %v2074, %v2426
        %v2574 = vadd.f32 %v2079, %v2431
        %v2575 = vadd.f32 %v2084, %v2436
        %v2576 = vadd.f32 %v2089, %v2441
        %v2577 = vadd.f32 %v2094, %v2446
        %v2578 = vadd.f32 %v2099, %v2451
        %v2579 = vadd.f32 %v2104, %v2456
        %v2580 = vadd.f32 %v2109, %v2461
        %v2581 = vadd.f32 %v2114, %v2466
        %v2582 = vadd.f32 %v2119, %v2471
        %v2583 = vadd.f32 %v2124, %v2476
        %v2584 = vadd.f32 %v2129, %v2481
        %v2585 = vadd.f32 %v2134, %v2486
        %v2586 = vadd.f32 %v2139, %v2491
        %v2587 = vadd.f32 %v2144, %v2496
        %v2588 = vadd.f32 %v2149, %v2501
        %v2589 = vadd.f32 %v2154, %v2506
        %v2590 = vadd.f32 %v2159, %v2511
        %v2591 = vadd.f32 %v2164, %v2516
        %v2592 = vadd.f32 %v2169, %v2521
        %v2593 = vadd.f32 %v2174, %v2526
        %v2594 = vadd.f32 %v2179, %v2531
        %v2595 = vadd.f32 %v2184, %v2536
        %v2596 = vadd.f32 %v2189, %v2541
        %v2597 = vadd.f32 %v2194, %v2546
        %v2598 = vadd.f32 %v2199, %v2551
        %v2599 = vld [vmem:[#allocation2] sm:$0xff]
        %v2600 = vld [vmem:[#allocation2 + $0x8] sm:$0xff]
        %v2601 = vld [vmem:[#allocation2 + $0x10] sm:$0xff]
        %v2602 = vld [vmem:[#allocation2 + $0x18] sm:$0xff]
        %v2603 = vld [vmem:[#allocation2 + $0x20] sm:$0xff]
        %v2604 = vld [vmem:[#allocation2 + $0x28] sm:$0xff]
        %v2605 = vld [vmem:[#allocation2 + $0x30] sm:$0xff]
        %v2606 = vld [vmem:[#allocation2 + $0x38] sm:$0xff]
        %v2607 = vld [vmem:[#allocation2 + $0x40] sm:$0xff]
        %v2608 = vld [vmem:[#allocation2 + $0x48] sm:$0xff]
        %v2609 = vld [vmem:[#allocation2 + $0x50] sm:$0xff]
        %v2610 = vld [vmem:[#allocation2 + $0x58] sm:$0xff]
        %v2611 = vld [vmem:[#allocation2 + $0x60] sm:$0xff]
        %v2612 = vld [vmem:[#allocation2 + $0x68] sm:$0xff]
        %v2613 = vld [vmem:[#allocation2 + $0x70] sm:$0xff]
        %v2614 = vld [vmem:[#allocation2 + $0x78] sm:$0xff]
        %v2615 = vld [vmem:[#allocation2 + $0x80] sm:$0xff]
        %v2616 = vld [vmem:[#allocation2 + $0x88] sm:$0xff]
        %v2617 = vld [vmem:[#allocation2 + $0x90] sm:$0xff]
        %v2618 = vld [vmem:[#allocation2 + $0x98] sm:$0xff]
        %v2619 = vld [vmem:[#allocation2 + $0xa0] sm:$0xff]
        %v2620 = vld [vmem:[#allocation2 + $0xa8] sm:$0xff]
        %v2621 = vld [vmem:[#allocation2 + $0xb0] sm:$0xff]
        %v2622 = vld [vmem:[#allocation2 + $0xb8] sm:$0xff]
        %v2623 = vld [vmem:[#allocation2 + $0xc0] sm:$0xff]
        %v2624 = vld [vmem:[#allocation2 + $0xc8] sm:$0xff]
        %v2625 = vld [vmem:[#allocation2 + $0xd0] sm:$0xff]
        %v2626 = vld [vmem:[#allocation2 + $0xd8] sm:$0xff]
        %v2627 = vld [vmem:[#allocation2 + $0xe0] sm:$0xff]
        %v2628 = vld [vmem:[#allocation2 + $0xe8] sm:$0xff]
        %v2629 = vld [vmem:[#allocation2 + $0xf0] sm:$0xff]
        %v2630 = vld [vmem:[#allocation2 + $0xf8] sm:$0xff]
        %v2631 = vld [vmem:[#allocation2 + $0x100] sm:$0xff]
        %v2632 = vld [vmem:[#allocation2 + $0x108] sm:$0xff]
        %v2633 = vld [vmem:[#allocation2 + $0x110] sm:$0xff]
        %v2634 = vld [vmem:[#allocation2 + $0x118] sm:$0xff]
        %v2635 = vld [vmem:[#allocation2 + $0x120] sm:$0xff]
        %v2636 = vld [vmem:[#allocation2 + $0x128] sm:$0xff]
        %v2637 = vld [vmem:[#allocation2 + $0x130] sm:$0xff]
        %v2638 = vld [vmem:[#allocation2 + $0x138] sm:$0xff]
        %v2639 = vld [vmem:[#allocation2 + $0x140] sm:$0xff]
        %v2640 = vld [vmem:[#allocation2 + $0x148] sm:$0xff]
        %v2641 = vld [vmem:[#allocation2 + $0x150] sm:$0xff]
        %v2642 = vld [vmem:[#allocation2 + $0x158] sm:$0xff]
        %v2643 = vld [vmem:[#allocation2 + $0x160] sm:$0xff]
        %v2644 = vadd.f32 %v2599, %v2554
        %v2645 = vadd.f32 %v2600, %v2555
        %v2646 = vadd.f32 %v2601, %v2556
        %v2647 = vadd.f32 %v2602, %v2557
        %v2648 = vadd.f32 %v2603, %v2558
        %v2649 = vadd.f32 %v2604, %v2559
        %v2650 = vadd.f32 %v2605, %v2560
        %v2651 = vadd.f32 %v2606, %v2561
        %v2652 = vadd.f32 %v2607, %v2562
        %v2653 = vadd.f32 %v2608, %v2563
        %v2654 = vadd.f32 %v2609, %v2564
        %v2655 = vadd.f32 %v2610, %v2565
        %v2656 = vadd.f32 %v2611, %v2566
        %v2657 = vadd.f32 %v2612, %v2567
        %v2658 = vadd.f32 %v2613, %v2568
        %v2659 = vadd.f32 %v2614, %v2569
        %v2660 = vadd.f32 %v2615, %v2570
        %v2661 = vadd.f32 %v2616, %v2571
        %v2662 = vadd.f32 %v2617, %v2572
        %v2663 = vadd.f32 %v2618, %v2573
        %v2664 = vadd.f32 %v2619, %v2574
        %v2665 = vadd.f32 %v2620, %v2575
        %v2666 = vadd.f32 %v2621, %v2576
        %v2667 = vadd.f32 %v2622, %v2577
        %v2668 = vadd.f32 %v2623, %v2578
        %v2669 = vadd.f32 %v2624, %v2579
        %v2670 = vadd.f32 %v2625, %v2580
        %v2671 = vadd.f32 %v2626, %v2581
        %v2672 = vadd.f32 %v2627, %v2582
        %v2673 = vadd.f32 %v2628, %v2583
        %v2674 = vadd.f32 %v2629, %v2584
        %v2675 = vadd.f32 %v2630, %v2585
        %v2676 = vadd.f32 %v2631, %v2586
        %v2677 = vadd.f32 %v2632, %v2587
        %v2678 = vadd.f32 %v2633, %v2588
        %v2679 = vadd.f32 %v2634, %v2589
        %v2680 = vadd.f32 %v2635, %v2590
        %v2681 = vadd.f32 %v2636, %v2591
        %v2682 = vadd.f32 %v2637, %v2592
        %v2683 = vadd.f32 %v2638, %v2593
        %v2684 = vadd.f32 %v2639, %v2594
        %v2685 = vadd.f32 %v2640, %v2595
        %v2686 = vadd.f32 %v2641, %v2596
        %v2687 = vadd.f32 %v2642, %v2597
        %v2688 = vadd.f32 %v2643, %v2598
        %2689 = vst [vmem:[#allocation2] sm:$0xff] %v2644
        %2690 = vst [vmem:[#allocation2 + $0x8] sm:$0xff] %v2645
        %2691 = vst [vmem:[#allocation2 + $0x10] sm:$0xff] %v2646
        %2692 = vst [vmem:[#allocation2 + $0x18] sm:$0xff] %v2647
        %2693 = vst [vmem:[#allocation2 + $0x20] sm:$0xff] %v2648
        %2694 = vst [vmem:[#allocation2 + $0x28] sm:$0xff] %v2649
        %2695 = vst [vmem:[#allocation2 + $0x30] sm:$0xff] %v2650
        %2696 = vst [vmem:[#allocation2 + $0x38] sm:$0xff] %v2651
        %2697 = vst [vmem:[#allocation2 + $0x40] sm:$0xff] %v2652
        %2698 = vst [vmem:[#allocation2 + $0x48] sm:$0xff] %v2653
        %2699 = vst [vmem:[#allocation2 + $0x50] sm:$0xff] %v2654
        %2700 = vst [vmem:[#allocation2 + $0x58] sm:$0xff] %v2655
        %2701 = vst [vmem:[#allocation2 + $0x60] sm:$0xff] %v2656
        %2702 = vst [vmem:[#allocation2 + $0x68] sm:$0xff] %v2657
        %2703 = vst [vmem:[#allocation2 + $0x70] sm:$0xff] %v2658
        %2704 = vst [vmem:[#allocation2 + $0x78] sm:$0xff] %v2659
        %2705 = vst [vmem:[#allocation2 + $0x80] sm:$0xff] %v2660
        %2706 = vst [vmem:[#allocation2 + $0x88] sm:$0xff] %v2661
        %2707 = vst [vmem:[#allocation2 + $0x90] sm:$0xff] %v2662
        %2708 = vst [vmem:[#allocation2 + $0x98] sm:$0xff] %v2663
        %2709 = vst [vmem:[#allocation2 + $0xa0] sm:$0xff] %v2664
        %2710 = vst [vmem:[#allocation2 + $0xa8] sm:$0xff] %v2665
        %2711 = vst [vmem:[#allocation2 + $0xb0] sm:$0xff] %v2666
        %2712 = vst [vmem:[#allocation2 + $0xb8] sm:$0xff] %v2667
        %2713 = vst [vmem:[#allocation2 + $0xc0] sm:$0xff] %v2668
        %2714 = vst [vmem:[#allocation2 + $0xc8] sm:$0xff] %v2669
        %2715 = vst [vmem:[#allocation2 + $0xd0] sm:$0xff] %v2670
        %2716 = vst [vmem:[#allocation2 + $0xd8] sm:$0xff] %v2671
        %2717 = vst [vmem:[#allocation2 + $0xe0] sm:$0xff] %v2672
        %2718 = vst [vmem:[#allocation2 + $0xe8] sm:$0xff] %v2673
        %2719 = vst [vmem:[#allocation2 + $0xf0] sm:$0xff] %v2674
        %2720 = vst [vmem:[#allocation2 + $0xf8] sm:$0xff] %v2675
        %2721 = vst [vmem:[#allocation2 + $0x100] sm:$0xff] %v2676
        %2722 = vst [vmem:[#allocation2 + $0x108] sm:$0xff] %v2677
        %2723 = vst [vmem:[#allocation2 + $0x110] sm:$0xff] %v2678
        %2724 = vst [vmem:[#allocation2 + $0x118] sm:$0xff] %v2679
        %2725 = vst [vmem:[#allocation2 + $0x120] sm:$0xff] %v2680
        %2726 = vst [vmem:[#allocation2 + $0x128] sm:$0xff] %v2681
        %2727 = vst [vmem:[#allocation2 + $0x130] sm:$0xff] %v2682
        %2728 = vst [vmem:[#allocation2 + $0x138] sm:$0xff] %v2683
        %2729 = vst [vmem:[#allocation2 + $0x140] sm:$0xff] %v2684
        %2730 = vst [vmem:[#allocation2 + $0x148] sm:$0xff] %v2685
        %2731 = vst [vmem:[#allocation2 + $0x150] sm:$0xff] %v2686
        %2732 = vst [vmem:[#allocation2 + $0x158] sm:$0xff] %v2687
        %2733 = vst [vmem:[#allocation2 + $0x160] sm:$0xff] %v2688
        %v2734 = vld [vmem:[%s312 + $0x28] sm:$0xff]
        %v2735 = vld [vmem:[%s312 + $0x30] sm:$0xff]
        %v2736 = vld [vmem:[%s312 + $0x38] sm:$0xff]
        %v2737 = vld [vmem:[%s312 + $0x40] sm:$0xff]
        %v2738 = vld [vmem:[%s312 + $0x48] sm:$0xff]
        %v2739 = vld [vmem:[%s312 + $0x50] sm:$0xff]
        %v2740 = vld [vmem:[%s312 + $0x58] sm:$0xff]
        %v2741 = vld [vmem:[%s312 + $0x60] sm:$0xff]
        %v2742 = vld [vmem:[%s312 + $0x68] sm:$0xff]
        %v2743 = vld [vmem:[%s312 + $0x70] sm:$0xff]
        %v2744 = vld [vmem:[%s312 + $0x78] sm:$0xff]
        %v2745 = vld [vmem:[%s312 + $0x80] sm:$0xff]
        %v2746 = vld [vmem:[%s312 + $0x88] sm:$0xff]
        %v2747 = vld [vmem:[%s312 + $0x90] sm:$0xff]
        %v2748 = vld [vmem:[%s312 + $0x98] sm:$0xff]
        %v2749 = vld [vmem:[%s312 + $0xa0] sm:$0xff]
        %v2750 = vld [vmem:[%s312 + $0xa8] sm:$0xff]
        %v2751 = vld [vmem:[%s312 + $0xb0] sm:$0xff]
        %v2752 = vld [vmem:[%s312 + $0xb8] sm:$0xff]
        %v2753 = vld [vmem:[%s312 + $0xc0] sm:$0xff]
        %v2754 = vld [vmem:[%s312 + $0xc8] sm:$0xff]
        %v2755 = vld [vmem:[%s312 + $0xd0] sm:$0xff]
        %v2756 = vld [vmem:[%s312 + $0xd8] sm:$0xff]
        %v2757 = vld [vmem:[%s312 + $0xe0] sm:$0xff]
        %v2758 = vld [vmem:[%s312 + $0xe8] sm:$0xff]
        %v2759 = vld [vmem:[%s312 + $0xf0] sm:$0xff]
        %v2760 = vld [vmem:[%s312 + $0xf8] sm:$0xff]
        %v2761 = vld [vmem:[%s312 + $0x100] sm:$0xff]
        %v2762 = vld [vmem:[%s312 + $0x108] sm:$0xff]
        %v2763 = vld [vmem:[%s312 + $0x110] sm:$0xff]
        %v2764 = vld [vmem:[%s312 + $0x118] sm:$0xff]
        %v2765 = vld [vmem:[%s312 + $0x120] sm:$0xff]
        %v2766 = vld [vmem:[%s312 + $0x128] sm:$0xff]
        %v2767 = vld [vmem:[%s312 + $0x130] sm:$0xff]
        %v2768 = vld [vmem:[%s312 + $0x138] sm:$0xff]
        %v2769 = vld [vmem:[%s312 + $0x140] sm:$0xff]
        %v2770 = vld [vmem:[%s312 + $0x148] sm:$0xff]
        %v2771 = vld [vmem:[%s312 + $0x150] sm:$0xff]
        %v2772 = vld [vmem:[%s312 + $0x158] sm:$0xff]
        %v2773 = vld [vmem:[%s312 + $0x160] sm:$0xff]
        %v2774 = vld [vmem:[%s312 + $0x168] sm:$0xff]
        %v2775 = vld [vmem:[%s312 + $0x170] sm:$0xff]
        %v2776 = vld [vmem:[%s312 + $0x178] sm:$0xff]
        %v2777 = vld [vmem:[%s312 + $0x180] sm:$0xff]
        %v2778 = vld [vmem:[%s312 + $0x188] sm:$0xff]
        %s2779 = scalar_lea.vmem [#allocation7], 768
        %v2780 = vld [vmem:[%s2779] sm:$0xff]
        %v2781 = vld [vmem:[%s2779 + $0x8] sm:$0xff]
        %v2782 = vld [vmem:[%s2779 + $0x10] sm:$0xff]
        %v2783 = vld [vmem:[%s2779 + $0x18] sm:$0xff]
        %v2784 = vld [vmem:[%s2779 + $0x20] sm:$0xff]
        %v2785 = vld [vmem:[%s2779 + $0x28] sm:$0xff]
        %v2786 = vld [vmem:[%s2779 + $0x30] sm:$0xff]
        %v2787 = vld [vmem:[%s2779 + $0x38] sm:$0xff]
        %v2788 = vld [vmem:[%s2779 + $0x40] sm:$0xff]
        %v2789 = vld [vmem:[%s2779 + $0x48] sm:$0xff]
        %v2790 = vld [vmem:[%s2779 + $0x50] sm:$0xff]
        %v2791 = vld [vmem:[%s2779 + $0x58] sm:$0xff]
        %v2792 = vld [vmem:[%s2779 + $0x60] sm:$0xff]
        %v2793 = vld [vmem:[%s2779 + $0x68] sm:$0xff]
        %v2794 = vld [vmem:[%s2779 + $0x70] sm:$0xff]
        %v2795 = vld [vmem:[%s2779 + $0x78] sm:$0xff]
        %v2796 = vld [vmem:[%s312 + $0x29] sm:$0xff]
        %v2797 = vld [vmem:[%s312 + $0x31] sm:$0xff]
        %v2798 = vld [vmem:[%s312 + $0x39] sm:$0xff]
        %v2799 = vld [vmem:[%s312 + $0x41] sm:$0xff]
        %v2800 = vld [vmem:[%s312 + $0x49] sm:$0xff]
        %v2801 = vld [vmem:[%s312 + $0x51] sm:$0xff]
        %v2802 = vld [vmem:[%s312 + $0x59] sm:$0xff]
        %v2803 = vld [vmem:[%s312 + $0x61] sm:$0xff]
        %v2804 = vld [vmem:[%s312 + $0x69] sm:$0xff]
        %v2805 = vld [vmem:[%s312 + $0x71] sm:$0xff]
        %v2806 = vld [vmem:[%s312 + $0x79] sm:$0xff]
        %v2807 = vld [vmem:[%s312 + $0x81] sm:$0xff]
        %v2808 = vld [vmem:[%s312 + $0x89] sm:$0xff]
        %v2809 = vld [vmem:[%s312 + $0x91] sm:$0xff]
        %v2810 = vld [vmem:[%s312 + $0x99] sm:$0xff]
        %v2811 = vld [vmem:[%s312 + $0xa1] sm:$0xff]
        %v2812 = vld [vmem:[%s312 + $0xa9] sm:$0xff]
        %v2813 = vld [vmem:[%s312 + $0xb1] sm:$0xff]
        %v2814 = vld [vmem:[%s312 + $0xb9] sm:$0xff]
        %v2815 = vld [vmem:[%s312 + $0xc1] sm:$0xff]
        %v2816 = vld [vmem:[%s312 + $0xc9] sm:$0xff]
        %v2817 = vld [vmem:[%s312 + $0xd1] sm:$0xff]
        %v2818 = vld [vmem:[%s312 + $0xd9] sm:$0xff]
        %v2819 = vld [vmem:[%s312 + $0xe1] sm:$0xff]
        %v2820 = vld [vmem:[%s312 + $0xe9] sm:$0xff]
        %v2821 = vld [vmem:[%s312 + $0xf1] sm:$0xff]
        %v2822 = vld [vmem:[%s312 + $0xf9] sm:$0xff]
        %v2823 = vld [vmem:[%s312 + $0x101] sm:$0xff]
        %v2824 = vld [vmem:[%s312 + $0x109] sm:$0xff]
        %v2825 = vld [vmem:[%s312 + $0x111] sm:$0xff]
        %v2826 = vld [vmem:[%s312 + $0x119] sm:$0xff]
        %v2827 = vld [vmem:[%s312 + $0x121] sm:$0xff]
        %v2828 = vld [vmem:[%s312 + $0x129] sm:$0xff]
        %v2829 = vld [vmem:[%s312 + $0x131] sm:$0xff]
        %v2830 = vld [vmem:[%s312 + $0x139] sm:$0xff]
        %v2831 = vld [vmem:[%s312 + $0x141] sm:$0xff]
        %v2832 = vld [vmem:[%s312 + $0x149] sm:$0xff]
        %v2833 = vld [vmem:[%s312 + $0x151] sm:$0xff]
        %v2834 = vld [vmem:[%s312 + $0x159] sm:$0xff]
        %v2835 = vld [vmem:[%s312 + $0x161] sm:$0xff]
        %v2836 = vld [vmem:[%s312 + $0x169] sm:$0xff]
        %v2837 = vld [vmem:[%s312 + $0x171] sm:$0xff]
        %v2838 = vld [vmem:[%s312 + $0x179] sm:$0xff]
        %v2839 = vld [vmem:[%s312 + $0x181] sm:$0xff]
        %v2840 = vld [vmem:[%s312 + $0x189] sm:$0xff]
        %s2841 = scalar_lea.vmem [#allocation7], 896
        %v2842 = vld [vmem:[%s2841] sm:$0xff]
        %v2843 = vld [vmem:[%s2841 + $0x8] sm:$0xff]
        %v2844 = vld [vmem:[%s2841 + $0x10] sm:$0xff]
        %v2845 = vld [vmem:[%s2841 + $0x18] sm:$0xff]
        %v2846 = vld [vmem:[%s2841 + $0x20] sm:$0xff]
        %v2847 = vld [vmem:[%s2841 + $0x28] sm:$0xff]
        %v2848 = vld [vmem:[%s2841 + $0x30] sm:$0xff]
        %v2849 = vld [vmem:[%s2841 + $0x38] sm:$0xff]
        %v2850 = vld [vmem:[%s2841 + $0x40] sm:$0xff]
        %v2851 = vld [vmem:[%s2841 + $0x48] sm:$0xff]
        %v2852 = vld [vmem:[%s2841 + $0x50] sm:$0xff]
        %v2853 = vld [vmem:[%s2841 + $0x58] sm:$0xff]
        %v2854 = vld [vmem:[%s2841 + $0x60] sm:$0xff]
        %v2855 = vld [vmem:[%s2841 + $0x68] sm:$0xff]
        %v2856 = vld [vmem:[%s2841 + $0x70] sm:$0xff]
        %v2857 = vld [vmem:[%s2841 + $0x78] sm:$0xff]
        %2858 = vmatprep.subr.mxu0 0.0
        %2859 = vmatpush1.msra.mxu0 %v2857
        %2860 = vmatprep.subr.mxu0 0.0
        %2861 = vmatpush1.msra.mxu0 %v2856
        %2862 = vmatprep.subr.mxu0 0.0
        %2863 = vmatpush1.msra.mxu0 %v2855
        %2864 = vmatprep.subr.mxu0 0.0
        %2865 = vmatpush1.msra.mxu0 %v2854
        %2866 = vmatprep.subr.mxu0 0.0
        %2867 = vmatpush1.msra.mxu0 %v2853
        %2868 = vmatprep.subr.mxu0 0.0
        %2869 = vmatpush1.msra.mxu0 %v2852
        %2870 = vmatprep.subr.mxu0 0.0
        %2871 = vmatpush1.msra.mxu0 %v2851
        %2872 = vmatprep.subr.mxu0 0.0
        %2873 = vmatpush1.msra.mxu0 %v2850
        %2874 = vmatprep.subr.mxu0 0.0
        %2875 = vmatpush1.msra.mxu0 %v2849
        %2876 = vmatprep.subr.mxu0 0.0
        %2877 = vmatpush1.msra.mxu0 %v2848
        %2878 = vmatprep.subr.mxu0 0.0
        %2879 = vmatpush1.msra.mxu0 %v2847
        %2880 = vmatprep.subr.mxu0 0.0
        %2881 = vmatpush1.msra.mxu0 %v2846
        %2882 = vmatprep.subr.mxu0 0.0
        %2883 = vmatpush1.msra.mxu0 %v2845
        %2884 = vmatprep.subr.mxu0 0.0
        %2885 = vmatpush1.msra.mxu0 %v2844
        %2886 = vmatprep.subr.mxu0 0.0
        %2887 = vmatpush1.msra.mxu0 %v2843
        %2888 = vmatprep.subr.mxu0 0.0
        %2889 = vmatpush1.msra.mxu0 %v2842
        %2890 = vmatprep.subr.mxu0 0.0
        %2891 = vmatpush2.msra.mxu0 0.0
        %2892 = vmatprep.subr.mxu0 0.0
        %2893 = vmatpush2.msra.mxu0 0.0
        %2894 = vmatprep.subr.mxu0 0.0
        %2895 = vmatpush2.msra.mxu0 0.0
        %2896 = vmatprep.subr.mxu0 0.0
        %2897 = vmatpush2.msra.mxu0 0.0
        %2898 = vmatprep.subr.mxu0 0.0
        %2899 = vmatpush2.msra.mxu0 0.0
        %2900 = vmatprep.subr.mxu0 0.0
        %2901 = vmatpush2.msra.mxu0 0.0
        %2902 = vmatprep.subr.mxu0 0.0
        %2903 = vmatpush2.msra.mxu0 0.0
        %2904 = vmatprep.subr.mxu0 0.0
        %2905 = vmatpush2.msra.mxu0 0.0
        %2906 = vmatprep.subr.mxu0 0.0
        %2907 = vmatpush2.msra.mxu0 0.0
        %2908 = vmatprep.subr.mxu0 0.0
        %2909 = vmatpush2.msra.mxu0 0.0
        %2910 = vmatprep.subr.mxu0 0.0
        %2911 = vmatpush2.msra.mxu0 0.0
        %2912 = vmatprep.subr.mxu0 0.0
        %2913 = vmatpush2.msra.mxu0 0.0
        %2914 = vmatprep.subr.mxu0 0.0
        %2915 = vmatpush2.msra.mxu0 0.0
        %2916 = vmatprep.subr.mxu0 0.0
        %2917 = vmatpush2.msra.mxu0 0.0
        %2918 = vmatprep.subr.mxu0 0.0
        %2919 = vmatpush2.msra.mxu0 0.0
        %2920 = vmatprep.subr.mxu0 0.0
        %2921 = vmatpush2.msra.mxu0 0.0
        %2922 = vmatprep.mubr.f32.mxu0 0.0
        %2923 = vmatmul.mubr.f32.gmra.mxu0 %v2796
        %v2924 = vpop.f32.mrf.mxu0
        %v2925 = vadd.f32 0.0, %v2924
        %v2926 = vpop.f32.mrf.mxu0
        %2927 = vmatprep.mubr.f32.mxu0 0.0
        %2928 = vmatmul.mubr.f32.gmra.mxu0 %v2797
        %v2929 = vpop.f32.mrf.mxu0
        %v2930 = vadd.f32 0.0, %v2929
        %v2931 = vpop.f32.mrf.mxu0
        %2932 = vmatprep.mubr.f32.mxu0 0.0
        %2933 = vmatmul.mubr.f32.gmra.mxu0 %v2798
        %v2934 = vpop.f32.mrf.mxu0
        %v2935 = vadd.f32 0.0, %v2934
        %v2936 = vpop.f32.mrf.mxu0
        %2937 = vmatprep.mubr.f32.mxu0 0.0
        %2938 = vmatmul.mubr.f32.gmra.mxu0 %v2799
        %v2939 = vpop.f32.mrf.mxu0
        %v2940 = vadd.f32 0.0, %v2939
        %v2941 = vpop.f32.mrf.mxu0
        %2942 = vmatprep.mubr.f32.mxu0 0.0
        %2943 = vmatmul.mubr.f32.gmra.mxu0 %v2800
        %v2944 = vpop.f32.mrf.mxu0
        %v2945 = vadd.f32 0.0, %v2944
        %v2946 = vpop.f32.mrf.mxu0
        %2947 = vmatprep.mubr.f32.mxu0 0.0
        %2948 = vmatmul.mubr.f32.gmra.mxu0 %v2801
        %v2949 = vpop.f32.mrf.mxu0
        %v2950 = vadd.f32 0.0, %v2949
        %v2951 = vpop.f32.mrf.mxu0
        %2952 = vmatprep.mubr.f32.mxu0 0.0
        %2953 = vmatmul.mubr.f32.gmra.mxu0 %v2802
        %v2954 = vpop.f32.mrf.mxu0
        %v2955 = vadd.f32 0.0, %v2954
        %v2956 = vpop.f32.mrf.mxu0
        %2957 = vmatprep.mubr.f32.mxu0 0.0
        %2958 = vmatmul.mubr.f32.gmra.mxu0 %v2803
        %v2959 = vpop.f32.mrf.mxu0
        %v2960 = vadd.f32 0.0, %v2959
        %v2961 = vpop.f32.mrf.mxu0
        %2962 = vmatprep.mubr.f32.mxu0 0.0
        %2963 = vmatmul.mubr.f32.gmra.mxu0 %v2804
        %v2964 = vpop.f32.mrf.mxu0
        %v2965 = vadd.f32 0.0, %v2964
        %v2966 = vpop.f32.mrf.mxu0
        %2967 = vmatprep.mubr.f32.mxu0 0.0
        %2968 = vmatmul.mubr.f32.gmra.mxu0 %v2805
        %v2969 = vpop.f32.mrf.mxu0
        %v2970 = vadd.f32 0.0, %v2969
        %v2971 = vpop.f32.mrf.mxu0
        %2972 = vmatprep.mubr.f32.mxu0 0.0
        %2973 = vmatmul.mubr.f32.gmra.mxu0 %v2806
        %v2974 = vpop.f32.mrf.mxu0
        %v2975 = vadd.f32 0.0, %v2974
        %v2976 = vpop.f32.mrf.mxu0
        %2977 = vmatprep.mubr.f32.mxu0 0.0
        %2978 = vmatmul.mubr.f32.gmra.mxu0 %v2807
        %v2979 = vpop.f32.mrf.mxu0
        %v2980 = vadd.f32 0.0, %v2979
        %v2981 = vpop.f32.mrf.mxu0
        %2982 = vmatprep.mubr.f32.mxu0 0.0
        %2983 = vmatmul.mubr.f32.gmra.mxu0 %v2808
        %v2984 = vpop.f32.mrf.mxu0
        %v2985 = vadd.f32 0.0, %v2984
        %v2986 = vpop.f32.mrf.mxu0
        %2987 = vmatprep.mubr.f32.mxu0 0.0
        %2988 = vmatmul.mubr.f32.gmra.mxu0 %v2809
        %v2989 = vpop.f32.mrf.mxu0
        %v2990 = vadd.f32 0.0, %v2989
        %v2991 = vpop.f32.mrf.mxu0
        %2992 = vmatprep.mubr.f32.mxu0 0.0
        %2993 = vmatmul.mubr.f32.gmra.mxu0 %v2810
        %v2994 = vpop.f32.mrf.mxu0
        %v2995 = vadd.f32 0.0, %v2994
        %v2996 = vpop.f32.mrf.mxu0
        %2997 = vmatprep.mubr.f32.mxu0 0.0
        %2998 = vmatmul.mubr.f32.gmra.mxu0 %v2811
        %v2999 = vpop.f32.mrf.mxu0
        %v3000 = vadd.f32 0.0, %v2999
        %v3001 = vpop.f32.mrf.mxu0
        %3002 = vmatprep.mubr.f32.mxu0 0.0
        %3003 = vmatmul.mubr.f32.gmra.mxu0 %v2812
        %v3004 = vpop.f32.mrf.mxu0
        %v3005 = vadd.f32 0.0, %v3004
        %v3006 = vpop.f32.mrf.mxu0
        %3007 = vmatprep.mubr.f32.mxu0 0.0
        %3008 = vmatmul.mubr.f32.gmra.mxu0 %v2813
        %v3009 = vpop.f32.mrf.mxu0
        %v3010 = vadd.f32 0.0, %v3009
        %v3011 = vpop.f32.mrf.mxu0
        %3012 = vmatprep.mubr.f32.mxu0 0.0
        %3013 = vmatmul.mubr.f32.gmra.mxu0 %v2814
        %v3014 = vpop.f32.mrf.mxu0
        %v3015 = vadd.f32 0.0, %v3014
        %v3016 = vpop.f32.mrf.mxu0
        %3017 = vmatprep.mubr.f32.mxu0 0.0
        %3018 = vmatmul.mubr.f32.gmra.mxu0 %v2815
        %v3019 = vpop.f32.mrf.mxu0
        %v3020 = vadd.f32 0.0, %v3019
        %v3021 = vpop.f32.mrf.mxu0
        %3022 = vmatprep.mubr.f32.mxu0 0.0
        %3023 = vmatmul.mubr.f32.gmra.mxu0 %v2816
        %v3024 = vpop.f32.mrf.mxu0
        %v3025 = vadd.f32 0.0, %v3024
        %v3026 = vpop.f32.mrf.mxu0
        %3027 = vmatprep.mubr.f32.mxu0 0.0
        %3028 = vmatmul.mubr.f32.gmra.mxu0 %v2817
        %v3029 = vpop.f32.mrf.mxu0
        %v3030 = vadd.f32 0.0, %v3029
        %v3031 = vpop.f32.mrf.mxu0
        %3032 = vmatprep.mubr.f32.mxu0 0.0
        %3033 = vmatmul.mubr.f32.gmra.mxu0 %v2818
        %v3034 = vpop.f32.mrf.mxu0
        %v3035 = vadd.f32 0.0, %v3034
        %v3036 = vpop.f32.mrf.mxu0
        %3037 = vmatprep.mubr.f32.mxu0 0.0
        %3038 = vmatmul.mubr.f32.gmra.mxu0 %v2819
        %v3039 = vpop.f32.mrf.mxu0
        %v3040 = vadd.f32 0.0, %v3039
        %v3041 = vpop.f32.mrf.mxu0
        %3042 = vmatprep.mubr.f32.mxu0 0.0
        %3043 = vmatmul.mubr.f32.gmra.mxu0 %v2820
        %v3044 = vpop.f32.mrf.mxu0
        %v3045 = vadd.f32 0.0, %v3044
        %v3046 = vpop.f32.mrf.mxu0
        %3047 = vmatprep.mubr.f32.mxu0 0.0
        %3048 = vmatmul.mubr.f32.gmra.mxu0 %v2821
        %v3049 = vpop.f32.mrf.mxu0
        %v3050 = vadd.f32 0.0, %v3049
        %v3051 = vpop.f32.mrf.mxu0
        %3052 = vmatprep.mubr.f32.mxu0 0.0
        %3053 = vmatmul.mubr.f32.gmra.mxu0 %v2822
        %v3054 = vpop.f32.mrf.mxu0
        %v3055 = vadd.f32 0.0, %v3054
        %v3056 = vpop.f32.mrf.mxu0
        %3057 = vmatprep.mubr.f32.mxu0 0.0
        %3058 = vmatmul.mubr.f32.gmra.mxu0 %v2823
        %v3059 = vpop.f32.mrf.mxu0
        %v3060 = vadd.f32 0.0, %v3059
        %v3061 = vpop.f32.mrf.mxu0
        %3062 = vmatprep.mubr.f32.mxu0 0.0
        %3063 = vmatmul.mubr.f32.gmra.mxu0 %v2824
        %v3064 = vpop.f32.mrf.mxu0
        %v3065 = vadd.f32 0.0, %v3064
        %v3066 = vpop.f32.mrf.mxu0
        %3067 = vmatprep.mubr.f32.mxu0 0.0
        %3068 = vmatmul.mubr.f32.gmra.mxu0 %v2825
        %v3069 = vpop.f32.mrf.mxu0
        %v3070 = vadd.f32 0.0, %v3069
        %v3071 = vpop.f32.mrf.mxu0
        %3072 = vmatprep.mubr.f32.mxu0 0.0
        %3073 = vmatmul.mubr.f32.gmra.mxu0 %v2826
        %v3074 = vpop.f32.mrf.mxu0
        %v3075 = vadd.f32 0.0, %v3074
        %v3076 = vpop.f32.mrf.mxu0
        %3077 = vmatprep.mubr.f32.mxu0 0.0
        %3078 = vmatmul.mubr.f32.gmra.mxu0 %v2827
        %v3079 = vpop.f32.mrf.mxu0
        %v3080 = vadd.f32 0.0, %v3079
        %v3081 = vpop.f32.mrf.mxu0
        %3082 = vmatprep.mubr.f32.mxu0 0.0
        %3083 = vmatmul.mubr.f32.gmra.mxu0 %v2828
        %v3084 = vpop.f32.mrf.mxu0
        %v3085 = vadd.f32 0.0, %v3084
        %v3086 = vpop.f32.mrf.mxu0
        %3087 = vmatprep.mubr.f32.mxu0 0.0
        %3088 = vmatmul.mubr.f32.gmra.mxu0 %v2829
        %v3089 = vpop.f32.mrf.mxu0
        %v3090 = vadd.f32 0.0, %v3089
        %v3091 = vpop.f32.mrf.mxu0
        %3092 = vmatprep.mubr.f32.mxu0 0.0
        %3093 = vmatmul.mubr.f32.gmra.mxu0 %v2830
        %v3094 = vpop.f32.mrf.mxu0
        %v3095 = vadd.f32 0.0, %v3094
        %v3096 = vpop.f32.mrf.mxu0
        %3097 = vmatprep.mubr.f32.mxu0 0.0
        %3098 = vmatmul.mubr.f32.gmra.mxu0 %v2831
        %v3099 = vpop.f32.mrf.mxu0
        %v3100 = vadd.f32 0.0, %v3099
        %v3101 = vpop.f32.mrf.mxu0
        %3102 = vmatprep.mubr.f32.mxu0 0.0
        %3103 = vmatmul.mubr.f32.gmra.mxu0 %v2832
        %v3104 = vpop.f32.mrf.mxu0
        %v3105 = vadd.f32 0.0, %v3104
        %v3106 = vpop.f32.mrf.mxu0
        %3107 = vmatprep.mubr.f32.mxu0 0.0
        %3108 = vmatmul.mubr.f32.gmra.mxu0 %v2833
        %v3109 = vpop.f32.mrf.mxu0
        %v3110 = vadd.f32 0.0, %v3109
        %v3111 = vpop.f32.mrf.mxu0
        %3112 = vmatprep.mubr.f32.mxu0 0.0
        %3113 = vmatmul.mubr.f32.gmra.mxu0 %v2834
        %v3114 = vpop.f32.mrf.mxu0
        %v3115 = vadd.f32 0.0, %v3114
        %v3116 = vpop.f32.mrf.mxu0
        %3117 = vmatprep.mubr.f32.mxu0 0.0
        %3118 = vmatmul.mubr.f32.gmra.mxu0 %v2835
        %v3119 = vpop.f32.mrf.mxu0
        %v3120 = vadd.f32 0.0, %v3119
        %v3121 = vpop.f32.mrf.mxu0
        %3122 = vmatprep.mubr.f32.mxu0 0.0
        %3123 = vmatmul.mubr.f32.gmra.mxu0 %v2836
        %v3124 = vpop.f32.mrf.mxu0
        %v3125 = vadd.f32 0.0, %v3124
        %v3126 = vpop.f32.mrf.mxu0
        %3127 = vmatprep.mubr.f32.mxu0 0.0
        %3128 = vmatmul.mubr.f32.gmra.mxu0 %v2837
        %v3129 = vpop.f32.mrf.mxu0
        %v3130 = vadd.f32 0.0, %v3129
        %v3131 = vpop.f32.mrf.mxu0
        %3132 = vmatprep.mubr.f32.mxu0 0.0
        %3133 = vmatmul.mubr.f32.gmra.mxu0 %v2838
        %v3134 = vpop.f32.mrf.mxu0
        %v3135 = vadd.f32 0.0, %v3134
        %v3136 = vpop.f32.mrf.mxu0
        %3137 = vmatprep.mubr.f32.mxu0 0.0
        %3138 = vmatmul.mubr.f32.gmra.mxu0 %v2839
        %v3139 = vpop.f32.mrf.mxu0
        %v3140 = vadd.f32 0.0, %v3139
        %v3141 = vpop.f32.mrf.mxu0
        %3142 = vmatprep.mubr.f32.mxu0 0.0
        %3143 = vmatmul.mubr.f32.gmra.mxu0 %v2840
        %v3144 = vpop.f32.mrf.mxu0
        %v3145 = vadd.f32 0.0, %v3144
        %v3146 = vpop.f32.mrf.mxu0
        %3147 = vdwg.mxu0
        %3148 = vmatprep.subr.mxu0 0.0
        %3149 = vmatpush1.msra.mxu0 %v2795
        %3150 = vmatprep.subr.mxu0 0.0
        %3151 = vmatpush1.msra.mxu0 %v2794
        %3152 = vmatprep.subr.mxu0 0.0
        %3153 = vmatpush1.msra.mxu0 %v2793
        %3154 = vmatprep.subr.mxu0 0.0
        %3155 = vmatpush1.msra.mxu0 %v2792
        %3156 = vmatprep.subr.mxu0 0.0
        %3157 = vmatpush1.msra.mxu0 %v2791
        %3158 = vmatprep.subr.mxu0 0.0
        %3159 = vmatpush1.msra.mxu0 %v2790
        %3160 = vmatprep.subr.mxu0 0.0
        %3161 = vmatpush1.msra.mxu0 %v2789
        %3162 = vmatprep.subr.mxu0 0.0
        %3163 = vmatpush1.msra.mxu0 %v2788
        %3164 = vmatprep.subr.mxu0 0.0
        %3165 = vmatpush1.msra.mxu0 %v2787
        %3166 = vmatprep.subr.mxu0 0.0
        %3167 = vmatpush1.msra.mxu0 %v2786
        %3168 = vmatprep.subr.mxu0 0.0
        %3169 = vmatpush1.msra.mxu0 %v2785
        %3170 = vmatprep.subr.mxu0 0.0
        %3171 = vmatpush1.msra.mxu0 %v2784
        %3172 = vmatprep.subr.mxu0 0.0
        %3173 = vmatpush1.msra.mxu0 %v2783
        %3174 = vmatprep.subr.mxu0 0.0
        %3175 = vmatpush1.msra.mxu0 %v2782
        %3176 = vmatprep.subr.mxu0 0.0
        %3177 = vmatpush1.msra.mxu0 %v2781
        %3178 = vmatprep.subr.mxu0 0.0
        %3179 = vmatpush1.msra.mxu0 %v2780
        %3180 = vmatprep.subr.mxu0 0.0
        %3181 = vmatpush2.msra.mxu0 0.0
        %3182 = vmatprep.subr.mxu0 0.0
        %3183 = vmatpush2.msra.mxu0 0.0
        %3184 = vmatprep.subr.mxu0 0.0
        %3185 = vmatpush2.msra.mxu0 0.0
        %3186 = vmatprep.subr.mxu0 0.0
        %3187 = vmatpush2.msra.mxu0 0.0
        %3188 = vmatprep.subr.mxu0 0.0
        %3189 = vmatpush2.msra.mxu0 0.0
        %3190 = vmatprep.subr.mxu0 0.0
        %3191 = vmatpush2.msra.mxu0 0.0
        %3192 = vmatprep.subr.mxu0 0.0
        %3193 = vmatpush2.msra.mxu0 0.0
        %3194 = vmatprep.subr.mxu0 0.0
        %3195 = vmatpush2.msra.mxu0 0.0
        %3196 = vmatprep.subr.mxu0 0.0
        %3197 = vmatpush2.msra.mxu0 0.0
        %3198 = vmatprep.subr.mxu0 0.0
        %3199 = vmatpush2.msra.mxu0 0.0
        %3200 = vmatprep.subr.mxu0 0.0
        %3201 = vmatpush2.msra.mxu0 0.0
        %3202 = vmatprep.subr.mxu0 0.0
        %3203 = vmatpush2.msra.mxu0 0.0
        %3204 = vmatprep.subr.mxu0 0.0
        %3205 = vmatpush2.msra.mxu0 0.0
        %3206 = vmatprep.subr.mxu0 0.0
        %3207 = vmatpush2.msra.mxu0 0.0
        %3208 = vmatprep.subr.mxu0 0.0
        %3209 = vmatpush2.msra.mxu0 0.0
        %3210 = vmatprep.subr.mxu0 0.0
        %3211 = vmatpush2.msra.mxu0 0.0
        %3212 = vmatprep.mubr.f32.mxu0 0.0
        %3213 = vmatmul.mubr.f32.gmra.mxu0 %v2734
        %v3214 = vpop.f32.mrf.mxu0
        %v3215 = vadd.f32 %v2925, %v3214
        %v3216 = vpop.f32.mrf.mxu0
        %3217 = vmatprep.mubr.f32.mxu0 0.0
        %3218 = vmatmul.mubr.f32.gmra.mxu0 %v2735
        %v3219 = vpop.f32.mrf.mxu0
        %v3220 = vadd.f32 %v2930, %v3219
        %v3221 = vpop.f32.mrf.mxu0
        %3222 = vmatprep.mubr.f32.mxu0 0.0
        %3223 = vmatmul.mubr.f32.gmra.mxu0 %v2736
        %v3224 = vpop.f32.mrf.mxu0
        %v3225 = vadd.f32 %v2935, %v3224
        %v3226 = vpop.f32.mrf.mxu0
        %3227 = vmatprep.mubr.f32.mxu0 0.0
        %3228 = vmatmul.mubr.f32.gmra.mxu0 %v2737
        %v3229 = vpop.f32.mrf.mxu0
        %v3230 = vadd.f32 %v2940, %v3229
        %v3231 = vpop.f32.mrf.mxu0
        %3232 = vmatprep.mubr.f32.mxu0 0.0
        %3233 = vmatmul.mubr.f32.gmra.mxu0 %v2738
        %v3234 = vpop.f32.mrf.mxu0
        %v3235 = vadd.f32 %v2945, %v3234
        %v3236 = vpop.f32.mrf.mxu0
        %3237 = vmatprep.mubr.f32.mxu0 0.0
        %3238 = vmatmul.mubr.f32.gmra.mxu0 %v2739
        %v3239 = vpop.f32.mrf.mxu0
        %v3240 = vadd.f32 %v2950, %v3239
        %v3241 = vpop.f32.mrf.mxu0
        %3242 = vmatprep.mubr.f32.mxu0 0.0
        %3243 = vmatmul.mubr.f32.gmra.mxu0 %v2740
        %v3244 = vpop.f32.mrf.mxu0
        %v3245 = vadd.f32 %v2955, %v3244
        %v3246 = vpop.f32.mrf.mxu0
        %3247 = vmatprep.mubr.f32.mxu0 0.0
        %3248 = vmatmul.mubr.f32.gmra.mxu0 %v2741
        %v3249 = vpop.f32.mrf.mxu0
        %v3250 = vadd.f32 %v2960, %v3249
        %v3251 = vpop.f32.mrf.mxu0
        %3252 = vmatprep.mubr.f32.mxu0 0.0
        %3253 = vmatmul.mubr.f32.gmra.mxu0 %v2742
        %v3254 = vpop.f32.mrf.mxu0
        %v3255 = vadd.f32 %v2965, %v3254
        %v3256 = vpop.f32.mrf.mxu0
        %3257 = vmatprep.mubr.f32.mxu0 0.0
        %3258 = vmatmul.mubr.f32.gmra.mxu0 %v2743
        %v3259 = vpop.f32.mrf.mxu0
        %v3260 = vadd.f32 %v2970, %v3259
        %v3261 = vpop.f32.mrf.mxu0
        %3262 = vmatprep.mubr.f32.mxu0 0.0
        %3263 = vmatmul.mubr.f32.gmra.mxu0 %v2744
        %v3264 = vpop.f32.mrf.mxu0
        %v3265 = vadd.f32 %v2975, %v3264
        %v3266 = vpop.f32.mrf.mxu0
        %3267 = vmatprep.mubr.f32.mxu0 0.0
        %3268 = vmatmul.mubr.f32.gmra.mxu0 %v2745
        %v3269 = vpop.f32.mrf.mxu0
        %v3270 = vadd.f32 %v2980, %v3269
        %v3271 = vpop.f32.mrf.mxu0
        %3272 = vmatprep.mubr.f32.mxu0 0.0
        %3273 = vmatmul.mubr.f32.gmra.mxu0 %v2746
        %v3274 = vpop.f32.mrf.mxu0
        %v3275 = vadd.f32 %v2985, %v3274
        %v3276 = vpop.f32.mrf.mxu0
        %3277 = vmatprep.mubr.f32.mxu0 0.0
        %3278 = vmatmul.mubr.f32.gmra.mxu0 %v2747
        %v3279 = vpop.f32.mrf.mxu0
        %v3280 = vadd.f32 %v2990, %v3279
        %v3281 = vpop.f32.mrf.mxu0
        %3282 = vmatprep.mubr.f32.mxu0 0.0
        %3283 = vmatmul.mubr.f32.gmra.mxu0 %v2748
        %v3284 = vpop.f32.mrf.mxu0
        %v3285 = vadd.f32 %v2995, %v3284
        %v3286 = vpop.f32.mrf.mxu0
        %3287 = vmatprep.mubr.f32.mxu0 0.0
        %3288 = vmatmul.mubr.f32.gmra.mxu0 %v2749
        %v3289 = vpop.f32.mrf.mxu0
        %v3290 = vadd.f32 %v3000, %v3289
        %v3291 = vpop.f32.mrf.mxu0
        %3292 = vmatprep.mubr.f32.mxu0 0.0
        %3293 = vmatmul.mubr.f32.gmra.mxu0 %v2750
        %v3294 = vpop.f32.mrf.mxu0
        %v3295 = vadd.f32 %v3005, %v3294
        %v3296 = vpop.f32.mrf.mxu0
        %3297 = vmatprep.mubr.f32.mxu0 0.0
        %3298 = vmatmul.mubr.f32.gmra.mxu0 %v2751
        %v3299 = vpop.f32.mrf.mxu0
        %v3300 = vadd.f32 %v3010, %v3299
        %v3301 = vpop.f32.mrf.mxu0
        %3302 = vmatprep.mubr.f32.mxu0 0.0
        %3303 = vmatmul.mubr.f32.gmra.mxu0 %v2752
        %v3304 = vpop.f32.mrf.mxu0
        %v3305 = vadd.f32 %v3015, %v3304
        %v3306 = vpop.f32.mrf.mxu0
        %3307 = vmatprep.mubr.f32.mxu0 0.0
        %3308 = vmatmul.mubr.f32.gmra.mxu0 %v2753
        %v3309 = vpop.f32.mrf.mxu0
        %v3310 = vadd.f32 %v3020, %v3309
        %v3311 = vpop.f32.mrf.mxu0
        %3312 = vmatprep.mubr.f32.mxu0 0.0
        %3313 = vmatmul.mubr.f32.gmra.mxu0 %v2754
        %v3314 = vpop.f32.mrf.mxu0
        %v3315 = vadd.f32 %v3025, %v3314
        %v3316 = vpop.f32.mrf.mxu0
        %3317 = vmatprep.mubr.f32.mxu0 0.0
        %3318 = vmatmul.mubr.f32.gmra.mxu0 %v2755
        %v3319 = vpop.f32.mrf.mxu0
        %v3320 = vadd.f32 %v3030, %v3319
        %v3321 = vpop.f32.mrf.mxu0
        %3322 = vmatprep.mubr.f32.mxu0 0.0
        %3323 = vmatmul.mubr.f32.gmra.mxu0 %v2756
        %v3324 = vpop.f32.mrf.mxu0
        %v3325 = vadd.f32 %v3035, %v3324
        %v3326 = vpop.f32.mrf.mxu0
        %3327 = vmatprep.mubr.f32.mxu0 0.0
        %3328 = vmatmul.mubr.f32.gmra.mxu0 %v2757
        %v3329 = vpop.f32.mrf.mxu0
        %v3330 = vadd.f32 %v3040, %v3329
        %v3331 = vpop.f32.mrf.mxu0
        %3332 = vmatprep.mubr.f32.mxu0 0.0
        %3333 = vmatmul.mubr.f32.gmra.mxu0 %v2758
        %v3334 = vpop.f32.mrf.mxu0
        %v3335 = vadd.f32 %v3045, %v3334
        %v3336 = vpop.f32.mrf.mxu0
        %3337 = vmatprep.mubr.f32.mxu0 0.0
        %3338 = vmatmul.mubr.f32.gmra.mxu0 %v2759
        %v3339 = vpop.f32.mrf.mxu0
        %v3340 = vadd.f32 %v3050, %v3339
        %v3341 = vpop.f32.mrf.mxu0
        %3342 = vmatprep.mubr.f32.mxu0 0.0
        %3343 = vmatmul.mubr.f32.gmra.mxu0 %v2760
        %v3344 = vpop.f32.mrf.mxu0
        %v3345 = vadd.f32 %v3055, %v3344
        %v3346 = vpop.f32.mrf.mxu0
        %3347 = vmatprep.mubr.f32.mxu0 0.0
        %3348 = vmatmul.mubr.f32.gmra.mxu0 %v2761
        %v3349 = vpop.f32.mrf.mxu0
        %v3350 = vadd.f32 %v3060, %v3349
        %v3351 = vpop.f32.mrf.mxu0
        %3352 = vmatprep.mubr.f32.mxu0 0.0
        %3353 = vmatmul.mubr.f32.gmra.mxu0 %v2762
        %v3354 = vpop.f32.mrf.mxu0
        %v3355 = vadd.f32 %v3065, %v3354
        %v3356 = vpop.f32.mrf.mxu0
        %3357 = vmatprep.mubr.f32.mxu0 0.0
        %3358 = vmatmul.mubr.f32.gmra.mxu0 %v2763
        %v3359 = vpop.f32.mrf.mxu0
        %v3360 = vadd.f32 %v3070, %v3359
        %v3361 = vpop.f32.mrf.mxu0
        %3362 = vmatprep.mubr.f32.mxu0 0.0
        %3363 = vmatmul.mubr.f32.gmra.mxu0 %v2764
        %v3364 = vpop.f32.mrf.mxu0
        %v3365 = vadd.f32 %v3075, %v3364
        %v3366 = vpop.f32.mrf.mxu0
        %3367 = vmatprep.mubr.f32.mxu0 0.0
        %3368 = vmatmul.mubr.f32.gmra.mxu0 %v2765
        %v3369 = vpop.f32.mrf.mxu0
        %v3370 = vadd.f32 %v3080, %v3369
        %v3371 = vpop.f32.mrf.mxu0
        %3372 = vmatprep.mubr.f32.mxu0 0.0
        %3373 = vmatmul.mubr.f32.gmra.mxu0 %v2766
        %v3374 = vpop.f32.mrf.mxu0
        %v3375 = vadd.f32 %v3085, %v3374
        %v3376 = vpop.f32.mrf.mxu0
        %3377 = vmatprep.mubr.f32.mxu0 0.0
        %3378 = vmatmul.mubr.f32.gmra.mxu0 %v2767
        %v3379 = vpop.f32.mrf.mxu0
        %v3380 = vadd.f32 %v3090, %v3379
        %v3381 = vpop.f32.mrf.mxu0
        %3382 = vmatprep.mubr.f32.mxu0 0.0
        %3383 = vmatmul.mubr.f32.gmra.mxu0 %v2768
        %v3384 = vpop.f32.mrf.mxu0
        %v3385 = vadd.f32 %v3095, %v3384
        %v3386 = vpop.f32.mrf.mxu0
        %3387 = vmatprep.mubr.f32.mxu0 0.0
        %3388 = vmatmul.mubr.f32.gmra.mxu0 %v2769
        %v3389 = vpop.f32.mrf.mxu0
        %v3390 = vadd.f32 %v3100, %v3389
        %v3391 = vpop.f32.mrf.mxu0
        %3392 = vmatprep.mubr.f32.mxu0 0.0
        %3393 = vmatmul.mubr.f32.gmra.mxu0 %v2770
        %v3394 = vpop.f32.mrf.mxu0
        %v3395 = vadd.f32 %v3105, %v3394
        %v3396 = vpop.f32.mrf.mxu0
        %3397 = vmatprep.mubr.f32.mxu0 0.0
        %3398 = vmatmul.mubr.f32.gmra.mxu0 %v2771
        %v3399 = vpop.f32.mrf.mxu0
        %v3400 = vadd.f32 %v3110, %v3399
        %v3401 = vpop.f32.mrf.mxu0
        %3402 = vmatprep.mubr.f32.mxu0 0.0
        %3403 = vmatmul.mubr.f32.gmra.mxu0 %v2772
        %v3404 = vpop.f32.mrf.mxu0
        %v3405 = vadd.f32 %v3115, %v3404
        %v3406 = vpop.f32.mrf.mxu0
        %3407 = vmatprep.mubr.f32.mxu0 0.0
        %3408 = vmatmul.mubr.f32.gmra.mxu0 %v2773
        %v3409 = vpop.f32.mrf.mxu0
        %v3410 = vadd.f32 %v3120, %v3409
        %v3411 = vpop.f32.mrf.mxu0
        %3412 = vmatprep.mubr.f32.mxu0 0.0
        %3413 = vmatmul.mubr.f32.gmra.mxu0 %v2774
        %v3414 = vpop.f32.mrf.mxu0
        %v3415 = vadd.f32 %v3125, %v3414
        %v3416 = vpop.f32.mrf.mxu0
        %3417 = vmatprep.mubr.f32.mxu0 0.0
        %3418 = vmatmul.mubr.f32.gmra.mxu0 %v2775
        %v3419 = vpop.f32.mrf.mxu0
        %v3420 = vadd.f32 %v3130, %v3419
        %v3421 = vpop.f32.mrf.mxu0
        %3422 = vmatprep.mubr.f32.mxu0 0.0
        %3423 = vmatmul.mubr.f32.gmra.mxu0 %v2776
        %v3424 = vpop.f32.mrf.mxu0
        %v3425 = vadd.f32 %v3135, %v3424
        %v3426 = vpop.f32.mrf.mxu0
        %3427 = vmatprep.mubr.f32.mxu0 0.0
        %3428 = vmatmul.mubr.f32.gmra.mxu0 %v2777
        %v3429 = vpop.f32.mrf.mxu0
        %v3430 = vadd.f32 %v3140, %v3429
        %v3431 = vpop.f32.mrf.mxu0
        %3432 = vmatprep.mubr.f32.mxu0 0.0
        %3433 = vmatmul.mubr.f32.gmra.mxu0 %v2778
        %v3434 = vpop.f32.mrf.mxu0
        %v3435 = vadd.f32 %v3145, %v3434
        %v3436 = vpop.f32.mrf.mxu0
        %3437 = vdwg.mxu0
        %v3438 = vld [vmem:[%s312 + $0x2a] sm:$0xff]
        %v3439 = vld [vmem:[%s312 + $0x32] sm:$0xff]
        %v3440 = vld [vmem:[%s312 + $0x3a] sm:$0xff]
        %v3441 = vld [vmem:[%s312 + $0x42] sm:$0xff]
        %v3442 = vld [vmem:[%s312 + $0x4a] sm:$0xff]
        %v3443 = vld [vmem:[%s312 + $0x52] sm:$0xff]
        %v3444 = vld [vmem:[%s312 + $0x5a] sm:$0xff]
        %v3445 = vld [vmem:[%s312 + $0x62] sm:$0xff]
        %v3446 = vld [vmem:[%s312 + $0x6a] sm:$0xff]
        %v3447 = vld [vmem:[%s312 + $0x72] sm:$0xff]
        %v3448 = vld [vmem:[%s312 + $0x7a] sm:$0xff]
        %v3449 = vld [vmem:[%s312 + $0x82] sm:$0xff]
        %v3450 = vld [vmem:[%s312 + $0x8a] sm:$0xff]
        %v3451 = vld [vmem:[%s312 + $0x92] sm:$0xff]
        %v3452 = vld [vmem:[%s312 + $0x9a] sm:$0xff]
        %v3453 = vld [vmem:[%s312 + $0xa2] sm:$0xff]
        %v3454 = vld [vmem:[%s312 + $0xaa] sm:$0xff]
        %v3455 = vld [vmem:[%s312 + $0xb2] sm:$0xff]
        %v3456 = vld [vmem:[%s312 + $0xba] sm:$0xff]
        %v3457 = vld [vmem:[%s312 + $0xc2] sm:$0xff]
        %v3458 = vld [vmem:[%s312 + $0xca] sm:$0xff]
        %v3459 = vld [vmem:[%s312 + $0xd2] sm:$0xff]
        %v3460 = vld [vmem:[%s312 + $0xda] sm:$0xff]
        %v3461 = vld [vmem:[%s312 + $0xe2] sm:$0xff]
        %v3462 = vld [vmem:[%s312 + $0xea] sm:$0xff]
        %v3463 = vld [vmem:[%s312 + $0xf2] sm:$0xff]
        %v3464 = vld [vmem:[%s312 + $0xfa] sm:$0xff]
        %v3465 = vld [vmem:[%s312 + $0x102] sm:$0xff]
        %v3466 = vld [vmem:[%s312 + $0x10a] sm:$0xff]
        %v3467 = vld [vmem:[%s312 + $0x112] sm:$0xff]
        %v3468 = vld [vmem:[%s312 + $0x11a] sm:$0xff]
        %v3469 = vld [vmem:[%s312 + $0x122] sm:$0xff]
        %v3470 = vld [vmem:[%s312 + $0x12a] sm:$0xff]
        %v3471 = vld [vmem:[%s312 + $0x132] sm:$0xff]
        %v3472 = vld [vmem:[%s312 + $0x13a] sm:$0xff]
        %v3473 = vld [vmem:[%s312 + $0x142] sm:$0xff]
        %v3474 = vld [vmem:[%s312 + $0x14a] sm:$0xff]
        %v3475 = vld [vmem:[%s312 + $0x152] sm:$0xff]
        %v3476 = vld [vmem:[%s312 + $0x15a] sm:$0xff]
        %v3477 = vld [vmem:[%s312 + $0x162] sm:$0xff]
        %v3478 = vld [vmem:[%s312 + $0x16a] sm:$0xff]
        %v3479 = vld [vmem:[%s312 + $0x172] sm:$0xff]
        %v3480 = vld [vmem:[%s312 + $0x17a] sm:$0xff]
        %v3481 = vld [vmem:[%s312 + $0x182] sm:$0xff]
        %v3482 = vld [vmem:[%s312 + $0x18a] sm:$0xff]
        %s3483 = scalar_lea.vmem [#allocation7], 1024
        %v3484 = vld [vmem:[%s3483] sm:$0xff]
        %v3485 = vld [vmem:[%s3483 + $0x8] sm:$0xff]
        %v3486 = vld [vmem:[%s3483 + $0x10] sm:$0xff]
        %v3487 = vld [vmem:[%s3483 + $0x18] sm:$0xff]
        %v3488 = vld [vmem:[%s3483 + $0x20] sm:$0xff]
        %v3489 = vld [vmem:[%s3483 + $0x28] sm:$0xff]
        %v3490 = vld [vmem:[%s3483 + $0x30] sm:$0xff]
        %v3491 = vld [vmem:[%s3483 + $0x38] sm:$0xff]
        %v3492 = vld [vmem:[%s3483 + $0x40] sm:$0xff]
        %v3493 = vld [vmem:[%s3483 + $0x48] sm:$0xff]
        %v3494 = vld [vmem:[%s3483 + $0x50] sm:$0xff]
        %v3495 = vld [vmem:[%s3483 + $0x58] sm:$0xff]
        %v3496 = vld [vmem:[%s3483 + $0x60] sm:$0xff]
        %v3497 = vld [vmem:[%s3483 + $0x68] sm:$0xff]
        %v3498 = vld [vmem:[%s3483 + $0x70] sm:$0xff]
        %v3499 = vld [vmem:[%s3483 + $0x78] sm:$0xff]
        %3500 = vmatprep.subr.mxu0 0.0
        %3501 = vmatpush1.msra.mxu0 %v3499
        %3502 = vmatprep.subr.mxu0 0.0
        %3503 = vmatpush1.msra.mxu0 %v3498
        %3504 = vmatprep.subr.mxu0 0.0
        %3505 = vmatpush1.msra.mxu0 %v3497
        %3506 = vmatprep.subr.mxu0 0.0
        %3507 = vmatpush1.msra.mxu0 %v3496
        %3508 = vmatprep.subr.mxu0 0.0
        %3509 = vmatpush1.msra.mxu0 %v3495
        %3510 = vmatprep.subr.mxu0 0.0
        %3511 = vmatpush1.msra.mxu0 %v3494
        %3512 = vmatprep.subr.mxu0 0.0
        %3513 = vmatpush1.msra.mxu0 %v3493
        %3514 = vmatprep.subr.mxu0 0.0
        %3515 = vmatpush1.msra.mxu0 %v3492
        %3516 = vmatprep.subr.mxu0 0.0
        %3517 = vmatpush1.msra.mxu0 %v3491
        %3518 = vmatprep.subr.mxu0 0.0
        %3519 = vmatpush1.msra.mxu0 %v3490
        %3520 = vmatprep.subr.mxu0 0.0
        %3521 = vmatpush1.msra.mxu0 %v3489
        %3522 = vmatprep.subr.mxu0 0.0
        %3523 = vmatpush1.msra.mxu0 %v3488
        %3524 = vmatprep.subr.mxu0 0.0
        %3525 = vmatpush1.msra.mxu0 %v3487
        %3526 = vmatprep.subr.mxu0 0.0
        %3527 = vmatpush1.msra.mxu0 %v3486
        %3528 = vmatprep.subr.mxu0 0.0
        %3529 = vmatpush1.msra.mxu0 %v3485
        %3530 = vmatprep.subr.mxu0 0.0
        %3531 = vmatpush1.msra.mxu0 %v3484
        %3532 = vmatprep.subr.mxu0 0.0
        %3533 = vmatpush2.msra.mxu0 0.0
        %3534 = vmatprep.subr.mxu0 0.0
        %3535 = vmatpush2.msra.mxu0 0.0
        %3536 = vmatprep.subr.mxu0 0.0
        %3537 = vmatpush2.msra.mxu0 0.0
        %3538 = vmatprep.subr.mxu0 0.0
        %3539 = vmatpush2.msra.mxu0 0.0
        %3540 = vmatprep.subr.mxu0 0.0
        %3541 = vmatpush2.msra.mxu0 0.0
        %3542 = vmatprep.subr.mxu0 0.0
        %3543 = vmatpush2.msra.mxu0 0.0
        %3544 = vmatprep.subr.mxu0 0.0
        %3545 = vmatpush2.msra.mxu0 0.0
        %3546 = vmatprep.subr.mxu0 0.0
        %3547 = vmatpush2.msra.mxu0 0.0
        %3548 = vmatprep.subr.mxu0 0.0
        %3549 = vmatpush2.msra.mxu0 0.0
        %3550 = vmatprep.subr.mxu0 0.0
        %3551 = vmatpush2.msra.mxu0 0.0
        %3552 = vmatprep.subr.mxu0 0.0
        %3553 = vmatpush2.msra.mxu0 0.0
        %3554 = vmatprep.subr.mxu0 0.0
        %3555 = vmatpush2.msra.mxu0 0.0
        %3556 = vmatprep.subr.mxu0 0.0
        %3557 = vmatpush2.msra.mxu0 0.0
        %3558 = vmatprep.subr.mxu0 0.0
        %3559 = vmatpush2.msra.mxu0 0.0
        %3560 = vmatprep.subr.mxu0 0.0
        %3561 = vmatpush2.msra.mxu0 0.0
        %3562 = vmatprep.subr.mxu0 0.0
        %3563 = vmatpush2.msra.mxu0 0.0
        %3564 = vmatprep.mubr.f32.mxu0 0.0
        %3565 = vmatmul.mubr.f32.gmra.mxu0 %v3438
        %v3566 = vpop.f32.mrf.mxu0
        %v3567 = vadd.f32 0.0, %v3566
        %v3568 = vpop.f32.mrf.mxu0
        %3569 = vmatprep.mubr.f32.mxu0 0.0
        %3570 = vmatmul.mubr.f32.gmra.mxu0 %v3439
        %v3571 = vpop.f32.mrf.mxu0
        %v3572 = vadd.f32 0.0, %v3571
        %v3573 = vpop.f32.mrf.mxu0
        %3574 = vmatprep.mubr.f32.mxu0 0.0
        %3575 = vmatmul.mubr.f32.gmra.mxu0 %v3440
        %v3576 = vpop.f32.mrf.mxu0
        %v3577 = vadd.f32 0.0, %v3576
        %v3578 = vpop.f32.mrf.mxu0
        %3579 = vmatprep.mubr.f32.mxu0 0.0
        %3580 = vmatmul.mubr.f32.gmra.mxu0 %v3441
        %v3581 = vpop.f32.mrf.mxu0
        %v3582 = vadd.f32 0.0, %v3581
        %v3583 = vpop.f32.mrf.mxu0
        %3584 = vmatprep.mubr.f32.mxu0 0.0
        %3585 = vmatmul.mubr.f32.gmra.mxu0 %v3442
        %v3586 = vpop.f32.mrf.mxu0
        %v3587 = vadd.f32 0.0, %v3586
        %v3588 = vpop.f32.mrf.mxu0
        %3589 = vmatprep.mubr.f32.mxu0 0.0
        %3590 = vmatmul.mubr.f32.gmra.mxu0 %v3443
        %v3591 = vpop.f32.mrf.mxu0
        %v3592 = vadd.f32 0.0, %v3591
        %v3593 = vpop.f32.mrf.mxu0
        %3594 = vmatprep.mubr.f32.mxu0 0.0
        %3595 = vmatmul.mubr.f32.gmra.mxu0 %v3444
        %v3596 = vpop.f32.mrf.mxu0
        %v3597 = vadd.f32 0.0, %v3596
        %v3598 = vpop.f32.mrf.mxu0
        %3599 = vmatprep.mubr.f32.mxu0 0.0
        %3600 = vmatmul.mubr.f32.gmra.mxu0 %v3445
        %v3601 = vpop.f32.mrf.mxu0
        %v3602 = vadd.f32 0.0, %v3601
        %v3603 = vpop.f32.mrf.mxu0
        %3604 = vmatprep.mubr.f32.mxu0 0.0
        %3605 = vmatmul.mubr.f32.gmra.mxu0 %v3446
        %v3606 = vpop.f32.mrf.mxu0
        %v3607 = vadd.f32 0.0, %v3606
        %v3608 = vpop.f32.mrf.mxu0
        %3609 = vmatprep.mubr.f32.mxu0 0.0
        %3610 = vmatmul.mubr.f32.gmra.mxu0 %v3447
        %v3611 = vpop.f32.mrf.mxu0
        %v3612 = vadd.f32 0.0, %v3611
        %v3613 = vpop.f32.mrf.mxu0
        %3614 = vmatprep.mubr.f32.mxu0 0.0
        %3615 = vmatmul.mubr.f32.gmra.mxu0 %v3448
        %v3616 = vpop.f32.mrf.mxu0
        %v3617 = vadd.f32 0.0, %v3616
        %v3618 = vpop.f32.mrf.mxu0
        %3619 = vmatprep.mubr.f32.mxu0 0.0
        %3620 = vmatmul.mubr.f32.gmra.mxu0 %v3449
        %v3621 = vpop.f32.mrf.mxu0
        %v3622 = vadd.f32 0.0, %v3621
        %v3623 = vpop.f32.mrf.mxu0
        %3624 = vmatprep.mubr.f32.mxu0 0.0
        %3625 = vmatmul.mubr.f32.gmra.mxu0 %v3450
        %v3626 = vpop.f32.mrf.mxu0
        %v3627 = vadd.f32 0.0, %v3626
        %v3628 = vpop.f32.mrf.mxu0
        %3629 = vmatprep.mubr.f32.mxu0 0.0
        %3630 = vmatmul.mubr.f32.gmra.mxu0 %v3451
        %v3631 = vpop.f32.mrf.mxu0
        %v3632 = vadd.f32 0.0, %v3631
        %v3633 = vpop.f32.mrf.mxu0
        %3634 = vmatprep.mubr.f32.mxu0 0.0
        %3635 = vmatmul.mubr.f32.gmra.mxu0 %v3452
        %v3636 = vpop.f32.mrf.mxu0
        %v3637 = vadd.f32 0.0, %v3636
        %v3638 = vpop.f32.mrf.mxu0
        %3639 = vmatprep.mubr.f32.mxu0 0.0
        %3640 = vmatmul.mubr.f32.gmra.mxu0 %v3453
        %v3641 = vpop.f32.mrf.mxu0
        %v3642 = vadd.f32 0.0, %v3641
        %v3643 = vpop.f32.mrf.mxu0
        %3644 = vmatprep.mubr.f32.mxu0 0.0
        %3645 = vmatmul.mubr.f32.gmra.mxu0 %v3454
        %v3646 = vpop.f32.mrf.mxu0
        %v3647 = vadd.f32 0.0, %v3646
        %v3648 = vpop.f32.mrf.mxu0
        %3649 = vmatprep.mubr.f32.mxu0 0.0
        %3650 = vmatmul.mubr.f32.gmra.mxu0 %v3455
        %v3651 = vpop.f32.mrf.mxu0
        %v3652 = vadd.f32 0.0, %v3651
        %v3653 = vpop.f32.mrf.mxu0
        %3654 = vmatprep.mubr.f32.mxu0 0.0
        %3655 = vmatmul.mubr.f32.gmra.mxu0 %v3456
        %v3656 = vpop.f32.mrf.mxu0
        %v3657 = vadd.f32 0.0, %v3656
        %v3658 = vpop.f32.mrf.mxu0
        %3659 = vmatprep.mubr.f32.mxu0 0.0
        %3660 = vmatmul.mubr.f32.gmra.mxu0 %v3457
        %v3661 = vpop.f32.mrf.mxu0
        %v3662 = vadd.f32 0.0, %v3661
        %v3663 = vpop.f32.mrf.mxu0
        %3664 = vmatprep.mubr.f32.mxu0 0.0
        %3665 = vmatmul.mubr.f32.gmra.mxu0 %v3458
        %v3666 = vpop.f32.mrf.mxu0
        %v3667 = vadd.f32 0.0, %v3666
        %v3668 = vpop.f32.mrf.mxu0
        %3669 = vmatprep.mubr.f32.mxu0 0.0
        %3670 = vmatmul.mubr.f32.gmra.mxu0 %v3459
        %v3671 = vpop.f32.mrf.mxu0
        %v3672 = vadd.f32 0.0, %v3671
        %v3673 = vpop.f32.mrf.mxu0
        %3674 = vmatprep.mubr.f32.mxu0 0.0
        %3675 = vmatmul.mubr.f32.gmra.mxu0 %v3460
        %v3676 = vpop.f32.mrf.mxu0
        %v3677 = vadd.f32 0.0, %v3676
        %v3678 = vpop.f32.mrf.mxu0
        %3679 = vmatprep.mubr.f32.mxu0 0.0
        %3680 = vmatmul.mubr.f32.gmra.mxu0 %v3461
        %v3681 = vpop.f32.mrf.mxu0
        %v3682 = vadd.f32 0.0, %v3681
        %v3683 = vpop.f32.mrf.mxu0
        %3684 = vmatprep.mubr.f32.mxu0 0.0
        %3685 = vmatmul.mubr.f32.gmra.mxu0 %v3462
        %v3686 = vpop.f32.mrf.mxu0
        %v3687 = vadd.f32 0.0, %v3686
        %v3688 = vpop.f32.mrf.mxu0
        %3689 = vmatprep.mubr.f32.mxu0 0.0
        %3690 = vmatmul.mubr.f32.gmra.mxu0 %v3463
        %v3691 = vpop.f32.mrf.mxu0
        %v3692 = vadd.f32 0.0, %v3691
        %v3693 = vpop.f32.mrf.mxu0
        %3694 = vmatprep.mubr.f32.mxu0 0.0
        %3695 = vmatmul.mubr.f32.gmra.mxu0 %v3464
        %v3696 = vpop.f32.mrf.mxu0
        %v3697 = vadd.f32 0.0, %v3696
        %v3698 = vpop.f32.mrf.mxu0
        %3699 = vmatprep.mubr.f32.mxu0 0.0
        %3700 = vmatmul.mubr.f32.gmra.mxu0 %v3465
        %v3701 = vpop.f32.mrf.mxu0
        %v3702 = vadd.f32 0.0, %v3701
        %v3703 = vpop.f32.mrf.mxu0
        %3704 = vmatprep.mubr.f32.mxu0 0.0
        %3705 = vmatmul.mubr.f32.gmra.mxu0 %v3466
        %v3706 = vpop.f32.mrf.mxu0
        %v3707 = vadd.f32 0.0, %v3706
        %v3708 = vpop.f32.mrf.mxu0
        %3709 = vmatprep.mubr.f32.mxu0 0.0
        %3710 = vmatmul.mubr.f32.gmra.mxu0 %v3467
        %v3711 = vpop.f32.mrf.mxu0
        %v3712 = vadd.f32 0.0, %v3711
        %v3713 = vpop.f32.mrf.mxu0
        %3714 = vmatprep.mubr.f32.mxu0 0.0
        %3715 = vmatmul.mubr.f32.gmra.mxu0 %v3468
        %v3716 = vpop.f32.mrf.mxu0
        %v3717 = vadd.f32 0.0, %v3716
        %v3718 = vpop.f32.mrf.mxu0
        %3719 = vmatprep.mubr.f32.mxu0 0.0
        %3720 = vmatmul.mubr.f32.gmra.mxu0 %v3469
        %v3721 = vpop.f32.mrf.mxu0
        %v3722 = vadd.f32 0.0, %v3721
        %v3723 = vpop.f32.mrf.mxu0
        %3724 = vmatprep.mubr.f32.mxu0 0.0
        %3725 = vmatmul.mubr.f32.gmra.mxu0 %v3470
        %v3726 = vpop.f32.mrf.mxu0
        %v3727 = vadd.f32 0.0, %v3726
        %v3728 = vpop.f32.mrf.mxu0
        %3729 = vmatprep.mubr.f32.mxu0 0.0
        %3730 = vmatmul.mubr.f32.gmra.mxu0 %v3471
        %v3731 = vpop.f32.mrf.mxu0
        %v3732 = vadd.f32 0.0, %v3731
        %v3733 = vpop.f32.mrf.mxu0
        %3734 = vmatprep.mubr.f32.mxu0 0.0
        %3735 = vmatmul.mubr.f32.gmra.mxu0 %v3472
        %v3736 = vpop.f32.mrf.mxu0
        %v3737 = vadd.f32 0.0, %v3736
        %v3738 = vpop.f32.mrf.mxu0
        %3739 = vmatprep.mubr.f32.mxu0 0.0
        %3740 = vmatmul.mubr.f32.gmra.mxu0 %v3473
        %v3741 = vpop.f32.mrf.mxu0
        %v3742 = vadd.f32 0.0, %v3741
        %v3743 = vpop.f32.mrf.mxu0
        %3744 = vmatprep.mubr.f32.mxu0 0.0
        %3745 = vmatmul.mubr.f32.gmra.mxu0 %v3474
        %v3746 = vpop.f32.mrf.mxu0
        %v3747 = vadd.f32 0.0, %v3746
        %v3748 = vpop.f32.mrf.mxu0
        %3749 = vmatprep.mubr.f32.mxu0 0.0
        %3750 = vmatmul.mubr.f32.gmra.mxu0 %v3475
        %v3751 = vpop.f32.mrf.mxu0
        %v3752 = vadd.f32 0.0, %v3751
        %v3753 = vpop.f32.mrf.mxu0
        %3754 = vmatprep.mubr.f32.mxu0 0.0
        %3755 = vmatmul.mubr.f32.gmra.mxu0 %v3476
        %v3756 = vpop.f32.mrf.mxu0
        %v3757 = vadd.f32 0.0, %v3756
        %v3758 = vpop.f32.mrf.mxu0
        %3759 = vmatprep.mubr.f32.mxu0 0.0
        %3760 = vmatmul.mubr.f32.gmra.mxu0 %v3477
        %v3761 = vpop.f32.mrf.mxu0
        %v3762 = vadd.f32 0.0, %v3761
        %v3763 = vpop.f32.mrf.mxu0
        %3764 = vmatprep.mubr.f32.mxu0 0.0
        %3765 = vmatmul.mubr.f32.gmra.mxu0 %v3478
        %v3766 = vpop.f32.mrf.mxu0
        %v3767 = vadd.f32 0.0, %v3766
        %v3768 = vpop.f32.mrf.mxu0
        %3769 = vmatprep.mubr.f32.mxu0 0.0
        %3770 = vmatmul.mubr.f32.gmra.mxu0 %v3479
        %v3771 = vpop.f32.mrf.mxu0
        %v3772 = vadd.f32 0.0, %v3771
        %v3773 = vpop.f32.mrf.mxu0
        %3774 = vmatprep.mubr.f32.mxu0 0.0
        %3775 = vmatmul.mubr.f32.gmra.mxu0 %v3480
        %v3776 = vpop.f32.mrf.mxu0
        %v3777 = vadd.f32 0.0, %v3776
        %v3778 = vpop.f32.mrf.mxu0
        %3779 = vmatprep.mubr.f32.mxu0 0.0
        %3780 = vmatmul.mubr.f32.gmra.mxu0 %v3481
        %v3781 = vpop.f32.mrf.mxu0
        %v3782 = vadd.f32 0.0, %v3781
        %v3783 = vpop.f32.mrf.mxu0
        %3784 = vmatprep.mubr.f32.mxu0 0.0
        %3785 = vmatmul.mubr.f32.gmra.mxu0 %v3482
        %v3786 = vpop.f32.mrf.mxu0
        %v3787 = vadd.f32 0.0, %v3786
        %v3788 = vpop.f32.mrf.mxu0
        %3789 = vdwg.mxu0
        %v3790 = vadd.f32 %v3215, %v3567
        %v3791 = vadd.f32 %v3220, %v3572
        %v3792 = vadd.f32 %v3225, %v3577
        %v3793 = vadd.f32 %v3230, %v3582
        %v3794 = vadd.f32 %v3235, %v3587
        %v3795 = vadd.f32 %v3240, %v3592
        %v3796 = vadd.f32 %v3245, %v3597
        %v3797 = vadd.f32 %v3250, %v3602
        %v3798 = vadd.f32 %v3255, %v3607
        %v3799 = vadd.f32 %v3260, %v3612
        %v3800 = vadd.f32 %v3265, %v3617
        %v3801 = vadd.f32 %v3270, %v3622
        %v3802 = vadd.f32 %v3275, %v3627
        %v3803 = vadd.f32 %v3280, %v3632
        %v3804 = vadd.f32 %v3285, %v3637
        %v3805 = vadd.f32 %v3290, %v3642
        %v3806 = vadd.f32 %v3295, %v3647
        %v3807 = vadd.f32 %v3300, %v3652
        %v3808 = vadd.f32 %v3305, %v3657
        %v3809 = vadd.f32 %v3310, %v3662
        %v3810 = vadd.f32 %v3315, %v3667
        %v3811 = vadd.f32 %v3320, %v3672
        %v3812 = vadd.f32 %v3325, %v3677
        %v3813 = vadd.f32 %v3330, %v3682
        %v3814 = vadd.f32 %v3335, %v3687
        %v3815 = vadd.f32 %v3340, %v3692
        %v3816 = vadd.f32 %v3345, %v3697
        %v3817 = vadd.f32 %v3350, %v3702
        %v3818 = vadd.f32 %v3355, %v3707
        %v3819 = vadd.f32 %v3360, %v3712
        %v3820 = vadd.f32 %v3365, %v3717
        %v3821 = vadd.f32 %v3370, %v3722
        %v3822 = vadd.f32 %v3375, %v3727
        %v3823 = vadd.f32 %v3380, %v3732
        %v3824 = vadd.f32 %v3385, %v3737
        %v3825 = vadd.f32 %v3390, %v3742
        %v3826 = vadd.f32 %v3395, %v3747
        %v3827 = vadd.f32 %v3400, %v3752
        %v3828 = vadd.f32 %v3405, %v3757
        %v3829 = vadd.f32 %v3410, %v3762
        %v3830 = vadd.f32 %v3415, %v3767
        %v3831 = vadd.f32 %v3420, %v3772
        %v3832 = vadd.f32 %v3425, %v3777
        %v3833 = vadd.f32 %v3430, %v3782
        %v3834 = vadd.f32 %v3435, %v3787
        %v3835 = vld [vmem:[#allocation2] sm:$0xff]
        %v3836 = vld [vmem:[#allocation2 + $0x8] sm:$0xff]
        %v3837 = vld [vmem:[#allocation2 + $0x10] sm:$0xff]
        %v3838 = vld [vmem:[#allocation2 + $0x18] sm:$0xff]
        %v3839 = vld [vmem:[#allocation2 + $0x20] sm:$0xff]
        %v3840 = vld [vmem:[#allocation2 + $0x28] sm:$0xff]
        %v3841 = vld [vmem:[#allocation2 + $0x30] sm:$0xff]
        %v3842 = vld [vmem:[#allocation2 + $0x38] sm:$0xff]
        %v3843 = vld [vmem:[#allocation2 + $0x40] sm:$0xff]
        %v3844 = vld [vmem:[#allocation2 + $0x48] sm:$0xff]
        %v3845 = vld [vmem:[#allocation2 + $0x50] sm:$0xff]
        %v3846 = vld [vmem:[#allocation2 + $0x58] sm:$0xff]
        %v3847 = vld [vmem:[#allocation2 + $0x60] sm:$0xff]
        %v3848 = vld [vmem:[#allocation2 + $0x68] sm:$0xff]
        %v3849 = vld [vmem:[#allocation2 + $0x70] sm:$0xff]
        %v3850 = vld [vmem:[#allocation2 + $0x78] sm:$0xff]
        %v3851 = vld [vmem:[#allocation2 + $0x80] sm:$0xff]
        %v3852 = vld [vmem:[#allocation2 + $0x88] sm:$0xff]
        %v3853 = vld [vmem:[#allocation2 + $0x90] sm:$0xff]
        %v3854 = vld [vmem:[#allocation2 + $0x98] sm:$0xff]
        %v3855 = vld [vmem:[#allocation2 + $0xa0] sm:$0xff]
        %v3856 = vld [vmem:[#allocation2 + $0xa8] sm:$0xff]
        %v3857 = vld [vmem:[#allocation2 + $0xb0] sm:$0xff]
        %v3858 = vld [vmem:[#allocation2 + $0xb8] sm:$0xff]
        %v3859 = vld [vmem:[#allocation2 + $0xc0] sm:$0xff]
        %v3860 = vld [vmem:[#allocation2 + $0xc8] sm:$0xff]
        %v3861 = vld [vmem:[#allocation2 + $0xd0] sm:$0xff]
        %v3862 = vld [vmem:[#allocation2 + $0xd8] sm:$0xff]
        %v3863 = vld [vmem:[#allocation2 + $0xe0] sm:$0xff]
        %v3864 = vld [vmem:[#allocation2 + $0xe8] sm:$0xff]
        %v3865 = vld [vmem:[#allocation2 + $0xf0] sm:$0xff]
        %v3866 = vld [vmem:[#allocation2 + $0xf8] sm:$0xff]
        %v3867 = vld [vmem:[#allocation2 + $0x100] sm:$0xff]
        %v3868 = vld [vmem:[#allocation2 + $0x108] sm:$0xff]
        %v3869 = vld [vmem:[#allocation2 + $0x110] sm:$0xff]
        %v3870 = vld [vmem:[#allocation2 + $0x118] sm:$0xff]
        %v3871 = vld [vmem:[#allocation2 + $0x120] sm:$0xff]
        %v3872 = vld [vmem:[#allocation2 + $0x128] sm:$0xff]
        %v3873 = vld [vmem:[#allocation2 + $0x130] sm:$0xff]
        %v3874 = vld [vmem:[#allocation2 + $0x138] sm:$0xff]
        %v3875 = vld [vmem:[#allocation2 + $0x140] sm:$0xff]
        %v3876 = vld [vmem:[#allocation2 + $0x148] sm:$0xff]
        %v3877 = vld [vmem:[#allocation2 + $0x150] sm:$0xff]
        %v3878 = vld [vmem:[#allocation2 + $0x158] sm:$0xff]
        %v3879 = vld [vmem:[#allocation2 + $0x160] sm:$0xff]
        %v3880 = vadd.f32 %v3835, %v3790
        %v3881 = vadd.f32 %v3836, %v3791
        %v3882 = vadd.f32 %v3837, %v3792
        %v3883 = vadd.f32 %v3838, %v3793
        %v3884 = vadd.f32 %v3839, %v3794
        %v3885 = vadd.f32 %v3840, %v3795
        %v3886 = vadd.f32 %v3841, %v3796
        %v3887 = vadd.f32 %v3842, %v3797
        %v3888 = vadd.f32 %v3843, %v3798
        %v3889 = vadd.f32 %v3844, %v3799
        %v3890 = vadd.f32 %v3845, %v3800
        %v3891 = vadd.f32 %v3846, %v3801
        %v3892 = vadd.f32 %v3847, %v3802
        %v3893 = vadd.f32 %v3848, %v3803
        %v3894 = vadd.f32 %v3849, %v3804
        %v3895 = vadd.f32 %v3850, %v3805
        %v3896 = vadd.f32 %v3851, %v3806
        %v3897 = vadd.f32 %v3852, %v3807
        %v3898 = vadd.f32 %v3853, %v3808
        %v3899 = vadd.f32 %v3854, %v3809
        %v3900 = vadd.f32 %v3855, %v3810
        %v3901 = vadd.f32 %v3856, %v3811
        %v3902 = vadd.f32 %v3857, %v3812
        %v3903 = vadd.f32 %v3858, %v3813
        %v3904 = vadd.f32 %v3859, %v3814
        %v3905 = vadd.f32 %v3860, %v3815
        %v3906 = vadd.f32 %v3861, %v3816
        %v3907 = vadd.f32 %v3862, %v3817
        %v3908 = vadd.f32 %v3863, %v3818
        %v3909 = vadd.f32 %v3864, %v3819
        %v3910 = vadd.f32 %v3865, %v3820
        %v3911 = vadd.f32 %v3866, %v3821
        %v3912 = vadd.f32 %v3867, %v3822
        %v3913 = vadd.f32 %v3868, %v3823
        %v3914 = vadd.f32 %v3869, %v3824
        %v3915 = vadd.f32 %v3870, %v3825
        %v3916 = vadd.f32 %v3871, %v3826
        %v3917 = vadd.f32 %v3872, %v3827
        %v3918 = vadd.f32 %v3873, %v3828
        %v3919 = vadd.f32 %v3874, %v3829
        %v3920 = vadd.f32 %v3875, %v3830
        %v3921 = vadd.f32 %v3876, %v3831
        %v3922 = vadd.f32 %v3877, %v3832
        %v3923 = vadd.f32 %v3878, %v3833
        %v3924 = vadd.f32 %v3879, %v3834
        %3925 = vst [vmem:[#allocation2] sm:$0xff] %v3880
        %3926 = vst [vmem:[#allocation2 + $0x8] sm:$0xff] %v3881
        %3927 = vst [vmem:[#allocation2 + $0x10] sm:$0xff] %v3882
        %3928 = vst [vmem:[#allocation2 + $0x18] sm:$0xff] %v3883
        %3929 = vst [vmem:[#allocation2 + $0x20] sm:$0xff] %v3884
        %3930 = vst [vmem:[#allocation2 + $0x28] sm:$0xff] %v3885
        %3931 = vst [vmem:[#allocation2 + $0x30] sm:$0xff] %v3886
        %3932 = vst [vmem:[#allocation2 + $0x38] sm:$0xff] %v3887
        %3933 = vst [vmem:[#allocation2 + $0x40] sm:$0xff] %v3888
        %3934 = vst [vmem:[#allocation2 + $0x48] sm:$0xff] %v3889
        %3935 = vst [vmem:[#allocation2 + $0x50] sm:$0xff] %v3890
        %3936 = vst [vmem:[#allocation2 + $0x58] sm:$0xff] %v3891
        %3937 = vst [vmem:[#allocation2 + $0x60] sm:$0xff] %v3892
        %3938 = vst [vmem:[#allocation2 + $0x68] sm:$0xff] %v3893
        %3939 = vst [vmem:[#allocation2 + $0x70] sm:$0xff] %v3894
        %3940 = vst [vmem:[#allocation2 + $0x78] sm:$0xff] %v3895
        %3941 = vst [vmem:[#allocation2 + $0x80] sm:$0xff] %v3896
        %3942 = vst [vmem:[#allocation2 + $0x88] sm:$0xff] %v3897
        %3943 = vst [vmem:[#allocation2 + $0x90] sm:$0xff] %v3898
        %3944 = vst [vmem:[#allocation2 + $0x98] sm:$0xff] %v3899
        %3945 = vst [vmem:[#allocation2 + $0xa0] sm:$0xff] %v3900
        %3946 = vst [vmem:[#allocation2 + $0xa8] sm:$0xff] %v3901
        %3947 = vst [vmem:[#allocation2 + $0xb0] sm:$0xff] %v3902
        %3948 = vst [vmem:[#allocation2 + $0xb8] sm:$0xff] %v3903
        %3949 = vst [vmem:[#allocation2 + $0xc0] sm:$0xff] %v3904
        %3950 = vst [vmem:[#allocation2 + $0xc8] sm:$0xff] %v3905
        %3951 = vst [vmem:[#allocation2 + $0xd0] sm:$0xff] %v3906
        %3952 = vst [vmem:[#allocation2 + $0xd8] sm:$0xff] %v3907
        %3953 = vst [vmem:[#allocation2 + $0xe0] sm:$0xff] %v3908
        %3954 = vst [vmem:[#allocation2 + $0xe8] sm:$0xff] %v3909
        %3955 = vst [vmem:[#allocation2 + $0xf0] sm:$0xff] %v3910
        %3956 = vst [vmem:[#allocation2 + $0xf8] sm:$0xff] %v3911
        %3957 = vst [vmem:[#allocation2 + $0x100] sm:$0xff] %v3912
        %3958 = vst [vmem:[#allocation2 + $0x108] sm:$0xff] %v3913
        %3959 = vst [vmem:[#allocation2 + $0x110] sm:$0xff] %v3914
        %3960 = vst [vmem:[#allocation2 + $0x118] sm:$0xff] %v3915
        %3961 = vst [vmem:[#allocation2 + $0x120] sm:$0xff] %v3916
        %3962 = vst [vmem:[#allocation2 + $0x128] sm:$0xff] %v3917
        %3963 = vst [vmem:[#allocation2 + $0x130] sm:$0xff] %v3918
        %3964 = vst [vmem:[#allocation2 + $0x138] sm:$0xff] %v3919
        %3965 = vst [vmem:[#allocation2 + $0x140] sm:$0xff] %v3920
        %3966 = vst [vmem:[#allocation2 + $0x148] sm:$0xff] %v3921
        %3967 = vst [vmem:[#allocation2 + $0x150] sm:$0xff] %v3922
        %3968 = vst [vmem:[#allocation2 + $0x158] sm:$0xff] %v3923
        %3969 = vst [vmem:[#allocation2 + $0x160] sm:$0xff] %v3924
        %v3970 = vld [vmem:[#allocation2] sm:$0xff]
        %v3971 = vld [vmem:[#allocation2 + $0x8] sm:$0xff]
        %v3972 = vld [vmem:[#allocation2 + $0x10] sm:$0xff]
        %v3973 = vld [vmem:[#allocation2 + $0x18] sm:$0xff]
        %v3974 = vld [vmem:[#allocation2 + $0x20] sm:$0xff]
        %v3975 = vld [vmem:[#allocation2 + $0x28] sm:$0xff]
        %v3976 = vld [vmem:[#allocation2 + $0x30] sm:$0xff]
        %v3977 = vld [vmem:[#allocation2 + $0x38] sm:$0xff]
        %v3978 = vld [vmem:[#allocation2 + $0x40] sm:$0xff]
        %v3979 = vld [vmem:[#allocation2 + $0x48] sm:$0xff]
        %v3980 = vld [vmem:[#allocation2 + $0x50] sm:$0xff]
        %v3981 = vld [vmem:[#allocation2 + $0x58] sm:$0xff]
        %v3982 = vld [vmem:[#allocation2 + $0x60] sm:$0xff]
        %v3983 = vld [vmem:[#allocation2 + $0x68] sm:$0xff]
        %v3984 = vld [vmem:[#allocation2 + $0x70] sm:$0xff]
        %v3985 = vld [vmem:[#allocation2 + $0x78] sm:$0xff]
        %v3986 = vld [vmem:[#allocation2 + $0x80] sm:$0xff]
        %v3987 = vld [vmem:[#allocation2 + $0x88] sm:$0xff]
        %v3988 = vld [vmem:[#allocation2 + $0x90] sm:$0xff]
        %v3989 = vld [vmem:[#allocation2 + $0x98] sm:$0xff]
        %v3990 = vld [vmem:[#allocation2 + $0xa0] sm:$0xff]
        %v3991 = vld [vmem:[#allocation2 + $0xa8] sm:$0xff]
        %v3992 = vld [vmem:[#allocation2 + $0xb0] sm:$0xff]
        %v3993 = vld [vmem:[#allocation2 + $0xb8] sm:$0xff]
        %v3994 = vld [vmem:[#allocation2 + $0xc0] sm:$0xff]
        %v3995 = vld [vmem:[#allocation2 + $0xc8] sm:$0xff]
        %v3996 = vld [vmem:[#allocation2 + $0xd0] sm:$0xff]
        %v3997 = vld [vmem:[#allocation2 + $0xd8] sm:$0xff]
        %v3998 = vld [vmem:[#allocation2 + $0xe0] sm:$0xff]
        %v3999 = vld [vmem:[#allocation2 + $0xe8] sm:$0xff]
        %v4000 = vld [vmem:[#allocation2 + $0xf0] sm:$0xff]
        %v4001 = vld [vmem:[#allocation2 + $0xf8] sm:$0xff]
        %v4002 = vld [vmem:[#allocation2 + $0x100] sm:$0xff]
        %v4003 = vld [vmem:[#allocation2 + $0x108] sm:$0xff]
        %v4004 = vld [vmem:[#allocation2 + $0x110] sm:$0xff]
        %v4005 = vld [vmem:[#allocation2 + $0x118] sm:$0xff]
        %v4006 = vld [vmem:[#allocation2 + $0x120] sm:$0xff]
        %v4007 = vld [vmem:[#allocation2 + $0x128] sm:$0xff]
        %v4008 = vld [vmem:[#allocation2 + $0x130] sm:$0xff]
        %v4009 = vld [vmem:[#allocation2 + $0x138] sm:$0xff]
        %v4010 = vld [vmem:[#allocation2 + $0x140] sm:$0xff]
        %v4011 = vld [vmem:[#allocation2 + $0x148] sm:$0xff]
        %v4012 = vld [vmem:[#allocation2 + $0x150] sm:$0xff]
        %v4013 = vld [vmem:[#allocation2 + $0x158] sm:$0xff]
        %v4014 = vld [vmem:[#allocation2 + $0x160] sm:$0xff]
        %v4015 = vld [vmem:[%s3] sm:$0x1]
        %v4017 = vlaneseq
        %v4018 = vshrl.u32 %v4017, 7
        %v4019 = vsub.s32 0, %v4018
        %v4020 = vrot.slane %v4015, %v4019
        %v4022 = vmul.f32 %v3970, %v4020
        %v4023 = vmul.f32 %v3971, %v4020
        %v4024 = vmul.f32 %v3972, %v4020
        %v4025 = vmul.f32 %v3973, %v4020
        %v4026 = vmul.f32 %v3974, %v4020
        %v4027 = vmul.f32 %v3975, %v4020
        %v4028 = vmul.f32 %v3976, %v4020
        %v4029 = vmul.f32 %v3977, %v4020
        %v4030 = vmul.f32 %v3978, %v4020
        %v4031 = vmul.f32 %v3979, %v4020
        %v4032 = vmul.f32 %v3980, %v4020
        %v4033 = vmul.f32 %v3981, %v4020
        %v4034 = vmul.f32 %v3982, %v4020
        %v4035 = vmul.f32 %v3983, %v4020
        %v4036 = vmul.f32 %v3984, %v4020
        %v4037 = vmul.f32 %v3985, %v4020
        %v4038 = vmul.f32 %v3986, %v4020
        %v4039 = vmul.f32 %v3987, %v4020
        %v4040 = vmul.f32 %v3988, %v4020
        %v4041 = vmul.f32 %v3989, %v4020
        %v4042 = vmul.f32 %v3990, %v4020
        %v4043 = vmul.f32 %v3991, %v4020
        %v4044 = vmul.f32 %v3992, %v4020
        %v4045 = vmul.f32 %v3993, %v4020
        %v4046 = vmul.f32 %v3994, %v4020
        %v4047 = vmul.f32 %v3995, %v4020
        %v4048 = vmul.f32 %v3996, %v4020
        %v4049 = vmul.f32 %v3997, %v4020
        %v4050 = vmul.f32 %v3998, %v4020
        %v4051 = vmul.f32 %v3999, %v4020
        %v4052 = vmul.f32 %v4000, %v4020
        %v4053 = vmul.f32 %v4001, %v4020
        %v4054 = vmul.f32 %v4002, %v4020
        %v4055 = vmul.f32 %v4003, %v4020
        %v4056 = vmul.f32 %v4004, %v4020
        %v4057 = vmul.f32 %v4005, %v4020
        %v4058 = vmul.f32 %v4006, %v4020
        %v4059 = vmul.f32 %v4007, %v4020
        %v4060 = vmul.f32 %v4008, %v4020
        %v4061 = vmul.f32 %v4009, %v4020
        %v4062 = vmul.f32 %v4010, %v4020
        %v4063 = vmul.f32 %v4011, %v4020
        %v4064 = vmul.f32 %v4012, %v4020
        %v4065 = vmul.f32 %v4013, %v4020
        %v4066 = vmul.f32 %v4014, %v4020
        %v4067 = vld [vmem:[%s4] sm:$0x1]
        %v4069 = vlaneseq
        %v4070 = vshrl.u32 %v4069, 7
        %v4071 = vsub.s32 0, %v4070
        %v4072 = vrot.slane %v4067, %v4071
        %v4074 = vadd.f32 %v4022, %v4072
        %v4075 = vadd.f32 %v4023, %v4072
        %v4076 = vadd.f32 %v4024, %v4072
        %v4077 = vadd.f32 %v4025, %v4072
        %v4078 = vadd.f32 %v4026, %v4072
        %v4079 = vadd.f32 %v4027, %v4072
        %v4080 = vadd.f32 %v4028, %v4072
        %v4081 = vadd.f32 %v4029, %v4072
        %v4082 = vadd.f32 %v4030, %v4072
        %v4083 = vadd.f32 %v4031, %v4072
        %v4084 = vadd.f32 %v4032, %v4072
        %v4085 = vadd.f32 %v4033, %v4072
        %v4086 = vadd.f32 %v4034, %v4072
        %v4087 = vadd.f32 %v4035, %v4072
        %v4088 = vadd.f32 %v4036, %v4072
        %v4089 = vadd.f32 %v4037, %v4072
        %v4090 = vadd.f32 %v4038, %v4072
        %v4091 = vadd.f32 %v4039, %v4072
        %v4092 = vadd.f32 %v4040, %v4072
        %v4093 = vadd.f32 %v4041, %v4072
        %v4094 = vadd.f32 %v4042, %v4072
        %v4095 = vadd.f32 %v4043, %v4072
        %v4096 = vadd.f32 %v4044, %v4072
        %v4097 = vadd.f32 %v4045, %v4072
        %v4098 = vadd.f32 %v4046, %v4072
        %v4099 = vadd.f32 %v4047, %v4072
        %v4100 = vadd.f32 %v4048, %v4072
        %v4101 = vadd.f32 %v4049, %v4072
        %v4102 = vadd.f32 %v4050, %v4072
        %v4103 = vadd.f32 %v4051, %v4072
        %v4104 = vadd.f32 %v4052, %v4072
        %v4105 = vadd.f32 %v4053, %v4072
        %v4106 = vadd.f32 %v4054, %v4072
        %v4107 = vadd.f32 %v4055, %v4072
        %v4108 = vadd.f32 %v4056, %v4072
        %v4109 = vadd.f32 %v4057, %v4072
        %v4110 = vadd.f32 %v4058, %v4072
        %v4111 = vadd.f32 %v4059, %v4072
        %v4112 = vadd.f32 %v4060, %v4072
        %v4113 = vadd.f32 %v4061, %v4072
        %v4114 = vadd.f32 %v4062, %v4072
        %v4115 = vadd.f32 %v4063, %v4072
        %v4116 = vadd.f32 %v4064, %v4072
        %v4117 = vadd.f32 %v4065, %v4072
        %v4118 = vadd.f32 %v4066, %v4072
        %v4119 = vmax.f32 %v4074, 0.0
        %v4120 = vmax.f32 %v4075, 0.0
        %v4121 = vmax.f32 %v4076, 0.0
        %v4122 = vmax.f32 %v4077, 0.0
        %v4123 = vmax.f32 %v4078, 0.0
        %v4124 = vmax.f32 %v4079, 0.0
        %v4125 = vmax.f32 %v4080, 0.0
        %v4126 = vmax.f32 %v4081, 0.0
        %v4127 = vmax.f32 %v4082, 0.0
        %v4128 = vmax.f32 %v4083, 0.0
        %v4129 = vmax.f32 %v4084, 0.0
        %v4130 = vmax.f32 %v4085, 0.0
        %v4131 = vmax.f32 %v4086, 0.0
        %v4132 = vmax.f32 %v4087, 0.0
        %v4133 = vmax.f32 %v4088, 0.0
        %v4134 = vmax.f32 %v4089, 0.0
        %v4135 = vmax.f32 %v4090, 0.0
        %v4136 = vmax.f32 %v4091, 0.0
        %v4137 = vmax.f32 %v4092, 0.0
        %v4138 = vmax.f32 %v4093, 0.0
        %v4139 = vmax.f32 %v4094, 0.0
        %v4140 = vmax.f32 %v4095, 0.0
        %v4141 = vmax.f32 %v4096, 0.0
        %v4142 = vmax.f32 %v4097, 0.0
        %v4143 = vmax.f32 %v4098, 0.0
        %v4144 = vmax.f32 %v4099, 0.0
        %v4145 = vmax.f32 %v4100, 0.0
        %v4146 = vmax.f32 %v4101, 0.0
        %v4147 = vmax.f32 %v4102, 0.0
        %v4148 = vmax.f32 %v4103, 0.0
        %v4149 = vmax.f32 %v4104, 0.0
        %v4150 = vmax.f32 %v4105, 0.0
        %v4151 = vmax.f32 %v4106, 0.0
        %v4152 = vmax.f32 %v4107, 0.0
        %v4153 = vmax.f32 %v4108, 0.0
        %v4154 = vmax.f32 %v4109, 0.0
        %v4155 = vmax.f32 %v4110, 0.0
        %v4156 = vmax.f32 %v4111, 0.0
        %v4157 = vmax.f32 %v4112, 0.0
        %v4158 = vmax.f32 %v4113, 0.0
        %v4159 = vmax.f32 %v4114, 0.0
        %v4160 = vmax.f32 %v4115, 0.0
        %v4161 = vmax.f32 %v4116, 0.0
        %v4162 = vmax.f32 %v4117, 0.0
        %v4163 = vmax.f32 %v4118, 0.0
        %v4164 = vld [vmem:[%s1] sm:$0xff]
        %v4165 = vld [vmem:[%s1 + $0x8] sm:$0xff]
        %v4166 = vld [vmem:[%s1 + $0x10] sm:$0xff]
        %v4167 = vld [vmem:[%s1 + $0x18] sm:$0xff]
        %v4168 = vld [vmem:[%s1 + $0x20] sm:$0xff]
        %v4169 = vld [vmem:[%s1 + $0x28] sm:$0xff]
        %v4170 = vld [vmem:[%s1 + $0x30] sm:$0xff]
        %v4171 = vld [vmem:[%s1 + $0x38] sm:$0xff]
        %v4172 = vld [vmem:[%s1 + $0x40] sm:$0xff]
        %v4173 = vld [vmem:[%s1 + $0x48] sm:$0xff]
        %v4174 = vld [vmem:[%s1 + $0x50] sm:$0xff]
        %v4175 = vld [vmem:[%s1 + $0x58] sm:$0xff]
        %v4176 = vld [vmem:[%s1 + $0x60] sm:$0xff]
        %v4177 = vld [vmem:[%s1 + $0x68] sm:$0xff]
        %v4178 = vld [vmem:[%s1 + $0x70] sm:$0xff]
        %v4179 = vld [vmem:[%s1 + $0x78] sm:$0xff]
        %v4180 = vld [vmem:[%s1 + $0x80] sm:$0xff]
        %v4181 = vld [vmem:[%s1 + $0x88] sm:$0xff]
        %v4182 = vld [vmem:[%s1 + $0x90] sm:$0xff]
        %v4183 = vld [vmem:[%s1 + $0x98] sm:$0xff]
        %v4184 = vld [vmem:[%s1 + $0xa0] sm:$0xff]
        %v4185 = vld [vmem:[%s1 + $0xa8] sm:$0xff]
        %v4186 = vld [vmem:[%s1 + $0xb0] sm:$0xff]
        %v4187 = vld [vmem:[%s1 + $0xb8] sm:$0xff]
        %v4188 = vld [vmem:[%s1 + $0xc0] sm:$0xff]
        %v4189 = vld [vmem:[%s1 + $0xc8] sm:$0xff]
        %v4190 = vld [vmem:[%s1 + $0xd0] sm:$0xff]
        %v4191 = vld [vmem:[%s1 + $0xd8] sm:$0xff]
        %v4192 = vld [vmem:[%s1 + $0xe0] sm:$0xff]
        %v4193 = vld [vmem:[%s1 + $0xe8] sm:$0xff]
        %v4194 = vld [vmem:[%s1 + $0xf0] sm:$0xff]
        %v4195 = vld [vmem:[%s1 + $0xf8] sm:$0xff]
        %v4196 = vld [vmem:[%s1 + $0x100] sm:$0xff]
        %v4197 = vld [vmem:[%s1 + $0x108] sm:$0xff]
        %v4198 = vld [vmem:[%s1 + $0x110] sm:$0xff]
        %v4199 = vld [vmem:[%s1 + $0x118] sm:$0xff]
        %v4200 = vld [vmem:[%s1 + $0x120] sm:$0xff]
        %v4201 = vld [vmem:[%s1 + $0x128] sm:$0xff]
        %v4202 = vld [vmem:[%s1 + $0x130] sm:$0xff]
        %v4203 = vld [vmem:[%s1 + $0x138] sm:$0xff]
        %v4204 = vld [vmem:[%s1 + $0x140] sm:$0xff]
        %v4205 = vld [vmem:[%s1 + $0x148] sm:$0xff]
        %v4206 = vld [vmem:[%s1 + $0x150] sm:$0xff]
        %v4207 = vld [vmem:[%s1 + $0x158] sm:$0xff]
        %v4208 = vld [vmem:[%s1 + $0x160] sm:$0xff]
        %4210 = vset.pattern.permute.xlu0 0
        %4211 = vperm.xlu0 %4210, %v4164
        %v4212 = vpop.permute.xlu0 %4211
        %4215 = vset.pattern.permute.xlu0 0
        %4216 = vperm.xlu0 %4215, %v4165
        %v4217 = vpop.permute.xlu0 %4216
        %4220 = vset.pattern.permute.xlu0 0
        %4221 = vperm.xlu0 %4220, %v4166
        %v4222 = vpop.permute.xlu0 %4221
        %4225 = vset.pattern.permute.xlu0 0
        %4226 = vperm.xlu0 %4225, %v4167
        %v4227 = vpop.permute.xlu0 %4226
        %4230 = vset.pattern.permute.xlu0 0
        %4231 = vperm.xlu0 %4230, %v4168
        %v4232 = vpop.permute.xlu0 %4231
        %4235 = vset.pattern.permute.xlu0 0
        %4236 = vperm.xlu0 %4235, %v4169
        %v4237 = vpop.permute.xlu0 %4236
        %4240 = vset.pattern.permute.xlu0 0
        %4241 = vperm.xlu0 %4240, %v4170
        %v4242 = vpop.permute.xlu0 %4241
        %4245 = vset.pattern.permute.xlu0 0
        %4246 = vperm.xlu0 %4245, %v4171
        %v4247 = vpop.permute.xlu0 %4246
        %4250 = vset.pattern.permute.xlu0 0
        %4251 = vperm.xlu0 %4250, %v4172
        %v4252 = vpop.permute.xlu0 %4251
        %4255 = vset.pattern.permute.xlu0 0
        %4256 = vperm.xlu0 %4255, %v4173
        %v4257 = vpop.permute.xlu0 %4256
        %4260 = vset.pattern.permute.xlu0 0
        %4261 = vperm.xlu0 %4260, %v4174
        %v4262 = vpop.permute.xlu0 %4261
        %4265 = vset.pattern.permute.xlu0 0
        %4266 = vperm.xlu0 %4265, %v4175
        %v4267 = vpop.permute.xlu0 %4266
        %4270 = vset.pattern.permute.xlu0 0
        %4271 = vperm.xlu0 %4270, %v4176
        %v4272 = vpop.permute.xlu0 %4271
        %4275 = vset.pattern.permute.xlu0 0
        %4276 = vperm.xlu0 %4275, %v4177
        %v4277 = vpop.permute.xlu0 %4276
        %4280 = vset.pattern.permute.xlu0 0
        %4281 = vperm.xlu0 %4280, %v4178
        %v4282 = vpop.permute.xlu0 %4281
        %4285 = vset.pattern.permute.xlu0 0
        %4286 = vperm.xlu0 %4285, %v4179
        %v4287 = vpop.permute.xlu0 %4286
        %4290 = vset.pattern.permute.xlu0 0
        %4291 = vperm.xlu0 %4290, %v4180
        %v4292 = vpop.permute.xlu0 %4291
        %4295 = vset.pattern.permute.xlu0 0
        %4296 = vperm.xlu0 %4295, %v4181
        %v4297 = vpop.permute.xlu0 %4296
        %4300 = vset.pattern.permute.xlu0 0
        %4301 = vperm.xlu0 %4300, %v4182
        %v4302 = vpop.permute.xlu0 %4301
        %4305 = vset.pattern.permute.xlu0 0
        %4306 = vperm.xlu0 %4305, %v4183
        %v4307 = vpop.permute.xlu0 %4306
        %4310 = vset.pattern.permute.xlu0 0
        %4311 = vperm.xlu0 %4310, %v4184
        %v4312 = vpop.permute.xlu0 %4311
        %4315 = vset.pattern.permute.xlu0 0
        %4316 = vperm.xlu0 %4315, %v4185
        %v4317 = vpop.permute.xlu0 %4316
        %4320 = vset.pattern.permute.xlu0 0
        %4321 = vperm.xlu0 %4320, %v4186
        %v4322 = vpop.permute.xlu0 %4321
        %4325 = vset.pattern.permute.xlu0 0
        %4326 = vperm.xlu0 %4325, %v4187
        %v4327 = vpop.permute.xlu0 %4326
        %4330 = vset.pattern.permute.xlu0 0
        %4331 = vperm.xlu0 %4330, %v4188
        %v4332 = vpop.permute.xlu0 %4331
        %4335 = vset.pattern.permute.xlu0 0
        %4336 = vperm.xlu0 %4335, %v4189
        %v4337 = vpop.permute.xlu0 %4336
        %4340 = vset.pattern.permute.xlu0 0
        %4341 = vperm.xlu0 %4340, %v4190
        %v4342 = vpop.permute.xlu0 %4341
        %4345 = vset.pattern.permute.xlu0 0
        %4346 = vperm.xlu0 %4345, %v4191
        %v4347 = vpop.permute.xlu0 %4346
        %4350 = vset.pattern.permute.xlu0 0
        %4351 = vperm.xlu0 %4350, %v4192
        %v4352 = vpop.permute.xlu0 %4351
        %4355 = vset.pattern.permute.xlu0 0
        %4356 = vperm.xlu0 %4355, %v4193
        %v4357 = vpop.permute.xlu0 %4356
        %4360 = vset.pattern.permute.xlu0 0
        %4361 = vperm.xlu0 %4360, %v4194
        %v4362 = vpop.permute.xlu0 %4361
        %4365 = vset.pattern.permute.xlu0 0
        %4366 = vperm.xlu0 %4365, %v4195
        %v4367 = vpop.permute.xlu0 %4366
        %4370 = vset.pattern.permute.xlu0 0
        %4371 = vperm.xlu0 %4370, %v4196
        %v4372 = vpop.permute.xlu0 %4371
        %4375 = vset.pattern.permute.xlu0 0
        %4376 = vperm.xlu0 %4375, %v4197
        %v4377 = vpop.permute.xlu0 %4376
        %4380 = vset.pattern.permute.xlu0 0
        %4381 = vperm.xlu0 %4380, %v4198
        %v4382 = vpop.permute.xlu0 %4381
        %4385 = vset.pattern.permute.xlu0 0
        %4386 = vperm.xlu0 %4385, %v4199
        %v4387 = vpop.permute.xlu0 %4386
        %4390 = vset.pattern.permute.xlu0 0
        %4391 = vperm.xlu0 %4390, %v4200
        %v4392 = vpop.permute.xlu0 %4391
        %4395 = vset.pattern.permute.xlu0 0
        %4396 = vperm.xlu0 %4395, %v4201
        %v4397 = vpop.permute.xlu0 %4396
        %4400 = vset.pattern.permute.xlu0 0
        %4401 = vperm.xlu0 %4400, %v4202
        %v4402 = vpop.permute.xlu0 %4401
        %4405 = vset.pattern.permute.xlu0 0
        %4406 = vperm.xlu0 %4405, %v4203
        %v4407 = vpop.permute.xlu0 %4406
        %4410 = vset.pattern.permute.xlu0 0
        %4411 = vperm.xlu0 %4410, %v4204
        %v4412 = vpop.permute.xlu0 %4411
        %4415 = vset.pattern.permute.xlu0 0
        %4416 = vperm.xlu0 %4415, %v4205
        %v4417 = vpop.permute.xlu0 %4416
        %4420 = vset.pattern.permute.xlu0 0
        %4421 = vperm.xlu0 %4420, %v4206
        %v4422 = vpop.permute.xlu0 %4421
        %4425 = vset.pattern.permute.xlu0 0
        %4426 = vperm.xlu0 %4425, %v4207
        %v4427 = vpop.permute.xlu0 %4426
        %4430 = vset.pattern.permute.xlu0 0
        %4431 = vperm.xlu0 %4430, %v4208
        %v4432 = vpop.permute.xlu0 %4431
        %v4434 = vmul.f32 %v4119, %v4212
        %v4435 = vmul.f32 %v4120, %v4217
        %v4436 = vmul.f32 %v4121, %v4222
        %v4437 = vmul.f32 %v4122, %v4227
        %v4438 = vmul.f32 %v4123, %v4232
        %v4439 = vmul.f32 %v4124, %v4237
        %v4440 = vmul.f32 %v4125, %v4242
        %v4441 = vmul.f32 %v4126, %v4247
        %v4442 = vmul.f32 %v4127, %v4252
        %v4443 = vmul.f32 %v4128, %v4257
        %v4444 = vmul.f32 %v4129, %v4262
        %v4445 = vmul.f32 %v4130, %v4267
        %v4446 = vmul.f32 %v4131, %v4272
        %v4447 = vmul.f32 %v4132, %v4277
        %v4448 = vmul.f32 %v4133, %v4282
        %v4449 = vmul.f32 %v4134, %v4287
        %v4450 = vmul.f32 %v4135, %v4292
        %v4451 = vmul.f32 %v4136, %v4297
        %v4452 = vmul.f32 %v4137, %v4302
        %v4453 = vmul.f32 %v4138, %v4307
        %v4454 = vmul.f32 %v4139, %v4312
        %v4455 = vmul.f32 %v4140, %v4317
        %v4456 = vmul.f32 %v4141, %v4322
        %v4457 = vmul.f32 %v4142, %v4327
        %v4458 = vmul.f32 %v4143, %v4332
        %v4459 = vmul.f32 %v4144, %v4337
        %v4460 = vmul.f32 %v4145, %v4342
        %v4461 = vmul.f32 %v4146, %v4347
        %v4462 = vmul.f32 %v4147, %v4352
        %v4463 = vmul.f32 %v4148, %v4357
        %v4464 = vmul.f32 %v4149, %v4362
        %v4465 = vmul.f32 %v4150, %v4367
        %v4466 = vmul.f32 %v4151, %v4372
        %v4467 = vmul.f32 %v4152, %v4377
        %v4468 = vmul.f32 %v4153, %v4382
        %v4469 = vmul.f32 %v4154, %v4387
        %v4470 = vmul.f32 %v4155, %v4392
        %v4471 = vmul.f32 %v4156, %v4397
        %v4472 = vmul.f32 %v4157, %v4402
        %v4473 = vmul.f32 %v4158, %v4407
        %v4474 = vmul.f32 %v4159, %v4412
        %v4475 = vmul.f32 %v4160, %v4417
        %v4476 = vmul.f32 %v4161, %v4422
        %v4477 = vmul.f32 %v4162, %v4427
        %v4478 = vmul.f32 %v4163, %v4432
        %4479 = vst [vmem:[#allocation3] sm:$0xff] %v4434
        %4480 = vst [vmem:[#allocation3 + $0x8] sm:$0xff] %v4435
        %4481 = vst [vmem:[#allocation3 + $0x10] sm:$0xff] %v4436
        %4482 = vst [vmem:[#allocation3 + $0x18] sm:$0xff] %v4437
        %4483 = vst [vmem:[#allocation3 + $0x20] sm:$0xff] %v4438
        %4484 = vst [vmem:[#allocation3 + $0x28] sm:$0xff] %v4439
        %4485 = vst [vmem:[#allocation3 + $0x30] sm:$0xff] %v4440
        %4486 = vst [vmem:[#allocation3 + $0x38] sm:$0xff] %v4441
        %4487 = vst [vmem:[#allocation3 + $0x40] sm:$0xff] %v4442
        %4488 = vst [vmem:[#allocation3 + $0x48] sm:$0xff] %v4443
        %4489 = vst [vmem:[#allocation3 + $0x50] sm:$0xff] %v4444
        %4490 = vst [vmem:[#allocation3 + $0x58] sm:$0xff] %v4445
        %4491 = vst [vmem:[#allocation3 + $0x60] sm:$0xff] %v4446
        %4492 = vst [vmem:[#allocation3 + $0x68] sm:$0xff] %v4447
        %4493 = vst [vmem:[#allocation3 + $0x70] sm:$0xff] %v4448
        %4494 = vst [vmem:[#allocation3 + $0x78] sm:$0xff] %v4449
        %4495 = vst [vmem:[#allocation3 + $0x80] sm:$0xff] %v4450
        %4496 = vst [vmem:[#allocation3 + $0x88] sm:$0xff] %v4451
        %4497 = vst [vmem:[#allocation3 + $0x90] sm:$0xff] %v4452
        %4498 = vst [vmem:[#allocation3 + $0x98] sm:$0xff] %v4453
        %4499 = vst [vmem:[#allocation3 + $0xa0] sm:$0xff] %v4454
        %4500 = vst [vmem:[#allocation3 + $0xa8] sm:$0xff] %v4455
        %4501 = vst [vmem:[#allocation3 + $0xb0] sm:$0xff] %v4456
        %4502 = vst [vmem:[#allocation3 + $0xb8] sm:$0xff] %v4457
        %4503 = vst [vmem:[#allocation3 + $0xc0] sm:$0xff] %v4458
        %4504 = vst [vmem:[#allocation3 + $0xc8] sm:$0xff] %v4459
        %4505 = vst [vmem:[#allocation3 + $0xd0] sm:$0xff] %v4460
        %4506 = vst [vmem:[#allocation3 + $0xd8] sm:$0xff] %v4461
        %4507 = vst [vmem:[#allocation3 + $0xe0] sm:$0xff] %v4462
        %4508 = vst [vmem:[#allocation3 + $0xe8] sm:$0xff] %v4463
        %4509 = vst [vmem:[#allocation3 + $0xf0] sm:$0xff] %v4464
        %4510 = vst [vmem:[#allocation3 + $0xf8] sm:$0xff] %v4465
        %4511 = vst [vmem:[#allocation3 + $0x100] sm:$0xff] %v4466
        %4512 = vst [vmem:[#allocation3 + $0x108] sm:$0xff] %v4467
        %4513 = vst [vmem:[#allocation3 + $0x110] sm:$0xff] %v4468
        %4514 = vst [vmem:[#allocation3 + $0x118] sm:$0xff] %v4469
        %4515 = vst [vmem:[#allocation3 + $0x120] sm:$0xff] %v4470
        %4516 = vst [vmem:[#allocation3 + $0x128] sm:$0xff] %v4471
        %4517 = vst [vmem:[#allocation3 + $0x130] sm:$0xff] %v4472
        %4518 = vst [vmem:[#allocation3 + $0x138] sm:$0xff] %v4473
        %4519 = vst [vmem:[#allocation3 + $0x140] sm:$0xff] %v4474
        %4520 = vst [vmem:[#allocation3 + $0x148] sm:$0xff] %v4475
        %4521 = vst [vmem:[#allocation3 + $0x150] sm:$0xff] %v4476
        %4522 = vst [vmem:[#allocation3 + $0x158] sm:$0xff] %v4477
        %4523 = vst [vmem:[#allocation3 + $0x160] sm:$0xff] %v4478
        %4524 = vst [vmem:[#allocation3 + $0x168] sm:$0xff] 0.0
        %v4525 = vld [vmem:[#allocation3] sm:$0xff]
        %v4526 = vld [vmem:[#allocation3 + $0x8] sm:$0xff]
        %v4527 = vld [vmem:[#allocation3 + $0x10] sm:$0xff]
        %v4528 = vld [vmem:[#allocation3 + $0x18] sm:$0xff]
        %v4529 = vld [vmem:[#allocation3 + $0x20] sm:$0xff]
        %v4530 = vld [vmem:[#allocation3 + $0x28] sm:$0xff]
        %v4531 = vld [vmem:[#allocation3 + $0x30] sm:$0xff]
        %v4532 = vld [vmem:[#allocation3 + $0x38] sm:$0xff]
        %v4533 = vld [vmem:[#allocation3 + $0x40] sm:$0xff]
        %v4534 = vld [vmem:[#allocation3 + $0x48] sm:$0xff]
        %v4535 = vld [vmem:[#allocation3 + $0x50] sm:$0xff]
        %v4536 = vld [vmem:[#allocation3 + $0x58] sm:$0xff]
        %v4537 = vld [vmem:[#allocation3 + $0x60] sm:$0xff]
        %v4538 = vld [vmem:[#allocation3 + $0x68] sm:$0xff]
        %v4539 = vld [vmem:[#allocation3 + $0x70] sm:$0xff]
        %v4540 = vld [vmem:[#allocation3 + $0x78] sm:$0xff]
        %v4541 = vld [vmem:[#allocation3 + $0x80] sm:$0xff]
        %v4542 = vld [vmem:[#allocation3 + $0x88] sm:$0xff]
        %v4543 = vld [vmem:[#allocation3 + $0x90] sm:$0xff]
        %v4544 = vld [vmem:[#allocation3 + $0x98] sm:$0xff]
        %v4545 = vld [vmem:[#allocation3 + $0xa0] sm:$0xff]
        %v4546 = vld [vmem:[#allocation3 + $0xa8] sm:$0xff]
        %v4547 = vld [vmem:[#allocation3 + $0xb0] sm:$0xff]
        %v4548 = vld [vmem:[#allocation3 + $0xb8] sm:$0xff]
        %v4549 = vld [vmem:[#allocation3 + $0xc0] sm:$0xff]
        %v4550 = vld [vmem:[#allocation3 + $0xc8] sm:$0xff]
        %v4551 = vld [vmem:[#allocation3 + $0xd0] sm:$0xff]
        %v4552 = vld [vmem:[#allocation3 + $0xd8] sm:$0xff]
        %v4553 = vld [vmem:[#allocation3 + $0xe0] sm:$0xff]
        %v4554 = vld [vmem:[#allocation3 + $0xe8] sm:$0xff]
        %v4555 = vld [vmem:[#allocation3 + $0xf0] sm:$0xff]
        %v4556 = vld [vmem:[#allocation3 + $0xf8] sm:$0xff]
        %v4557 = vld [vmem:[#allocation3 + $0x100] sm:$0xff]
        %v4558 = vld [vmem:[#allocation3 + $0x108] sm:$0xff]
        %v4559 = vld [vmem:[#allocation3 + $0x110] sm:$0xff]
        %v4560 = vld [vmem:[#allocation3 + $0x118] sm:$0xff]
        %v4561 = vld [vmem:[#allocation3 + $0x120] sm:$0xff]
        %v4562 = vld [vmem:[#allocation3 + $0x128] sm:$0xff]
        %v4563 = vld [vmem:[#allocation3 + $0x130] sm:$0xff]
        %v4564 = vld [vmem:[#allocation3 + $0x138] sm:$0xff]
        %v4565 = vld [vmem:[#allocation9] sm:$0xff]
        %v4566 = vld [vmem:[#allocation9 + $0x8] sm:$0xff]
        %v4567 = vld [vmem:[#allocation9 + $0x10] sm:$0xff]
        %v4568 = vld [vmem:[#allocation9 + $0x18] sm:$0xff]
        %v4569 = vld [vmem:[#allocation9 + $0x20] sm:$0xff]
        %v4570 = vld [vmem:[#allocation9 + $0x28] sm:$0xff]
        %v4571 = vld [vmem:[#allocation9 + $0x30] sm:$0xff]
        %v4572 = vld [vmem:[#allocation9 + $0x38] sm:$0xff]
        %v4573 = vld [vmem:[#allocation9 + $0x40] sm:$0xff]
        %v4574 = vld [vmem:[#allocation9 + $0x48] sm:$0xff]
        %v4575 = vld [vmem:[#allocation9 + $0x50] sm:$0xff]
        %v4576 = vld [vmem:[#allocation9 + $0x58] sm:$0xff]
        %v4577 = vld [vmem:[#allocation9 + $0x60] sm:$0xff]
        %v4578 = vld [vmem:[#allocation9 + $0x68] sm:$0xff]
        %v4579 = vld [vmem:[#allocation9 + $0x70] sm:$0xff]
        %v4580 = vld [vmem:[#allocation9 + $0x78] sm:$0xff]
        %v4581 = vld [vmem:[#allocation3 + $0x1] sm:$0xff]
        %v4582 = vld [vmem:[#allocation3 + $0x9] sm:$0xff]
        %v4583 = vld [vmem:[#allocation3 + $0x11] sm:$0xff]
        %v4584 = vld [vmem:[#allocation3 + $0x19] sm:$0xff]
        %v4585 = vld [vmem:[#allocation3 + $0x21] sm:$0xff]
        %v4586 = vld [vmem:[#allocation3 + $0x29] sm:$0xff]
        %v4587 = vld [vmem:[#allocation3 + $0x31] sm:$0xff]
        %v4588 = vld [vmem:[#allocation3 + $0x39] sm:$0xff]
        %v4589 = vld [vmem:[#allocation3 + $0x41] sm:$0xff]
        %v4590 = vld [vmem:[#allocation3 + $0x49] sm:$0xff]
        %v4591 = vld [vmem:[#allocation3 + $0x51] sm:$0xff]
        %v4592 = vld [vmem:[#allocation3 + $0x59] sm:$0xff]
        %v4593 = vld [vmem:[#allocation3 + $0x61] sm:$0xff]
        %v4594 = vld [vmem:[#allocation3 + $0x69] sm:$0xff]
        %v4595 = vld [vmem:[#allocation3 + $0x71] sm:$0xff]
        %v4596 = vld [vmem:[#allocation3 + $0x79] sm:$0xff]
        %v4597 = vld [vmem:[#allocation3 + $0x81] sm:$0xff]
        %v4598 = vld [vmem:[#allocation3 + $0x89] sm:$0xff]
        %v4599 = vld [vmem:[#allocation3 + $0x91] sm:$0xff]
        %v4600 = vld [vmem:[#allocation3 + $0x99] sm:$0xff]
        %v4601 = vld [vmem:[#allocation3 + $0xa1] sm:$0xff]
        %v4602 = vld [vmem:[#allocation3 + $0xa9] sm:$0xff]
        %v4603 = vld [vmem:[#allocation3 + $0xb1] sm:$0xff]
        %v4604 = vld [vmem:[#allocation3 + $0xb9] sm:$0xff]
        %v4605 = vld [vmem:[#allocation3 + $0xc1] sm:$0xff]
        %v4606 = vld [vmem:[#allocation3 + $0xc9] sm:$0xff]
        %v4607 = vld [vmem:[#allocation3 + $0xd1] sm:$0xff]
        %v4608 = vld [vmem:[#allocation3 + $0xd9] sm:$0xff]
        %v4609 = vld [vmem:[#allocation3 + $0xe1] sm:$0xff]
        %v4610 = vld [vmem:[#allocation3 + $0xe9] sm:$0xff]
        %v4611 = vld [vmem:[#allocation3 + $0xf1] sm:$0xff]
        %v4612 = vld [vmem:[#allocation3 + $0xf9] sm:$0xff]
        %v4613 = vld [vmem:[#allocation3 + $0x101] sm:$0xff]
        %v4614 = vld [vmem:[#allocation3 + $0x109] sm:$0xff]
        %v4615 = vld [vmem:[#allocation3 + $0x111] sm:$0xff]
        %v4616 = vld [vmem:[#allocation3 + $0x119] sm:$0xff]
        %v4617 = vld [vmem:[#allocation3 + $0x121] sm:$0xff]
        %v4618 = vld [vmem:[#allocation3 + $0x129] sm:$0xff]
        %v4619 = vld [vmem:[#allocation3 + $0x131] sm:$0xff]
        %v4620 = vld [vmem:[#allocation3 + $0x139] sm:$0xff]
        %s4621 = scalar_lea.vmem [#allocation9], 128
        %v4622 = vld [vmem:[%s4621] sm:$0xff]
        %v4623 = vld [vmem:[%s4621 + $0x8] sm:$0xff]
        %v4624 = vld [vmem:[%s4621 + $0x10] sm:$0xff]
        %v4625 = vld [vmem:[%s4621 + $0x18] sm:$0xff]
        %v4626 = vld [vmem:[%s4621 + $0x20] sm:$0xff]
        %v4627 = vld [vmem:[%s4621 + $0x28] sm:$0xff]
        %v4628 = vld [vmem:[%s4621 + $0x30] sm:$0xff]
        %v4629 = vld [vmem:[%s4621 + $0x38] sm:$0xff]
        %v4630 = vld [vmem:[%s4621 + $0x40] sm:$0xff]
        %v4631 = vld [vmem:[%s4621 + $0x48] sm:$0xff]
        %v4632 = vld [vmem:[%s4621 + $0x50] sm:$0xff]
        %v4633 = vld [vmem:[%s4621 + $0x58] sm:$0xff]
        %v4634 = vld [vmem:[%s4621 + $0x60] sm:$0xff]
        %v4635 = vld [vmem:[%s4621 + $0x68] sm:$0xff]
        %v4636 = vld [vmem:[%s4621 + $0x70] sm:$0xff]
        %v4637 = vld [vmem:[%s4621 + $0x78] sm:$0xff]
        %4638 = vmatprep.subr.mxu0 0.0
        %4639 = vmatpush1.msra.mxu0 %v4637
        %4640 = vmatprep.subr.mxu0 0.0
        %4641 = vmatpush1.msra.mxu0 %v4636
        %4642 = vmatprep.subr.mxu0 0.0
        %4643 = vmatpush1.msra.mxu0 %v4635
        %4644 = vmatprep.subr.mxu0 0.0
        %4645 = vmatpush1.msra.mxu0 %v4634
        %4646 = vmatprep.subr.mxu0 0.0
        %4647 = vmatpush1.msra.mxu0 %v4633
        %4648 = vmatprep.subr.mxu0 0.0
        %4649 = vmatpush1.msra.mxu0 %v4632
        %4650 = vmatprep.subr.mxu0 0.0
        %4651 = vmatpush1.msra.mxu0 %v4631
        %4652 = vmatprep.subr.mxu0 0.0
        %4653 = vmatpush1.msra.mxu0 %v4630
        %4654 = vmatprep.subr.mxu0 0.0
        %4655 = vmatpush1.msra.mxu0 %v4629
        %4656 = vmatprep.subr.mxu0 0.0
        %4657 = vmatpush1.msra.mxu0 %v4628
        %4658 = vmatprep.subr.mxu0 0.0
        %4659 = vmatpush1.msra.mxu0 %v4627
        %4660 = vmatprep.subr.mxu0 0.0
        %4661 = vmatpush1.msra.mxu0 %v4626
        %4662 = vmatprep.subr.mxu0 0.0
        %4663 = vmatpush1.msra.mxu0 %v4625
        %4664 = vmatprep.subr.mxu0 0.0
        %4665 = vmatpush1.msra.mxu0 %v4624
        %4666 = vmatprep.subr.mxu0 0.0
        %4667 = vmatpush1.msra.mxu0 %v4623
        %4668 = vmatprep.subr.mxu0 0.0
        %4669 = vmatpush1.msra.mxu0 %v4622
        %4670 = vmatprep.subr.mxu0 0.0
        %4671 = vmatpush2.msra.mxu0 0.0
        %4672 = vmatprep.subr.mxu0 0.0
        %4673 = vmatpush2.msra.mxu0 0.0
        %4674 = vmatprep.subr.mxu0 0.0
        %4675 = vmatpush2.msra.mxu0 0.0
        %4676 = vmatprep.subr.mxu0 0.0
        %4677 = vmatpush2.msra.mxu0 0.0
        %4678 = vmatprep.subr.mxu0 0.0
        %4679 = vmatpush2.msra.mxu0 0.0
        %4680 = vmatprep.subr.mxu0 0.0
        %4681 = vmatpush2.msra.mxu0 0.0
        %4682 = vmatprep.subr.mxu0 0.0
        %4683 = vmatpush2.msra.mxu0 0.0
        %4684 = vmatprep.subr.mxu0 0.0
        %4685 = vmatpush2.msra.mxu0 0.0
        %4686 = vmatprep.subr.mxu0 0.0
        %4687 = vmatpush2.msra.mxu0 0.0
        %4688 = vmatprep.subr.mxu0 0.0
        %4689 = vmatpush2.msra.mxu0 0.0
        %4690 = vmatprep.subr.mxu0 0.0
        %4691 = vmatpush2.msra.mxu0 0.0
        %4692 = vmatprep.subr.mxu0 0.0
        %4693 = vmatpush2.msra.mxu0 0.0
        %4694 = vmatprep.subr.mxu0 0.0
        %4695 = vmatpush2.msra.mxu0 0.0
        %4696 = vmatprep.subr.mxu0 0.0
        %4697 = vmatpush2.msra.mxu0 0.0
        %4698 = vmatprep.subr.mxu0 0.0
        %4699 = vmatpush2.msra.mxu0 0.0
        %4700 = vmatprep.subr.mxu0 0.0
        %4701 = vmatpush2.msra.mxu0 0.0
        %4702 = vmatprep.mubr.f32.mxu0 0.0
        %4703 = vmatmul.mubr.f32.gmra.mxu0 %v4581
        %v4704 = vpop.f32.mrf.mxu0
        %v4705 = vadd.f32 0.0, %v4704
        %v4706 = vpop.f32.mrf.mxu0
        %4707 = vmatprep.mubr.f32.mxu0 0.0
        %4708 = vmatmul.mubr.f32.gmra.mxu0 %v4582
        %v4709 = vpop.f32.mrf.mxu0
        %v4710 = vadd.f32 0.0, %v4709
        %v4711 = vpop.f32.mrf.mxu0
        %4712 = vmatprep.mubr.f32.mxu0 0.0
        %4713 = vmatmul.mubr.f32.gmra.mxu0 %v4583
        %v4714 = vpop.f32.mrf.mxu0
        %v4715 = vadd.f32 0.0, %v4714
        %v4716 = vpop.f32.mrf.mxu0
        %4717 = vmatprep.mubr.f32.mxu0 0.0
        %4718 = vmatmul.mubr.f32.gmra.mxu0 %v4584
        %v4719 = vpop.f32.mrf.mxu0
        %v4720 = vadd.f32 0.0, %v4719
        %v4721 = vpop.f32.mrf.mxu0
        %4722 = vmatprep.mubr.f32.mxu0 0.0
        %4723 = vmatmul.mubr.f32.gmra.mxu0 %v4585
        %v4724 = vpop.f32.mrf.mxu0
        %v4725 = vadd.f32 0.0, %v4724
        %v4726 = vpop.f32.mrf.mxu0
        %4727 = vmatprep.mubr.f32.mxu0 0.0
        %4728 = vmatmul.mubr.f32.gmra.mxu0 %v4586
        %v4729 = vpop.f32.mrf.mxu0
        %v4730 = vadd.f32 0.0, %v4729
        %v4731 = vpop.f32.mrf.mxu0
        %4732 = vmatprep.mubr.f32.mxu0 0.0
        %4733 = vmatmul.mubr.f32.gmra.mxu0 %v4587
        %v4734 = vpop.f32.mrf.mxu0
        %v4735 = vadd.f32 0.0, %v4734
        %v4736 = vpop.f32.mrf.mxu0
        %4737 = vmatprep.mubr.f32.mxu0 0.0
        %4738 = vmatmul.mubr.f32.gmra.mxu0 %v4588
        %v4739 = vpop.f32.mrf.mxu0
        %v4740 = vadd.f32 0.0, %v4739
        %v4741 = vpop.f32.mrf.mxu0
        %4742 = vmatprep.mubr.f32.mxu0 0.0
        %4743 = vmatmul.mubr.f32.gmra.mxu0 %v4589
        %v4744 = vpop.f32.mrf.mxu0
        %v4745 = vadd.f32 0.0, %v4744
        %v4746 = vpop.f32.mrf.mxu0
        %4747 = vmatprep.mubr.f32.mxu0 0.0
        %4748 = vmatmul.mubr.f32.gmra.mxu0 %v4590
        %v4749 = vpop.f32.mrf.mxu0
        %v4750 = vadd.f32 0.0, %v4749
        %v4751 = vpop.f32.mrf.mxu0
        %4752 = vmatprep.mubr.f32.mxu0 0.0
        %4753 = vmatmul.mubr.f32.gmra.mxu0 %v4591
        %v4754 = vpop.f32.mrf.mxu0
        %v4755 = vadd.f32 0.0, %v4754
        %v4756 = vpop.f32.mrf.mxu0
        %4757 = vmatprep.mubr.f32.mxu0 0.0
        %4758 = vmatmul.mubr.f32.gmra.mxu0 %v4592
        %v4759 = vpop.f32.mrf.mxu0
        %v4760 = vadd.f32 0.0, %v4759
        %v4761 = vpop.f32.mrf.mxu0
        %4762 = vmatprep.mubr.f32.mxu0 0.0
        %4763 = vmatmul.mubr.f32.gmra.mxu0 %v4593
        %v4764 = vpop.f32.mrf.mxu0
        %v4765 = vadd.f32 0.0, %v4764
        %v4766 = vpop.f32.mrf.mxu0
        %4767 = vmatprep.mubr.f32.mxu0 0.0
        %4768 = vmatmul.mubr.f32.gmra.mxu0 %v4594
        %v4769 = vpop.f32.mrf.mxu0
        %v4770 = vadd.f32 0.0, %v4769
        %v4771 = vpop.f32.mrf.mxu0
        %4772 = vmatprep.mubr.f32.mxu0 0.0
        %4773 = vmatmul.mubr.f32.gmra.mxu0 %v4595
        %v4774 = vpop.f32.mrf.mxu0
        %v4775 = vadd.f32 0.0, %v4774
        %v4776 = vpop.f32.mrf.mxu0
        %4777 = vmatprep.mubr.f32.mxu0 0.0
        %4778 = vmatmul.mubr.f32.gmra.mxu0 %v4596
        %v4779 = vpop.f32.mrf.mxu0
        %v4780 = vadd.f32 0.0, %v4779
        %v4781 = vpop.f32.mrf.mxu0
        %4782 = vmatprep.mubr.f32.mxu0 0.0
        %4783 = vmatmul.mubr.f32.gmra.mxu0 %v4597
        %v4784 = vpop.f32.mrf.mxu0
        %v4785 = vadd.f32 0.0, %v4784
        %v4786 = vpop.f32.mrf.mxu0
        %4787 = vmatprep.mubr.f32.mxu0 0.0
        %4788 = vmatmul.mubr.f32.gmra.mxu0 %v4598
        %v4789 = vpop.f32.mrf.mxu0
        %v4790 = vadd.f32 0.0, %v4789
        %v4791 = vpop.f32.mrf.mxu0
        %4792 = vmatprep.mubr.f32.mxu0 0.0
        %4793 = vmatmul.mubr.f32.gmra.mxu0 %v4599
        %v4794 = vpop.f32.mrf.mxu0
        %v4795 = vadd.f32 0.0, %v4794
        %v4796 = vpop.f32.mrf.mxu0
        %4797 = vmatprep.mubr.f32.mxu0 0.0
        %4798 = vmatmul.mubr.f32.gmra.mxu0 %v4600
        %v4799 = vpop.f32.mrf.mxu0
        %v4800 = vadd.f32 0.0, %v4799
        %v4801 = vpop.f32.mrf.mxu0
        %4802 = vmatprep.mubr.f32.mxu0 0.0
        %4803 = vmatmul.mubr.f32.gmra.mxu0 %v4601
        %v4804 = vpop.f32.mrf.mxu0
        %v4805 = vadd.f32 0.0, %v4804
        %v4806 = vpop.f32.mrf.mxu0
        %4807 = vmatprep.mubr.f32.mxu0 0.0
        %4808 = vmatmul.mubr.f32.gmra.mxu0 %v4602
        %v4809 = vpop.f32.mrf.mxu0
        %v4810 = vadd.f32 0.0, %v4809
        %v4811 = vpop.f32.mrf.mxu0
        %4812 = vmatprep.mubr.f32.mxu0 0.0
        %4813 = vmatmul.mubr.f32.gmra.mxu0 %v4603
        %v4814 = vpop.f32.mrf.mxu0
        %v4815 = vadd.f32 0.0, %v4814
        %v4816 = vpop.f32.mrf.mxu0
        %4817 = vmatprep.mubr.f32.mxu0 0.0
        %4818 = vmatmul.mubr.f32.gmra.mxu0 %v4604
        %v4819 = vpop.f32.mrf.mxu0
        %v4820 = vadd.f32 0.0, %v4819
        %v4821 = vpop.f32.mrf.mxu0
        %4822 = vmatprep.mubr.f32.mxu0 0.0
        %4823 = vmatmul.mubr.f32.gmra.mxu0 %v4605
        %v4824 = vpop.f32.mrf.mxu0
        %v4825 = vadd.f32 0.0, %v4824
        %v4826 = vpop.f32.mrf.mxu0
        %4827 = vmatprep.mubr.f32.mxu0 0.0
        %4828 = vmatmul.mubr.f32.gmra.mxu0 %v4606
        %v4829 = vpop.f32.mrf.mxu0
        %v4830 = vadd.f32 0.0, %v4829
        %v4831 = vpop.f32.mrf.mxu0
        %4832 = vmatprep.mubr.f32.mxu0 0.0
        %4833 = vmatmul.mubr.f32.gmra.mxu0 %v4607
        %v4834 = vpop.f32.mrf.mxu0
        %v4835 = vadd.f32 0.0, %v4834
        %v4836 = vpop.f32.mrf.mxu0
        %4837 = vmatprep.mubr.f32.mxu0 0.0
        %4838 = vmatmul.mubr.f32.gmra.mxu0 %v4608
        %v4839 = vpop.f32.mrf.mxu0
        %v4840 = vadd.f32 0.0, %v4839
        %v4841 = vpop.f32.mrf.mxu0
        %4842 = vmatprep.mubr.f32.mxu0 0.0
        %4843 = vmatmul.mubr.f32.gmra.mxu0 %v4609
        %v4844 = vpop.f32.mrf.mxu0
        %v4845 = vadd.f32 0.0, %v4844
        %v4846 = vpop.f32.mrf.mxu0
        %4847 = vmatprep.mubr.f32.mxu0 0.0
        %4848 = vmatmul.mubr.f32.gmra.mxu0 %v4610
        %v4849 = vpop.f32.mrf.mxu0
        %v4850 = vadd.f32 0.0, %v4849
        %v4851 = vpop.f32.mrf.mxu0
        %4852 = vmatprep.mubr.f32.mxu0 0.0
        %4853 = vmatmul.mubr.f32.gmra.mxu0 %v4611
        %v4854 = vpop.f32.mrf.mxu0
        %v4855 = vadd.f32 0.0, %v4854
        %v4856 = vpop.f32.mrf.mxu0
        %4857 = vmatprep.mubr.f32.mxu0 0.0
        %4858 = vmatmul.mubr.f32.gmra.mxu0 %v4612
        %v4859 = vpop.f32.mrf.mxu0
        %v4860 = vadd.f32 0.0, %v4859
        %v4861 = vpop.f32.mrf.mxu0
        %4862 = vmatprep.mubr.f32.mxu0 0.0
        %4863 = vmatmul.mubr.f32.gmra.mxu0 %v4613
        %v4864 = vpop.f32.mrf.mxu0
        %v4865 = vadd.f32 0.0, %v4864
        %v4866 = vpop.f32.mrf.mxu0
        %4867 = vmatprep.mubr.f32.mxu0 0.0
        %4868 = vmatmul.mubr.f32.gmra.mxu0 %v4614
        %v4869 = vpop.f32.mrf.mxu0
        %v4870 = vadd.f32 0.0, %v4869
        %v4871 = vpop.f32.mrf.mxu0
        %4872 = vmatprep.mubr.f32.mxu0 0.0
        %4873 = vmatmul.mubr.f32.gmra.mxu0 %v4615
        %v4874 = vpop.f32.mrf.mxu0
        %v4875 = vadd.f32 0.0, %v4874
        %v4876 = vpop.f32.mrf.mxu0
        %4877 = vmatprep.mubr.f32.mxu0 0.0
        %4878 = vmatmul.mubr.f32.gmra.mxu0 %v4616
        %v4879 = vpop.f32.mrf.mxu0
        %v4880 = vadd.f32 0.0, %v4879
        %v4881 = vpop.f32.mrf.mxu0
        %4882 = vmatprep.mubr.f32.mxu0 0.0
        %4883 = vmatmul.mubr.f32.gmra.mxu0 %v4617
        %v4884 = vpop.f32.mrf.mxu0
        %v4885 = vadd.f32 0.0, %v4884
        %v4886 = vpop.f32.mrf.mxu0
        %4887 = vmatprep.mubr.f32.mxu0 0.0
        %4888 = vmatmul.mubr.f32.gmra.mxu0 %v4618
        %v4889 = vpop.f32.mrf.mxu0
        %v4890 = vadd.f32 0.0, %v4889
        %v4891 = vpop.f32.mrf.mxu0
        %4892 = vmatprep.mubr.f32.mxu0 0.0
        %4893 = vmatmul.mubr.f32.gmra.mxu0 %v4619
        %v4894 = vpop.f32.mrf.mxu0
        %v4895 = vadd.f32 0.0, %v4894
        %v4896 = vpop.f32.mrf.mxu0
        %4897 = vmatprep.mubr.f32.mxu0 0.0
        %4898 = vmatmul.mubr.f32.gmra.mxu0 %v4620
        %v4899 = vpop.f32.mrf.mxu0
        %v4900 = vadd.f32 0.0, %v4899
        %v4901 = vpop.f32.mrf.mxu0
        %4902 = vdwg.mxu0
        %4903 = vmatprep.subr.mxu0 0.0
        %4904 = vmatpush1.msra.mxu0 %v4580
        %4905 = vmatprep.subr.mxu0 0.0
        %4906 = vmatpush1.msra.mxu0 %v4579
        %4907 = vmatprep.subr.mxu0 0.0
        %4908 = vmatpush1.msra.mxu0 %v4578
        %4909 = vmatprep.subr.mxu0 0.0
        %4910 = vmatpush1.msra.mxu0 %v4577
        %4911 = vmatprep.subr.mxu0 0.0
        %4912 = vmatpush1.msra.mxu0 %v4576
        %4913 = vmatprep.subr.mxu0 0.0
        %4914 = vmatpush1.msra.mxu0 %v4575
        %4915 = vmatprep.subr.mxu0 0.0
        %4916 = vmatpush1.msra.mxu0 %v4574
        %4917 = vmatprep.subr.mxu0 0.0
        %4918 = vmatpush1.msra.mxu0 %v4573
        %4919 = vmatprep.subr.mxu0 0.0
        %4920 = vmatpush1.msra.mxu0 %v4572
        %4921 = vmatprep.subr.mxu0 0.0
        %4922 = vmatpush1.msra.mxu0 %v4571
        %4923 = vmatprep.subr.mxu0 0.0
        %4924 = vmatpush1.msra.mxu0 %v4570
        %4925 = vmatprep.subr.mxu0 0.0
        %4926 = vmatpush1.msra.mxu0 %v4569
        %4927 = vmatprep.subr.mxu0 0.0
        %4928 = vmatpush1.msra.mxu0 %v4568
        %4929 = vmatprep.subr.mxu0 0.0
        %4930 = vmatpush1.msra.mxu0 %v4567
        %4931 = vmatprep.subr.mxu0 0.0
        %4932 = vmatpush1.msra.mxu0 %v4566
        %4933 = vmatprep.subr.mxu0 0.0
        %4934 = vmatpush1.msra.mxu0 %v4565
        %4935 = vmatprep.subr.mxu0 0.0
        %4936 = vmatpush2.msra.mxu0 0.0
        %4937 = vmatprep.subr.mxu0 0.0
        %4938 = vmatpush2.msra.mxu0 0.0
        %4939 = vmatprep.subr.mxu0 0.0
        %4940 = vmatpush2.msra.mxu0 0.0
        %4941 = vmatprep.subr.mxu0 0.0
        %4942 = vmatpush2.msra.mxu0 0.0
        %4943 = vmatprep.subr.mxu0 0.0
        %4944 = vmatpush2.msra.mxu0 0.0
        %4945 = vmatprep.subr.mxu0 0.0
        %4946 = vmatpush2.msra.mxu0 0.0
        %4947 = vmatprep.subr.mxu0 0.0
        %4948 = vmatpush2.msra.mxu0 0.0
        %4949 = vmatprep.subr.mxu0 0.0
        %4950 = vmatpush2.msra.mxu0 0.0
        %4951 = vmatprep.subr.mxu0 0.0
        %4952 = vmatpush2.msra.mxu0 0.0
        %4953 = vmatprep.subr.mxu0 0.0
        %4954 = vmatpush2.msra.mxu0 0.0
        %4955 = vmatprep.subr.mxu0 0.0
        %4956 = vmatpush2.msra.mxu0 0.0
        %4957 = vmatprep.subr.mxu0 0.0
        %4958 = vmatpush2.msra.mxu0 0.0
        %4959 = vmatprep.subr.mxu0 0.0
        %4960 = vmatpush2.msra.mxu0 0.0
        %4961 = vmatprep.subr.mxu0 0.0
        %4962 = vmatpush2.msra.mxu0 0.0
        %4963 = vmatprep.subr.mxu0 0.0
        %4964 = vmatpush2.msra.mxu0 0.0
        %4965 = vmatprep.subr.mxu0 0.0
        %4966 = vmatpush2.msra.mxu0 0.0
        %4967 = vmatprep.mubr.f32.mxu0 0.0
        %4968 = vmatmul.mubr.f32.gmra.mxu0 %v4525
        %v4969 = vpop.f32.mrf.mxu0
        %v4970 = vadd.f32 %v4705, %v4969
        %v4971 = vpop.f32.mrf.mxu0
        %4972 = vmatprep.mubr.f32.mxu0 0.0
        %4973 = vmatmul.mubr.f32.gmra.mxu0 %v4526
        %v4974 = vpop.f32.mrf.mxu0
        %v4975 = vadd.f32 %v4710, %v4974
        %v4976 = vpop.f32.mrf.mxu0
        %4977 = vmatprep.mubr.f32.mxu0 0.0
        %4978 = vmatmul.mubr.f32.gmra.mxu0 %v4527
        %v4979 = vpop.f32.mrf.mxu0
        %v4980 = vadd.f32 %v4715, %v4979
        %v4981 = vpop.f32.mrf.mxu0
        %4982 = vmatprep.mubr.f32.mxu0 0.0
        %4983 = vmatmul.mubr.f32.gmra.mxu0 %v4528
        %v4984 = vpop.f32.mrf.mxu0
        %v4985 = vadd.f32 %v4720, %v4984
        %v4986 = vpop.f32.mrf.mxu0
        %4987 = vmatprep.mubr.f32.mxu0 0.0
        %4988 = vmatmul.mubr.f32.gmra.mxu0 %v4529
        %v4989 = vpop.f32.mrf.mxu0
        %v4990 = vadd.f32 %v4725, %v4989
        %v4991 = vpop.f32.mrf.mxu0
        %4992 = vmatprep.mubr.f32.mxu0 0.0
        %4993 = vmatmul.mubr.f32.gmra.mxu0 %v4530
        %v4994 = vpop.f32.mrf.mxu0
        %v4995 = vadd.f32 %v4730, %v4994
        %v4996 = vpop.f32.mrf.mxu0
        %4997 = vmatprep.mubr.f32.mxu0 0.0
        %4998 = vmatmul.mubr.f32.gmra.mxu0 %v4531
        %v4999 = vpop.f32.mrf.mxu0
        %v5000 = vadd.f32 %v4735, %v4999
        %v5001 = vpop.f32.mrf.mxu0
        %5002 = vmatprep.mubr.f32.mxu0 0.0
        %5003 = vmatmul.mubr.f32.gmra.mxu0 %v4532
        %v5004 = vpop.f32.mrf.mxu0
        %v5005 = vadd.f32 %v4740, %v5004
        %v5006 = vpop.f32.mrf.mxu0
        %5007 = vmatprep.mubr.f32.mxu0 0.0
        %5008 = vmatmul.mubr.f32.gmra.mxu0 %v4533
        %v5009 = vpop.f32.mrf.mxu0
        %v5010 = vadd.f32 %v4745, %v5009
        %v5011 = vpop.f32.mrf.mxu0
        %5012 = vmatprep.mubr.f32.mxu0 0.0
        %5013 = vmatmul.mubr.f32.gmra.mxu0 %v4534
        %v5014 = vpop.f32.mrf.mxu0
        %v5015 = vadd.f32 %v4750, %v5014
        %v5016 = vpop.f32.mrf.mxu0
        %5017 = vmatprep.mubr.f32.mxu0 0.0
        %5018 = vmatmul.mubr.f32.gmra.mxu0 %v4535
        %v5019 = vpop.f32.mrf.mxu0
        %v5020 = vadd.f32 %v4755, %v5019
        %v5021 = vpop.f32.mrf.mxu0
        %5022 = vmatprep.mubr.f32.mxu0 0.0
        %5023 = vmatmul.mubr.f32.gmra.mxu0 %v4536
        %v5024 = vpop.f32.mrf.mxu0
        %v5025 = vadd.f32 %v4760, %v5024
        %v5026 = vpop.f32.mrf.mxu0
        %5027 = vmatprep.mubr.f32.mxu0 0.0
        %5028 = vmatmul.mubr.f32.gmra.mxu0 %v4537
        %v5029 = vpop.f32.mrf.mxu0
        %v5030 = vadd.f32 %v4765, %v5029
        %v5031 = vpop.f32.mrf.mxu0
        %5032 = vmatprep.mubr.f32.mxu0 0.0
        %5033 = vmatmul.mubr.f32.gmra.mxu0 %v4538
        %v5034 = vpop.f32.mrf.mxu0
        %v5035 = vadd.f32 %v4770, %v5034
        %v5036 = vpop.f32.mrf.mxu0
        %5037 = vmatprep.mubr.f32.mxu0 0.0
        %5038 = vmatmul.mubr.f32.gmra.mxu0 %v4539
        %v5039 = vpop.f32.mrf.mxu0
        %v5040 = vadd.f32 %v4775, %v5039
        %v5041 = vpop.f32.mrf.mxu0
        %5042 = vmatprep.mubr.f32.mxu0 0.0
        %5043 = vmatmul.mubr.f32.gmra.mxu0 %v4540
        %v5044 = vpop.f32.mrf.mxu0
        %v5045 = vadd.f32 %v4780, %v5044
        %v5046 = vpop.f32.mrf.mxu0
        %5047 = vmatprep.mubr.f32.mxu0 0.0
        %5048 = vmatmul.mubr.f32.gmra.mxu0 %v4541
        %v5049 = vpop.f32.mrf.mxu0
        %v5050 = vadd.f32 %v4785, %v5049
        %v5051 = vpop.f32.mrf.mxu0
        %5052 = vmatprep.mubr.f32.mxu0 0.0
        %5053 = vmatmul.mubr.f32.gmra.mxu0 %v4542
        %v5054 = vpop.f32.mrf.mxu0
        %v5055 = vadd.f32 %v4790, %v5054
        %v5056 = vpop.f32.mrf.mxu0
        %5057 = vmatprep.mubr.f32.mxu0 0.0
        %5058 = vmatmul.mubr.f32.gmra.mxu0 %v4543
        %v5059 = vpop.f32.mrf.mxu0
        %v5060 = vadd.f32 %v4795, %v5059
        %v5061 = vpop.f32.mrf.mxu0
        %5062 = vmatprep.mubr.f32.mxu0 0.0
        %5063 = vmatmul.mubr.f32.gmra.mxu0 %v4544
        %v5064 = vpop.f32.mrf.mxu0
        %v5065 = vadd.f32 %v4800, %v5064
        %v5066 = vpop.f32.mrf.mxu0
        %5067 = vmatprep.mubr.f32.mxu0 0.0
        %5068 = vmatmul.mubr.f32.gmra.mxu0 %v4545
        %v5069 = vpop.f32.mrf.mxu0
        %v5070 = vadd.f32 %v4805, %v5069
        %v5071 = vpop.f32.mrf.mxu0
        %5072 = vmatprep.mubr.f32.mxu0 0.0
        %5073 = vmatmul.mubr.f32.gmra.mxu0 %v4546
        %v5074 = vpop.f32.mrf.mxu0
        %v5075 = vadd.f32 %v4810, %v5074
        %v5076 = vpop.f32.mrf.mxu0
        %5077 = vmatprep.mubr.f32.mxu0 0.0
        %5078 = vmatmul.mubr.f32.gmra.mxu0 %v4547
        %v5079 = vpop.f32.mrf.mxu0
        %v5080 = vadd.f32 %v4815, %v5079
        %v5081 = vpop.f32.mrf.mxu0
        %5082 = vmatprep.mubr.f32.mxu0 0.0
        %5083 = vmatmul.mubr.f32.gmra.mxu0 %v4548
        %v5084 = vpop.f32.mrf.mxu0
        %v5085 = vadd.f32 %v4820, %v5084
        %v5086 = vpop.f32.mrf.mxu0
        %5087 = vmatprep.mubr.f32.mxu0 0.0
        %5088 = vmatmul.mubr.f32.gmra.mxu0 %v4549
        %v5089 = vpop.f32.mrf.mxu0
        %v5090 = vadd.f32 %v4825, %v5089
        %v5091 = vpop.f32.mrf.mxu0
        %5092 = vmatprep.mubr.f32.mxu0 0.0
        %5093 = vmatmul.mubr.f32.gmra.mxu0 %v4550
        %v5094 = vpop.f32.mrf.mxu0
        %v5095 = vadd.f32 %v4830, %v5094
        %v5096 = vpop.f32.mrf.mxu0
        %5097 = vmatprep.mubr.f32.mxu0 0.0
        %5098 = vmatmul.mubr.f32.gmra.mxu0 %v4551
        %v5099 = vpop.f32.mrf.mxu0
        %v5100 = vadd.f32 %v4835, %v5099
        %v5101 = vpop.f32.mrf.mxu0
        %5102 = vmatprep.mubr.f32.mxu0 0.0
        %5103 = vmatmul.mubr.f32.gmra.mxu0 %v4552
        %v5104 = vpop.f32.mrf.mxu0
        %v5105 = vadd.f32 %v4840, %v5104
        %v5106 = vpop.f32.mrf.mxu0
        %5107 = vmatprep.mubr.f32.mxu0 0.0
        %5108 = vmatmul.mubr.f32.gmra.mxu0 %v4553
        %v5109 = vpop.f32.mrf.mxu0
        %v5110 = vadd.f32 %v4845, %v5109
        %v5111 = vpop.f32.mrf.mxu0
        %5112 = vmatprep.mubr.f32.mxu0 0.0
        %5113 = vmatmul.mubr.f32.gmra.mxu0 %v4554
        %v5114 = vpop.f32.mrf.mxu0
        %v5115 = vadd.f32 %v4850, %v5114
        %v5116 = vpop.f32.mrf.mxu0
        %5117 = vmatprep.mubr.f32.mxu0 0.0
        %5118 = vmatmul.mubr.f32.gmra.mxu0 %v4555
        %v5119 = vpop.f32.mrf.mxu0
        %v5120 = vadd.f32 %v4855, %v5119
        %v5121 = vpop.f32.mrf.mxu0
        %5122 = vmatprep.mubr.f32.mxu0 0.0
        %5123 = vmatmul.mubr.f32.gmra.mxu0 %v4556
        %v5124 = vpop.f32.mrf.mxu0
        %v5125 = vadd.f32 %v4860, %v5124
        %v5126 = vpop.f32.mrf.mxu0
        %5127 = vmatprep.mubr.f32.mxu0 0.0
        %5128 = vmatmul.mubr.f32.gmra.mxu0 %v4557
        %v5129 = vpop.f32.mrf.mxu0
        %v5130 = vadd.f32 %v4865, %v5129
        %v5131 = vpop.f32.mrf.mxu0
        %5132 = vmatprep.mubr.f32.mxu0 0.0
        %5133 = vmatmul.mubr.f32.gmra.mxu0 %v4558
        %v5134 = vpop.f32.mrf.mxu0
        %v5135 = vadd.f32 %v4870, %v5134
        %v5136 = vpop.f32.mrf.mxu0
        %5137 = vmatprep.mubr.f32.mxu0 0.0
        %5138 = vmatmul.mubr.f32.gmra.mxu0 %v4559
        %v5139 = vpop.f32.mrf.mxu0
        %v5140 = vadd.f32 %v4875, %v5139
        %v5141 = vpop.f32.mrf.mxu0
        %5142 = vmatprep.mubr.f32.mxu0 0.0
        %5143 = vmatmul.mubr.f32.gmra.mxu0 %v4560
        %v5144 = vpop.f32.mrf.mxu0
        %v5145 = vadd.f32 %v4880, %v5144
        %v5146 = vpop.f32.mrf.mxu0
        %5147 = vmatprep.mubr.f32.mxu0 0.0
        %5148 = vmatmul.mubr.f32.gmra.mxu0 %v4561
        %v5149 = vpop.f32.mrf.mxu0
        %v5150 = vadd.f32 %v4885, %v5149
        %v5151 = vpop.f32.mrf.mxu0
        %5152 = vmatprep.mubr.f32.mxu0 0.0
        %5153 = vmatmul.mubr.f32.gmra.mxu0 %v4562
        %v5154 = vpop.f32.mrf.mxu0
        %v5155 = vadd.f32 %v4890, %v5154
        %v5156 = vpop.f32.mrf.mxu0
        %5157 = vmatprep.mubr.f32.mxu0 0.0
        %5158 = vmatmul.mubr.f32.gmra.mxu0 %v4563
        %v5159 = vpop.f32.mrf.mxu0
        %v5160 = vadd.f32 %v4895, %v5159
        %v5161 = vpop.f32.mrf.mxu0
        %5162 = vmatprep.mubr.f32.mxu0 0.0
        %5163 = vmatmul.mubr.f32.gmra.mxu0 %v4564
        %v5164 = vpop.f32.mrf.mxu0
        %v5165 = vadd.f32 %v4900, %v5164
        %v5166 = vpop.f32.mrf.mxu0
        %5167 = vdwg.mxu0
        %v5168 = vld [vmem:[#allocation3 + $0x2] sm:$0xff]
        %v5169 = vld [vmem:[#allocation3 + $0xa] sm:$0xff]
        %v5170 = vld [vmem:[#allocation3 + $0x12] sm:$0xff]
        %v5171 = vld [vmem:[#allocation3 + $0x1a] sm:$0xff]
        %v5172 = vld [vmem:[#allocation3 + $0x22] sm:$0xff]
        %v5173 = vld [vmem:[#allocation3 + $0x2a] sm:$0xff]
        %v5174 = vld [vmem:[#allocation3 + $0x32] sm:$0xff]
        %v5175 = vld [vmem:[#allocation3 + $0x3a] sm:$0xff]
        %v5176 = vld [vmem:[#allocation3 + $0x42] sm:$0xff]
        %v5177 = vld [vmem:[#allocation3 + $0x4a] sm:$0xff]
        %v5178 = vld [vmem:[#allocation3 + $0x52] sm:$0xff]
        %v5179 = vld [vmem:[#allocation3 + $0x5a] sm:$0xff]
        %v5180 = vld [vmem:[#allocation3 + $0x62] sm:$0xff]
        %v5181 = vld [vmem:[#allocation3 + $0x6a] sm:$0xff]
        %v5182 = vld [vmem:[#allocation3 + $0x72] sm:$0xff]
        %v5183 = vld [vmem:[#allocation3 + $0x7a] sm:$0xff]
        %v5184 = vld [vmem:[#allocation3 + $0x82] sm:$0xff]
        %v5185 = vld [vmem:[#allocation3 + $0x8a] sm:$0xff]
        %v5186 = vld [vmem:[#allocation3 + $0x92] sm:$0xff]
        %v5187 = vld [vmem:[#allocation3 + $0x9a] sm:$0xff]
        %v5188 = vld [vmem:[#allocation3 + $0xa2] sm:$0xff]
        %v5189 = vld [vmem:[#allocation3 + $0xaa] sm:$0xff]
        %v5190 = vld [vmem:[#allocation3 + $0xb2] sm:$0xff]
        %v5191 = vld [vmem:[#allocation3 + $0xba] sm:$0xff]
        %v5192 = vld [vmem:[#allocation3 + $0xc2] sm:$0xff]
        %v5193 = vld [vmem:[#allocation3 + $0xca] sm:$0xff]
        %v5194 = vld [vmem:[#allocation3 + $0xd2] sm:$0xff]
        %v5195 = vld [vmem:[#allocation3 + $0xda] sm:$0xff]
        %v5196 = vld [vmem:[#allocation3 + $0xe2] sm:$0xff]
        %v5197 = vld [vmem:[#allocation3 + $0xea] sm:$0xff]
        %v5198 = vld [vmem:[#allocation3 + $0xf2] sm:$0xff]
        %v5199 = vld [vmem:[#allocation3 + $0xfa] sm:$0xff]
        %v5200 = vld [vmem:[#allocation3 + $0x102] sm:$0xff]
        %v5201 = vld [vmem:[#allocation3 + $0x10a] sm:$0xff]
        %v5202 = vld [vmem:[#allocation3 + $0x112] sm:$0xff]
        %v5203 = vld [vmem:[#allocation3 + $0x11a] sm:$0xff]
        %v5204 = vld [vmem:[#allocation3 + $0x122] sm:$0xff]
        %v5205 = vld [vmem:[#allocation3 + $0x12a] sm:$0xff]
        %v5206 = vld [vmem:[#allocation3 + $0x132] sm:$0xff]
        %v5207 = vld [vmem:[#allocation3 + $0x13a] sm:$0xff]
        %s5208 = scalar_lea.vmem [#allocation9], 256
        %v5209 = vld [vmem:[%s5208] sm:$0xff]
        %v5210 = vld [vmem:[%s5208 + $0x8] sm:$0xff]
        %v5211 = vld [vmem:[%s5208 + $0x10] sm:$0xff]
        %v5212 = vld [vmem:[%s5208 + $0x18] sm:$0xff]
        %v5213 = vld [vmem:[%s5208 + $0x20] sm:$0xff]
        %v5214 = vld [vmem:[%s5208 + $0x28] sm:$0xff]
        %v5215 = vld [vmem:[%s5208 + $0x30] sm:$0xff]
        %v5216 = vld [vmem:[%s5208 + $0x38] sm:$0xff]
        %v5217 = vld [vmem:[%s5208 + $0x40] sm:$0xff]
        %v5218 = vld [vmem:[%s5208 + $0x48] sm:$0xff]
        %v5219 = vld [vmem:[%s5208 + $0x50] sm:$0xff]
        %v5220 = vld [vmem:[%s5208 + $0x58] sm:$0xff]
        %v5221 = vld [vmem:[%s5208 + $0x60] sm:$0xff]
        %v5222 = vld [vmem:[%s5208 + $0x68] sm:$0xff]
        %v5223 = vld [vmem:[%s5208 + $0x70] sm:$0xff]
        %v5224 = vld [vmem:[%s5208 + $0x78] sm:$0xff]
        %5225 = vmatprep.subr.mxu0 0.0
        %5226 = vmatpush1.msra.mxu0 %v5224
        %5227 = vmatprep.subr.mxu0 0.0
        %5228 = vmatpush1.msra.mxu0 %v5223
        %5229 = vmatprep.subr.mxu0 0.0
        %5230 = vmatpush1.msra.mxu0 %v5222
        %5231 = vmatprep.subr.mxu0 0.0
        %5232 = vmatpush1.msra.mxu0 %v5221
        %5233 = vmatprep.subr.mxu0 0.0
        %5234 = vmatpush1.msra.mxu0 %v5220
        %5235 = vmatprep.subr.mxu0 0.0
        %5236 = vmatpush1.msra.mxu0 %v5219
        %5237 = vmatprep.subr.mxu0 0.0
        %5238 = vmatpush1.msra.mxu0 %v5218
        %5239 = vmatprep.subr.mxu0 0.0
        %5240 = vmatpush1.msra.mxu0 %v5217
        %5241 = vmatprep.subr.mxu0 0.0
        %5242 = vmatpush1.msra.mxu0 %v5216
        %5243 = vmatprep.subr.mxu0 0.0
        %5244 = vmatpush1.msra.mxu0 %v5215
        %5245 = vmatprep.subr.mxu0 0.0
        %5246 = vmatpush1.msra.mxu0 %v5214
        %5247 = vmatprep.subr.mxu0 0.0
        %5248 = vmatpush1.msra.mxu0 %v5213
        %5249 = vmatprep.subr.mxu0 0.0
        %5250 = vmatpush1.msra.mxu0 %v5212
        %5251 = vmatprep.subr.mxu0 0.0
        %5252 = vmatpush1.msra.mxu0 %v5211
        %5253 = vmatprep.subr.mxu0 0.0
        %5254 = vmatpush1.msra.mxu0 %v5210
        %5255 = vmatprep.subr.mxu0 0.0
        %5256 = vmatpush1.msra.mxu0 %v5209
        %5257 = vmatprep.subr.mxu0 0.0
        %5258 = vmatpush2.msra.mxu0 0.0
        %5259 = vmatprep.subr.mxu0 0.0
        %5260 = vmatpush2.msra.mxu0 0.0
        %5261 = vmatprep.subr.mxu0 0.0
        %5262 = vmatpush2.msra.mxu0 0.0
        %5263 = vmatprep.subr.mxu0 0.0
        %5264 = vmatpush2.msra.mxu0 0.0
        %5265 = vmatprep.subr.mxu0 0.0
        %5266 = vmatpush2.msra.mxu0 0.0
        %5267 = vmatprep.subr.mxu0 0.0
        %5268 = vmatpush2.msra.mxu0 0.0
        %5269 = vmatprep.subr.mxu0 0.0
        %5270 = vmatpush2.msra.mxu0 0.0
        %5271 = vmatprep.subr.mxu0 0.0
        %5272 = vmatpush2.msra.mxu0 0.0
        %5273 = vmatprep.subr.mxu0 0.0
        %5274 = vmatpush2.msra.mxu0 0.0
        %5275 = vmatprep.subr.mxu0 0.0
        %5276 = vmatpush2.msra.mxu0 0.0
        %5277 = vmatprep.subr.mxu0 0.0
        %5278 = vmatpush2.msra.mxu0 0.0
        %5279 = vmatprep.subr.mxu0 0.0
        %5280 = vmatpush2.msra.mxu0 0.0
        %5281 = vmatprep.subr.mxu0 0.0
        %5282 = vmatpush2.msra.mxu0 0.0
        %5283 = vmatprep.subr.mxu0 0.0
        %5284 = vmatpush2.msra.mxu0 0.0
        %5285 = vmatprep.subr.mxu0 0.0
        %5286 = vmatpush2.msra.mxu0 0.0
        %5287 = vmatprep.subr.mxu0 0.0
        %5288 = vmatpush2.msra.mxu0 0.0
        %5289 = vmatprep.mubr.f32.mxu0 0.0
        %5290 = vmatmul.mubr.f32.gmra.mxu0 %v5168
        %v5291 = vpop.f32.mrf.mxu0
        %v5292 = vadd.f32 0.0, %v5291
        %v5293 = vpop.f32.mrf.mxu0
        %5294 = vmatprep.mubr.f32.mxu0 0.0
        %5295 = vmatmul.mubr.f32.gmra.mxu0 %v5169
        %v5296 = vpop.f32.mrf.mxu0
        %v5297 = vadd.f32 0.0, %v5296
        %v5298 = vpop.f32.mrf.mxu0
        %5299 = vmatprep.mubr.f32.mxu0 0.0
        %5300 = vmatmul.mubr.f32.gmra.mxu0 %v5170
        %v5301 = vpop.f32.mrf.mxu0
        %v5302 = vadd.f32 0.0, %v5301
        %v5303 = vpop.f32.mrf.mxu0
        %5304 = vmatprep.mubr.f32.mxu0 0.0
        %5305 = vmatmul.mubr.f32.gmra.mxu0 %v5171
        %v5306 = vpop.f32.mrf.mxu0
        %v5307 = vadd.f32 0.0, %v5306
        %v5308 = vpop.f32.mrf.mxu0
        %5309 = vmatprep.mubr.f32.mxu0 0.0
        %5310 = vmatmul.mubr.f32.gmra.mxu0 %v5172
        %v5311 = vpop.f32.mrf.mxu0
        %v5312 = vadd.f32 0.0, %v5311
        %v5313 = vpop.f32.mrf.mxu0
        %5314 = vmatprep.mubr.f32.mxu0 0.0
        %5315 = vmatmul.mubr.f32.gmra.mxu0 %v5173
        %v5316 = vpop.f32.mrf.mxu0
        %v5317 = vadd.f32 0.0, %v5316
        %v5318 = vpop.f32.mrf.mxu0
        %5319 = vmatprep.mubr.f32.mxu0 0.0
        %5320 = vmatmul.mubr.f32.gmra.mxu0 %v5174
        %v5321 = vpop.f32.mrf.mxu0
        %v5322 = vadd.f32 0.0, %v5321
        %v5323 = vpop.f32.mrf.mxu0
        %5324 = vmatprep.mubr.f32.mxu0 0.0
        %5325 = vmatmul.mubr.f32.gmra.mxu0 %v5175
        %v5326 = vpop.f32.mrf.mxu0
        %v5327 = vadd.f32 0.0, %v5326
        %v5328 = vpop.f32.mrf.mxu0
        %5329 = vmatprep.mubr.f32.mxu0 0.0
        %5330 = vmatmul.mubr.f32.gmra.mxu0 %v5176
        %v5331 = vpop.f32.mrf.mxu0
        %v5332 = vadd.f32 0.0, %v5331
        %v5333 = vpop.f32.mrf.mxu0
        %5334 = vmatprep.mubr.f32.mxu0 0.0
        %5335 = vmatmul.mubr.f32.gmra.mxu0 %v5177
        %v5336 = vpop.f32.mrf.mxu0
        %v5337 = vadd.f32 0.0, %v5336
        %v5338 = vpop.f32.mrf.mxu0
        %5339 = vmatprep.mubr.f32.mxu0 0.0
        %5340 = vmatmul.mubr.f32.gmra.mxu0 %v5178
        %v5341 = vpop.f32.mrf.mxu0
        %v5342 = vadd.f32 0.0, %v5341
        %v5343 = vpop.f32.mrf.mxu0
        %5344 = vmatprep.mubr.f32.mxu0 0.0
        %5345 = vmatmul.mubr.f32.gmra.mxu0 %v5179
        %v5346 = vpop.f32.mrf.mxu0
        %v5347 = vadd.f32 0.0, %v5346
        %v5348 = vpop.f32.mrf.mxu0
        %5349 = vmatprep.mubr.f32.mxu0 0.0
        %5350 = vmatmul.mubr.f32.gmra.mxu0 %v5180
        %v5351 = vpop.f32.mrf.mxu0
        %v5352 = vadd.f32 0.0, %v5351
        %v5353 = vpop.f32.mrf.mxu0
        %5354 = vmatprep.mubr.f32.mxu0 0.0
        %5355 = vmatmul.mubr.f32.gmra.mxu0 %v5181
        %v5356 = vpop.f32.mrf.mxu0
        %v5357 = vadd.f32 0.0, %v5356
        %v5358 = vpop.f32.mrf.mxu0
        %5359 = vmatprep.mubr.f32.mxu0 0.0
        %5360 = vmatmul.mubr.f32.gmra.mxu0 %v5182
        %v5361 = vpop.f32.mrf.mxu0
        %v5362 = vadd.f32 0.0, %v5361
        %v5363 = vpop.f32.mrf.mxu0
        %5364 = vmatprep.mubr.f32.mxu0 0.0
        %5365 = vmatmul.mubr.f32.gmra.mxu0 %v5183
        %v5366 = vpop.f32.mrf.mxu0
        %v5367 = vadd.f32 0.0, %v5366
        %v5368 = vpop.f32.mrf.mxu0
        %5369 = vmatprep.mubr.f32.mxu0 0.0
        %5370 = vmatmul.mubr.f32.gmra.mxu0 %v5184
        %v5371 = vpop.f32.mrf.mxu0
        %v5372 = vadd.f32 0.0, %v5371
        %v5373 = vpop.f32.mrf.mxu0
        %5374 = vmatprep.mubr.f32.mxu0 0.0
        %5375 = vmatmul.mubr.f32.gmra.mxu0 %v5185
        %v5376 = vpop.f32.mrf.mxu0
        %v5377 = vadd.f32 0.0, %v5376
        %v5378 = vpop.f32.mrf.mxu0
        %5379 = vmatprep.mubr.f32.mxu0 0.0
        %5380 = vmatmul.mubr.f32.gmra.mxu0 %v5186
        %v5381 = vpop.f32.mrf.mxu0
        %v5382 = vadd.f32 0.0, %v5381
        %v5383 = vpop.f32.mrf.mxu0
        %5384 = vmatprep.mubr.f32.mxu0 0.0
        %5385 = vmatmul.mubr.f32.gmra.mxu0 %v5187
        %v5386 = vpop.f32.mrf.mxu0
        %v5387 = vadd.f32 0.0, %v5386
        %v5388 = vpop.f32.mrf.mxu0
        %5389 = vmatprep.mubr.f32.mxu0 0.0
        %5390 = vmatmul.mubr.f32.gmra.mxu0 %v5188
        %v5391 = vpop.f32.mrf.mxu0
        %v5392 = vadd.f32 0.0, %v5391
        %v5393 = vpop.f32.mrf.mxu0
        %5394 = vmatprep.mubr.f32.mxu0 0.0
        %5395 = vmatmul.mubr.f32.gmra.mxu0 %v5189
        %v5396 = vpop.f32.mrf.mxu0
        %v5397 = vadd.f32 0.0, %v5396
        %v5398 = vpop.f32.mrf.mxu0
        %5399 = vmatprep.mubr.f32.mxu0 0.0
        %5400 = vmatmul.mubr.f32.gmra.mxu0 %v5190
        %v5401 = vpop.f32.mrf.mxu0
        %v5402 = vadd.f32 0.0, %v5401
        %v5403 = vpop.f32.mrf.mxu0
        %5404 = vmatprep.mubr.f32.mxu0 0.0
        %5405 = vmatmul.mubr.f32.gmra.mxu0 %v5191
        %v5406 = vpop.f32.mrf.mxu0
        %v5407 = vadd.f32 0.0, %v5406
        %v5408 = vpop.f32.mrf.mxu0
        %5409 = vmatprep.mubr.f32.mxu0 0.0
        %5410 = vmatmul.mubr.f32.gmra.mxu0 %v5192
        %v5411 = vpop.f32.mrf.mxu0
        %v5412 = vadd.f32 0.0, %v5411
        %v5413 = vpop.f32.mrf.mxu0
        %5414 = vmatprep.mubr.f32.mxu0 0.0
        %5415 = vmatmul.mubr.f32.gmra.mxu0 %v5193
        %v5416 = vpop.f32.mrf.mxu0
        %v5417 = vadd.f32 0.0, %v5416
        %v5418 = vpop.f32.mrf.mxu0
        %5419 = vmatprep.mubr.f32.mxu0 0.0
        %5420 = vmatmul.mubr.f32.gmra.mxu0 %v5194
        %v5421 = vpop.f32.mrf.mxu0
        %v5422 = vadd.f32 0.0, %v5421
        %v5423 = vpop.f32.mrf.mxu0
        %5424 = vmatprep.mubr.f32.mxu0 0.0
        %5425 = vmatmul.mubr.f32.gmra.mxu0 %v5195
        %v5426 = vpop.f32.mrf.mxu0
        %v5427 = vadd.f32 0.0, %v5426
        %v5428 = vpop.f32.mrf.mxu0
        %5429 = vmatprep.mubr.f32.mxu0 0.0
        %5430 = vmatmul.mubr.f32.gmra.mxu0 %v5196
        %v5431 = vpop.f32.mrf.mxu0
        %v5432 = vadd.f32 0.0, %v5431
        %v5433 = vpop.f32.mrf.mxu0
        %5434 = vmatprep.mubr.f32.mxu0 0.0
        %5435 = vmatmul.mubr.f32.gmra.mxu0 %v5197
        %v5436 = vpop.f32.mrf.mxu0
        %v5437 = vadd.f32 0.0, %v5436
        %v5438 = vpop.f32.mrf.mxu0
        %5439 = vmatprep.mubr.f32.mxu0 0.0
        %5440 = vmatmul.mubr.f32.gmra.mxu0 %v5198
        %v5441 = vpop.f32.mrf.mxu0
        %v5442 = vadd.f32 0.0, %v5441
        %v5443 = vpop.f32.mrf.mxu0
        %5444 = vmatprep.mubr.f32.mxu0 0.0
        %5445 = vmatmul.mubr.f32.gmra.mxu0 %v5199
        %v5446 = vpop.f32.mrf.mxu0
        %v5447 = vadd.f32 0.0, %v5446
        %v5448 = vpop.f32.mrf.mxu0
        %5449 = vmatprep.mubr.f32.mxu0 0.0
        %5450 = vmatmul.mubr.f32.gmra.mxu0 %v5200
        %v5451 = vpop.f32.mrf.mxu0
        %v5452 = vadd.f32 0.0, %v5451
        %v5453 = vpop.f32.mrf.mxu0
        %5454 = vmatprep.mubr.f32.mxu0 0.0
        %5455 = vmatmul.mubr.f32.gmra.mxu0 %v5201
        %v5456 = vpop.f32.mrf.mxu0
        %v5457 = vadd.f32 0.0, %v5456
        %v5458 = vpop.f32.mrf.mxu0
        %5459 = vmatprep.mubr.f32.mxu0 0.0
        %5460 = vmatmul.mubr.f32.gmra.mxu0 %v5202
        %v5461 = vpop.f32.mrf.mxu0
        %v5462 = vadd.f32 0.0, %v5461
        %v5463 = vpop.f32.mrf.mxu0
        %5464 = vmatprep.mubr.f32.mxu0 0.0
        %5465 = vmatmul.mubr.f32.gmra.mxu0 %v5203
        %v5466 = vpop.f32.mrf.mxu0
        %v5467 = vadd.f32 0.0, %v5466
        %v5468 = vpop.f32.mrf.mxu0
        %5469 = vmatprep.mubr.f32.mxu0 0.0
        %5470 = vmatmul.mubr.f32.gmra.mxu0 %v5204
        %v5471 = vpop.f32.mrf.mxu0
        %v5472 = vadd.f32 0.0, %v5471
        %v5473 = vpop.f32.mrf.mxu0
        %5474 = vmatprep.mubr.f32.mxu0 0.0
        %5475 = vmatmul.mubr.f32.gmra.mxu0 %v5205
        %v5476 = vpop.f32.mrf.mxu0
        %v5477 = vadd.f32 0.0, %v5476
        %v5478 = vpop.f32.mrf.mxu0
        %5479 = vmatprep.mubr.f32.mxu0 0.0
        %5480 = vmatmul.mubr.f32.gmra.mxu0 %v5206
        %v5481 = vpop.f32.mrf.mxu0
        %v5482 = vadd.f32 0.0, %v5481
        %v5483 = vpop.f32.mrf.mxu0
        %5484 = vmatprep.mubr.f32.mxu0 0.0
        %5485 = vmatmul.mubr.f32.gmra.mxu0 %v5207
        %v5486 = vpop.f32.mrf.mxu0
        %v5487 = vadd.f32 0.0, %v5486
        %v5488 = vpop.f32.mrf.mxu0
        %5489 = vdwg.mxu0
        %v5490 = vadd.f32 %v4970, %v5292
        %v5491 = vadd.f32 %v4975, %v5297
        %v5492 = vadd.f32 %v4980, %v5302
        %v5493 = vadd.f32 %v4985, %v5307
        %v5494 = vadd.f32 %v4990, %v5312
        %v5495 = vadd.f32 %v4995, %v5317
        %v5496 = vadd.f32 %v5000, %v5322
        %v5497 = vadd.f32 %v5005, %v5327
        %v5498 = vadd.f32 %v5010, %v5332
        %v5499 = vadd.f32 %v5015, %v5337
        %v5500 = vadd.f32 %v5020, %v5342
        %v5501 = vadd.f32 %v5025, %v5347
        %v5502 = vadd.f32 %v5030, %v5352
        %v5503 = vadd.f32 %v5035, %v5357
        %v5504 = vadd.f32 %v5040, %v5362
        %v5505 = vadd.f32 %v5045, %v5367
        %v5506 = vadd.f32 %v5050, %v5372
        %v5507 = vadd.f32 %v5055, %v5377
        %v5508 = vadd.f32 %v5060, %v5382
        %v5509 = vadd.f32 %v5065, %v5387
        %v5510 = vadd.f32 %v5070, %v5392
        %v5511 = vadd.f32 %v5075, %v5397
        %v5512 = vadd.f32 %v5080, %v5402
        %v5513 = vadd.f32 %v5085, %v5407
        %v5514 = vadd.f32 %v5090, %v5412
        %v5515 = vadd.f32 %v5095, %v5417
        %v5516 = vadd.f32 %v5100, %v5422
        %v5517 = vadd.f32 %v5105, %v5427
        %v5518 = vadd.f32 %v5110, %v5432
        %v5519 = vadd.f32 %v5115, %v5437
        %v5520 = vadd.f32 %v5120, %v5442
        %v5521 = vadd.f32 %v5125, %v5447
        %v5522 = vadd.f32 %v5130, %v5452
        %v5523 = vadd.f32 %v5135, %v5457
        %v5524 = vadd.f32 %v5140, %v5462
        %v5525 = vadd.f32 %v5145, %v5467
        %v5526 = vadd.f32 %v5150, %v5472
        %v5527 = vadd.f32 %v5155, %v5477
        %v5528 = vadd.f32 %v5160, %v5482
        %v5529 = vadd.f32 %v5165, %v5487
        %5530 = vst [vmem:[%s352] sm:$0xff] %v5490
        %5531 = vst [vmem:[%s352 + $0x8] sm:$0xff] %v5491
        %5532 = vst [vmem:[%s352 + $0x10] sm:$0xff] %v5492
        %5533 = vst [vmem:[%s352 + $0x18] sm:$0xff] %v5493
        %5534 = vst [vmem:[%s352 + $0x20] sm:$0xff] %v5494
        %5535 = vst [vmem:[%s352 + $0x28] sm:$0xff] %v5495
        %5536 = vst [vmem:[%s352 + $0x30] sm:$0xff] %v5496
        %5537 = vst [vmem:[%s352 + $0x38] sm:$0xff] %v5497
        %5538 = vst [vmem:[%s352 + $0x40] sm:$0xff] %v5498
        %5539 = vst [vmem:[%s352 + $0x48] sm:$0xff] %v5499
        %5540 = vst [vmem:[%s352 + $0x50] sm:$0xff] %v5500
        %5541 = vst [vmem:[%s352 + $0x58] sm:$0xff] %v5501
        %5542 = vst [vmem:[%s352 + $0x60] sm:$0xff] %v5502
        %5543 = vst [vmem:[%s352 + $0x68] sm:$0xff] %v5503
        %5544 = vst [vmem:[%s352 + $0x70] sm:$0xff] %v5504
        %5545 = vst [vmem:[%s352 + $0x78] sm:$0xff] %v5505
        %5546 = vst [vmem:[%s352 + $0x80] sm:$0xff] %v5506
        %5547 = vst [vmem:[%s352 + $0x88] sm:$0xff] %v5507
        %5548 = vst [vmem:[%s352 + $0x90] sm:$0xff] %v5508
        %5549 = vst [vmem:[%s352 + $0x98] sm:$0xff] %v5509
        %5550 = vst [vmem:[%s352 + $0xa0] sm:$0xff] %v5510
        %5551 = vst [vmem:[%s352 + $0xa8] sm:$0xff] %v5511
        %5552 = vst [vmem:[%s352 + $0xb0] sm:$0xff] %v5512
        %5553 = vst [vmem:[%s352 + $0xb8] sm:$0xff] %v5513
        %5554 = vst [vmem:[%s352 + $0xc0] sm:$0xff] %v5514
        %5555 = vst [vmem:[%s352 + $0xc8] sm:$0xff] %v5515
        %5556 = vst [vmem:[%s352 + $0xd0] sm:$0xff] %v5516
        %5557 = vst [vmem:[%s352 + $0xd8] sm:$0xff] %v5517
        %5558 = vst [vmem:[%s352 + $0xe0] sm:$0xff] %v5518
        %5559 = vst [vmem:[%s352 + $0xe8] sm:$0xff] %v5519
        %5560 = vst [vmem:[%s352 + $0xf0] sm:$0xff] %v5520
        %5561 = vst [vmem:[%s352 + $0xf8] sm:$0xff] %v5521
        %5562 = vst [vmem:[%s352 + $0x100] sm:$0xff] %v5522
        %5563 = vst [vmem:[%s352 + $0x108] sm:$0xff] %v5523
        %5564 = vst [vmem:[%s352 + $0x110] sm:$0xff] %v5524
        %5565 = vst [vmem:[%s352 + $0x118] sm:$0xff] %v5525
        %5566 = vst [vmem:[%s352 + $0x120] sm:$0xff] %v5526
        %5567 = vst [vmem:[%s352 + $0x128] sm:$0xff] %v5527
        %5568 = vst [vmem:[%s352 + $0x130] sm:$0xff] %v5528
        %5569 = vst [vmem:[%s352 + $0x138] sm:$0xff] %v5529
        %v5570 = vld [vmem:[#allocation3 + $0x14] sm:$0xff]
        %v5571 = vld [vmem:[#allocation3 + $0x1c] sm:$0xff]
        %v5572 = vld [vmem:[#allocation3 + $0x24] sm:$0xff]
        %v5573 = vld [vmem:[#allocation3 + $0x2c] sm:$0xff]
        %v5574 = vld [vmem:[#allocation3 + $0x34] sm:$0xff]
        %v5575 = vld [vmem:[#allocation3 + $0x3c] sm:$0xff]
        %v5576 = vld [vmem:[#allocation3 + $0x44] sm:$0xff]
        %v5577 = vld [vmem:[#allocation3 + $0x4c] sm:$0xff]
        %v5578 = vld [vmem:[#allocation3 + $0x54] sm:$0xff]
        %v5579 = vld [vmem:[#allocation3 + $0x5c] sm:$0xff]
        %v5580 = vld [vmem:[#allocation3 + $0x64] sm:$0xff]
        %v5581 = vld [vmem:[#allocation3 + $0x6c] sm:$0xff]
        %v5582 = vld [vmem:[#allocation3 + $0x74] sm:$0xff]
        %v5583 = vld [vmem:[#allocation3 + $0x7c] sm:$0xff]
        %v5584 = vld [vmem:[#allocation3 + $0x84] sm:$0xff]
        %v5585 = vld [vmem:[#allocation3 + $0x8c] sm:$0xff]
        %v5586 = vld [vmem:[#allocation3 + $0x94] sm:$0xff]
        %v5587 = vld [vmem:[#allocation3 + $0x9c] sm:$0xff]
        %v5588 = vld [vmem:[#allocation3 + $0xa4] sm:$0xff]
        %v5589 = vld [vmem:[#allocation3 + $0xac] sm:$0xff]
        %v5590 = vld [vmem:[#allocation3 + $0xb4] sm:$0xff]
        %v5591 = vld [vmem:[#allocation3 + $0xbc] sm:$0xff]
        %v5592 = vld [vmem:[#allocation3 + $0xc4] sm:$0xff]
        %v5593 = vld [vmem:[#allocation3 + $0xcc] sm:$0xff]
        %v5594 = vld [vmem:[#allocation3 + $0xd4] sm:$0xff]
        %v5595 = vld [vmem:[#allocation3 + $0xdc] sm:$0xff]
        %v5596 = vld [vmem:[#allocation3 + $0xe4] sm:$0xff]
        %v5597 = vld [vmem:[#allocation3 + $0xec] sm:$0xff]
        %v5598 = vld [vmem:[#allocation3 + $0xf4] sm:$0xff]
        %v5599 = vld [vmem:[#allocation3 + $0xfc] sm:$0xff]
        %v5600 = vld [vmem:[#allocation3 + $0x104] sm:$0xff]
        %v5601 = vld [vmem:[#allocation3 + $0x10c] sm:$0xff]
        %v5602 = vld [vmem:[#allocation3 + $0x114] sm:$0xff]
        %v5603 = vld [vmem:[#allocation3 + $0x11c] sm:$0xff]
        %v5604 = vld [vmem:[#allocation3 + $0x124] sm:$0xff]
        %v5605 = vld [vmem:[#allocation3 + $0x12c] sm:$0xff]
        %v5606 = vld [vmem:[#allocation3 + $0x134] sm:$0xff]
        %v5607 = vld [vmem:[#allocation3 + $0x13c] sm:$0xff]
        %v5608 = vld [vmem:[#allocation3 + $0x144] sm:$0xff]
        %v5609 = vld [vmem:[#allocation3 + $0x14c] sm:$0xff]
        %s5610 = scalar_lea.vmem [#allocation9], 384
        %v5611 = vld [vmem:[%s5610] sm:$0xff]
        %v5612 = vld [vmem:[%s5610 + $0x8] sm:$0xff]
        %v5613 = vld [vmem:[%s5610 + $0x10] sm:$0xff]
        %v5614 = vld [vmem:[%s5610 + $0x18] sm:$0xff]
        %v5615 = vld [vmem:[%s5610 + $0x20] sm:$0xff]
        %v5616 = vld [vmem:[%s5610 + $0x28] sm:$0xff]
        %v5617 = vld [vmem:[%s5610 + $0x30] sm:$0xff]
        %v5618 = vld [vmem:[%s5610 + $0x38] sm:$0xff]
        %v5619 = vld [vmem:[%s5610 + $0x40] sm:$0xff]
        %v5620 = vld [vmem:[%s5610 + $0x48] sm:$0xff]
        %v5621 = vld [vmem:[%s5610 + $0x50] sm:$0xff]
        %v5622 = vld [vmem:[%s5610 + $0x58] sm:$0xff]
        %v5623 = vld [vmem:[%s5610 + $0x60] sm:$0xff]
        %v5624 = vld [vmem:[%s5610 + $0x68] sm:$0xff]
        %v5625 = vld [vmem:[%s5610 + $0x70] sm:$0xff]
        %v5626 = vld [vmem:[%s5610 + $0x78] sm:$0xff]
        %v5627 = vld [vmem:[#allocation3 + $0x15] sm:$0xff]
        %v5628 = vld [vmem:[#allocation3 + $0x1d] sm:$0xff]
        %v5629 = vld [vmem:[#allocation3 + $0x25] sm:$0xff]
        %v5630 = vld [vmem:[#allocation3 + $0x2d] sm:$0xff]
        %v5631 = vld [vmem:[#allocation3 + $0x35] sm:$0xff]
        %v5632 = vld [vmem:[#allocation3 + $0x3d] sm:$0xff]
        %v5633 = vld [vmem:[#allocation3 + $0x45] sm:$0xff]
        %v5634 = vld [vmem:[#allocation3 + $0x4d] sm:$0xff]
        %v5635 = vld [vmem:[#allocation3 + $0x55] sm:$0xff]
        %v5636 = vld [vmem:[#allocation3 + $0x5d] sm:$0xff]
        %v5637 = vld [vmem:[#allocation3 + $0x65] sm:$0xff]
        %v5638 = vld [vmem:[#allocation3 + $0x6d] sm:$0xff]
        %v5639 = vld [vmem:[#allocation3 + $0x75] sm:$0xff]
        %v5640 = vld [vmem:[#allocation3 + $0x7d] sm:$0xff]
        %v5641 = vld [vmem:[#allocation3 + $0x85] sm:$0xff]
        %v5642 = vld [vmem:[#allocation3 + $0x8d] sm:$0xff]
        %v5643 = vld [vmem:[#allocation3 + $0x95] sm:$0xff]
        %v5644 = vld [vmem:[#allocation3 + $0x9d] sm:$0xff]
        %v5645 = vld [vmem:[#allocation3 + $0xa5] sm:$0xff]
        %v5646 = vld [vmem:[#allocation3 + $0xad] sm:$0xff]
        %v5647 = vld [vmem:[#allocation3 + $0xb5] sm:$0xff]
        %v5648 = vld [vmem:[#allocation3 + $0xbd] sm:$0xff]
        %v5649 = vld [vmem:[#allocation3 + $0xc5] sm:$0xff]
        %v5650 = vld [vmem:[#allocation3 + $0xcd] sm:$0xff]
        %v5651 = vld [vmem:[#allocation3 + $0xd5] sm:$0xff]
        %v5652 = vld [vmem:[#allocation3 + $0xdd] sm:$0xff]
        %v5653 = vld [vmem:[#allocation3 + $0xe5] sm:$0xff]
        %v5654 = vld [vmem:[#allocation3 + $0xed] sm:$0xff]
        %v5655 = vld [vmem:[#allocation3 + $0xf5] sm:$0xff]
        %v5656 = vld [vmem:[#allocation3 + $0xfd] sm:$0xff]
        %v5657 = vld [vmem:[#allocation3 + $0x105] sm:$0xff]
        %v5658 = vld [vmem:[#allocation3 + $0x10d] sm:$0xff]
        %v5659 = vld [vmem:[#allocation3 + $0x115] sm:$0xff]
        %v5660 = vld [vmem:[#allocation3 + $0x11d] sm:$0xff]
        %v5661 = vld [vmem:[#allocation3 + $0x125] sm:$0xff]
        %v5662 = vld [vmem:[#allocation3 + $0x12d] sm:$0xff]
        %v5663 = vld [vmem:[#allocation3 + $0x135] sm:$0xff]
        %v5664 = vld [vmem:[#allocation3 + $0x13d] sm:$0xff]
        %v5665 = vld [vmem:[#allocation3 + $0x145] sm:$0xff]
        %v5666 = vld [vmem:[#allocation3 + $0x14d] sm:$0xff]
        %s5667 = scalar_lea.vmem [#allocation9], 512
        %v5668 = vld [vmem:[%s5667] sm:$0xff]
        %v5669 = vld [vmem:[%s5667 + $0x8] sm:$0xff]
        %v5670 = vld [vmem:[%s5667 + $0x10] sm:$0xff]
        %v5671 = vld [vmem:[%s5667 + $0x18] sm:$0xff]
        %v5672 = vld [vmem:[%s5667 + $0x20] sm:$0xff]
        %v5673 = vld [vmem:[%s5667 + $0x28] sm:$0xff]
        %v5674 = vld [vmem:[%s5667 + $0x30] sm:$0xff]
        %v5675 = vld [vmem:[%s5667 + $0x38] sm:$0xff]
        %v5676 = vld [vmem:[%s5667 + $0x40] sm:$0xff]
        %v5677 = vld [vmem:[%s5667 + $0x48] sm:$0xff]
        %v5678 = vld [vmem:[%s5667 + $0x50] sm:$0xff]
        %v5679 = vld [vmem:[%s5667 + $0x58] sm:$0xff]
        %v5680 = vld [vmem:[%s5667 + $0x60] sm:$0xff]
        %v5681 = vld [vmem:[%s5667 + $0x68] sm:$0xff]
        %v5682 = vld [vmem:[%s5667 + $0x70] sm:$0xff]
        %v5683 = vld [vmem:[%s5667 + $0x78] sm:$0xff]
        %5684 = vmatprep.subr.mxu0 0.0
        %5685 = vmatpush1.msra.mxu0 %v5683
        %5686 = vmatprep.subr.mxu0 0.0
        %5687 = vmatpush1.msra.mxu0 %v5682
        %5688 = vmatprep.subr.mxu0 0.0
        %5689 = vmatpush1.msra.mxu0 %v5681
        %5690 = vmatprep.subr.mxu0 0.0
        %5691 = vmatpush1.msra.mxu0 %v5680
        %5692 = vmatprep.subr.mxu0 0.0
        %5693 = vmatpush1.msra.mxu0 %v5679
        %5694 = vmatprep.subr.mxu0 0.0
        %5695 = vmatpush1.msra.mxu0 %v5678
        %5696 = vmatprep.subr.mxu0 0.0
        %5697 = vmatpush1.msra.mxu0 %v5677
        %5698 = vmatprep.subr.mxu0 0.0
        %5699 = vmatpush1.msra.mxu0 %v5676
        %5700 = vmatprep.subr.mxu0 0.0
        %5701 = vmatpush1.msra.mxu0 %v5675
        %5702 = vmatprep.subr.mxu0 0.0
        %5703 = vmatpush1.msra.mxu0 %v5674
        %5704 = vmatprep.subr.mxu0 0.0
        %5705 = vmatpush1.msra.mxu0 %v5673
        %5706 = vmatprep.subr.mxu0 0.0
        %5707 = vmatpush1.msra.mxu0 %v5672
        %5708 = vmatprep.subr.mxu0 0.0
        %5709 = vmatpush1.msra.mxu0 %v5671
        %5710 = vmatprep.subr.mxu0 0.0
        %5711 = vmatpush1.msra.mxu0 %v5670
        %5712 = vmatprep.subr.mxu0 0.0
        %5713 = vmatpush1.msra.mxu0 %v5669
        %5714 = vmatprep.subr.mxu0 0.0
        %5715 = vmatpush1.msra.mxu0 %v5668
        %5716 = vmatprep.subr.mxu0 0.0
        %5717 = vmatpush2.msra.mxu0 0.0
        %5718 = vmatprep.subr.mxu0 0.0
        %5719 = vmatpush2.msra.mxu0 0.0
        %5720 = vmatprep.subr.mxu0 0.0
        %5721 = vmatpush2.msra.mxu0 0.0
        %5722 = vmatprep.subr.mxu0 0.0
        %5723 = vmatpush2.msra.mxu0 0.0
        %5724 = vmatprep.subr.mxu0 0.0
        %5725 = vmatpush2.msra.mxu0 0.0
        %5726 = vmatprep.subr.mxu0 0.0
        %5727 = vmatpush2.msra.mxu0 0.0
        %5728 = vmatprep.subr.mxu0 0.0
        %5729 = vmatpush2.msra.mxu0 0.0
        %5730 = vmatprep.subr.mxu0 0.0
        %5731 = vmatpush2.msra.mxu0 0.0
        %5732 = vmatprep.subr.mxu0 0.0
        %5733 = vmatpush2.msra.mxu0 0.0
        %5734 = vmatprep.subr.mxu0 0.0
        %5735 = vmatpush2.msra.mxu0 0.0
        %5736 = vmatprep.subr.mxu0 0.0
        %5737 = vmatpush2.msra.mxu0 0.0
        %5738 = vmatprep.subr.mxu0 0.0
        %5739 = vmatpush2.msra.mxu0 0.0
        %5740 = vmatprep.subr.mxu0 0.0
        %5741 = vmatpush2.msra.mxu0 0.0
        %5742 = vmatprep.subr.mxu0 0.0
        %5743 = vmatpush2.msra.mxu0 0.0
        %5744 = vmatprep.subr.mxu0 0.0
        %5745 = vmatpush2.msra.mxu0 0.0
        %5746 = vmatprep.subr.mxu0 0.0
        %5747 = vmatpush2.msra.mxu0 0.0
        %5748 = vmatprep.mubr.f32.mxu0 0.0
        %5749 = vmatmul.mubr.f32.gmra.mxu0 %v5627
        %v5750 = vpop.f32.mrf.mxu0
        %v5751 = vadd.f32 0.0, %v5750
        %v5752 = vpop.f32.mrf.mxu0
        %5753 = vmatprep.mubr.f32.mxu0 0.0
        %5754 = vmatmul.mubr.f32.gmra.mxu0 %v5628
        %v5755 = vpop.f32.mrf.mxu0
        %v5756 = vadd.f32 0.0, %v5755
        %v5757 = vpop.f32.mrf.mxu0
        %5758 = vmatprep.mubr.f32.mxu0 0.0
        %5759 = vmatmul.mubr.f32.gmra.mxu0 %v5629
        %v5760 = vpop.f32.mrf.mxu0
        %v5761 = vadd.f32 0.0, %v5760
        %v5762 = vpop.f32.mrf.mxu0
        %5763 = vmatprep.mubr.f32.mxu0 0.0
        %5764 = vmatmul.mubr.f32.gmra.mxu0 %v5630
        %v5765 = vpop.f32.mrf.mxu0
        %v5766 = vadd.f32 0.0, %v5765
        %v5767 = vpop.f32.mrf.mxu0
        %5768 = vmatprep.mubr.f32.mxu0 0.0
        %5769 = vmatmul.mubr.f32.gmra.mxu0 %v5631
        %v5770 = vpop.f32.mrf.mxu0
        %v5771 = vadd.f32 0.0, %v5770
        %v5772 = vpop.f32.mrf.mxu0
        %5773 = vmatprep.mubr.f32.mxu0 0.0
        %5774 = vmatmul.mubr.f32.gmra.mxu0 %v5632
        %v5775 = vpop.f32.mrf.mxu0
        %v5776 = vadd.f32 0.0, %v5775
        %v5777 = vpop.f32.mrf.mxu0
        %5778 = vmatprep.mubr.f32.mxu0 0.0
        %5779 = vmatmul.mubr.f32.gmra.mxu0 %v5633
        %v5780 = vpop.f32.mrf.mxu0
        %v5781 = vadd.f32 0.0, %v5780
        %v5782 = vpop.f32.mrf.mxu0
        %5783 = vmatprep.mubr.f32.mxu0 0.0
        %5784 = vmatmul.mubr.f32.gmra.mxu0 %v5634
        %v5785 = vpop.f32.mrf.mxu0
        %v5786 = vadd.f32 0.0, %v5785
        %v5787 = vpop.f32.mrf.mxu0
        %5788 = vmatprep.mubr.f32.mxu0 0.0
        %5789 = vmatmul.mubr.f32.gmra.mxu0 %v5635
        %v5790 = vpop.f32.mrf.mxu0
        %v5791 = vadd.f32 0.0, %v5790
        %v5792 = vpop.f32.mrf.mxu0
        %5793 = vmatprep.mubr.f32.mxu0 0.0
        %5794 = vmatmul.mubr.f32.gmra.mxu0 %v5636
        %v5795 = vpop.f32.mrf.mxu0
        %v5796 = vadd.f32 0.0, %v5795
        %v5797 = vpop.f32.mrf.mxu0
        %5798 = vmatprep.mubr.f32.mxu0 0.0
        %5799 = vmatmul.mubr.f32.gmra.mxu0 %v5637
        %v5800 = vpop.f32.mrf.mxu0
        %v5801 = vadd.f32 0.0, %v5800
        %v5802 = vpop.f32.mrf.mxu0
        %5803 = vmatprep.mubr.f32.mxu0 0.0
        %5804 = vmatmul.mubr.f32.gmra.mxu0 %v5638
        %v5805 = vpop.f32.mrf.mxu0
        %v5806 = vadd.f32 0.0, %v5805
        %v5807 = vpop.f32.mrf.mxu0
        %5808 = vmatprep.mubr.f32.mxu0 0.0
        %5809 = vmatmul.mubr.f32.gmra.mxu0 %v5639
        %v5810 = vpop.f32.mrf.mxu0
        %v5811 = vadd.f32 0.0, %v5810
        %v5812 = vpop.f32.mrf.mxu0
        %5813 = vmatprep.mubr.f32.mxu0 0.0
        %5814 = vmatmul.mubr.f32.gmra.mxu0 %v5640
        %v5815 = vpop.f32.mrf.mxu0
        %v5816 = vadd.f32 0.0, %v5815
        %v5817 = vpop.f32.mrf.mxu0
        %5818 = vmatprep.mubr.f32.mxu0 0.0
        %5819 = vmatmul.mubr.f32.gmra.mxu0 %v5641
        %v5820 = vpop.f32.mrf.mxu0
        %v5821 = vadd.f32 0.0, %v5820
        %v5822 = vpop.f32.mrf.mxu0
        %5823 = vmatprep.mubr.f32.mxu0 0.0
        %5824 = vmatmul.mubr.f32.gmra.mxu0 %v5642
        %v5825 = vpop.f32.mrf.mxu0
        %v5826 = vadd.f32 0.0, %v5825
        %v5827 = vpop.f32.mrf.mxu0
        %5828 = vmatprep.mubr.f32.mxu0 0.0
        %5829 = vmatmul.mubr.f32.gmra.mxu0 %v5643
        %v5830 = vpop.f32.mrf.mxu0
        %v5831 = vadd.f32 0.0, %v5830
        %v5832 = vpop.f32.mrf.mxu0
        %5833 = vmatprep.mubr.f32.mxu0 0.0
        %5834 = vmatmul.mubr.f32.gmra.mxu0 %v5644
        %v5835 = vpop.f32.mrf.mxu0
        %v5836 = vadd.f32 0.0, %v5835
        %v5837 = vpop.f32.mrf.mxu0
        %5838 = vmatprep.mubr.f32.mxu0 0.0
        %5839 = vmatmul.mubr.f32.gmra.mxu0 %v5645
        %v5840 = vpop.f32.mrf.mxu0
        %v5841 = vadd.f32 0.0, %v5840
        %v5842 = vpop.f32.mrf.mxu0
        %5843 = vmatprep.mubr.f32.mxu0 0.0
        %5844 = vmatmul.mubr.f32.gmra.mxu0 %v5646
        %v5845 = vpop.f32.mrf.mxu0
        %v5846 = vadd.f32 0.0, %v5845
        %v5847 = vpop.f32.mrf.mxu0
        %5848 = vmatprep.mubr.f32.mxu0 0.0
        %5849 = vmatmul.mubr.f32.gmra.mxu0 %v5647
        %v5850 = vpop.f32.mrf.mxu0
        %v5851 = vadd.f32 0.0, %v5850
        %v5852 = vpop.f32.mrf.mxu0
        %5853 = vmatprep.mubr.f32.mxu0 0.0
        %5854 = vmatmul.mubr.f32.gmra.mxu0 %v5648
        %v5855 = vpop.f32.mrf.mxu0
        %v5856 = vadd.f32 0.0, %v5855
        %v5857 = vpop.f32.mrf.mxu0
        %5858 = vmatprep.mubr.f32.mxu0 0.0
        %5859 = vmatmul.mubr.f32.gmra.mxu0 %v5649
        %v5860 = vpop.f32.mrf.mxu0
        %v5861 = vadd.f32 0.0, %v5860
        %v5862 = vpop.f32.mrf.mxu0
        %5863 = vmatprep.mubr.f32.mxu0 0.0
        %5864 = vmatmul.mubr.f32.gmra.mxu0 %v5650
        %v5865 = vpop.f32.mrf.mxu0
        %v5866 = vadd.f32 0.0, %v5865
        %v5867 = vpop.f32.mrf.mxu0
        %5868 = vmatprep.mubr.f32.mxu0 0.0
        %5869 = vmatmul.mubr.f32.gmra.mxu0 %v5651
        %v5870 = vpop.f32.mrf.mxu0
        %v5871 = vadd.f32 0.0, %v5870
        %v5872 = vpop.f32.mrf.mxu0
        %5873 = vmatprep.mubr.f32.mxu0 0.0
        %5874 = vmatmul.mubr.f32.gmra.mxu0 %v5652
        %v5875 = vpop.f32.mrf.mxu0
        %v5876 = vadd.f32 0.0, %v5875
        %v5877 = vpop.f32.mrf.mxu0
        %5878 = vmatprep.mubr.f32.mxu0 0.0
        %5879 = vmatmul.mubr.f32.gmra.mxu0 %v5653
        %v5880 = vpop.f32.mrf.mxu0
        %v5881 = vadd.f32 0.0, %v5880
        %v5882 = vpop.f32.mrf.mxu0
        %5883 = vmatprep.mubr.f32.mxu0 0.0
        %5884 = vmatmul.mubr.f32.gmra.mxu0 %v5654
        %v5885 = vpop.f32.mrf.mxu0
        %v5886 = vadd.f32 0.0, %v5885
        %v5887 = vpop.f32.mrf.mxu0
        %5888 = vmatprep.mubr.f32.mxu0 0.0
        %5889 = vmatmul.mubr.f32.gmra.mxu0 %v5655
        %v5890 = vpop.f32.mrf.mxu0
        %v5891 = vadd.f32 0.0, %v5890
        %v5892 = vpop.f32.mrf.mxu0
        %5893 = vmatprep.mubr.f32.mxu0 0.0
        %5894 = vmatmul.mubr.f32.gmra.mxu0 %v5656
        %v5895 = vpop.f32.mrf.mxu0
        %v5896 = vadd.f32 0.0, %v5895
        %v5897 = vpop.f32.mrf.mxu0
        %5898 = vmatprep.mubr.f32.mxu0 0.0
        %5899 = vmatmul.mubr.f32.gmra.mxu0 %v5657
        %v5900 = vpop.f32.mrf.mxu0
        %v5901 = vadd.f32 0.0, %v5900
        %v5902 = vpop.f32.mrf.mxu0
        %5903 = vmatprep.mubr.f32.mxu0 0.0
        %5904 = vmatmul.mubr.f32.gmra.mxu0 %v5658
        %v5905 = vpop.f32.mrf.mxu0
        %v5906 = vadd.f32 0.0, %v5905
        %v5907 = vpop.f32.mrf.mxu0
        %5908 = vmatprep.mubr.f32.mxu0 0.0
        %5909 = vmatmul.mubr.f32.gmra.mxu0 %v5659
        %v5910 = vpop.f32.mrf.mxu0
        %v5911 = vadd.f32 0.0, %v5910
        %v5912 = vpop.f32.mrf.mxu0
        %5913 = vmatprep.mubr.f32.mxu0 0.0
        %5914 = vmatmul.mubr.f32.gmra.mxu0 %v5660
        %v5915 = vpop.f32.mrf.mxu0
        %v5916 = vadd.f32 0.0, %v5915
        %v5917 = vpop.f32.mrf.mxu0
        %5918 = vmatprep.mubr.f32.mxu0 0.0
        %5919 = vmatmul.mubr.f32.gmra.mxu0 %v5661
        %v5920 = vpop.f32.mrf.mxu0
        %v5921 = vadd.f32 0.0, %v5920
        %v5922 = vpop.f32.mrf.mxu0
        %5923 = vmatprep.mubr.f32.mxu0 0.0
        %5924 = vmatmul.mubr.f32.gmra.mxu0 %v5662
        %v5925 = vpop.f32.mrf.mxu0
        %v5926 = vadd.f32 0.0, %v5925
        %v5927 = vpop.f32.mrf.mxu0
        %5928 = vmatprep.mubr.f32.mxu0 0.0
        %5929 = vmatmul.mubr.f32.gmra.mxu0 %v5663
        %v5930 = vpop.f32.mrf.mxu0
        %v5931 = vadd.f32 0.0, %v5930
        %v5932 = vpop.f32.mrf.mxu0
        %5933 = vmatprep.mubr.f32.mxu0 0.0
        %5934 = vmatmul.mubr.f32.gmra.mxu0 %v5664
        %v5935 = vpop.f32.mrf.mxu0
        %v5936 = vadd.f32 0.0, %v5935
        %v5937 = vpop.f32.mrf.mxu0
        %5938 = vmatprep.mubr.f32.mxu0 0.0
        %5939 = vmatmul.mubr.f32.gmra.mxu0 %v5665
        %v5940 = vpop.f32.mrf.mxu0
        %v5941 = vadd.f32 0.0, %v5940
        %v5942 = vpop.f32.mrf.mxu0
        %5943 = vmatprep.mubr.f32.mxu0 0.0
        %5944 = vmatmul.mubr.f32.gmra.mxu0 %v5666
        %v5945 = vpop.f32.mrf.mxu0
        %v5946 = vadd.f32 0.0, %v5945
        %v5947 = vpop.f32.mrf.mxu0
        %5948 = vdwg.mxu0
        %5949 = vmatprep.subr.mxu0 0.0
        %5950 = vmatpush1.msra.mxu0 %v5626
        %5951 = vmatprep.subr.mxu0 0.0
        %5952 = vmatpush1.msra.mxu0 %v5625
        %5953 = vmatprep.subr.mxu0 0.0
        %5954 = vmatpush1.msra.mxu0 %v5624
        %5955 = vmatprep.subr.mxu0 0.0
        %5956 = vmatpush1.msra.mxu0 %v5623
        %5957 = vmatprep.subr.mxu0 0.0
        %5958 = vmatpush1.msra.mxu0 %v5622
        %5959 = vmatprep.subr.mxu0 0.0
        %5960 = vmatpush1.msra.mxu0 %v5621
        %5961 = vmatprep.subr.mxu0 0.0
        %5962 = vmatpush1.msra.mxu0 %v5620
        %5963 = vmatprep.subr.mxu0 0.0
        %5964 = vmatpush1.msra.mxu0 %v5619
        %5965 = vmatprep.subr.mxu0 0.0
        %5966 = vmatpush1.msra.mxu0 %v5618
        %5967 = vmatprep.subr.mxu0 0.0
        %5968 = vmatpush1.msra.mxu0 %v5617
        %5969 = vmatprep.subr.mxu0 0.0
        %5970 = vmatpush1.msra.mxu0 %v5616
        %5971 = vmatprep.subr.mxu0 0.0
        %5972 = vmatpush1.msra.mxu0 %v5615
        %5973 = vmatprep.subr.mxu0 0.0
        %5974 = vmatpush1.msra.mxu0 %v5614
        %5975 = vmatprep.subr.mxu0 0.0
        %5976 = vmatpush1.msra.mxu0 %v5613
        %5977 = vmatprep.subr.mxu0 0.0
        %5978 = vmatpush1.msra.mxu0 %v5612
        %5979 = vmatprep.subr.mxu0 0.0
        %5980 = vmatpush1.msra.mxu0 %v5611
        %5981 = vmatprep.subr.mxu0 0.0
        %5982 = vmatpush2.msra.mxu0 0.0
        %5983 = vmatprep.subr.mxu0 0.0
        %5984 = vmatpush2.msra.mxu0 0.0
        %5985 = vmatprep.subr.mxu0 0.0
        %5986 = vmatpush2.msra.mxu0 0.0
        %5987 = vmatprep.subr.mxu0 0.0
        %5988 = vmatpush2.msra.mxu0 0.0
        %5989 = vmatprep.subr.mxu0 0.0
        %5990 = vmatpush2.msra.mxu0 0.0
        %5991 = vmatprep.subr.mxu0 0.0
        %5992 = vmatpush2.msra.mxu0 0.0
        %5993 = vmatprep.subr.mxu0 0.0
        %5994 = vmatpush2.msra.mxu0 0.0
        %5995 = vmatprep.subr.mxu0 0.0
        %5996 = vmatpush2.msra.mxu0 0.0
        %5997 = vmatprep.subr.mxu0 0.0
        %5998 = vmatpush2.msra.mxu0 0.0
        %5999 = vmatprep.subr.mxu0 0.0
        %6000 = vmatpush2.msra.mxu0 0.0
        %6001 = vmatprep.subr.mxu0 0.0
        %6002 = vmatpush2.msra.mxu0 0.0
        %6003 = vmatprep.subr.mxu0 0.0
        %6004 = vmatpush2.msra.mxu0 0.0
        %6005 = vmatprep.subr.mxu0 0.0
        %6006 = vmatpush2.msra.mxu0 0.0
        %6007 = vmatprep.subr.mxu0 0.0
        %6008 = vmatpush2.msra.mxu0 0.0
        %6009 = vmatprep.subr.mxu0 0.0
        %6010 = vmatpush2.msra.mxu0 0.0
        %6011 = vmatprep.subr.mxu0 0.0
        %6012 = vmatpush2.msra.mxu0 0.0
        %6013 = vmatprep.mubr.f32.mxu0 0.0
        %6014 = vmatmul.mubr.f32.gmra.mxu0 %v5570
        %v6015 = vpop.f32.mrf.mxu0
        %v6016 = vadd.f32 %v5751, %v6015
        %v6017 = vpop.f32.mrf.mxu0
        %6018 = vmatprep.mubr.f32.mxu0 0.0
        %6019 = vmatmul.mubr.f32.gmra.mxu0 %v5571
        %v6020 = vpop.f32.mrf.mxu0
        %v6021 = vadd.f32 %v5756, %v6020
        %v6022 = vpop.f32.mrf.mxu0
        %6023 = vmatprep.mubr.f32.mxu0 0.0
        %6024 = vmatmul.mubr.f32.gmra.mxu0 %v5572
        %v6025 = vpop.f32.mrf.mxu0
        %v6026 = vadd.f32 %v5761, %v6025
        %v6027 = vpop.f32.mrf.mxu0
        %6028 = vmatprep.mubr.f32.mxu0 0.0
        %6029 = vmatmul.mubr.f32.gmra.mxu0 %v5573
        %v6030 = vpop.f32.mrf.mxu0
        %v6031 = vadd.f32 %v5766, %v6030
        %v6032 = vpop.f32.mrf.mxu0
        %6033 = vmatprep.mubr.f32.mxu0 0.0
        %6034 = vmatmul.mubr.f32.gmra.mxu0 %v5574
        %v6035 = vpop.f32.mrf.mxu0
        %v6036 = vadd.f32 %v5771, %v6035
        %v6037 = vpop.f32.mrf.mxu0
        %6038 = vmatprep.mubr.f32.mxu0 0.0
        %6039 = vmatmul.mubr.f32.gmra.mxu0 %v5575
        %v6040 = vpop.f32.mrf.mxu0
        %v6041 = vadd.f32 %v5776, %v6040
        %v6042 = vpop.f32.mrf.mxu0
        %6043 = vmatprep.mubr.f32.mxu0 0.0
        %6044 = vmatmul.mubr.f32.gmra.mxu0 %v5576
        %v6045 = vpop.f32.mrf.mxu0
        %v6046 = vadd.f32 %v5781, %v6045
        %v6047 = vpop.f32.mrf.mxu0
        %6048 = vmatprep.mubr.f32.mxu0 0.0
        %6049 = vmatmul.mubr.f32.gmra.mxu0 %v5577
        %v6050 = vpop.f32.mrf.mxu0
        %v6051 = vadd.f32 %v5786, %v6050
        %v6052 = vpop.f32.mrf.mxu0
        %6053 = vmatprep.mubr.f32.mxu0 0.0
        %6054 = vmatmul.mubr.f32.gmra.mxu0 %v5578
        %v6055 = vpop.f32.mrf.mxu0
        %v6056 = vadd.f32 %v5791, %v6055
        %v6057 = vpop.f32.mrf.mxu0
        %6058 = vmatprep.mubr.f32.mxu0 0.0
        %6059 = vmatmul.mubr.f32.gmra.mxu0 %v5579
        %v6060 = vpop.f32.mrf.mxu0
        %v6061 = vadd.f32 %v5796, %v6060
        %v6062 = vpop.f32.mrf.mxu0
        %6063 = vmatprep.mubr.f32.mxu0 0.0
        %6064 = vmatmul.mubr.f32.gmra.mxu0 %v5580
        %v6065 = vpop.f32.mrf.mxu0
        %v6066 = vadd.f32 %v5801, %v6065
        %v6067 = vpop.f32.mrf.mxu0
        %6068 = vmatprep.mubr.f32.mxu0 0.0
        %6069 = vmatmul.mubr.f32.gmra.mxu0 %v5581
        %v6070 = vpop.f32.mrf.mxu0
        %v6071 = vadd.f32 %v5806, %v6070
        %v6072 = vpop.f32.mrf.mxu0
        %6073 = vmatprep.mubr.f32.mxu0 0.0
        %6074 = vmatmul.mubr.f32.gmra.mxu0 %v5582
        %v6075 = vpop.f32.mrf.mxu0
        %v6076 = vadd.f32 %v5811, %v6075
        %v6077 = vpop.f32.mrf.mxu0
        %6078 = vmatprep.mubr.f32.mxu0 0.0
        %6079 = vmatmul.mubr.f32.gmra.mxu0 %v5583
        %v6080 = vpop.f32.mrf.mxu0
        %v6081 = vadd.f32 %v5816, %v6080
        %v6082 = vpop.f32.mrf.mxu0
        %6083 = vmatprep.mubr.f32.mxu0 0.0
        %6084 = vmatmul.mubr.f32.gmra.mxu0 %v5584
        %v6085 = vpop.f32.mrf.mxu0
        %v6086 = vadd.f32 %v5821, %v6085
        %v6087 = vpop.f32.mrf.mxu0
        %6088 = vmatprep.mubr.f32.mxu0 0.0
        %6089 = vmatmul.mubr.f32.gmra.mxu0 %v5585
        %v6090 = vpop.f32.mrf.mxu0
        %v6091 = vadd.f32 %v5826, %v6090
        %v6092 = vpop.f32.mrf.mxu0
        %6093 = vmatprep.mubr.f32.mxu0 0.0
        %6094 = vmatmul.mubr.f32.gmra.mxu0 %v5586
        %v6095 = vpop.f32.mrf.mxu0
        %v6096 = vadd.f32 %v5831, %v6095
        %v6097 = vpop.f32.mrf.mxu0
        %6098 = vmatprep.mubr.f32.mxu0 0.0
        %6099 = vmatmul.mubr.f32.gmra.mxu0 %v5587
        %v6100 = vpop.f32.mrf.mxu0
        %v6101 = vadd.f32 %v5836, %v6100
        %v6102 = vpop.f32.mrf.mxu0
        %6103 = vmatprep.mubr.f32.mxu0 0.0
        %6104 = vmatmul.mubr.f32.gmra.mxu0 %v5588
        %v6105 = vpop.f32.mrf.mxu0
        %v6106 = vadd.f32 %v5841, %v6105
        %v6107 = vpop.f32.mrf.mxu0
        %6108 = vmatprep.mubr.f32.mxu0 0.0
        %6109 = vmatmul.mubr.f32.gmra.mxu0 %v5589
        %v6110 = vpop.f32.mrf.mxu0
        %v6111 = vadd.f32 %v5846, %v6110
        %v6112 = vpop.f32.mrf.mxu0
        %6113 = vmatprep.mubr.f32.mxu0 0.0
        %6114 = vmatmul.mubr.f32.gmra.mxu0 %v5590
        %v6115 = vpop.f32.mrf.mxu0
        %v6116 = vadd.f32 %v5851, %v6115
        %v6117 = vpop.f32.mrf.mxu0
        %6118 = vmatprep.mubr.f32.mxu0 0.0
        %6119 = vmatmul.mubr.f32.gmra.mxu0 %v5591
        %v6120 = vpop.f32.mrf.mxu0
        %v6121 = vadd.f32 %v5856, %v6120
        %v6122 = vpop.f32.mrf.mxu0
        %6123 = vmatprep.mubr.f32.mxu0 0.0
        %6124 = vmatmul.mubr.f32.gmra.mxu0 %v5592
        %v6125 = vpop.f32.mrf.mxu0
        %v6126 = vadd.f32 %v5861, %v6125
        %v6127 = vpop.f32.mrf.mxu0
        %6128 = vmatprep.mubr.f32.mxu0 0.0
        %6129 = vmatmul.mubr.f32.gmra.mxu0 %v5593
        %v6130 = vpop.f32.mrf.mxu0
        %v6131 = vadd.f32 %v5866, %v6130
        %v6132 = vpop.f32.mrf.mxu0
        %6133 = vmatprep.mubr.f32.mxu0 0.0
        %6134 = vmatmul.mubr.f32.gmra.mxu0 %v5594
        %v6135 = vpop.f32.mrf.mxu0
        %v6136 = vadd.f32 %v5871, %v6135
        %v6137 = vpop.f32.mrf.mxu0
        %6138 = vmatprep.mubr.f32.mxu0 0.0
        %6139 = vmatmul.mubr.f32.gmra.mxu0 %v5595
        %v6140 = vpop.f32.mrf.mxu0
        %v6141 = vadd.f32 %v5876, %v6140
        %v6142 = vpop.f32.mrf.mxu0
        %6143 = vmatprep.mubr.f32.mxu0 0.0
        %6144 = vmatmul.mubr.f32.gmra.mxu0 %v5596
        %v6145 = vpop.f32.mrf.mxu0
        %v6146 = vadd.f32 %v5881, %v6145
        %v6147 = vpop.f32.mrf.mxu0
        %6148 = vmatprep.mubr.f32.mxu0 0.0
        %6149 = vmatmul.mubr.f32.gmra.mxu0 %v5597
        %v6150 = vpop.f32.mrf.mxu0
        %v6151 = vadd.f32 %v5886, %v6150
        %v6152 = vpop.f32.mrf.mxu0
        %6153 = vmatprep.mubr.f32.mxu0 0.0
        %6154 = vmatmul.mubr.f32.gmra.mxu0 %v5598
        %v6155 = vpop.f32.mrf.mxu0
        %v6156 = vadd.f32 %v5891, %v6155
        %v6157 = vpop.f32.mrf.mxu0
        %6158 = vmatprep.mubr.f32.mxu0 0.0
        %6159 = vmatmul.mubr.f32.gmra.mxu0 %v5599
        %v6160 = vpop.f32.mrf.mxu0
        %v6161 = vadd.f32 %v5896, %v6160
        %v6162 = vpop.f32.mrf.mxu0
        %6163 = vmatprep.mubr.f32.mxu0 0.0
        %6164 = vmatmul.mubr.f32.gmra.mxu0 %v5600
        %v6165 = vpop.f32.mrf.mxu0
        %v6166 = vadd.f32 %v5901, %v6165
        %v6167 = vpop.f32.mrf.mxu0
        %6168 = vmatprep.mubr.f32.mxu0 0.0
        %6169 = vmatmul.mubr.f32.gmra.mxu0 %v5601
        %v6170 = vpop.f32.mrf.mxu0
        %v6171 = vadd.f32 %v5906, %v6170
        %v6172 = vpop.f32.mrf.mxu0
        %6173 = vmatprep.mubr.f32.mxu0 0.0
        %6174 = vmatmul.mubr.f32.gmra.mxu0 %v5602
        %v6175 = vpop.f32.mrf.mxu0
        %v6176 = vadd.f32 %v5911, %v6175
        %v6177 = vpop.f32.mrf.mxu0
        %6178 = vmatprep.mubr.f32.mxu0 0.0
        %6179 = vmatmul.mubr.f32.gmra.mxu0 %v5603
        %v6180 = vpop.f32.mrf.mxu0
        %v6181 = vadd.f32 %v5916, %v6180
        %v6182 = vpop.f32.mrf.mxu0
        %6183 = vmatprep.mubr.f32.mxu0 0.0
        %6184 = vmatmul.mubr.f32.gmra.mxu0 %v5604
        %v6185 = vpop.f32.mrf.mxu0
        %v6186 = vadd.f32 %v5921, %v6185
        %v6187 = vpop.f32.mrf.mxu0
        %6188 = vmatprep.mubr.f32.mxu0 0.0
        %6189 = vmatmul.mubr.f32.gmra.mxu0 %v5605
        %v6190 = vpop.f32.mrf.mxu0
        %v6191 = vadd.f32 %v5926, %v6190
        %v6192 = vpop.f32.mrf.mxu0
        %6193 = vmatprep.mubr.f32.mxu0 0.0
        %6194 = vmatmul.mubr.f32.gmra.mxu0 %v5606
        %v6195 = vpop.f32.mrf.mxu0
        %v6196 = vadd.f32 %v5931, %v6195
        %v6197 = vpop.f32.mrf.mxu0
        %6198 = vmatprep.mubr.f32.mxu0 0.0
        %6199 = vmatmul.mubr.f32.gmra.mxu0 %v5607
        %v6200 = vpop.f32.mrf.mxu0
        %v6201 = vadd.f32 %v5936, %v6200
        %v6202 = vpop.f32.mrf.mxu0
        %6203 = vmatprep.mubr.f32.mxu0 0.0
        %6204 = vmatmul.mubr.f32.gmra.mxu0 %v5608
        %v6205 = vpop.f32.mrf.mxu0
        %v6206 = vadd.f32 %v5941, %v6205
        %v6207 = vpop.f32.mrf.mxu0
        %6208 = vmatprep.mubr.f32.mxu0 0.0
        %6209 = vmatmul.mubr.f32.gmra.mxu0 %v5609
        %v6210 = vpop.f32.mrf.mxu0
        %v6211 = vadd.f32 %v5946, %v6210
        %v6212 = vpop.f32.mrf.mxu0
        %6213 = vdwg.mxu0
        %v6214 = vld [vmem:[#allocation3 + $0x16] sm:$0xff]
        %v6215 = vld [vmem:[#allocation3 + $0x1e] sm:$0xff]
        %v6216 = vld [vmem:[#allocation3 + $0x26] sm:$0xff]
        %v6217 = vld [vmem:[#allocation3 + $0x2e] sm:$0xff]
        %v6218 = vld [vmem:[#allocation3 + $0x36] sm:$0xff]
        %v6219 = vld [vmem:[#allocation3 + $0x3e] sm:$0xff]
        %v6220 = vld [vmem:[#allocation3 + $0x46] sm:$0xff]
        %v6221 = vld [vmem:[#allocation3 + $0x4e] sm:$0xff]
        %v6222 = vld [vmem:[#allocation3 + $0x56] sm:$0xff]
        %v6223 = vld [vmem:[#allocation3 + $0x5e] sm:$0xff]
        %v6224 = vld [vmem:[#allocation3 + $0x66] sm:$0xff]
        %v6225 = vld [vmem:[#allocation3 + $0x6e] sm:$0xff]
        %v6226 = vld [vmem:[#allocation3 + $0x76] sm:$0xff]
        %v6227 = vld [vmem:[#allocation3 + $0x7e] sm:$0xff]
        %v6228 = vld [vmem:[#allocation3 + $0x86] sm:$0xff]
        %v6229 = vld [vmem:[#allocation3 + $0x8e] sm:$0xff]
        %v6230 = vld [vmem:[#allocation3 + $0x96] sm:$0xff]
        %v6231 = vld [vmem:[#allocation3 + $0x9e] sm:$0xff]
        %v6232 = vld [vmem:[#allocation3 + $0xa6] sm:$0xff]
        %v6233 = vld [vmem:[#allocation3 + $0xae] sm:$0xff]
        %v6234 = vld [vmem:[#allocation3 + $0xb6] sm:$0xff]
        %v6235 = vld [vmem:[#allocation3 + $0xbe] sm:$0xff]
        %v6236 = vld [vmem:[#allocation3 + $0xc6] sm:$0xff]
        %v6237 = vld [vmem:[#allocation3 + $0xce] sm:$0xff]
        %v6238 = vld [vmem:[#allocation3 + $0xd6] sm:$0xff]
        %v6239 = vld [vmem:[#allocation3 + $0xde] sm:$0xff]
        %v6240 = vld [vmem:[#allocation3 + $0xe6] sm:$0xff]
        %v6241 = vld [vmem:[#allocation3 + $0xee] sm:$0xff]
        %v6242 = vld [vmem:[#allocation3 + $0xf6] sm:$0xff]
        %v6243 = vld [vmem:[#allocation3 + $0xfe] sm:$0xff]
        %v6244 = vld [vmem:[#allocation3 + $0x106] sm:$0xff]
        %v6245 = vld [vmem:[#allocation3 + $0x10e] sm:$0xff]
        %v6246 = vld [vmem:[#allocation3 + $0x116] sm:$0xff]
        %v6247 = vld [vmem:[#allocation3 + $0x11e] sm:$0xff]
        %v6248 = vld [vmem:[#allocation3 + $0x126] sm:$0xff]
        %v6249 = vld [vmem:[#allocation3 + $0x12e] sm:$0xff]
        %v6250 = vld [vmem:[#allocation3 + $0x136] sm:$0xff]
        %v6251 = vld [vmem:[#allocation3 + $0x13e] sm:$0xff]
        %v6252 = vld [vmem:[#allocation3 + $0x146] sm:$0xff]
        %v6253 = vld [vmem:[#allocation3 + $0x14e] sm:$0xff]
        %s6254 = scalar_lea.vmem [#allocation9], 640
        %v6255 = vld [vmem:[%s6254] sm:$0xff]
        %v6256 = vld [vmem:[%s6254 + $0x8] sm:$0xff]
        %v6257 = vld [vmem:[%s6254 + $0x10] sm:$0xff]
        %v6258 = vld [vmem:[%s6254 + $0x18] sm:$0xff]
        %v6259 = vld [vmem:[%s6254 + $0x20] sm:$0xff]
        %v6260 = vld [vmem:[%s6254 + $0x28] sm:$0xff]
        %v6261 = vld [vmem:[%s6254 + $0x30] sm:$0xff]
        %v6262 = vld [vmem:[%s6254 + $0x38] sm:$0xff]
        %v6263 = vld [vmem:[%s6254 + $0x40] sm:$0xff]
        %v6264 = vld [vmem:[%s6254 + $0x48] sm:$0xff]
        %v6265 = vld [vmem:[%s6254 + $0x50] sm:$0xff]
        %v6266 = vld [vmem:[%s6254 + $0x58] sm:$0xff]
        %v6267 = vld [vmem:[%s6254 + $0x60] sm:$0xff]
        %v6268 = vld [vmem:[%s6254 + $0x68] sm:$0xff]
        %v6269 = vld [vmem:[%s6254 + $0x70] sm:$0xff]
        %v6270 = vld [vmem:[%s6254 + $0x78] sm:$0xff]
        %6271 = vmatprep.subr.mxu0 0.0
        %6272 = vmatpush1.msra.mxu0 %v6270
        %6273 = vmatprep.subr.mxu0 0.0
        %6274 = vmatpush1.msra.mxu0 %v6269
        %6275 = vmatprep.subr.mxu0 0.0
        %6276 = vmatpush1.msra.mxu0 %v6268
        %6277 = vmatprep.subr.mxu0 0.0
        %6278 = vmatpush1.msra.mxu0 %v6267
        %6279 = vmatprep.subr.mxu0 0.0
        %6280 = vmatpush1.msra.mxu0 %v6266
        %6281 = vmatprep.subr.mxu0 0.0
        %6282 = vmatpush1.msra.mxu0 %v6265
        %6283 = vmatprep.subr.mxu0 0.0
        %6284 = vmatpush1.msra.mxu0 %v6264
        %6285 = vmatprep.subr.mxu0 0.0
        %6286 = vmatpush1.msra.mxu0 %v6263
        %6287 = vmatprep.subr.mxu0 0.0
        %6288 = vmatpush1.msra.mxu0 %v6262
        %6289 = vmatprep.subr.mxu0 0.0
        %6290 = vmatpush1.msra.mxu0 %v6261
        %6291 = vmatprep.subr.mxu0 0.0
        %6292 = vmatpush1.msra.mxu0 %v6260
        %6293 = vmatprep.subr.mxu0 0.0
        %6294 = vmatpush1.msra.mxu0 %v6259
        %6295 = vmatprep.subr.mxu0 0.0
        %6296 = vmatpush1.msra.mxu0 %v6258
        %6297 = vmatprep.subr.mxu0 0.0
        %6298 = vmatpush1.msra.mxu0 %v6257
        %6299 = vmatprep.subr.mxu0 0.0
        %6300 = vmatpush1.msra.mxu0 %v6256
        %6301 = vmatprep.subr.mxu0 0.0
        %6302 = vmatpush1.msra.mxu0 %v6255
        %6303 = vmatprep.subr.mxu0 0.0
        %6304 = vmatpush2.msra.mxu0 0.0
        %6305 = vmatprep.subr.mxu0 0.0
        %6306 = vmatpush2.msra.mxu0 0.0
        %6307 = vmatprep.subr.mxu0 0.0
        %6308 = vmatpush2.msra.mxu0 0.0
        %6309 = vmatprep.subr.mxu0 0.0
        %6310 = vmatpush2.msra.mxu0 0.0
        %6311 = vmatprep.subr.mxu0 0.0
        %6312 = vmatpush2.msra.mxu0 0.0
        %6313 = vmatprep.subr.mxu0 0.0
        %6314 = vmatpush2.msra.mxu0 0.0
        %6315 = vmatprep.subr.mxu0 0.0
        %6316 = vmatpush2.msra.mxu0 0.0
        %6317 = vmatprep.subr.mxu0 0.0
        %6318 = vmatpush2.msra.mxu0 0.0
        %6319 = vmatprep.subr.mxu0 0.0
        %6320 = vmatpush2.msra.mxu0 0.0
        %6321 = vmatprep.subr.mxu0 0.0
        %6322 = vmatpush2.msra.mxu0 0.0
        %6323 = vmatprep.subr.mxu0 0.0
        %6324 = vmatpush2.msra.mxu0 0.0
        %6325 = vmatprep.subr.mxu0 0.0
        %6326 = vmatpush2.msra.mxu0 0.0
        %6327 = vmatprep.subr.mxu0 0.0
        %6328 = vmatpush2.msra.mxu0 0.0
        %6329 = vmatprep.subr.mxu0 0.0
        %6330 = vmatpush2.msra.mxu0 0.0
        %6331 = vmatprep.subr.mxu0 0.0
        %6332 = vmatpush2.msra.mxu0 0.0
        %6333 = vmatprep.subr.mxu0 0.0
        %6334 = vmatpush2.msra.mxu0 0.0
        %6335 = vmatprep.mubr.f32.mxu0 0.0
        %6336 = vmatmul.mubr.f32.gmra.mxu0 %v6214
        %v6337 = vpop.f32.mrf.mxu0
        %v6338 = vadd.f32 0.0, %v6337
        %v6339 = vpop.f32.mrf.mxu0
        %6340 = vmatprep.mubr.f32.mxu0 0.0
        %6341 = vmatmul.mubr.f32.gmra.mxu0 %v6215
        %v6342 = vpop.f32.mrf.mxu0
        %v6343 = vadd.f32 0.0, %v6342
        %v6344 = vpop.f32.mrf.mxu0
        %6345 = vmatprep.mubr.f32.mxu0 0.0
        %6346 = vmatmul.mubr.f32.gmra.mxu0 %v6216
        %v6347 = vpop.f32.mrf.mxu0
        %v6348 = vadd.f32 0.0, %v6347
        %v6349 = vpop.f32.mrf.mxu0
        %6350 = vmatprep.mubr.f32.mxu0 0.0
        %6351 = vmatmul.mubr.f32.gmra.mxu0 %v6217
        %v6352 = vpop.f32.mrf.mxu0
        %v6353 = vadd.f32 0.0, %v6352
        %v6354 = vpop.f32.mrf.mxu0
        %6355 = vmatprep.mubr.f32.mxu0 0.0
        %6356 = vmatmul.mubr.f32.gmra.mxu0 %v6218
        %v6357 = vpop.f32.mrf.mxu0
        %v6358 = vadd.f32 0.0, %v6357
        %v6359 = vpop.f32.mrf.mxu0
        %6360 = vmatprep.mubr.f32.mxu0 0.0
        %6361 = vmatmul.mubr.f32.gmra.mxu0 %v6219
        %v6362 = vpop.f32.mrf.mxu0
        %v6363 = vadd.f32 0.0, %v6362
        %v6364 = vpop.f32.mrf.mxu0
        %6365 = vmatprep.mubr.f32.mxu0 0.0
        %6366 = vmatmul.mubr.f32.gmra.mxu0 %v6220
        %v6367 = vpop.f32.mrf.mxu0
        %v6368 = vadd.f32 0.0, %v6367
        %v6369 = vpop.f32.mrf.mxu0
        %6370 = vmatprep.mubr.f32.mxu0 0.0
        %6371 = vmatmul.mubr.f32.gmra.mxu0 %v6221
        %v6372 = vpop.f32.mrf.mxu0
        %v6373 = vadd.f32 0.0, %v6372
        %v6374 = vpop.f32.mrf.mxu0
        %6375 = vmatprep.mubr.f32.mxu0 0.0
        %6376 = vmatmul.mubr.f32.gmra.mxu0 %v6222
        %v6377 = vpop.f32.mrf.mxu0
        %v6378 = vadd.f32 0.0, %v6377
        %v6379 = vpop.f32.mrf.mxu0
        %6380 = vmatprep.mubr.f32.mxu0 0.0
        %6381 = vmatmul.mubr.f32.gmra.mxu0 %v6223
        %v6382 = vpop.f32.mrf.mxu0
        %v6383 = vadd.f32 0.0, %v6382
        %v6384 = vpop.f32.mrf.mxu0
        %6385 = vmatprep.mubr.f32.mxu0 0.0
        %6386 = vmatmul.mubr.f32.gmra.mxu0 %v6224
        %v6387 = vpop.f32.mrf.mxu0
        %v6388 = vadd.f32 0.0, %v6387
        %v6389 = vpop.f32.mrf.mxu0
        %6390 = vmatprep.mubr.f32.mxu0 0.0
        %6391 = vmatmul.mubr.f32.gmra.mxu0 %v6225
        %v6392 = vpop.f32.mrf.mxu0
        %v6393 = vadd.f32 0.0, %v6392
        %v6394 = vpop.f32.mrf.mxu0
        %6395 = vmatprep.mubr.f32.mxu0 0.0
        %6396 = vmatmul.mubr.f32.gmra.mxu0 %v6226
        %v6397 = vpop.f32.mrf.mxu0
        %v6398 = vadd.f32 0.0, %v6397
        %v6399 = vpop.f32.mrf.mxu0
        %6400 = vmatprep.mubr.f32.mxu0 0.0
        %6401 = vmatmul.mubr.f32.gmra.mxu0 %v6227
        %v6402 = vpop.f32.mrf.mxu0
        %v6403 = vadd.f32 0.0, %v6402
        %v6404 = vpop.f32.mrf.mxu0
        %6405 = vmatprep.mubr.f32.mxu0 0.0
        %6406 = vmatmul.mubr.f32.gmra.mxu0 %v6228
        %v6407 = vpop.f32.mrf.mxu0
        %v6408 = vadd.f32 0.0, %v6407
        %v6409 = vpop.f32.mrf.mxu0
        %6410 = vmatprep.mubr.f32.mxu0 0.0
        %6411 = vmatmul.mubr.f32.gmra.mxu0 %v6229
        %v6412 = vpop.f32.mrf.mxu0
        %v6413 = vadd.f32 0.0, %v6412
        %v6414 = vpop.f32.mrf.mxu0
        %6415 = vmatprep.mubr.f32.mxu0 0.0
        %6416 = vmatmul.mubr.f32.gmra.mxu0 %v6230
        %v6417 = vpop.f32.mrf.mxu0
        %v6418 = vadd.f32 0.0, %v6417
        %v6419 = vpop.f32.mrf.mxu0
        %6420 = vmatprep.mubr.f32.mxu0 0.0
        %6421 = vmatmul.mubr.f32.gmra.mxu0 %v6231
        %v6422 = vpop.f32.mrf.mxu0
        %v6423 = vadd.f32 0.0, %v6422
        %v6424 = vpop.f32.mrf.mxu0
        %6425 = vmatprep.mubr.f32.mxu0 0.0
        %6426 = vmatmul.mubr.f32.gmra.mxu0 %v6232
        %v6427 = vpop.f32.mrf.mxu0
        %v6428 = vadd.f32 0.0, %v6427
        %v6429 = vpop.f32.mrf.mxu0
        %6430 = vmatprep.mubr.f32.mxu0 0.0
        %6431 = vmatmul.mubr.f32.gmra.mxu0 %v6233
        %v6432 = vpop.f32.mrf.mxu0
        %v6433 = vadd.f32 0.0, %v6432
        %v6434 = vpop.f32.mrf.mxu0
        %6435 = vmatprep.mubr.f32.mxu0 0.0
        %6436 = vmatmul.mubr.f32.gmra.mxu0 %v6234
        %v6437 = vpop.f32.mrf.mxu0
        %v6438 = vadd.f32 0.0, %v6437
        %v6439 = vpop.f32.mrf.mxu0
        %6440 = vmatprep.mubr.f32.mxu0 0.0
        %6441 = vmatmul.mubr.f32.gmra.mxu0 %v6235
        %v6442 = vpop.f32.mrf.mxu0
        %v6443 = vadd.f32 0.0, %v6442
        %v6444 = vpop.f32.mrf.mxu0
        %6445 = vmatprep.mubr.f32.mxu0 0.0
        %6446 = vmatmul.mubr.f32.gmra.mxu0 %v6236
        %v6447 = vpop.f32.mrf.mxu0
        %v6448 = vadd.f32 0.0, %v6447
        %v6449 = vpop.f32.mrf.mxu0
        %6450 = vmatprep.mubr.f32.mxu0 0.0
        %6451 = vmatmul.mubr.f32.gmra.mxu0 %v6237
        %v6452 = vpop.f32.mrf.mxu0
        %v6453 = vadd.f32 0.0, %v6452
        %v6454 = vpop.f32.mrf.mxu0
        %6455 = vmatprep.mubr.f32.mxu0 0.0
        %6456 = vmatmul.mubr.f32.gmra.mxu0 %v6238
        %v6457 = vpop.f32.mrf.mxu0
        %v6458 = vadd.f32 0.0, %v6457
        %v6459 = vpop.f32.mrf.mxu0
        %6460 = vmatprep.mubr.f32.mxu0 0.0
        %6461 = vmatmul.mubr.f32.gmra.mxu0 %v6239
        %v6462 = vpop.f32.mrf.mxu0
        %v6463 = vadd.f32 0.0, %v6462
        %v6464 = vpop.f32.mrf.mxu0
        %6465 = vmatprep.mubr.f32.mxu0 0.0
        %6466 = vmatmul.mubr.f32.gmra.mxu0 %v6240
        %v6467 = vpop.f32.mrf.mxu0
        %v6468 = vadd.f32 0.0, %v6467
        %v6469 = vpop.f32.mrf.mxu0
        %6470 = vmatprep.mubr.f32.mxu0 0.0
        %6471 = vmatmul.mubr.f32.gmra.mxu0 %v6241
        %v6472 = vpop.f32.mrf.mxu0
        %v6473 = vadd.f32 0.0, %v6472
        %v6474 = vpop.f32.mrf.mxu0
        %6475 = vmatprep.mubr.f32.mxu0 0.0
        %6476 = vmatmul.mubr.f32.gmra.mxu0 %v6242
        %v6477 = vpop.f32.mrf.mxu0
        %v6478 = vadd.f32 0.0, %v6477
        %v6479 = vpop.f32.mrf.mxu0
        %6480 = vmatprep.mubr.f32.mxu0 0.0
        %6481 = vmatmul.mubr.f32.gmra.mxu0 %v6243
        %v6482 = vpop.f32.mrf.mxu0
        %v6483 = vadd.f32 0.0, %v6482
        %v6484 = vpop.f32.mrf.mxu0
        %6485 = vmatprep.mubr.f32.mxu0 0.0
        %6486 = vmatmul.mubr.f32.gmra.mxu0 %v6244
        %v6487 = vpop.f32.mrf.mxu0
        %v6488 = vadd.f32 0.0, %v6487
        %v6489 = vpop.f32.mrf.mxu0
        %6490 = vmatprep.mubr.f32.mxu0 0.0
        %6491 = vmatmul.mubr.f32.gmra.mxu0 %v6245
        %v6492 = vpop.f32.mrf.mxu0
        %v6493 = vadd.f32 0.0, %v6492
        %v6494 = vpop.f32.mrf.mxu0
        %6495 = vmatprep.mubr.f32.mxu0 0.0
        %6496 = vmatmul.mubr.f32.gmra.mxu0 %v6246
        %v6497 = vpop.f32.mrf.mxu0
        %v6498 = vadd.f32 0.0, %v6497
        %v6499 = vpop.f32.mrf.mxu0
        %6500 = vmatprep.mubr.f32.mxu0 0.0
        %6501 = vmatmul.mubr.f32.gmra.mxu0 %v6247
        %v6502 = vpop.f32.mrf.mxu0
        %v6503 = vadd.f32 0.0, %v6502
        %v6504 = vpop.f32.mrf.mxu0
        %6505 = vmatprep.mubr.f32.mxu0 0.0
        %6506 = vmatmul.mubr.f32.gmra.mxu0 %v6248
        %v6507 = vpop.f32.mrf.mxu0
        %v6508 = vadd.f32 0.0, %v6507
        %v6509 = vpop.f32.mrf.mxu0
        %6510 = vmatprep.mubr.f32.mxu0 0.0
        %6511 = vmatmul.mubr.f32.gmra.mxu0 %v6249
        %v6512 = vpop.f32.mrf.mxu0
        %v6513 = vadd.f32 0.0, %v6512
        %v6514 = vpop.f32.mrf.mxu0
        %6515 = vmatprep.mubr.f32.mxu0 0.0
        %6516 = vmatmul.mubr.f32.gmra.mxu0 %v6250
        %v6517 = vpop.f32.mrf.mxu0
        %v6518 = vadd.f32 0.0, %v6517
        %v6519 = vpop.f32.mrf.mxu0
        %6520 = vmatprep.mubr.f32.mxu0 0.0
        %6521 = vmatmul.mubr.f32.gmra.mxu0 %v6251
        %v6522 = vpop.f32.mrf.mxu0
        %v6523 = vadd.f32 0.0, %v6522
        %v6524 = vpop.f32.mrf.mxu0
        %6525 = vmatprep.mubr.f32.mxu0 0.0
        %6526 = vmatmul.mubr.f32.gmra.mxu0 %v6252
        %v6527 = vpop.f32.mrf.mxu0
        %v6528 = vadd.f32 0.0, %v6527
        %v6529 = vpop.f32.mrf.mxu0
        %6530 = vmatprep.mubr.f32.mxu0 0.0
        %6531 = vmatmul.mubr.f32.gmra.mxu0 %v6253
        %v6532 = vpop.f32.mrf.mxu0
        %v6533 = vadd.f32 0.0, %v6532
        %v6534 = vpop.f32.mrf.mxu0
        %6535 = vdwg.mxu0
        %v6536 = vadd.f32 %v6016, %v6338
        %v6537 = vadd.f32 %v6021, %v6343
        %v6538 = vadd.f32 %v6026, %v6348
        %v6539 = vadd.f32 %v6031, %v6353
        %v6540 = vadd.f32 %v6036, %v6358
        %v6541 = vadd.f32 %v6041, %v6363
        %v6542 = vadd.f32 %v6046, %v6368
        %v6543 = vadd.f32 %v6051, %v6373
        %v6544 = vadd.f32 %v6056, %v6378
        %v6545 = vadd.f32 %v6061, %v6383
        %v6546 = vadd.f32 %v6066, %v6388
        %v6547 = vadd.f32 %v6071, %v6393
        %v6548 = vadd.f32 %v6076, %v6398
        %v6549 = vadd.f32 %v6081, %v6403
        %v6550 = vadd.f32 %v6086, %v6408
        %v6551 = vadd.f32 %v6091, %v6413
        %v6552 = vadd.f32 %v6096, %v6418
        %v6553 = vadd.f32 %v6101, %v6423
        %v6554 = vadd.f32 %v6106, %v6428
        %v6555 = vadd.f32 %v6111, %v6433
        %v6556 = vadd.f32 %v6116, %v6438
        %v6557 = vadd.f32 %v6121, %v6443
        %v6558 = vadd.f32 %v6126, %v6448
        %v6559 = vadd.f32 %v6131, %v6453
        %v6560 = vadd.f32 %v6136, %v6458
        %v6561 = vadd.f32 %v6141, %v6463
        %v6562 = vadd.f32 %v6146, %v6468
        %v6563 = vadd.f32 %v6151, %v6473
        %v6564 = vadd.f32 %v6156, %v6478
        %v6565 = vadd.f32 %v6161, %v6483
        %v6566 = vadd.f32 %v6166, %v6488
        %v6567 = vadd.f32 %v6171, %v6493
        %v6568 = vadd.f32 %v6176, %v6498
        %v6569 = vadd.f32 %v6181, %v6503
        %v6570 = vadd.f32 %v6186, %v6508
        %v6571 = vadd.f32 %v6191, %v6513
        %v6572 = vadd.f32 %v6196, %v6518
        %v6573 = vadd.f32 %v6201, %v6523
        %v6574 = vadd.f32 %v6206, %v6528
        %v6575 = vadd.f32 %v6211, %v6533
        %v6576 = vld [vmem:[%s352] sm:$0xff]
        %v6577 = vld [vmem:[%s352 + $0x8] sm:$0xff]
        %v6578 = vld [vmem:[%s352 + $0x10] sm:$0xff]
        %v6579 = vld [vmem:[%s352 + $0x18] sm:$0xff]
        %v6580 = vld [vmem:[%s352 + $0x20] sm:$0xff]
        %v6581 = vld [vmem:[%s352 + $0x28] sm:$0xff]
        %v6582 = vld [vmem:[%s352 + $0x30] sm:$0xff]
        %v6583 = vld [vmem:[%s352 + $0x38] sm:$0xff]
        %v6584 = vld [vmem:[%s352 + $0x40] sm:$0xff]
        %v6585 = vld [vmem:[%s352 + $0x48] sm:$0xff]
        %v6586 = vld [vmem:[%s352 + $0x50] sm:$0xff]
        %v6587 = vld [vmem:[%s352 + $0x58] sm:$0xff]
        %v6588 = vld [vmem:[%s352 + $0x60] sm:$0xff]
        %v6589 = vld [vmem:[%s352 + $0x68] sm:$0xff]
        %v6590 = vld [vmem:[%s352 + $0x70] sm:$0xff]
        %v6591 = vld [vmem:[%s352 + $0x78] sm:$0xff]
        %v6592 = vld [vmem:[%s352 + $0x80] sm:$0xff]
        %v6593 = vld [vmem:[%s352 + $0x88] sm:$0xff]
        %v6594 = vld [vmem:[%s352 + $0x90] sm:$0xff]
        %v6595 = vld [vmem:[%s352 + $0x98] sm:$0xff]
        %v6596 = vld [vmem:[%s352 + $0xa0] sm:$0xff]
        %v6597 = vld [vmem:[%s352 + $0xa8] sm:$0xff]
        %v6598 = vld [vmem:[%s352 + $0xb0] sm:$0xff]
        %v6599 = vld [vmem:[%s352 + $0xb8] sm:$0xff]
        %v6600 = vld [vmem:[%s352 + $0xc0] sm:$0xff]
        %v6601 = vld [vmem:[%s352 + $0xc8] sm:$0xff]
        %v6602 = vld [vmem:[%s352 + $0xd0] sm:$0xff]
        %v6603 = vld [vmem:[%s352 + $0xd8] sm:$0xff]
        %v6604 = vld [vmem:[%s352 + $0xe0] sm:$0xff]
        %v6605 = vld [vmem:[%s352 + $0xe8] sm:$0xff]
        %v6606 = vld [vmem:[%s352 + $0xf0] sm:$0xff]
        %v6607 = vld [vmem:[%s352 + $0xf8] sm:$0xff]
        %v6608 = vld [vmem:[%s352 + $0x100] sm:$0xff]
        %v6609 = vld [vmem:[%s352 + $0x108] sm:$0xff]
        %v6610 = vld [vmem:[%s352 + $0x110] sm:$0xff]
        %v6611 = vld [vmem:[%s352 + $0x118] sm:$0xff]
        %v6612 = vld [vmem:[%s352 + $0x120] sm:$0xff]
        %v6613 = vld [vmem:[%s352 + $0x128] sm:$0xff]
        %v6614 = vld [vmem:[%s352 + $0x130] sm:$0xff]
        %v6615 = vld [vmem:[%s352 + $0x138] sm:$0xff]
        %v6616 = vadd.f32 %v6576, %v6536
        %v6617 = vadd.f32 %v6577, %v6537
        %v6618 = vadd.f32 %v6578, %v6538
        %v6619 = vadd.f32 %v6579, %v6539
        %v6620 = vadd.f32 %v6580, %v6540
        %v6621 = vadd.f32 %v6581, %v6541
        %v6622 = vadd.f32 %v6582, %v6542
        %v6623 = vadd.f32 %v6583, %v6543
        %v6624 = vadd.f32 %v6584, %v6544
        %v6625 = vadd.f32 %v6585, %v6545
        %v6626 = vadd.f32 %v6586, %v6546
        %v6627 = vadd.f32 %v6587, %v6547
        %v6628 = vadd.f32 %v6588, %v6548
        %v6629 = vadd.f32 %v6589, %v6549
        %v6630 = vadd.f32 %v6590, %v6550
        %v6631 = vadd.f32 %v6591, %v6551
        %v6632 = vadd.f32 %v6592, %v6552
        %v6633 = vadd.f32 %v6593, %v6553
        %v6634 = vadd.f32 %v6594, %v6554
        %v6635 = vadd.f32 %v6595, %v6555
        %v6636 = vadd.f32 %v6596, %v6556
        %v6637 = vadd.f32 %v6597, %v6557
        %v6638 = vadd.f32 %v6598, %v6558
        %v6639 = vadd.f32 %v6599, %v6559
        %v6640 = vadd.f32 %v6600, %v6560
        %v6641 = vadd.f32 %v6601, %v6561
        %v6642 = vadd.f32 %v6602, %v6562
        %v6643 = vadd.f32 %v6603, %v6563
        %v6644 = vadd.f32 %v6604, %v6564
        %v6645 = vadd.f32 %v6605, %v6565
        %v6646 = vadd.f32 %v6606, %v6566
        %v6647 = vadd.f32 %v6607, %v6567
        %v6648 = vadd.f32 %v6608, %v6568
        %v6649 = vadd.f32 %v6609, %v6569
        %v6650 = vadd.f32 %v6610, %v6570
        %v6651 = vadd.f32 %v6611, %v6571
        %v6652 = vadd.f32 %v6612, %v6572
        %v6653 = vadd.f32 %v6613, %v6573
        %v6654 = vadd.f32 %v6614, %v6574
        %v6655 = vadd.f32 %v6615, %v6575
        %6656 = vst [vmem:[%s352] sm:$0xff] %v6616
        %6657 = vst [vmem:[%s352 + $0x8] sm:$0xff] %v6617
        %6658 = vst [vmem:[%s352 + $0x10] sm:$0xff] %v6618
        %6659 = vst [vmem:[%s352 + $0x18] sm:$0xff] %v6619
        %6660 = vst [vmem:[%s352 + $0x20] sm:$0xff] %v6620
        %6661 = vst [vmem:[%s352 + $0x28] sm:$0xff] %v6621
        %6662 = vst [vmem:[%s352 + $0x30] sm:$0xff] %v6622
        %6663 = vst [vmem:[%s352 + $0x38] sm:$0xff] %v6623
        %6664 = vst [vmem:[%s352 + $0x40] sm:$0xff] %v6624
        %6665 = vst [vmem:[%s352 + $0x48] sm:$0xff] %v6625
        %6666 = vst [vmem:[%s352 + $0x50] sm:$0xff] %v6626
        %6667 = vst [vmem:[%s352 + $0x58] sm:$0xff] %v6627
        %6668 = vst [vmem:[%s352 + $0x60] sm:$0xff] %v6628
        %6669 = vst [vmem:[%s352 + $0x68] sm:$0xff] %v6629
        %6670 = vst [vmem:[%s352 + $0x70] sm:$0xff] %v6630
        %6671 = vst [vmem:[%s352 + $0x78] sm:$0xff] %v6631
        %6672 = vst [vmem:[%s352 + $0x80] sm:$0xff] %v6632
        %6673 = vst [vmem:[%s352 + $0x88] sm:$0xff] %v6633
        %6674 = vst [vmem:[%s352 + $0x90] sm:$0xff] %v6634
        %6675 = vst [vmem:[%s352 + $0x98] sm:$0xff] %v6635
        %6676 = vst [vmem:[%s352 + $0xa0] sm:$0xff] %v6636
        %6677 = vst [vmem:[%s352 + $0xa8] sm:$0xff] %v6637
        %6678 = vst [vmem:[%s352 + $0xb0] sm:$0xff] %v6638
        %6679 = vst [vmem:[%s352 + $0xb8] sm:$0xff] %v6639
        %6680 = vst [vmem:[%s352 + $0xc0] sm:$0xff] %v6640
        %6681 = vst [vmem:[%s352 + $0xc8] sm:$0xff] %v6641
        %6682 = vst [vmem:[%s352 + $0xd0] sm:$0xff] %v6642
        %6683 = vst [vmem:[%s352 + $0xd8] sm:$0xff] %v6643
        %6684 = vst [vmem:[%s352 + $0xe0] sm:$0xff] %v6644
        %6685 = vst [vmem:[%s352 + $0xe8] sm:$0xff] %v6645
        %6686 = vst [vmem:[%s352 + $0xf0] sm:$0xff] %v6646
        %6687 = vst [vmem:[%s352 + $0xf8] sm:$0xff] %v6647
        %6688 = vst [vmem:[%s352 + $0x100] sm:$0xff] %v6648
        %6689 = vst [vmem:[%s352 + $0x108] sm:$0xff] %v6649
        %6690 = vst [vmem:[%s352 + $0x110] sm:$0xff] %v6650
        %6691 = vst [vmem:[%s352 + $0x118] sm:$0xff] %v6651
        %6692 = vst [vmem:[%s352 + $0x120] sm:$0xff] %v6652
        %6693 = vst [vmem:[%s352 + $0x128] sm:$0xff] %v6653
        %6694 = vst [vmem:[%s352 + $0x130] sm:$0xff] %v6654
        %6695 = vst [vmem:[%s352 + $0x138] sm:$0xff] %v6655
        %v6696 = vld [vmem:[#allocation3 + $0x28] sm:$0xff]
        %v6697 = vld [vmem:[#allocation3 + $0x30] sm:$0xff]
        %v6698 = vld [vmem:[#allocation3 + $0x38] sm:$0xff]
        %v6699 = vld [vmem:[#allocation3 + $0x40] sm:$0xff]
        %v6700 = vld [vmem:[#allocation3 + $0x48] sm:$0xff]
        %v6701 = vld [vmem:[#allocation3 + $0x50] sm:$0xff]
        %v6702 = vld [vmem:[#allocation3 + $0x58] sm:$0xff]
        %v6703 = vld [vmem:[#allocation3 + $0x60] sm:$0xff]
        %v6704 = vld [vmem:[#allocation3 + $0x68] sm:$0xff]
        %v6705 = vld [vmem:[#allocation3 + $0x70] sm:$0xff]
        %v6706 = vld [vmem:[#allocation3 + $0x78] sm:$0xff]
        %v6707 = vld [vmem:[#allocation3 + $0x80] sm:$0xff]
        %v6708 = vld [vmem:[#allocation3 + $0x88] sm:$0xff]
        %v6709 = vld [vmem:[#allocation3 + $0x90] sm:$0xff]
        %v6710 = vld [vmem:[#allocation3 + $0x98] sm:$0xff]
        %v6711 = vld [vmem:[#allocation3 + $0xa0] sm:$0xff]
        %v6712 = vld [vmem:[#allocation3 + $0xa8] sm:$0xff]
        %v6713 = vld [vmem:[#allocation3 + $0xb0] sm:$0xff]
        %v6714 = vld [vmem:[#allocation3 + $0xb8] sm:$0xff]
        %v6715 = vld [vmem:[#allocation3 + $0xc0] sm:$0xff]
        %v6716 = vld [vmem:[#allocation3 + $0xc8] sm:$0xff]
        %v6717 = vld [vmem:[#allocation3 + $0xd0] sm:$0xff]
        %v6718 = vld [vmem:[#allocation3 + $0xd8] sm:$0xff]
        %v6719 = vld [vmem:[#allocation3 + $0xe0] sm:$0xff]
        %v6720 = vld [vmem:[#allocation3 + $0xe8] sm:$0xff]
        %v6721 = vld [vmem:[#allocation3 + $0xf0] sm:$0xff]
        %v6722 = vld [vmem:[#allocation3 + $0xf8] sm:$0xff]
        %v6723 = vld [vmem:[#allocation3 + $0x100] sm:$0xff]
        %v6724 = vld [vmem:[#allocation3 + $0x108] sm:$0xff]
        %v6725 = vld [vmem:[#allocation3 + $0x110] sm:$0xff]
        %v6726 = vld [vmem:[#allocation3 + $0x118] sm:$0xff]
        %v6727 = vld [vmem:[#allocation3 + $0x120] sm:$0xff]
        %v6728 = vld [vmem:[#allocation3 + $0x128] sm:$0xff]
        %v6729 = vld [vmem:[#allocation3 + $0x130] sm:$0xff]
        %v6730 = vld [vmem:[#allocation3 + $0x138] sm:$0xff]
        %v6731 = vld [vmem:[#allocation3 + $0x140] sm:$0xff]
        %v6732 = vld [vmem:[#allocation3 + $0x148] sm:$0xff]
        %v6733 = vld [vmem:[#allocation3 + $0x150] sm:$0xff]
        %v6734 = vld [vmem:[#allocation3 + $0x158] sm:$0xff]
        %v6735 = vld [vmem:[#allocation3 + $0x160] sm:$0xff]
        %s6736 = scalar_lea.vmem [#allocation9], 768
        %v6737 = vld [vmem:[%s6736] sm:$0xff]
        %v6738 = vld [vmem:[%s6736 + $0x8] sm:$0xff]
        %v6739 = vld [vmem:[%s6736 + $0x10] sm:$0xff]
        %v6740 = vld [vmem:[%s6736 + $0x18] sm:$0xff]
        %v6741 = vld [vmem:[%s6736 + $0x20] sm:$0xff]
        %v6742 = vld [vmem:[%s6736 + $0x28] sm:$0xff]
        %v6743 = vld [vmem:[%s6736 + $0x30] sm:$0xff]
        %v6744 = vld [vmem:[%s6736 + $0x38] sm:$0xff]
        %v6745 = vld [vmem:[%s6736 + $0x40] sm:$0xff]
        %v6746 = vld [vmem:[%s6736 + $0x48] sm:$0xff]
        %v6747 = vld [vmem:[%s6736 + $0x50] sm:$0xff]
        %v6748 = vld [vmem:[%s6736 + $0x58] sm:$0xff]
        %v6749 = vld [vmem:[%s6736 + $0x60] sm:$0xff]
        %v6750 = vld [vmem:[%s6736 + $0x68] sm:$0xff]
        %v6751 = vld [vmem:[%s6736 + $0x70] sm:$0xff]
        %v6752 = vld [vmem:[%s6736 + $0x78] sm:$0xff]
        %v6753 = vld [vmem:[#allocation3 + $0x29] sm:$0xff]
        %v6754 = vld [vmem:[#allocation3 + $0x31] sm:$0xff]
        %v6755 = vld [vmem:[#allocation3 + $0x39] sm:$0xff]
        %v6756 = vld [vmem:[#allocation3 + $0x41] sm:$0xff]
        %v6757 = vld [vmem:[#allocation3 + $0x49] sm:$0xff]
        %v6758 = vld [vmem:[#allocation3 + $0x51] sm:$0xff]
        %v6759 = vld [vmem:[#allocation3 + $0x59] sm:$0xff]
        %v6760 = vld [vmem:[#allocation3 + $0x61] sm:$0xff]
        %v6761 = vld [vmem:[#allocation3 + $0x69] sm:$0xff]
        %v6762 = vld [vmem:[#allocation3 + $0x71] sm:$0xff]
        %v6763 = vld [vmem:[#allocation3 + $0x79] sm:$0xff]
        %v6764 = vld [vmem:[#allocation3 + $0x81] sm:$0xff]
        %v6765 = vld [vmem:[#allocation3 + $0x89] sm:$0xff]
        %v6766 = vld [vmem:[#allocation3 + $0x91] sm:$0xff]
        %v6767 = vld [vmem:[#allocation3 + $0x99] sm:$0xff]
        %v6768 = vld [vmem:[#allocation3 + $0xa1] sm:$0xff]
        %v6769 = vld [vmem:[#allocation3 + $0xa9] sm:$0xff]
        %v6770 = vld [vmem:[#allocation3 + $0xb1] sm:$0xff]
        %v6771 = vld [vmem:[#allocation3 + $0xb9] sm:$0xff]
        %v6772 = vld [vmem:[#allocation3 + $0xc1] sm:$0xff]
        %v6773 = vld [vmem:[#allocation3 + $0xc9] sm:$0xff]
        %v6774 = vld [vmem:[#allocation3 + $0xd1] sm:$0xff]
        %v6775 = vld [vmem:[#allocation3 + $0xd9] sm:$0xff]
        %v6776 = vld [vmem:[#allocation3 + $0xe1] sm:$0xff]
        %v6777 = vld [vmem:[#allocation3 + $0xe9] sm:$0xff]
        %v6778 = vld [vmem:[#allocation3 + $0xf1] sm:$0xff]
        %v6779 = vld [vmem:[#allocation3 + $0xf9] sm:$0xff]
        %v6780 = vld [vmem:[#allocation3 + $0x101] sm:$0xff]
        %v6781 = vld [vmem:[#allocation3 + $0x109] sm:$0xff]
        %v6782 = vld [vmem:[#allocation3 + $0x111] sm:$0xff]
        %v6783 = vld [vmem:[#allocation3 + $0x119] sm:$0xff]
        %v6784 = vld [vmem:[#allocation3 + $0x121] sm:$0xff]
        %v6785 = vld [vmem:[#allocation3 + $0x129] sm:$0xff]
        %v6786 = vld [vmem:[#allocation3 + $0x131] sm:$0xff]
        %v6787 = vld [vmem:[#allocation3 + $0x139] sm:$0xff]
        %v6788 = vld [vmem:[#allocation3 + $0x141] sm:$0xff]
        %v6789 = vld [vmem:[#allocation3 + $0x149] sm:$0xff]
        %v6790 = vld [vmem:[#allocation3 + $0x151] sm:$0xff]
        %v6791 = vld [vmem:[#allocation3 + $0x159] sm:$0xff]
        %v6792 = vld [vmem:[#allocation3 + $0x161] sm:$0xff]
        %s6793 = scalar_lea.vmem [#allocation9], 896
        %v6794 = vld [vmem:[%s6793] sm:$0xff]
        %v6795 = vld [vmem:[%s6793 + $0x8] sm:$0xff]
        %v6796 = vld [vmem:[%s6793 + $0x10] sm:$0xff]
        %v6797 = vld [vmem:[%s6793 + $0x18] sm:$0xff]
        %v6798 = vld [vmem:[%s6793 + $0x20] sm:$0xff]
        %v6799 = vld [vmem:[%s6793 + $0x28] sm:$0xff]
        %v6800 = vld [vmem:[%s6793 + $0x30] sm:$0xff]
        %v6801 = vld [vmem:[%s6793 + $0x38] sm:$0xff]
        %v6802 = vld [vmem:[%s6793 + $0x40] sm:$0xff]
        %v6803 = vld [vmem:[%s6793 + $0x48] sm:$0xff]
        %v6804 = vld [vmem:[%s6793 + $0x50] sm:$0xff]
        %v6805 = vld [vmem:[%s6793 + $0x58] sm:$0xff]
        %v6806 = vld [vmem:[%s6793 + $0x60] sm:$0xff]
        %v6807 = vld [vmem:[%s6793 + $0x68] sm:$0xff]
        %v6808 = vld [vmem:[%s6793 + $0x70] sm:$0xff]
        %v6809 = vld [vmem:[%s6793 + $0x78] sm:$0xff]
        %6810 = vmatprep.subr.mxu0 0.0
        %6811 = vmatpush1.msra.mxu0 %v6809
        %6812 = vmatprep.subr.mxu0 0.0
        %6813 = vmatpush1.msra.mxu0 %v6808
        %6814 = vmatprep.subr.mxu0 0.0
        %6815 = vmatpush1.msra.mxu0 %v6807
        %6816 = vmatprep.subr.mxu0 0.0
        %6817 = vmatpush1.msra.mxu0 %v6806
        %6818 = vmatprep.subr.mxu0 0.0
        %6819 = vmatpush1.msra.mxu0 %v6805
        %6820 = vmatprep.subr.mxu0 0.0
        %6821 = vmatpush1.msra.mxu0 %v6804
        %6822 = vmatprep.subr.mxu0 0.0
        %6823 = vmatpush1.msra.mxu0 %v6803
        %6824 = vmatprep.subr.mxu0 0.0
        %6825 = vmatpush1.msra.mxu0 %v6802
        %6826 = vmatprep.subr.mxu0 0.0
        %6827 = vmatpush1.msra.mxu0 %v6801
        %6828 = vmatprep.subr.mxu0 0.0
        %6829 = vmatpush1.msra.mxu0 %v6800
        %6830 = vmatprep.subr.mxu0 0.0
        %6831 = vmatpush1.msra.mxu0 %v6799
        %6832 = vmatprep.subr.mxu0 0.0
        %6833 = vmatpush1.msra.mxu0 %v6798
        %6834 = vmatprep.subr.mxu0 0.0
        %6835 = vmatpush1.msra.mxu0 %v6797
        %6836 = vmatprep.subr.mxu0 0.0
        %6837 = vmatpush1.msra.mxu0 %v6796
        %6838 = vmatprep.subr.mxu0 0.0
        %6839 = vmatpush1.msra.mxu0 %v6795
        %6840 = vmatprep.subr.mxu0 0.0
        %6841 = vmatpush1.msra.mxu0 %v6794
        %6842 = vmatprep.subr.mxu0 0.0
        %6843 = vmatpush2.msra.mxu0 0.0
        %6844 = vmatprep.subr.mxu0 0.0
        %6845 = vmatpush2.msra.mxu0 0.0
        %6846 = vmatprep.subr.mxu0 0.0
        %6847 = vmatpush2.msra.mxu0 0.0
        %6848 = vmatprep.subr.mxu0 0.0
        %6849 = vmatpush2.msra.mxu0 0.0
        %6850 = vmatprep.subr.mxu0 0.0
        %6851 = vmatpush2.msra.mxu0 0.0
        %6852 = vmatprep.subr.mxu0 0.0
        %6853 = vmatpush2.msra.mxu0 0.0
        %6854 = vmatprep.subr.mxu0 0.0
        %6855 = vmatpush2.msra.mxu0 0.0
        %6856 = vmatprep.subr.mxu0 0.0
        %6857 = vmatpush2.msra.mxu0 0.0
        %6858 = vmatprep.subr.mxu0 0.0
        %6859 = vmatpush2.msra.mxu0 0.0
        %6860 = vmatprep.subr.mxu0 0.0
        %6861 = vmatpush2.msra.mxu0 0.0
        %6862 = vmatprep.subr.mxu0 0.0
        %6863 = vmatpush2.msra.mxu0 0.0
        %6864 = vmatprep.subr.mxu0 0.0
        %6865 = vmatpush2.msra.mxu0 0.0
        %6866 = vmatprep.subr.mxu0 0.0
        %6867 = vmatpush2.msra.mxu0 0.0
        %6868 = vmatprep.subr.mxu0 0.0
        %6869 = vmatpush2.msra.mxu0 0.0
        %6870 = vmatprep.subr.mxu0 0.0
        %6871 = vmatpush2.msra.mxu0 0.0
        %6872 = vmatprep.subr.mxu0 0.0
        %6873 = vmatpush2.msra.mxu0 0.0
        %6874 = vmatprep.mubr.f32.mxu0 0.0
        %6875 = vmatmul.mubr.f32.gmra.mxu0 %v6753
        %v6876 = vpop.f32.mrf.mxu0
        %v6877 = vadd.f32 0.0, %v6876
        %v6878 = vpop.f32.mrf.mxu0
        %6879 = vmatprep.mubr.f32.mxu0 0.0
        %6880 = vmatmul.mubr.f32.gmra.mxu0 %v6754
        %v6881 = vpop.f32.mrf.mxu0
        %v6882 = vadd.f32 0.0, %v6881
        %v6883 = vpop.f32.mrf.mxu0
        %6884 = vmatprep.mubr.f32.mxu0 0.0
        %6885 = vmatmul.mubr.f32.gmra.mxu0 %v6755
        %v6886 = vpop.f32.mrf.mxu0
        %v6887 = vadd.f32 0.0, %v6886
        %v6888 = vpop.f32.mrf.mxu0
        %6889 = vmatprep.mubr.f32.mxu0 0.0
        %6890 = vmatmul.mubr.f32.gmra.mxu0 %v6756
        %v6891 = vpop.f32.mrf.mxu0
        %v6892 = vadd.f32 0.0, %v6891
        %v6893 = vpop.f32.mrf.mxu0
        %6894 = vmatprep.mubr.f32.mxu0 0.0
        %6895 = vmatmul.mubr.f32.gmra.mxu0 %v6757
        %v6896 = vpop.f32.mrf.mxu0
        %v6897 = vadd.f32 0.0, %v6896
        %v6898 = vpop.f32.mrf.mxu0
        %6899 = vmatprep.mubr.f32.mxu0 0.0
        %6900 = vmatmul.mubr.f32.gmra.mxu0 %v6758
        %v6901 = vpop.f32.mrf.mxu0
        %v6902 = vadd.f32 0.0, %v6901
        %v6903 = vpop.f32.mrf.mxu0
        %6904 = vmatprep.mubr.f32.mxu0 0.0
        %6905 = vmatmul.mubr.f32.gmra.mxu0 %v6759
        %v6906 = vpop.f32.mrf.mxu0
        %v6907 = vadd.f32 0.0, %v6906
        %v6908 = vpop.f32.mrf.mxu0
        %6909 = vmatprep.mubr.f32.mxu0 0.0
        %6910 = vmatmul.mubr.f32.gmra.mxu0 %v6760
        %v6911 = vpop.f32.mrf.mxu0
        %v6912 = vadd.f32 0.0, %v6911
        %v6913 = vpop.f32.mrf.mxu0
        %6914 = vmatprep.mubr.f32.mxu0 0.0
        %6915 = vmatmul.mubr.f32.gmra.mxu0 %v6761
        %v6916 = vpop.f32.mrf.mxu0
        %v6917 = vadd.f32 0.0, %v6916
        %v6918 = vpop.f32.mrf.mxu0
        %6919 = vmatprep.mubr.f32.mxu0 0.0
        %6920 = vmatmul.mubr.f32.gmra.mxu0 %v6762
        %v6921 = vpop.f32.mrf.mxu0
        %v6922 = vadd.f32 0.0, %v6921
        %v6923 = vpop.f32.mrf.mxu0
        %6924 = vmatprep.mubr.f32.mxu0 0.0
        %6925 = vmatmul.mubr.f32.gmra.mxu0 %v6763
        %v6926 = vpop.f32.mrf.mxu0
        %v6927 = vadd.f32 0.0, %v6926
        %v6928 = vpop.f32.mrf.mxu0
        %6929 = vmatprep.mubr.f32.mxu0 0.0
        %6930 = vmatmul.mubr.f32.gmra.mxu0 %v6764
        %v6931 = vpop.f32.mrf.mxu0
        %v6932 = vadd.f32 0.0, %v6931
        %v6933 = vpop.f32.mrf.mxu0
        %6934 = vmatprep.mubr.f32.mxu0 0.0
        %6935 = vmatmul.mubr.f32.gmra.mxu0 %v6765
        %v6936 = vpop.f32.mrf.mxu0
        %v6937 = vadd.f32 0.0, %v6936
        %v6938 = vpop.f32.mrf.mxu0
        %6939 = vmatprep.mubr.f32.mxu0 0.0
        %6940 = vmatmul.mubr.f32.gmra.mxu0 %v6766
        %v6941 = vpop.f32.mrf.mxu0
        %v6942 = vadd.f32 0.0, %v6941
        %v6943 = vpop.f32.mrf.mxu0
        %6944 = vmatprep.mubr.f32.mxu0 0.0
        %6945 = vmatmul.mubr.f32.gmra.mxu0 %v6767
        %v6946 = vpop.f32.mrf.mxu0
        %v6947 = vadd.f32 0.0, %v6946
        %v6948 = vpop.f32.mrf.mxu0
        %6949 = vmatprep.mubr.f32.mxu0 0.0
        %6950 = vmatmul.mubr.f32.gmra.mxu0 %v6768
        %v6951 = vpop.f32.mrf.mxu0
        %v6952 = vadd.f32 0.0, %v6951
        %v6953 = vpop.f32.mrf.mxu0
        %6954 = vmatprep.mubr.f32.mxu0 0.0
        %6955 = vmatmul.mubr.f32.gmra.mxu0 %v6769
        %v6956 = vpop.f32.mrf.mxu0
        %v6957 = vadd.f32 0.0, %v6956
        %v6958 = vpop.f32.mrf.mxu0
        %6959 = vmatprep.mubr.f32.mxu0 0.0
        %6960 = vmatmul.mubr.f32.gmra.mxu0 %v6770
        %v6961 = vpop.f32.mrf.mxu0
        %v6962 = vadd.f32 0.0, %v6961
        %v6963 = vpop.f32.mrf.mxu0
        %6964 = vmatprep.mubr.f32.mxu0 0.0
        %6965 = vmatmul.mubr.f32.gmra.mxu0 %v6771
        %v6966 = vpop.f32.mrf.mxu0
        %v6967 = vadd.f32 0.0, %v6966
        %v6968 = vpop.f32.mrf.mxu0
        %6969 = vmatprep.mubr.f32.mxu0 0.0
        %6970 = vmatmul.mubr.f32.gmra.mxu0 %v6772
        %v6971 = vpop.f32.mrf.mxu0
        %v6972 = vadd.f32 0.0, %v6971
        %v6973 = vpop.f32.mrf.mxu0
        %6974 = vmatprep.mubr.f32.mxu0 0.0
        %6975 = vmatmul.mubr.f32.gmra.mxu0 %v6773
        %v6976 = vpop.f32.mrf.mxu0
        %v6977 = vadd.f32 0.0, %v6976
        %v6978 = vpop.f32.mrf.mxu0
        %6979 = vmatprep.mubr.f32.mxu0 0.0
        %6980 = vmatmul.mubr.f32.gmra.mxu0 %v6774
        %v6981 = vpop.f32.mrf.mxu0
        %v6982 = vadd.f32 0.0, %v6981
        %v6983 = vpop.f32.mrf.mxu0
        %6984 = vmatprep.mubr.f32.mxu0 0.0
        %6985 = vmatmul.mubr.f32.gmra.mxu0 %v6775
        %v6986 = vpop.f32.mrf.mxu0
        %v6987 = vadd.f32 0.0, %v6986
        %v6988 = vpop.f32.mrf.mxu0
        %6989 = vmatprep.mubr.f32.mxu0 0.0
        %6990 = vmatmul.mubr.f32.gmra.mxu0 %v6776
        %v6991 = vpop.f32.mrf.mxu0
        %v6992 = vadd.f32 0.0, %v6991
        %v6993 = vpop.f32.mrf.mxu0
        %6994 = vmatprep.mubr.f32.mxu0 0.0
        %6995 = vmatmul.mubr.f32.gmra.mxu0 %v6777
        %v6996 = vpop.f32.mrf.mxu0
        %v6997 = vadd.f32 0.0, %v6996
        %v6998 = vpop.f32.mrf.mxu0
        %6999 = vmatprep.mubr.f32.mxu0 0.0
        %7000 = vmatmul.mubr.f32.gmra.mxu0 %v6778
        %v7001 = vpop.f32.mrf.mxu0
        %v7002 = vadd.f32 0.0, %v7001
        %v7003 = vpop.f32.mrf.mxu0
        %7004 = vmatprep.mubr.f32.mxu0 0.0
        %7005 = vmatmul.mubr.f32.gmra.mxu0 %v6779
        %v7006 = vpop.f32.mrf.mxu0
        %v7007 = vadd.f32 0.0, %v7006
        %v7008 = vpop.f32.mrf.mxu0
        %7009 = vmatprep.mubr.f32.mxu0 0.0
        %7010 = vmatmul.mubr.f32.gmra.mxu0 %v6780
        %v7011 = vpop.f32.mrf.mxu0
        %v7012 = vadd.f32 0.0, %v7011
        %v7013 = vpop.f32.mrf.mxu0
        %7014 = vmatprep.mubr.f32.mxu0 0.0
        %7015 = vmatmul.mubr.f32.gmra.mxu0 %v6781
        %v7016 = vpop.f32.mrf.mxu0
        %v7017 = vadd.f32 0.0, %v7016
        %v7018 = vpop.f32.mrf.mxu0
        %7019 = vmatprep.mubr.f32.mxu0 0.0
        %7020 = vmatmul.mubr.f32.gmra.mxu0 %v6782
        %v7021 = vpop.f32.mrf.mxu0
        %v7022 = vadd.f32 0.0, %v7021
        %v7023 = vpop.f32.mrf.mxu0
        %7024 = vmatprep.mubr.f32.mxu0 0.0
        %7025 = vmatmul.mubr.f32.gmra.mxu0 %v6783
        %v7026 = vpop.f32.mrf.mxu0
        %v7027 = vadd.f32 0.0, %v7026
        %v7028 = vpop.f32.mrf.mxu0
        %7029 = vmatprep.mubr.f32.mxu0 0.0
        %7030 = vmatmul.mubr.f32.gmra.mxu0 %v6784
        %v7031 = vpop.f32.mrf.mxu0
        %v7032 = vadd.f32 0.0, %v7031
        %v7033 = vpop.f32.mrf.mxu0
        %7034 = vmatprep.mubr.f32.mxu0 0.0
        %7035 = vmatmul.mubr.f32.gmra.mxu0 %v6785
        %v7036 = vpop.f32.mrf.mxu0
        %v7037 = vadd.f32 0.0, %v7036
        %v7038 = vpop.f32.mrf.mxu0
        %7039 = vmatprep.mubr.f32.mxu0 0.0
        %7040 = vmatmul.mubr.f32.gmra.mxu0 %v6786
        %v7041 = vpop.f32.mrf.mxu0
        %v7042 = vadd.f32 0.0, %v7041
        %v7043 = vpop.f32.mrf.mxu0
        %7044 = vmatprep.mubr.f32.mxu0 0.0
        %7045 = vmatmul.mubr.f32.gmra.mxu0 %v6787
        %v7046 = vpop.f32.mrf.mxu0
        %v7047 = vadd.f32 0.0, %v7046
        %v7048 = vpop.f32.mrf.mxu0
        %7049 = vmatprep.mubr.f32.mxu0 0.0
        %7050 = vmatmul.mubr.f32.gmra.mxu0 %v6788
        %v7051 = vpop.f32.mrf.mxu0
        %v7052 = vadd.f32 0.0, %v7051
        %v7053 = vpop.f32.mrf.mxu0
        %7054 = vmatprep.mubr.f32.mxu0 0.0
        %7055 = vmatmul.mubr.f32.gmra.mxu0 %v6789
        %v7056 = vpop.f32.mrf.mxu0
        %v7057 = vadd.f32 0.0, %v7056
        %v7058 = vpop.f32.mrf.mxu0
        %7059 = vmatprep.mubr.f32.mxu0 0.0
        %7060 = vmatmul.mubr.f32.gmra.mxu0 %v6790
        %v7061 = vpop.f32.mrf.mxu0
        %v7062 = vadd.f32 0.0, %v7061
        %v7063 = vpop.f32.mrf.mxu0
        %7064 = vmatprep.mubr.f32.mxu0 0.0
        %7065 = vmatmul.mubr.f32.gmra.mxu0 %v6791
        %v7066 = vpop.f32.mrf.mxu0
        %v7067 = vadd.f32 0.0, %v7066
        %v7068 = vpop.f32.mrf.mxu0
        %7069 = vmatprep.mubr.f32.mxu0 0.0
        %7070 = vmatmul.mubr.f32.gmra.mxu0 %v6792
        %v7071 = vpop.f32.mrf.mxu0
        %v7072 = vadd.f32 0.0, %v7071
        %v7073 = vpop.f32.mrf.mxu0
        %7074 = vdwg.mxu0
        %7075 = vmatprep.subr.mxu0 0.0
        %7076 = vmatpush1.msra.mxu0 %v6752
        %7077 = vmatprep.subr.mxu0 0.0
        %7078 = vmatpush1.msra.mxu0 %v6751
        %7079 = vmatprep.subr.mxu0 0.0
        %7080 = vmatpush1.msra.mxu0 %v6750
        %7081 = vmatprep.subr.mxu0 0.0
        %7082 = vmatpush1.msra.mxu0 %v6749
        %7083 = vmatprep.subr.mxu0 0.0
        %7084 = vmatpush1.msra.mxu0 %v6748
        %7085 = vmatprep.subr.mxu0 0.0
        %7086 = vmatpush1.msra.mxu0 %v6747
        %7087 = vmatprep.subr.mxu0 0.0
        %7088 = vmatpush1.msra.mxu0 %v6746
        %7089 = vmatprep.subr.mxu0 0.0
        %7090 = vmatpush1.msra.mxu0 %v6745
        %7091 = vmatprep.subr.mxu0 0.0
        %7092 = vmatpush1.msra.mxu0 %v6744
        %7093 = vmatprep.subr.mxu0 0.0
        %7094 = vmatpush1.msra.mxu0 %v6743
        %7095 = vmatprep.subr.mxu0 0.0
        %7096 = vmatpush1.msra.mxu0 %v6742
        %7097 = vmatprep.subr.mxu0 0.0
        %7098 = vmatpush1.msra.mxu0 %v6741
        %7099 = vmatprep.subr.mxu0 0.0
        %7100 = vmatpush1.msra.mxu0 %v6740
        %7101 = vmatprep.subr.mxu0 0.0
        %7102 = vmatpush1.msra.mxu0 %v6739
        %7103 = vmatprep.subr.mxu0 0.0
        %7104 = vmatpush1.msra.mxu0 %v6738
        %7105 = vmatprep.subr.mxu0 0.0
        %7106 = vmatpush1.msra.mxu0 %v6737
        %7107 = vmatprep.subr.mxu0 0.0
        %7108 = vmatpush2.msra.mxu0 0.0
        %7109 = vmatprep.subr.mxu0 0.0
        %7110 = vmatpush2.msra.mxu0 0.0
        %7111 = vmatprep.subr.mxu0 0.0
        %7112 = vmatpush2.msra.mxu0 0.0
        %7113 = vmatprep.subr.mxu0 0.0
        %7114 = vmatpush2.msra.mxu0 0.0
        %7115 = vmatprep.subr.mxu0 0.0
        %7116 = vmatpush2.msra.mxu0 0.0
        %7117 = vmatprep.subr.mxu0 0.0
        %7118 = vmatpush2.msra.mxu0 0.0
        %7119 = vmatprep.subr.mxu0 0.0
        %7120 = vmatpush2.msra.mxu0 0.0
        %7121 = vmatprep.subr.mxu0 0.0
        %7122 = vmatpush2.msra.mxu0 0.0
        %7123 = vmatprep.subr.mxu0 0.0
        %7124 = vmatpush2.msra.mxu0 0.0
        %7125 = vmatprep.subr.mxu0 0.0
        %7126 = vmatpush2.msra.mxu0 0.0
        %7127 = vmatprep.subr.mxu0 0.0
        %7128 = vmatpush2.msra.mxu0 0.0
        %7129 = vmatprep.subr.mxu0 0.0
        %7130 = vmatpush2.msra.mxu0 0.0
        %7131 = vmatprep.subr.mxu0 0.0
        %7132 = vmatpush2.msra.mxu0 0.0
        %7133 = vmatprep.subr.mxu0 0.0
        %7134 = vmatpush2.msra.mxu0 0.0
        %7135 = vmatprep.subr.mxu0 0.0
        %7136 = vmatpush2.msra.mxu0 0.0
        %7137 = vmatprep.subr.mxu0 0.0
        %7138 = vmatpush2.msra.mxu0 0.0
        %7139 = vmatprep.mubr.f32.mxu0 0.0
        %7140 = vmatmul.mubr.f32.gmra.mxu0 %v6696
        %v7141 = vpop.f32.mrf.mxu0
        %v7142 = vadd.f32 %v6877, %v7141
        %v7143 = vpop.f32.mrf.mxu0
        %7144 = vmatprep.mubr.f32.mxu0 0.0
        %7145 = vmatmul.mubr.f32.gmra.mxu0 %v6697
        %v7146 = vpop.f32.mrf.mxu0
        %v7147 = vadd.f32 %v6882, %v7146
        %v7148 = vpop.f32.mrf.mxu0
        %7149 = vmatprep.mubr.f32.mxu0 0.0
        %7150 = vmatmul.mubr.f32.gmra.mxu0 %v6698
        %v7151 = vpop.f32.mrf.mxu0
        %v7152 = vadd.f32 %v6887, %v7151
        %v7153 = vpop.f32.mrf.mxu0
        %7154 = vmatprep.mubr.f32.mxu0 0.0
        %7155 = vmatmul.mubr.f32.gmra.mxu0 %v6699
        %v7156 = vpop.f32.mrf.mxu0
        %v7157 = vadd.f32 %v6892, %v7156
        %v7158 = vpop.f32.mrf.mxu0
        %7159 = vmatprep.mubr.f32.mxu0 0.0
        %7160 = vmatmul.mubr.f32.gmra.mxu0 %v6700
        %v7161 = vpop.f32.mrf.mxu0
        %v7162 = vadd.f32 %v6897, %v7161
        %v7163 = vpop.f32.mrf.mxu0
        %7164 = vmatprep.mubr.f32.mxu0 0.0
        %7165 = vmatmul.mubr.f32.gmra.mxu0 %v6701
        %v7166 = vpop.f32.mrf.mxu0
        %v7167 = vadd.f32 %v6902, %v7166
        %v7168 = vpop.f32.mrf.mxu0
        %7169 = vmatprep.mubr.f32.mxu0 0.0
        %7170 = vmatmul.mubr.f32.gmra.mxu0 %v6702
        %v7171 = vpop.f32.mrf.mxu0
        %v7172 = vadd.f32 %v6907, %v7171
        %v7173 = vpop.f32.mrf.mxu0
        %7174 = vmatprep.mubr.f32.mxu0 0.0
        %7175 = vmatmul.mubr.f32.gmra.mxu0 %v6703
        %v7176 = vpop.f32.mrf.mxu0
        %v7177 = vadd.f32 %v6912, %v7176
        %v7178 = vpop.f32.mrf.mxu0
        %7179 = vmatprep.mubr.f32.mxu0 0.0
        %7180 = vmatmul.mubr.f32.gmra.mxu0 %v6704
        %v7181 = vpop.f32.mrf.mxu0
        %v7182 = vadd.f32 %v6917, %v7181
        %v7183 = vpop.f32.mrf.mxu0
        %7184 = vmatprep.mubr.f32.mxu0 0.0
        %7185 = vmatmul.mubr.f32.gmra.mxu0 %v6705
        %v7186 = vpop.f32.mrf.mxu0
        %v7187 = vadd.f32 %v6922, %v7186
        %v7188 = vpop.f32.mrf.mxu0
        %7189 = vmatprep.mubr.f32.mxu0 0.0
        %7190 = vmatmul.mubr.f32.gmra.mxu0 %v6706
        %v7191 = vpop.f32.mrf.mxu0
        %v7192 = vadd.f32 %v6927, %v7191
        %v7193 = vpop.f32.mrf.mxu0
        %7194 = vmatprep.mubr.f32.mxu0 0.0
        %7195 = vmatmul.mubr.f32.gmra.mxu0 %v6707
        %v7196 = vpop.f32.mrf.mxu0
        %v7197 = vadd.f32 %v6932, %v7196
        %v7198 = vpop.f32.mrf.mxu0
        %7199 = vmatprep.mubr.f32.mxu0 0.0
        %7200 = vmatmul.mubr.f32.gmra.mxu0 %v6708
        %v7201 = vpop.f32.mrf.mxu0
        %v7202 = vadd.f32 %v6937, %v7201
        %v7203 = vpop.f32.mrf.mxu0
        %7204 = vmatprep.mubr.f32.mxu0 0.0
        %7205 = vmatmul.mubr.f32.gmra.mxu0 %v6709
        %v7206 = vpop.f32.mrf.mxu0
        %v7207 = vadd.f32 %v6942, %v7206
        %v7208 = vpop.f32.mrf.mxu0
        %7209 = vmatprep.mubr.f32.mxu0 0.0
        %7210 = vmatmul.mubr.f32.gmra.mxu0 %v6710
        %v7211 = vpop.f32.mrf.mxu0
        %v7212 = vadd.f32 %v6947, %v7211
        %v7213 = vpop.f32.mrf.mxu0
        %7214 = vmatprep.mubr.f32.mxu0 0.0
        %7215 = vmatmul.mubr.f32.gmra.mxu0 %v6711
        %v7216 = vpop.f32.mrf.mxu0
        %v7217 = vadd.f32 %v6952, %v7216
        %v7218 = vpop.f32.mrf.mxu0
        %7219 = vmatprep.mubr.f32.mxu0 0.0
        %7220 = vmatmul.mubr.f32.gmra.mxu0 %v6712
        %v7221 = vpop.f32.mrf.mxu0
        %v7222 = vadd.f32 %v6957, %v7221
        %v7223 = vpop.f32.mrf.mxu0
        %7224 = vmatprep.mubr.f32.mxu0 0.0
        %7225 = vmatmul.mubr.f32.gmra.mxu0 %v6713
        %v7226 = vpop.f32.mrf.mxu0
        %v7227 = vadd.f32 %v6962, %v7226
        %v7228 = vpop.f32.mrf.mxu0
        %7229 = vmatprep.mubr.f32.mxu0 0.0
        %7230 = vmatmul.mubr.f32.gmra.mxu0 %v6714
        %v7231 = vpop.f32.mrf.mxu0
        %v7232 = vadd.f32 %v6967, %v7231
        %v7233 = vpop.f32.mrf.mxu0
        %7234 = vmatprep.mubr.f32.mxu0 0.0
        %7235 = vmatmul.mubr.f32.gmra.mxu0 %v6715
        %v7236 = vpop.f32.mrf.mxu0
        %v7237 = vadd.f32 %v6972, %v7236
        %v7238 = vpop.f32.mrf.mxu0
        %7239 = vmatprep.mubr.f32.mxu0 0.0
        %7240 = vmatmul.mubr.f32.gmra.mxu0 %v6716
        %v7241 = vpop.f32.mrf.mxu0
        %v7242 = vadd.f32 %v6977, %v7241
        %v7243 = vpop.f32.mrf.mxu0
        %7244 = vmatprep.mubr.f32.mxu0 0.0
        %7245 = vmatmul.mubr.f32.gmra.mxu0 %v6717
        %v7246 = vpop.f32.mrf.mxu0
        %v7247 = vadd.f32 %v6982, %v7246
        %v7248 = vpop.f32.mrf.mxu0
        %7249 = vmatprep.mubr.f32.mxu0 0.0
        %7250 = vmatmul.mubr.f32.gmra.mxu0 %v6718
        %v7251 = vpop.f32.mrf.mxu0
        %v7252 = vadd.f32 %v6987, %v7251
        %v7253 = vpop.f32.mrf.mxu0
        %7254 = vmatprep.mubr.f32.mxu0 0.0
        %7255 = vmatmul.mubr.f32.gmra.mxu0 %v6719
        %v7256 = vpop.f32.mrf.mxu0
        %v7257 = vadd.f32 %v6992, %v7256
        %v7258 = vpop.f32.mrf.mxu0
        %7259 = vmatprep.mubr.f32.mxu0 0.0
        %7260 = vmatmul.mubr.f32.gmra.mxu0 %v6720
        %v7261 = vpop.f32.mrf.mxu0
        %v7262 = vadd.f32 %v6997, %v7261
        %v7263 = vpop.f32.mrf.mxu0
        %7264 = vmatprep.mubr.f32.mxu0 0.0
        %7265 = vmatmul.mubr.f32.gmra.mxu0 %v6721
        %v7266 = vpop.f32.mrf.mxu0
        %v7267 = vadd.f32 %v7002, %v7266
        %v7268 = vpop.f32.mrf.mxu0
        %7269 = vmatprep.mubr.f32.mxu0 0.0
        %7270 = vmatmul.mubr.f32.gmra.mxu0 %v6722
        %v7271 = vpop.f32.mrf.mxu0
        %v7272 = vadd.f32 %v7007, %v7271
        %v7273 = vpop.f32.mrf.mxu0
        %7274 = vmatprep.mubr.f32.mxu0 0.0
        %7275 = vmatmul.mubr.f32.gmra.mxu0 %v6723
        %v7276 = vpop.f32.mrf.mxu0
        %v7277 = vadd.f32 %v7012, %v7276
        %v7278 = vpop.f32.mrf.mxu0
        %7279 = vmatprep.mubr.f32.mxu0 0.0
        %7280 = vmatmul.mubr.f32.gmra.mxu0 %v6724
        %v7281 = vpop.f32.mrf.mxu0
        %v7282 = vadd.f32 %v7017, %v7281
        %v7283 = vpop.f32.mrf.mxu0
        %7284 = vmatprep.mubr.f32.mxu0 0.0
        %7285 = vmatmul.mubr.f32.gmra.mxu0 %v6725
        %v7286 = vpop.f32.mrf.mxu0
        %v7287 = vadd.f32 %v7022, %v7286
        %v7288 = vpop.f32.mrf.mxu0
        %7289 = vmatprep.mubr.f32.mxu0 0.0
        %7290 = vmatmul.mubr.f32.gmra.mxu0 %v6726
        %v7291 = vpop.f32.mrf.mxu0
        %v7292 = vadd.f32 %v7027, %v7291
        %v7293 = vpop.f32.mrf.mxu0
        %7294 = vmatprep.mubr.f32.mxu0 0.0
        %7295 = vmatmul.mubr.f32.gmra.mxu0 %v6727
        %v7296 = vpop.f32.mrf.mxu0
        %v7297 = vadd.f32 %v7032, %v7296
        %v7298 = vpop.f32.mrf.mxu0
        %7299 = vmatprep.mubr.f32.mxu0 0.0
        %7300 = vmatmul.mubr.f32.gmra.mxu0 %v6728
        %v7301 = vpop.f32.mrf.mxu0
        %v7302 = vadd.f32 %v7037, %v7301
        %v7303 = vpop.f32.mrf.mxu0
        %7304 = vmatprep.mubr.f32.mxu0 0.0
        %7305 = vmatmul.mubr.f32.gmra.mxu0 %v6729
        %v7306 = vpop.f32.mrf.mxu0
        %v7307 = vadd.f32 %v7042, %v7306
        %v7308 = vpop.f32.mrf.mxu0
        %7309 = vmatprep.mubr.f32.mxu0 0.0
        %7310 = vmatmul.mubr.f32.gmra.mxu0 %v6730
        %v7311 = vpop.f32.mrf.mxu0
        %v7312 = vadd.f32 %v7047, %v7311
        %v7313 = vpop.f32.mrf.mxu0
        %7314 = vmatprep.mubr.f32.mxu0 0.0
        %7315 = vmatmul.mubr.f32.gmra.mxu0 %v6731
        %v7316 = vpop.f32.mrf.mxu0
        %v7317 = vadd.f32 %v7052, %v7316
        %v7318 = vpop.f32.mrf.mxu0
        %7319 = vmatprep.mubr.f32.mxu0 0.0
        %7320 = vmatmul.mubr.f32.gmra.mxu0 %v6732
        %v7321 = vpop.f32.mrf.mxu0
        %v7322 = vadd.f32 %v7057, %v7321
        %v7323 = vpop.f32.mrf.mxu0
        %7324 = vmatprep.mubr.f32.mxu0 0.0
        %7325 = vmatmul.mubr.f32.gmra.mxu0 %v6733
        %v7326 = vpop.f32.mrf.mxu0
        %v7327 = vadd.f32 %v7062, %v7326
        %v7328 = vpop.f32.mrf.mxu0
        %7329 = vmatprep.mubr.f32.mxu0 0.0
        %7330 = vmatmul.mubr.f32.gmra.mxu0 %v6734
        %v7331 = vpop.f32.mrf.mxu0
        %v7332 = vadd.f32 %v7067, %v7331
        %v7333 = vpop.f32.mrf.mxu0
        %7334 = vmatprep.mubr.f32.mxu0 0.0
        %7335 = vmatmul.mubr.f32.gmra.mxu0 %v6735
        %v7336 = vpop.f32.mrf.mxu0
        %v7337 = vadd.f32 %v7072, %v7336
        %v7338 = vpop.f32.mrf.mxu0
        %7339 = vdwg.mxu0
        %v7340 = vld [vmem:[#allocation3 + $0x2a] sm:$0xff]
        %v7341 = vld [vmem:[#allocation3 + $0x32] sm:$0xff]
        %v7342 = vld [vmem:[#allocation3 + $0x3a] sm:$0xff]
        %v7343 = vld [vmem:[#allocation3 + $0x42] sm:$0xff]
        %v7344 = vld [vmem:[#allocation3 + $0x4a] sm:$0xff]
        %v7345 = vld [vmem:[#allocation3 + $0x52] sm:$0xff]
        %v7346 = vld [vmem:[#allocation3 + $0x5a] sm:$0xff]
        %v7347 = vld [vmem:[#allocation3 + $0x62] sm:$0xff]
        %v7348 = vld [vmem:[#allocation3 + $0x6a] sm:$0xff]
        %v7349 = vld [vmem:[#allocation3 + $0x72] sm:$0xff]
        %v7350 = vld [vmem:[#allocation3 + $0x7a] sm:$0xff]
        %v7351 = vld [vmem:[#allocation3 + $0x82] sm:$0xff]
        %v7352 = vld [vmem:[#allocation3 + $0x8a] sm:$0xff]
        %v7353 = vld [vmem:[#allocation3 + $0x92] sm:$0xff]
        %v7354 = vld [vmem:[#allocation3 + $0x9a] sm:$0xff]
        %v7355 = vld [vmem:[#allocation3 + $0xa2] sm:$0xff]
        %v7356 = vld [vmem:[#allocation3 + $0xaa] sm:$0xff]
        %v7357 = vld [vmem:[#allocation3 + $0xb2] sm:$0xff]
        %v7358 = vld [vmem:[#allocation3 + $0xba] sm:$0xff]
        %v7359 = vld [vmem:[#allocation3 + $0xc2] sm:$0xff]
        %v7360 = vld [vmem:[#allocation3 + $0xca] sm:$0xff]
        %v7361 = vld [vmem:[#allocation3 + $0xd2] sm:$0xff]
        %v7362 = vld [vmem:[#allocation3 + $0xda] sm:$0xff]
        %v7363 = vld [vmem:[#allocation3 + $0xe2] sm:$0xff]
        %v7364 = vld [vmem:[#allocation3 + $0xea] sm:$0xff]
        %v7365 = vld [vmem:[#allocation3 + $0xf2] sm:$0xff]
        %v7366 = vld [vmem:[#allocation3 + $0xfa] sm:$0xff]
        %v7367 = vld [vmem:[#allocation3 + $0x102] sm:$0xff]
        %v7368 = vld [vmem:[#allocation3 + $0x10a] sm:$0xff]
        %v7369 = vld [vmem:[#allocation3 + $0x112] sm:$0xff]
        %v7370 = vld [vmem:[#allocation3 + $0x11a] sm:$0xff]
        %v7371 = vld [vmem:[#allocation3 + $0x122] sm:$0xff]
        %v7372 = vld [vmem:[#allocation3 + $0x12a] sm:$0xff]
        %v7373 = vld [vmem:[#allocation3 + $0x132] sm:$0xff]
        %v7374 = vld [vmem:[#allocation3 + $0x13a] sm:$0xff]
        %v7375 = vld [vmem:[#allocation3 + $0x142] sm:$0xff]
        %v7376 = vld [vmem:[#allocation3 + $0x14a] sm:$0xff]
        %v7377 = vld [vmem:[#allocation3 + $0x152] sm:$0xff]
        %v7378 = vld [vmem:[#allocation3 + $0x15a] sm:$0xff]
        %v7379 = vld [vmem:[#allocation3 + $0x162] sm:$0xff]
        %s7380 = scalar_lea.vmem [#allocation9], 1024
        %v7381 = vld [vmem:[%s7380] sm:$0xff]
        %v7382 = vld [vmem:[%s7380 + $0x8] sm:$0xff]
        %v7383 = vld [vmem:[%s7380 + $0x10] sm:$0xff]
        %v7384 = vld [vmem:[%s7380 + $0x18] sm:$0xff]
        %v7385 = vld [vmem:[%s7380 + $0x20] sm:$0xff]
        %v7386 = vld [vmem:[%s7380 + $0x28] sm:$0xff]
        %v7387 = vld [vmem:[%s7380 + $0x30] sm:$0xff]
        %v7388 = vld [vmem:[%s7380 + $0x38] sm:$0xff]
        %v7389 = vld [vmem:[%s7380 + $0x40] sm:$0xff]
        %v7390 = vld [vmem:[%s7380 + $0x48] sm:$0xff]
        %v7391 = vld [vmem:[%s7380 + $0x50] sm:$0xff]
        %v7392 = vld [vmem:[%s7380 + $0x58] sm:$0xff]
        %v7393 = vld [vmem:[%s7380 + $0x60] sm:$0xff]
        %v7394 = vld [vmem:[%s7380 + $0x68] sm:$0xff]
        %v7395 = vld [vmem:[%s7380 + $0x70] sm:$0xff]
        %v7396 = vld [vmem:[%s7380 + $0x78] sm:$0xff]
        %7397 = vmatprep.subr.mxu0 0.0
        %7398 = vmatpush1.msra.mxu0 %v7396
        %7399 = vmatprep.subr.mxu0 0.0
        %7400 = vmatpush1.msra.mxu0 %v7395
        %7401 = vmatprep.subr.mxu0 0.0
        %7402 = vmatpush1.msra.mxu0 %v7394
        %7403 = vmatprep.subr.mxu0 0.0
        %7404 = vmatpush1.msra.mxu0 %v7393
        %7405 = vmatprep.subr.mxu0 0.0
        %7406 = vmatpush1.msra.mxu0 %v7392
        %7407 = vmatprep.subr.mxu0 0.0
        %7408 = vmatpush1.msra.mxu0 %v7391
        %7409 = vmatprep.subr.mxu0 0.0
        %7410 = vmatpush1.msra.mxu0 %v7390
        %7411 = vmatprep.subr.mxu0 0.0
        %7412 = vmatpush1.msra.mxu0 %v7389
        %7413 = vmatprep.subr.mxu0 0.0
        %7414 = vmatpush1.msra.mxu0 %v7388
        %7415 = vmatprep.subr.mxu0 0.0
        %7416 = vmatpush1.msra.mxu0 %v7387
        %7417 = vmatprep.subr.mxu0 0.0
        %7418 = vmatpush1.msra.mxu0 %v7386
        %7419 = vmatprep.subr.mxu0 0.0
        %7420 = vmatpush1.msra.mxu0 %v7385
        %7421 = vmatprep.subr.mxu0 0.0
        %7422 = vmatpush1.msra.mxu0 %v7384
        %7423 = vmatprep.subr.mxu0 0.0
        %7424 = vmatpush1.msra.mxu0 %v7383
        %7425 = vmatprep.subr.mxu0 0.0
        %7426 = vmatpush1.msra.mxu0 %v7382
        %7427 = vmatprep.subr.mxu0 0.0
        %7428 = vmatpush1.msra.mxu0 %v7381
        %7429 = vmatprep.subr.mxu0 0.0
        %7430 = vmatpush2.msra.mxu0 0.0
        %7431 = vmatprep.subr.mxu0 0.0
        %7432 = vmatpush2.msra.mxu0 0.0
        %7433 = vmatprep.subr.mxu0 0.0
        %7434 = vmatpush2.msra.mxu0 0.0
        %7435 = vmatprep.subr.mxu0 0.0
        %7436 = vmatpush2.msra.mxu0 0.0
        %7437 = vmatprep.subr.mxu0 0.0
        %7438 = vmatpush2.msra.mxu0 0.0
        %7439 = vmatprep.subr.mxu0 0.0
        %7440 = vmatpush2.msra.mxu0 0.0
        %7441 = vmatprep.subr.mxu0 0.0
        %7442 = vmatpush2.msra.mxu0 0.0
        %7443 = vmatprep.subr.mxu0 0.0
        %7444 = vmatpush2.msra.mxu0 0.0
        %7445 = vmatprep.subr.mxu0 0.0
        %7446 = vmatpush2.msra.mxu0 0.0
        %7447 = vmatprep.subr.mxu0 0.0
        %7448 = vmatpush2.msra.mxu0 0.0
        %7449 = vmatprep.subr.mxu0 0.0
        %7450 = vmatpush2.msra.mxu0 0.0
        %7451 = vmatprep.subr.mxu0 0.0
        %7452 = vmatpush2.msra.mxu0 0.0
        %7453 = vmatprep.subr.mxu0 0.0
        %7454 = vmatpush2.msra.mxu0 0.0
        %7455 = vmatprep.subr.mxu0 0.0
        %7456 = vmatpush2.msra.mxu0 0.0
        %7457 = vmatprep.subr.mxu0 0.0
        %7458 = vmatpush2.msra.mxu0 0.0
        %7459 = vmatprep.subr.mxu0 0.0
        %7460 = vmatpush2.msra.mxu0 0.0
        %7461 = vmatprep.mubr.f32.mxu0 0.0
        %7462 = vmatmul.mubr.f32.gmra.mxu0 %v7340
        %v7463 = vpop.f32.mrf.mxu0
        %v7464 = vadd.f32 0.0, %v7463
        %v7465 = vpop.f32.mrf.mxu0
        %7466 = vmatprep.mubr.f32.mxu0 0.0
        %7467 = vmatmul.mubr.f32.gmra.mxu0 %v7341
        %v7468 = vpop.f32.mrf.mxu0
        %v7469 = vadd.f32 0.0, %v7468
        %v7470 = vpop.f32.mrf.mxu0
        %7471 = vmatprep.mubr.f32.mxu0 0.0
        %7472 = vmatmul.mubr.f32.gmra.mxu0 %v7342
        %v7473 = vpop.f32.mrf.mxu0
        %v7474 = vadd.f32 0.0, %v7473
        %v7475 = vpop.f32.mrf.mxu0
        %7476 = vmatprep.mubr.f32.mxu0 0.0
        %7477 = vmatmul.mubr.f32.gmra.mxu0 %v7343
        %v7478 = vpop.f32.mrf.mxu0
        %v7479 = vadd.f32 0.0, %v7478
        %v7480 = vpop.f32.mrf.mxu0
        %7481 = vmatprep.mubr.f32.mxu0 0.0
        %7482 = vmatmul.mubr.f32.gmra.mxu0 %v7344
        %v7483 = vpop.f32.mrf.mxu0
        %v7484 = vadd.f32 0.0, %v7483
        %v7485 = vpop.f32.mrf.mxu0
        %7486 = vmatprep.mubr.f32.mxu0 0.0
        %7487 = vmatmul.mubr.f32.gmra.mxu0 %v7345
        %v7488 = vpop.f32.mrf.mxu0
        %v7489 = vadd.f32 0.0, %v7488
        %v7490 = vpop.f32.mrf.mxu0
        %7491 = vmatprep.mubr.f32.mxu0 0.0
        %7492 = vmatmul.mubr.f32.gmra.mxu0 %v7346
        %v7493 = vpop.f32.mrf.mxu0
        %v7494 = vadd.f32 0.0, %v7493
        %v7495 = vpop.f32.mrf.mxu0
        %7496 = vmatprep.mubr.f32.mxu0 0.0
        %7497 = vmatmul.mubr.f32.gmra.mxu0 %v7347
        %v7498 = vpop.f32.mrf.mxu0
        %v7499 = vadd.f32 0.0, %v7498
        %v7500 = vpop.f32.mrf.mxu0
        %7501 = vmatprep.mubr.f32.mxu0 0.0
        %7502 = vmatmul.mubr.f32.gmra.mxu0 %v7348
        %v7503 = vpop.f32.mrf.mxu0
        %v7504 = vadd.f32 0.0, %v7503
        %v7505 = vpop.f32.mrf.mxu0
        %7506 = vmatprep.mubr.f32.mxu0 0.0
        %7507 = vmatmul.mubr.f32.gmra.mxu0 %v7349
        %v7508 = vpop.f32.mrf.mxu0
        %v7509 = vadd.f32 0.0, %v7508
        %v7510 = vpop.f32.mrf.mxu0
        %7511 = vmatprep.mubr.f32.mxu0 0.0
        %7512 = vmatmul.mubr.f32.gmra.mxu0 %v7350
        %v7513 = vpop.f32.mrf.mxu0
        %v7514 = vadd.f32 0.0, %v7513
        %v7515 = vpop.f32.mrf.mxu0
        %7516 = vmatprep.mubr.f32.mxu0 0.0
        %7517 = vmatmul.mubr.f32.gmra.mxu0 %v7351
        %v7518 = vpop.f32.mrf.mxu0
        %v7519 = vadd.f32 0.0, %v7518
        %v7520 = vpop.f32.mrf.mxu0
        %7521 = vmatprep.mubr.f32.mxu0 0.0
        %7522 = vmatmul.mubr.f32.gmra.mxu0 %v7352
        %v7523 = vpop.f32.mrf.mxu0
        %v7524 = vadd.f32 0.0, %v7523
        %v7525 = vpop.f32.mrf.mxu0
        %7526 = vmatprep.mubr.f32.mxu0 0.0
        %7527 = vmatmul.mubr.f32.gmra.mxu0 %v7353
        %v7528 = vpop.f32.mrf.mxu0
        %v7529 = vadd.f32 0.0, %v7528
        %v7530 = vpop.f32.mrf.mxu0
        %7531 = vmatprep.mubr.f32.mxu0 0.0
        %7532 = vmatmul.mubr.f32.gmra.mxu0 %v7354
        %v7533 = vpop.f32.mrf.mxu0
        %v7534 = vadd.f32 0.0, %v7533
        %v7535 = vpop.f32.mrf.mxu0
        %7536 = vmatprep.mubr.f32.mxu0 0.0
        %7537 = vmatmul.mubr.f32.gmra.mxu0 %v7355
        %v7538 = vpop.f32.mrf.mxu0
        %v7539 = vadd.f32 0.0, %v7538
        %v7540 = vpop.f32.mrf.mxu0
        %7541 = vmatprep.mubr.f32.mxu0 0.0
        %7542 = vmatmul.mubr.f32.gmra.mxu0 %v7356
        %v7543 = vpop.f32.mrf.mxu0
        %v7544 = vadd.f32 0.0, %v7543
        %v7545 = vpop.f32.mrf.mxu0
        %7546 = vmatprep.mubr.f32.mxu0 0.0
        %7547 = vmatmul.mubr.f32.gmra.mxu0 %v7357
        %v7548 = vpop.f32.mrf.mxu0
        %v7549 = vadd.f32 0.0, %v7548
        %v7550 = vpop.f32.mrf.mxu0
        %7551 = vmatprep.mubr.f32.mxu0 0.0
        %7552 = vmatmul.mubr.f32.gmra.mxu0 %v7358
        %v7553 = vpop.f32.mrf.mxu0
        %v7554 = vadd.f32 0.0, %v7553
        %v7555 = vpop.f32.mrf.mxu0
        %7556 = vmatprep.mubr.f32.mxu0 0.0
        %7557 = vmatmul.mubr.f32.gmra.mxu0 %v7359
        %v7558 = vpop.f32.mrf.mxu0
        %v7559 = vadd.f32 0.0, %v7558
        %v7560 = vpop.f32.mrf.mxu0
        %7561 = vmatprep.mubr.f32.mxu0 0.0
        %7562 = vmatmul.mubr.f32.gmra.mxu0 %v7360
        %v7563 = vpop.f32.mrf.mxu0
        %v7564 = vadd.f32 0.0, %v7563
        %v7565 = vpop.f32.mrf.mxu0
        %7566 = vmatprep.mubr.f32.mxu0 0.0
        %7567 = vmatmul.mubr.f32.gmra.mxu0 %v7361
        %v7568 = vpop.f32.mrf.mxu0
        %v7569 = vadd.f32 0.0, %v7568
        %v7570 = vpop.f32.mrf.mxu0
        %7571 = vmatprep.mubr.f32.mxu0 0.0
        %7572 = vmatmul.mubr.f32.gmra.mxu0 %v7362
        %v7573 = vpop.f32.mrf.mxu0
        %v7574 = vadd.f32 0.0, %v7573
        %v7575 = vpop.f32.mrf.mxu0
        %7576 = vmatprep.mubr.f32.mxu0 0.0
        %7577 = vmatmul.mubr.f32.gmra.mxu0 %v7363
        %v7578 = vpop.f32.mrf.mxu0
        %v7579 = vadd.f32 0.0, %v7578
        %v7580 = vpop.f32.mrf.mxu0
        %7581 = vmatprep.mubr.f32.mxu0 0.0
        %7582 = vmatmul.mubr.f32.gmra.mxu0 %v7364
        %v7583 = vpop.f32.mrf.mxu0
        %v7584 = vadd.f32 0.0, %v7583
        %v7585 = vpop.f32.mrf.mxu0
        %7586 = vmatprep.mubr.f32.mxu0 0.0
        %7587 = vmatmul.mubr.f32.gmra.mxu0 %v7365
        %v7588 = vpop.f32.mrf.mxu0
        %v7589 = vadd.f32 0.0, %v7588
        %v7590 = vpop.f32.mrf.mxu0
        %7591 = vmatprep.mubr.f32.mxu0 0.0
        %7592 = vmatmul.mubr.f32.gmra.mxu0 %v7366
        %v7593 = vpop.f32.mrf.mxu0
        %v7594 = vadd.f32 0.0, %v7593
        %v7595 = vpop.f32.mrf.mxu0
        %7596 = vmatprep.mubr.f32.mxu0 0.0
        %7597 = vmatmul.mubr.f32.gmra.mxu0 %v7367
        %v7598 = vpop.f32.mrf.mxu0
        %v7599 = vadd.f32 0.0, %v7598
        %v7600 = vpop.f32.mrf.mxu0
        %7601 = vmatprep.mubr.f32.mxu0 0.0
        %7602 = vmatmul.mubr.f32.gmra.mxu0 %v7368
        %v7603 = vpop.f32.mrf.mxu0
        %v7604 = vadd.f32 0.0, %v7603
        %v7605 = vpop.f32.mrf.mxu0
        %7606 = vmatprep.mubr.f32.mxu0 0.0
        %7607 = vmatmul.mubr.f32.gmra.mxu0 %v7369
        %v7608 = vpop.f32.mrf.mxu0
        %v7609 = vadd.f32 0.0, %v7608
        %v7610 = vpop.f32.mrf.mxu0
        %7611 = vmatprep.mubr.f32.mxu0 0.0
        %7612 = vmatmul.mubr.f32.gmra.mxu0 %v7370
        %v7613 = vpop.f32.mrf.mxu0
        %v7614 = vadd.f32 0.0, %v7613
        %v7615 = vpop.f32.mrf.mxu0
        %7616 = vmatprep.mubr.f32.mxu0 0.0
        %7617 = vmatmul.mubr.f32.gmra.mxu0 %v7371
        %v7618 = vpop.f32.mrf.mxu0
        %v7619 = vadd.f32 0.0, %v7618
        %v7620 = vpop.f32.mrf.mxu0
        %7621 = vmatprep.mubr.f32.mxu0 0.0
        %7622 = vmatmul.mubr.f32.gmra.mxu0 %v7372
        %v7623 = vpop.f32.mrf.mxu0
        %v7624 = vadd.f32 0.0, %v7623
        %v7625 = vpop.f32.mrf.mxu0
        %7626 = vmatprep.mubr.f32.mxu0 0.0
        %7627 = vmatmul.mubr.f32.gmra.mxu0 %v7373
        %v7628 = vpop.f32.mrf.mxu0
        %v7629 = vadd.f32 0.0, %v7628
        %v7630 = vpop.f32.mrf.mxu0
        %7631 = vmatprep.mubr.f32.mxu0 0.0
        %7632 = vmatmul.mubr.f32.gmra.mxu0 %v7374
        %v7633 = vpop.f32.mrf.mxu0
        %v7634 = vadd.f32 0.0, %v7633
        %v7635 = vpop.f32.mrf.mxu0
        %7636 = vmatprep.mubr.f32.mxu0 0.0
        %7637 = vmatmul.mubr.f32.gmra.mxu0 %v7375
        %v7638 = vpop.f32.mrf.mxu0
        %v7639 = vadd.f32 0.0, %v7638
        %v7640 = vpop.f32.mrf.mxu0
        %7641 = vmatprep.mubr.f32.mxu0 0.0
        %7642 = vmatmul.mubr.f32.gmra.mxu0 %v7376
        %v7643 = vpop.f32.mrf.mxu0
        %v7644 = vadd.f32 0.0, %v7643
        %v7645 = vpop.f32.mrf.mxu0
        %7646 = vmatprep.mubr.f32.mxu0 0.0
        %7647 = vmatmul.mubr.f32.gmra.mxu0 %v7377
        %v7648 = vpop.f32.mrf.mxu0
        %v7649 = vadd.f32 0.0, %v7648
        %v7650 = vpop.f32.mrf.mxu0
        %7651 = vmatprep.mubr.f32.mxu0 0.0
        %7652 = vmatmul.mubr.f32.gmra.mxu0 %v7378
        %v7653 = vpop.f32.mrf.mxu0
        %v7654 = vadd.f32 0.0, %v7653
        %v7655 = vpop.f32.mrf.mxu0
        %7656 = vmatprep.mubr.f32.mxu0 0.0
        %7657 = vmatmul.mubr.f32.gmra.mxu0 %v7379
        %v7658 = vpop.f32.mrf.mxu0
        %v7659 = vadd.f32 0.0, %v7658
        %v7660 = vpop.f32.mrf.mxu0
        %7661 = vdwg.mxu0
        %v7662 = vadd.f32 %v7142, %v7464
        %v7663 = vadd.f32 %v7147, %v7469
        %v7664 = vadd.f32 %v7152, %v7474
        %v7665 = vadd.f32 %v7157, %v7479
        %v7666 = vadd.f32 %v7162, %v7484
        %v7667 = vadd.f32 %v7167, %v7489
        %v7668 = vadd.f32 %v7172, %v7494
        %v7669 = vadd.f32 %v7177, %v7499
        %v7670 = vadd.f32 %v7182, %v7504
        %v7671 = vadd.f32 %v7187, %v7509
        %v7672 = vadd.f32 %v7192, %v7514
        %v7673 = vadd.f32 %v7197, %v7519
        %v7674 = vadd.f32 %v7202, %v7524
        %v7675 = vadd.f32 %v7207, %v7529
        %v7676 = vadd.f32 %v7212, %v7534
        %v7677 = vadd.f32 %v7217, %v7539
        %v7678 = vadd.f32 %v7222, %v7544
        %v7679 = vadd.f32 %v7227, %v7549
        %v7680 = vadd.f32 %v7232, %v7554
        %v7681 = vadd.f32 %v7237, %v7559
        %v7682 = vadd.f32 %v7242, %v7564
        %v7683 = vadd.f32 %v7247, %v7569
        %v7684 = vadd.f32 %v7252, %v7574
        %v7685 = vadd.f32 %v7257, %v7579
        %v7686 = vadd.f32 %v7262, %v7584
        %v7687 = vadd.f32 %v7267, %v7589
        %v7688 = vadd.f32 %v7272, %v7594
        %v7689 = vadd.f32 %v7277, %v7599
        %v7690 = vadd.f32 %v7282, %v7604
        %v7691 = vadd.f32 %v7287, %v7609
        %v7692 = vadd.f32 %v7292, %v7614
        %v7693 = vadd.f32 %v7297, %v7619
        %v7694 = vadd.f32 %v7302, %v7624
        %v7695 = vadd.f32 %v7307, %v7629
        %v7696 = vadd.f32 %v7312, %v7634
        %v7697 = vadd.f32 %v7317, %v7639
        %v7698 = vadd.f32 %v7322, %v7644
        %v7699 = vadd.f32 %v7327, %v7649
        %v7700 = vadd.f32 %v7332, %v7654
        %v7701 = vadd.f32 %v7337, %v7659
        %v7702 = vld [vmem:[%s352] sm:$0xff]
        %v7703 = vld [vmem:[%s352 + $0x8] sm:$0xff]
        %v7704 = vld [vmem:[%s352 + $0x10] sm:$0xff]
        %v7705 = vld [vmem:[%s352 + $0x18] sm:$0xff]
        %v7706 = vld [vmem:[%s352 + $0x20] sm:$0xff]
        %v7707 = vld [vmem:[%s352 + $0x28] sm:$0xff]
        %v7708 = vld [vmem:[%s352 + $0x30] sm:$0xff]
        %v7709 = vld [vmem:[%s352 + $0x38] sm:$0xff]
        %v7710 = vld [vmem:[%s352 + $0x40] sm:$0xff]
        %v7711 = vld [vmem:[%s352 + $0x48] sm:$0xff]
        %v7712 = vld [vmem:[%s352 + $0x50] sm:$0xff]
        %v7713 = vld [vmem:[%s352 + $0x58] sm:$0xff]
        %v7714 = vld [vmem:[%s352 + $0x60] sm:$0xff]
        %v7715 = vld [vmem:[%s352 + $0x68] sm:$0xff]
        %v7716 = vld [vmem:[%s352 + $0x70] sm:$0xff]
        %v7717 = vld [vmem:[%s352 + $0x78] sm:$0xff]
        %v7718 = vld [vmem:[%s352 + $0x80] sm:$0xff]
        %v7719 = vld [vmem:[%s352 + $0x88] sm:$0xff]
        %v7720 = vld [vmem:[%s352 + $0x90] sm:$0xff]
        %v7721 = vld [vmem:[%s352 + $0x98] sm:$0xff]
        %v7722 = vld [vmem:[%s352 + $0xa0] sm:$0xff]
        %v7723 = vld [vmem:[%s352 + $0xa8] sm:$0xff]
        %v7724 = vld [vmem:[%s352 + $0xb0] sm:$0xff]
        %v7725 = vld [vmem:[%s352 + $0xb8] sm:$0xff]
        %v7726 = vld [vmem:[%s352 + $0xc0] sm:$0xff]
        %v7727 = vld [vmem:[%s352 + $0xc8] sm:$0xff]
        %v7728 = vld [vmem:[%s352 + $0xd0] sm:$0xff]
        %v7729 = vld [vmem:[%s352 + $0xd8] sm:$0xff]
        %v7730 = vld [vmem:[%s352 + $0xe0] sm:$0xff]
        %v7731 = vld [vmem:[%s352 + $0xe8] sm:$0xff]
        %v7732 = vld [vmem:[%s352 + $0xf0] sm:$0xff]
        %v7733 = vld [vmem:[%s352 + $0xf8] sm:$0xff]
        %v7734 = vld [vmem:[%s352 + $0x100] sm:$0xff]
        %v7735 = vld [vmem:[%s352 + $0x108] sm:$0xff]
        %v7736 = vld [vmem:[%s352 + $0x110] sm:$0xff]
        %v7737 = vld [vmem:[%s352 + $0x118] sm:$0xff]
        %v7738 = vld [vmem:[%s352 + $0x120] sm:$0xff]
        %v7739 = vld [vmem:[%s352 + $0x128] sm:$0xff]
        %v7740 = vld [vmem:[%s352 + $0x130] sm:$0xff]
        %v7741 = vld [vmem:[%s352 + $0x138] sm:$0xff]
        %v7742 = vadd.f32 %v7702, %v7662
        %v7743 = vadd.f32 %v7703, %v7663
        %v7744 = vadd.f32 %v7704, %v7664
        %v7745 = vadd.f32 %v7705, %v7665
        %v7746 = vadd.f32 %v7706, %v7666
        %v7747 = vadd.f32 %v7707, %v7667
        %v7748 = vadd.f32 %v7708, %v7668
        %v7749 = vadd.f32 %v7709, %v7669
        %v7750 = vadd.f32 %v7710, %v7670
        %v7751 = vadd.f32 %v7711, %v7671
        %v7752 = vadd.f32 %v7712, %v7672
        %v7753 = vadd.f32 %v7713, %v7673
        %v7754 = vadd.f32 %v7714, %v7674
        %v7755 = vadd.f32 %v7715, %v7675
        %v7756 = vadd.f32 %v7716, %v7676
        %v7757 = vadd.f32 %v7717, %v7677
        %v7758 = vadd.f32 %v7718, %v7678
        %v7759 = vadd.f32 %v7719, %v7679
        %v7760 = vadd.f32 %v7720, %v7680
        %v7761 = vadd.f32 %v7721, %v7681
        %v7762 = vadd.f32 %v7722, %v7682
        %v7763 = vadd.f32 %v7723, %v7683
        %v7764 = vadd.f32 %v7724, %v7684
        %v7765 = vadd.f32 %v7725, %v7685
        %v7766 = vadd.f32 %v7726, %v7686
        %v7767 = vadd.f32 %v7727, %v7687
        %v7768 = vadd.f32 %v7728, %v7688
        %v7769 = vadd.f32 %v7729, %v7689
        %v7770 = vadd.f32 %v7730, %v7690
        %v7771 = vadd.f32 %v7731, %v7691
        %v7772 = vadd.f32 %v7732, %v7692
        %v7773 = vadd.f32 %v7733, %v7693
        %v7774 = vadd.f32 %v7734, %v7694
        %v7775 = vadd.f32 %v7735, %v7695
        %v7776 = vadd.f32 %v7736, %v7696
        %v7777 = vadd.f32 %v7737, %v7697
        %v7778 = vadd.f32 %v7738, %v7698
        %v7779 = vadd.f32 %v7739, %v7699
        %v7780 = vadd.f32 %v7740, %v7700
        %v7781 = vadd.f32 %v7741, %v7701
        %7782 = vst [vmem:[%s352] sm:$0xff] %v7742
        %7783 = vst [vmem:[%s352 + $0x8] sm:$0xff] %v7743
        %7784 = vst [vmem:[%s352 + $0x10] sm:$0xff] %v7744
        %7785 = vst [vmem:[%s352 + $0x18] sm:$0xff] %v7745
        %7786 = vst [vmem:[%s352 + $0x20] sm:$0xff] %v7746
        %7787 = vst [vmem:[%s352 + $0x28] sm:$0xff] %v7747
        %7788 = vst [vmem:[%s352 + $0x30] sm:$0xff] %v7748
        %7789 = vst [vmem:[%s352 + $0x38] sm:$0xff] %v7749
        %7790 = vst [vmem:[%s352 + $0x40] sm:$0xff] %v7750
        %7791 = vst [vmem:[%s352 + $0x48] sm:$0xff] %v7751
        %7792 = vst [vmem:[%s352 + $0x50] sm:$0xff] %v7752
        %7793 = vst [vmem:[%s352 + $0x58] sm:$0xff] %v7753
        %7794 = vst [vmem:[%s352 + $0x60] sm:$0xff] %v7754
        %7795 = vst [vmem:[%s352 + $0x68] sm:$0xff] %v7755
        %7796 = vst [vmem:[%s352 + $0x70] sm:$0xff] %v7756
        %7797 = vst [vmem:[%s352 + $0x78] sm:$0xff] %v7757
        %7798 = vst [vmem:[%s352 + $0x80] sm:$0xff] %v7758
        %7799 = vst [vmem:[%s352 + $0x88] sm:$0xff] %v7759
        %7800 = vst [vmem:[%s352 + $0x90] sm:$0xff] %v7760
        %7801 = vst [vmem:[%s352 + $0x98] sm:$0xff] %v7761
        %7802 = vst [vmem:[%s352 + $0xa0] sm:$0xff] %v7762
        %7803 = vst [vmem:[%s352 + $0xa8] sm:$0xff] %v7763
        %7804 = vst [vmem:[%s352 + $0xb0] sm:$0xff] %v7764
        %7805 = vst [vmem:[%s352 + $0xb8] sm:$0xff] %v7765
        %7806 = vst [vmem:[%s352 + $0xc0] sm:$0xff] %v7766
        %7807 = vst [vmem:[%s352 + $0xc8] sm:$0xff] %v7767
        %7808 = vst [vmem:[%s352 + $0xd0] sm:$0xff] %v7768
        %7809 = vst [vmem:[%s352 + $0xd8] sm:$0xff] %v7769
        %7810 = vst [vmem:[%s352 + $0xe0] sm:$0xff] %v7770
        %7811 = vst [vmem:[%s352 + $0xe8] sm:$0xff] %v7771
        %7812 = vst [vmem:[%s352 + $0xf0] sm:$0xff] %v7772
        %7813 = vst [vmem:[%s352 + $0xf8] sm:$0xff] %v7773
        %7814 = vst [vmem:[%s352 + $0x100] sm:$0xff] %v7774
        %7815 = vst [vmem:[%s352 + $0x108] sm:$0xff] %v7775
        %7816 = vst [vmem:[%s352 + $0x110] sm:$0xff] %v7776
        %7817 = vst [vmem:[%s352 + $0x118] sm:$0xff] %v7777
        %7818 = vst [vmem:[%s352 + $0x120] sm:$0xff] %v7778
        %7819 = vst [vmem:[%s352 + $0x128] sm:$0xff] %v7779
        %7820 = vst [vmem:[%s352 + $0x130] sm:$0xff] %v7780
        %7821 = vst [vmem:[%s352 + $0x138] sm:$0xff] %v7781
        %v7822 = vld [vmem:[%s312 + $0x2a] sm:$0xff]
        %v7823 = vld [vmem:[%s312 + $0x32] sm:$0xff]
        %v7824 = vld [vmem:[%s312 + $0x3a] sm:$0xff]
        %v7825 = vld [vmem:[%s312 + $0x42] sm:$0xff]
        %v7826 = vld [vmem:[%s312 + $0x4a] sm:$0xff]
        %v7827 = vld [vmem:[%s312 + $0x52] sm:$0xff]
        %v7828 = vld [vmem:[%s312 + $0x5a] sm:$0xff]
        %v7829 = vld [vmem:[%s312 + $0x62] sm:$0xff]
        %v7830 = vld [vmem:[%s312 + $0x6a] sm:$0xff]
        %v7831 = vld [vmem:[%s312 + $0x72] sm:$0xff]
        %v7832 = vld [vmem:[%s312 + $0x7a] sm:$0xff]
        %v7833 = vld [vmem:[%s312 + $0x82] sm:$0xff]
        %v7834 = vld [vmem:[%s312 + $0x8a] sm:$0xff]
        %v7835 = vld [vmem:[%s312 + $0x92] sm:$0xff]
        %v7836 = vld [vmem:[%s312 + $0x9a] sm:$0xff]
        %v7837 = vld [vmem:[%s312 + $0xa2] sm:$0xff]
        %v7838 = vld [vmem:[%s312 + $0xaa] sm:$0xff]
        %v7839 = vld [vmem:[%s312 + $0xb2] sm:$0xff]
        %v7840 = vld [vmem:[%s312 + $0xba] sm:$0xff]
        %v7841 = vld [vmem:[%s312 + $0xc2] sm:$0xff]
        %v7842 = vld [vmem:[%s312 + $0xca] sm:$0xff]
        %v7843 = vld [vmem:[%s312 + $0xd2] sm:$0xff]
        %v7844 = vld [vmem:[%s312 + $0xda] sm:$0xff]
        %v7845 = vld [vmem:[%s312 + $0xe2] sm:$0xff]
        %v7846 = vld [vmem:[%s312 + $0xea] sm:$0xff]
        %v7847 = vld [vmem:[%s312 + $0xf2] sm:$0xff]
        %v7848 = vld [vmem:[%s312 + $0xfa] sm:$0xff]
        %v7849 = vld [vmem:[%s312 + $0x102] sm:$0xff]
        %v7850 = vld [vmem:[%s312 + $0x10a] sm:$0xff]
        %v7851 = vld [vmem:[%s312 + $0x112] sm:$0xff]
        %v7852 = vld [vmem:[%s312 + $0x11a] sm:$0xff]
        %v7853 = vld [vmem:[%s312 + $0x122] sm:$0xff]
        %v7854 = vld [vmem:[%s312 + $0x12a] sm:$0xff]
        %v7855 = vld [vmem:[%s312 + $0x132] sm:$0xff]
        %v7856 = vld [vmem:[%s312 + $0x13a] sm:$0xff]
        %v7857 = vld [vmem:[%s312 + $0x142] sm:$0xff]
        %v7858 = vld [vmem:[%s312 + $0x14a] sm:$0xff]
        %v7859 = vld [vmem:[%s312 + $0x152] sm:$0xff]
        %v7860 = vld [vmem:[%s312 + $0x15a] sm:$0xff]
        %v7861 = vld [vmem:[%s312 + $0x162] sm:$0xff]
        %v7862 = vld [vmem:[%s352] sm:$0xff]
        %v7863 = vld [vmem:[%s352 + $0x8] sm:$0xff]
        %v7864 = vld [vmem:[%s352 + $0x10] sm:$0xff]
        %v7865 = vld [vmem:[%s352 + $0x18] sm:$0xff]
        %v7866 = vld [vmem:[%s352 + $0x20] sm:$0xff]
        %v7867 = vld [vmem:[%s352 + $0x28] sm:$0xff]
        %v7868 = vld [vmem:[%s352 + $0x30] sm:$0xff]
        %v7869 = vld [vmem:[%s352 + $0x38] sm:$0xff]
        %v7870 = vld [vmem:[%s352 + $0x40] sm:$0xff]
        %v7871 = vld [vmem:[%s352 + $0x48] sm:$0xff]
        %v7872 = vld [vmem:[%s352 + $0x50] sm:$0xff]
        %v7873 = vld [vmem:[%s352 + $0x58] sm:$0xff]
        %v7874 = vld [vmem:[%s352 + $0x60] sm:$0xff]
        %v7875 = vld [vmem:[%s352 + $0x68] sm:$0xff]
        %v7876 = vld [vmem:[%s352 + $0x70] sm:$0xff]
        %v7877 = vld [vmem:[%s352 + $0x78] sm:$0xff]
        %v7878 = vld [vmem:[%s352 + $0x80] sm:$0xff]
        %v7879 = vld [vmem:[%s352 + $0x88] sm:$0xff]
        %v7880 = vld [vmem:[%s352 + $0x90] sm:$0xff]
        %v7881 = vld [vmem:[%s352 + $0x98] sm:$0xff]
        %v7882 = vld [vmem:[%s352 + $0xa0] sm:$0xff]
        %v7883 = vld [vmem:[%s352 + $0xa8] sm:$0xff]
        %v7884 = vld [vmem:[%s352 + $0xb0] sm:$0xff]
        %v7885 = vld [vmem:[%s352 + $0xb8] sm:$0xff]
        %v7886 = vld [vmem:[%s352 + $0xc0] sm:$0xff]
        %v7887 = vld [vmem:[%s352 + $0xc8] sm:$0xff]
        %v7888 = vld [vmem:[%s352 + $0xd0] sm:$0xff]
        %v7889 = vld [vmem:[%s352 + $0xd8] sm:$0xff]
        %v7890 = vld [vmem:[%s352 + $0xe0] sm:$0xff]
        %v7891 = vld [vmem:[%s352 + $0xe8] sm:$0xff]
        %v7892 = vld [vmem:[%s352 + $0xf0] sm:$0xff]
        %v7893 = vld [vmem:[%s352 + $0xf8] sm:$0xff]
        %v7894 = vld [vmem:[%s352 + $0x100] sm:$0xff]
        %v7895 = vld [vmem:[%s352 + $0x108] sm:$0xff]
        %v7896 = vld [vmem:[%s352 + $0x110] sm:$0xff]
        %v7897 = vld [vmem:[%s352 + $0x118] sm:$0xff]
        %v7898 = vld [vmem:[%s352 + $0x120] sm:$0xff]
        %v7899 = vld [vmem:[%s352 + $0x128] sm:$0xff]
        %v7900 = vld [vmem:[%s352 + $0x130] sm:$0xff]
        %v7901 = vld [vmem:[%s352 + $0x138] sm:$0xff]
        %v7902 = vld [vmem:[%s6] sm:$0x1]
        %v7904 = vlaneseq
        %v7905 = vshrl.u32 %v7904, 7
        %v7906 = vsub.s32 0, %v7905
        %v7907 = vrot.slane %v7902, %v7906
        %v7909 = vmul.f32 %v7862, %v7907
        %v7910 = vmul.f32 %v7863, %v7907
        %v7911 = vmul.f32 %v7864, %v7907
        %v7912 = vmul.f32 %v7865, %v7907
        %v7913 = vmul.f32 %v7866, %v7907
        %v7914 = vmul.f32 %v7867, %v7907
        %v7915 = vmul.f32 %v7868, %v7907
        %v7916 = vmul.f32 %v7869, %v7907
        %v7917 = vmul.f32 %v7870, %v7907
        %v7918 = vmul.f32 %v7871, %v7907
        %v7919 = vmul.f32 %v7872, %v7907
        %v7920 = vmul.f32 %v7873, %v7907
        %v7921 = vmul.f32 %v7874, %v7907
        %v7922 = vmul.f32 %v7875, %v7907
        %v7923 = vmul.f32 %v7876, %v7907
        %v7924 = vmul.f32 %v7877, %v7907
        %v7925 = vmul.f32 %v7878, %v7907
        %v7926 = vmul.f32 %v7879, %v7907
        %v7927 = vmul.f32 %v7880, %v7907
        %v7928 = vmul.f32 %v7881, %v7907
        %v7929 = vmul.f32 %v7882, %v7907
        %v7930 = vmul.f32 %v7883, %v7907
        %v7931 = vmul.f32 %v7884, %v7907
        %v7932 = vmul.f32 %v7885, %v7907
        %v7933 = vmul.f32 %v7886, %v7907
        %v7934 = vmul.f32 %v7887, %v7907
        %v7935 = vmul.f32 %v7888, %v7907
        %v7936 = vmul.f32 %v7889, %v7907
        %v7937 = vmul.f32 %v7890, %v7907
        %v7938 = vmul.f32 %v7891, %v7907
        %v7939 = vmul.f32 %v7892, %v7907
        %v7940 = vmul.f32 %v7893, %v7907
        %v7941 = vmul.f32 %v7894, %v7907
        %v7942 = vmul.f32 %v7895, %v7907
        %v7943 = vmul.f32 %v7896, %v7907
        %v7944 = vmul.f32 %v7897, %v7907
        %v7945 = vmul.f32 %v7898, %v7907
        %v7946 = vmul.f32 %v7899, %v7907
        %v7947 = vmul.f32 %v7900, %v7907
        %v7948 = vmul.f32 %v7901, %v7907
        %v7949 = vld [vmem:[%s7] sm:$0x1]
        %v7951 = vlaneseq
        %v7952 = vshrl.u32 %v7951, 7
        %v7953 = vsub.s32 0, %v7952
        %v7954 = vrot.slane %v7949, %v7953
        %v7956 = vadd.f32 %v7909, %v7954
        %v7957 = vadd.f32 %v7910, %v7954
        %v7958 = vadd.f32 %v7911, %v7954
        %v7959 = vadd.f32 %v7912, %v7954
        %v7960 = vadd.f32 %v7913, %v7954
        %v7961 = vadd.f32 %v7914, %v7954
        %v7962 = vadd.f32 %v7915, %v7954
        %v7963 = vadd.f32 %v7916, %v7954
        %v7964 = vadd.f32 %v7917, %v7954
        %v7965 = vadd.f32 %v7918, %v7954
        %v7966 = vadd.f32 %v7919, %v7954
        %v7967 = vadd.f32 %v7920, %v7954
        %v7968 = vadd.f32 %v7921, %v7954
        %v7969 = vadd.f32 %v7922, %v7954
        %v7970 = vadd.f32 %v7923, %v7954
        %v7971 = vadd.f32 %v7924, %v7954
        %v7972 = vadd.f32 %v7925, %v7954
        %v7973 = vadd.f32 %v7926, %v7954
        %v7974 = vadd.f32 %v7927, %v7954
        %v7975 = vadd.f32 %v7928, %v7954
        %v7976 = vadd.f32 %v7929, %v7954
        %v7977 = vadd.f32 %v7930, %v7954
        %v7978 = vadd.f32 %v7931, %v7954
        %v7979 = vadd.f32 %v7932, %v7954
        %v7980 = vadd.f32 %v7933, %v7954
        %v7981 = vadd.f32 %v7934, %v7954
        %v7982 = vadd.f32 %v7935, %v7954
        %v7983 = vadd.f32 %v7936, %v7954
        %v7984 = vadd.f32 %v7937, %v7954
        %v7985 = vadd.f32 %v7938, %v7954
        %v7986 = vadd.f32 %v7939, %v7954
        %v7987 = vadd.f32 %v7940, %v7954
        %v7988 = vadd.f32 %v7941, %v7954
        %v7989 = vadd.f32 %v7942, %v7954
        %v7990 = vadd.f32 %v7943, %v7954
        %v7991 = vadd.f32 %v7944, %v7954
        %v7992 = vadd.f32 %v7945, %v7954
        %v7993 = vadd.f32 %v7946, %v7954
        %v7994 = vadd.f32 %v7947, %v7954
        %v7995 = vadd.f32 %v7948, %v7954
        %v7996 = vadd.f32 %v7956, %v7822
        %v7997 = vadd.f32 %v7957, %v7823
        %v7998 = vadd.f32 %v7958, %v7824
        %v7999 = vadd.f32 %v7959, %v7825
        %v8000 = vadd.f32 %v7960, %v7826
        %v8001 = vadd.f32 %v7961, %v7827
        %v8002 = vadd.f32 %v7962, %v7828
        %v8003 = vadd.f32 %v7963, %v7829
        %v8004 = vadd.f32 %v7964, %v7830
        %v8005 = vadd.f32 %v7965, %v7831
        %v8006 = vadd.f32 %v7966, %v7832
        %v8007 = vadd.f32 %v7967, %v7833
        %v8008 = vadd.f32 %v7968, %v7834
        %v8009 = vadd.f32 %v7969, %v7835
        %v8010 = vadd.f32 %v7970, %v7836
        %v8011 = vadd.f32 %v7971, %v7837
        %v8012 = vadd.f32 %v7972, %v7838
        %v8013 = vadd.f32 %v7973, %v7839
        %v8014 = vadd.f32 %v7974, %v7840
        %v8015 = vadd.f32 %v7975, %v7841
        %v8016 = vadd.f32 %v7976, %v7842
        %v8017 = vadd.f32 %v7977, %v7843
        %v8018 = vadd.f32 %v7978, %v7844
        %v8019 = vadd.f32 %v7979, %v7845
        %v8020 = vadd.f32 %v7980, %v7846
        %v8021 = vadd.f32 %v7981, %v7847
        %v8022 = vadd.f32 %v7982, %v7848
        %v8023 = vadd.f32 %v7983, %v7849
        %v8024 = vadd.f32 %v7984, %v7850
        %v8025 = vadd.f32 %v7985, %v7851
        %v8026 = vadd.f32 %v7986, %v7852
        %v8027 = vadd.f32 %v7987, %v7853
        %v8028 = vadd.f32 %v7988, %v7854
        %v8029 = vadd.f32 %v7989, %v7855
        %v8030 = vadd.f32 %v7990, %v7856
        %v8031 = vadd.f32 %v7991, %v7857
        %v8032 = vadd.f32 %v7992, %v7858
        %v8033 = vadd.f32 %v7993, %v7859
        %v8034 = vadd.f32 %v7994, %v7860
        %v8035 = vadd.f32 %v7995, %v7861
        %v8036 = vmax.f32 %v7996, 0.0
        %v8037 = vmax.f32 %v7997, 0.0
        %v8038 = vmax.f32 %v7998, 0.0
        %v8039 = vmax.f32 %v7999, 0.0
        %v8040 = vmax.f32 %v8000, 0.0
        %v8041 = vmax.f32 %v8001, 0.0
        %v8042 = vmax.f32 %v8002, 0.0
        %v8043 = vmax.f32 %v8003, 0.0
        %v8044 = vmax.f32 %v8004, 0.0
        %v8045 = vmax.f32 %v8005, 0.0
        %v8046 = vmax.f32 %v8006, 0.0
        %v8047 = vmax.f32 %v8007, 0.0
        %v8048 = vmax.f32 %v8008, 0.0
        %v8049 = vmax.f32 %v8009, 0.0
        %v8050 = vmax.f32 %v8010, 0.0
        %v8051 = vmax.f32 %v8011, 0.0
        %v8052 = vmax.f32 %v8012, 0.0
        %v8053 = vmax.f32 %v8013, 0.0
        %v8054 = vmax.f32 %v8014, 0.0
        %v8055 = vmax.f32 %v8015, 0.0
        %v8056 = vmax.f32 %v8016, 0.0
        %v8057 = vmax.f32 %v8017, 0.0
        %v8058 = vmax.f32 %v8018, 0.0
        %v8059 = vmax.f32 %v8019, 0.0
        %v8060 = vmax.f32 %v8020, 0.0
        %v8061 = vmax.f32 %v8021, 0.0
        %v8062 = vmax.f32 %v8022, 0.0
        %v8063 = vmax.f32 %v8023, 0.0
        %v8064 = vmax.f32 %v8024, 0.0
        %v8065 = vmax.f32 %v8025, 0.0
        %v8066 = vmax.f32 %v8026, 0.0
        %v8067 = vmax.f32 %v8027, 0.0
        %v8068 = vmax.f32 %v8028, 0.0
        %v8069 = vmax.f32 %v8029, 0.0
        %v8070 = vmax.f32 %v8030, 0.0
        %v8071 = vmax.f32 %v8031, 0.0
        %v8072 = vmax.f32 %v8032, 0.0
        %v8073 = vmax.f32 %v8033, 0.0
        %v8074 = vmax.f32 %v8034, 0.0
        %v8075 = vmax.f32 %v8035, 0.0
        %8076 = vst [vmem:[%s352] sm:$0xff] %v8036
        %8077 = vst [vmem:[%s352 + $0x8] sm:$0xff] %v8037
        %8078 = vst [vmem:[%s352 + $0x10] sm:$0xff] %v8038
        %8079 = vst [vmem:[%s352 + $0x18] sm:$0xff] %v8039
        %8080 = vst [vmem:[%s352 + $0x20] sm:$0xff] %v8040
        %8081 = vst [vmem:[%s352 + $0x28] sm:$0xff] %v8041
        %8082 = vst [vmem:[%s352 + $0x30] sm:$0xff] %v8042
        %8083 = vst [vmem:[%s352 + $0x38] sm:$0xff] %v8043
        %8084 = vst [vmem:[%s352 + $0x40] sm:$0xff] %v8044
        %8085 = vst [vmem:[%s352 + $0x48] sm:$0xff] %v8045
        %8086 = vst [vmem:[%s352 + $0x50] sm:$0xff] %v8046
        %8087 = vst [vmem:[%s352 + $0x58] sm:$0xff] %v8047
        %8088 = vst [vmem:[%s352 + $0x60] sm:$0xff] %v8048
        %8089 = vst [vmem:[%s352 + $0x68] sm:$0xff] %v8049
        %8090 = vst [vmem:[%s352 + $0x70] sm:$0xff] %v8050
        %8091 = vst [vmem:[%s352 + $0x78] sm:$0xff] %v8051
        %8092 = vst [vmem:[%s352 + $0x80] sm:$0xff] %v8052
        %8093 = vst [vmem:[%s352 + $0x88] sm:$0xff] %v8053
        %8094 = vst [vmem:[%s352 + $0x90] sm:$0xff] %v8054
        %8095 = vst [vmem:[%s352 + $0x98] sm:$0xff] %v8055
        %8096 = vst [vmem:[%s352 + $0xa0] sm:$0xff] %v8056
        %8097 = vst [vmem:[%s352 + $0xa8] sm:$0xff] %v8057
        %8098 = vst [vmem:[%s352 + $0xb0] sm:$0xff] %v8058
        %8099 = vst [vmem:[%s352 + $0xb8] sm:$0xff] %v8059
        %8100 = vst [vmem:[%s352 + $0xc0] sm:$0xff] %v8060
        %8101 = vst [vmem:[%s352 + $0xc8] sm:$0xff] %v8061
        %8102 = vst [vmem:[%s352 + $0xd0] sm:$0xff] %v8062
        %8103 = vst [vmem:[%s352 + $0xd8] sm:$0xff] %v8063
        %8104 = vst [vmem:[%s352 + $0xe0] sm:$0xff] %v8064
        %8105 = vst [vmem:[%s352 + $0xe8] sm:$0xff] %v8065
        %8106 = vst [vmem:[%s352 + $0xf0] sm:$0xff] %v8066
        %8107 = vst [vmem:[%s352 + $0xf8] sm:$0xff] %v8067
        %8108 = vst [vmem:[%s352 + $0x100] sm:$0xff] %v8068
        %8109 = vst [vmem:[%s352 + $0x108] sm:$0xff] %v8069
        %8110 = vst [vmem:[%s352 + $0x110] sm:$0xff] %v8070
        %8111 = vst [vmem:[%s352 + $0x118] sm:$0xff] %v8071
        %8112 = vst [vmem:[%s352 + $0x120] sm:$0xff] %v8072
        %8113 = vst [vmem:[%s352 + $0x128] sm:$0xff] %v8073
        %8114 = vst [vmem:[%s352 + $0x130] sm:$0xff] %v8074
        %8115 = vst [vmem:[%s352 + $0x138] sm:$0xff] %v8075
        %s8116 = sand.u32 %s207, 1
        %s8117 = scalar_lea.sflag [#allocation6], %s8116
        %s8118 = sand.u32 %s207, 1
        %s8119 = smul.addr %s8118, 320
        %s8120 = scalar_lea.vmem [#allocation10], %s8119
        // Predicated region
        $region65: #{tpu_custom_call.1} parent=51 // pred_check
          %p8121 = pneg %p217
        $region66: #{tpu_custom_call.1} parent=51 // pred_check_branch
          %8123 = sbr.rel (%p8121) target = $region68
        $region67: #{tpu_custom_call.1} parent=51 // pred_region
          %s8125 = ssub.s32 5120, 5120
          %8126 = vsyncadd %s8117, %s8125
          %s8127 = smul.addr %s26, 40
          %s8128 = smul.addr %s8127, 128
          %s8129 = scalar_lea.hbm %s8, %s8128
          %s8130 = sshll.u32 %s8120, 4
          %s8131 = int_to_ptr.vmem [resolvable:$true] %s8130
          %8136 = dma.vmem_to_hbm [thread:$0]  %s8131, 5120, %s8129, %s8117, 128, 128, 8
        $region68: #{tpu_custom_call.1} parent=51 // pred_fallthru
          _
      $region52: #{tpu_custom_call.1} parent=5 // pred_fallthru
        _
      %p8137 = scmp.le.s32.totalorder 2, %s21
      // Predicated region
      $region69: #{tpu_custom_call.1} parent=5 // pred_check
        %p8138 = pneg %p8137
      $region70: #{tpu_custom_call.1} parent=5 // pred_check_branch
        %8140 = sbr.rel (%p8138) target = $region72
      $region71: #{tpu_custom_call.1} parent=5 // pred_region
        %s8141 = ssub.s32 %s21, 2
        // Predicated region
        $region73: #{tpu_custom_call.1} parent=71 // pred_check
          %p8142 = pneg %p223
        $region74: #{tpu_custom_call.1} parent=71 // pred_check_branch
          %8144 = sbr.rel (%p8142) target = $region76
        $region75: #{tpu_custom_call.1} parent=71 // pred_region
          %s8145 = sand.u32 %s208, 1
          %s8146 = scalar_lea.sflag [#allocation6], %s8145
          %s8147 = sand.u32 %s208, 1
          %s8148 = smul.addr %s8147, 320
          %s8149 = scalar_lea.vmem [#allocation10], %s8148
          %8150 = dma.done %s8146, 5120
        $region76: #{tpu_custom_call.1} parent=71 // pred_fallthru
          _
      $region72: #{tpu_custom_call.1} parent=5 // pred_fallthru
        _
    $region6: #{tpu_custom_call.1} parent=1 // loop_footer
      %s25 = sadd.s32 1, %s21
    $region7: #{tpu_custom_call.1} parent=1 // loop_footer_branch
      %20 = sbr.rel target = $region3
    $region8: #{tpu_custom_call.1} parent=1 // loop_exit
      _
    %8151 = vsyncpa [#allocation5], 1
    %s8152 = scalar_lea.sflag [#allocation5], 1
    %8153 = vsyncpa %s8152, 1
    %8154 = vsyncpa [#allocation8], 1
    %8155 = vsyncpa [#allocation6], 1
    %s8156 = scalar_lea.sflag [#allocation6], 1
    %8157 = vsyncpa %s8156, 1

</llo_original>
